<compile_context>
chip_gen: v5e
topology: v5e:2x2
jax: 0.10.0
libtpu: 0.0.40
codegen_flags: <defaults>
</compile_context>

<pallas_src>
import numpy as np

import jax
import jax.numpy as jnp
from jax.experimental import pallas as pl
from jax.experimental.pallas import tpu as pltpu

LANES = 128                 # channel padding / lane width
_LAYER_HW = (16, 8, 4)      # spatial size (H == W) seen by conv1 / conv2 / conv3
_LAYER_BASE = (24, 16, 8)   # zero rows before/after each activation block (>= W+1, mult of 8)


# ---------------------------------------------------------------------------
# Fused kernel
# ---------------------------------------------------------------------------
def _shifted(pad_ref, base, rows, shift):
    # rows shifted by `shift` positions; out-of-range rows read the zeroed border
    return pad_ref[base + shift: base + shift + rows, :]


def _conv_pool_block(x, w_ref, b_ref, m_ref, s_ref, pad_ref, base, width):
    """conv3x3(pad=1)+bias, then fused 2x2 max-pool + ReLU, on (R,128) rows."""
    rows = x.shape[0]

    pad_ref[...] = jnp.zeros_like(pad_ref)        # zero borders read by shifted taps
    pad_ref[base:base + rows, :] = x              # aligned store (base, rows mult of 8)

    acc = jnp.broadcast_to(b_ref[...], (rows, LANES))   # bias-initialized accumulator
    t = 0
    for dh in (-1, 0, 1):
        for dw in (-1, 0, 1):
            shift = dh * width + dw
            tap = _shifted(pad_ref, base, rows, shift) * m_ref[t]     # boundary mask
            acc = acc + jnp.dot(tap, w_ref[t],
                                preferred_element_type=jnp.float32)   # MXU
            t += 1

    # 2x2 max-pool + ReLU fused into the epilogue: window rows {r, r+1, r+W, r+W+1}
    pad_ref[base:base + rows, :] = acc
    pooled = jnp.maximum(
        jnp.maximum(acc, _shifted(pad_ref, base, rows, 1)),
        jnp.maximum(_shifted(pad_ref, base, rows, width),
                    _shifted(pad_ref, base, rows, width + 1)))
    pooled = jnp.maximum(pooled, 0.0)

    # keep only top-left-corner rows, reordered to (n, h//2, w//2): 0/1 selection matmul
    return jnp.dot(s_ref[...], pooled, preferred_element_type=jnp.float32)


def _netz_kernel(x_ref,
                 w1, b1, m1, s1,
                 w2, b2, m2, s2,
                 w3, b3, m3, s3,
                 p_ref, wl1, bl1, wl2, bl2,
                 out_ref,
                 pad1, pad2, pad3):
    x = x_ref[...]
    x = _conv_pool_block(x, w1, b1, m1, s1, pad1, _LAYER_BASE[0], _LAYER_HW[0])
    x = _conv_pool_block(x, w2, b2, m2, s2, pad2, _LAYER_BASE[1], _LAYER_HW[1])
    x = _conv_pool_block(x, w3, b3, m3, s3, pad3, _LAYER_BASE[2], _LAYER_HW[2])

    # torch `.view(-1, 64)` + lin1 + ReLU + lin2 + ReLU + sigmoid, folded into
    # lane-dense matmuls: output lane 32*k + o == lin1 unit o of torch row n*4 + k.
    nb = out_ref.shape[0]
    acc = jnp.zeros((nb, LANES), jnp.float32)
    for hw in range(4):
        rows = jnp.dot(p_ref[hw], x, preferred_element_type=jnp.float32)        # (N,128)
        acc = acc + jnp.dot(rows, wl1[hw], preferred_element_type=jnp.float32)
    a1 = jnp.maximum(acc + bl1[...], 0.0)
    a2 = jnp.dot(a1, wl2[...], preferred_element_type=jnp.float32) + bl2[...]
    a2 = jnp.maximum(a2, 0.0)
    out_ref[...] = 1.0 / (1.0 + jnp.exp(-a2))     # exp on the EUP


# ---------------------------------------------------------------------------
# Host-side constant builders (pure layout plumbing of weights / masks)
# ---------------------------------------------------------------------------
def _conv_weight_slabs(w):
    # torch conv weight (Cout, Cin, 3, 3) -> (9, 128, 128) per-tap (Cin,Cout) slabs
    cout, cin = w.shape[0], w.shape[1]
    wt = jnp.transpose(w, (2, 3, 1, 0)).reshape(9, cin, cout)
    return jnp.pad(wt, ((0, 0), (0, LANES - cin), (0, LANES - cout)))


def _bias_slab(b):
    return jnp.pad(b, (0, LANES - b.shape[0])).reshape(1, LANES)


def _conv_masks(n, hw):
    # (9, N*H*W, 1) 0/1 validity of each tap position (replaces im2col zero-padding)
    r = np.arange(n * hw * hw)
    h = (r // hw) % hw
    w = r % hw
    m = np.zeros((9, r.size, 1), np.float32)
    t = 0
    for dh in (-1, 0, 1):
        for dw in (-1, 0, 1):
            ok = (h + dh >= 0) & (h + dh < hw) & (w + dw >= 0) & (w + dw < hw)
            m[t, :, 0] = ok
            t += 1
    return jnp.asarray(m)


def _pool_select(n, hw):
    # (N*(H/2)*(W/2), N*H*W) 0/1 matrix selecting the 2x2-window top-left rows
    ph = hw // 2
    i = np.arange(n * ph * ph)
    nn = i // (ph * ph)
    yy = (i // ph) % ph
    xx = i % ph
    s = np.zeros((i.size, n * hw * hw), np.float32)
    s[i, nn * hw * hw + 2 * yy * hw + 2 * xx] = 1.0
    return jnp.asarray(s)


def _head_constants(n, lin1_w, lin1_b, lin2_w, lin2_b):
    # row selector: output sample n uses activation rows n*4 + hw (hw = 2*h + w)
    p = np.zeros((4, n, 4 * n), np.float32)
    for hw in range(4):
        p[hw, np.arange(n), 4 * np.arange(n) + hw] = 1.0

    # lin1 rearranged so acc[n, 32*k + o] == lin1 unit o of torch row n*4 + k,
    # reproducing `.view(-1, 64)` on the NCHW tensor exactly.
    c = np.arange(64)
    m = np.arange(LANES)
    block = (c[:, None] // 16 == m[None, :] // 32).astype(np.float32)     # (64,128)
    o_idx = np.broadcast_to(m % 32, (64, LANES))
    col_base = (4 * (c % 16))[:, None]
    wl1 = []
    for hw in range(4):
        a = lin1_w[o_idx, np.broadcast_to(col_base + hw, (64, LANES))] * block
        wl1.append(jnp.pad(a, ((0, LANES - 64), (0, 0))))
    wl1 = jnp.stack(wl1, axis=0)                                          # (4,128,128)
    bl1 = jnp.tile(lin1_b, 4).reshape(1, LANES)

    # lin2 applied per 32-lane block k -> output lane k (k < 4)
    sel = (m[:, None] // 32 == m[None, :]).astype(np.float32)             # (128,128)
    wl2 = lin2_w[0, m % 32][:, None] * sel
    bl2 = jnp.broadcast_to(lin2_b.reshape(1, 1), (1, LANES))
    return jnp.asarray(p), wl1, bl1, wl2, bl2


# ---------------------------------------------------------------------------
# Forward pass (single fused pallas_call)
# ---------------------------------------------------------------------------
def netz_forward(x_nchw, params):
    n, cin, h, w = x_nchw.shape
    assert (cin, h, w) == (1, 16, 16), "Netz expects (N, 1, 16, 16) inputs"

    # NCHW -> lane-dense rows (n, h, w) x 128 channel lanes
    x2d = jnp.transpose(x_nchw, (0, 2, 3, 1)).astype(jnp.float32).reshape(n * h * w, cin)
    x2d = jnp.pad(x2d, ((0, 0), (0, LANES - cin)))

    conv_args = []
    for li, name in enumerate(("conv1", "conv2", "conv3")):
        hw_l = _LAYER_HW[li]
        conv_args += [
            _conv_weight_slabs(params[name + "_w"]),
            _bias_slab(params[name + "_b"]),
            _conv_masks(n, hw_l),
            _pool_select(n, hw_l),
        ]

    head = _head_constants(n, params["lin1_w"], params["lin1_b"],
                           params["lin2_w"], params["lin2_b"])

    scratch_shapes = [
        pltpu.VMEM((2 * _LAYER_BASE[li] + n * _LAYER_HW[li] * _LAYER_HW[li], LANES),
                   jnp.float32)
        for li in range(3)
    ]

    out = pl.pallas_call(
        _netz_kernel,
        out_shape=jax.ShapeDtypeStruct((n, LANES), jnp.float32),
        scratch_shapes=scratch_shapes,
    )(x2d, *conv_args, *head)

    # logical outputs live in lanes 0..3 (torch rows n*4 + k); slice only at the end
    return out[:, :4].reshape(n * 4, 1)


# ---------------------------------------------------------------------------
# Pure-JAX reference (mirrors the PyTorch module) and parameter init
# ---------------------------------------------------------------------------
def netz_reference(x_nchw, params):
    x = x_nchw.astype(jnp.float32)
    for name in ("conv1", "conv2", "conv3"):
        x = jax.lax.conv_general_dilated(
            x, params[name + "_w"], window_strides=(1, 1), padding=((1, 1), (1, 1)),
            dimension_numbers=("NCHW", "OIHW", "NCHW"),
            precision=jax.lax.Precision.HIGHEST)
        x = x + params[name + "_b"][None, :, None, None]
        nb, cc, hh, ww = x.shape
        x = x.reshape(nb, cc, hh // 2, 2, ww // 2, 2).max(axis=(3, 5))
        x = jnp.maximum(x, 0.0)
    x = x.reshape(-1, 64)
    x = jnp.maximum(jnp.dot(x, params["lin1_w"].T,
                            precision=jax.lax.Precision.HIGHEST) + params["lin1_b"], 0.0)
    x = jnp.maximum(jnp.dot(x, params["lin2_w"].T,
                            precision=jax.lax.Precision.HIGHEST) + params["lin2_b"], 0.0)
    return jax.nn.sigmoid(x)


def init_params(key):
    ks = jax.random.split(key, 10)

    def u(k, shape, fan_in):
        bound = 1.0 / jnp.sqrt(jnp.float32(fan_in))
        return jax.random.uniform(k, shape, jnp.float32, -bound, bound)

    return {
        "conv1_w": u(ks[0], (16, 1, 3, 3), 1 * 9),
        "conv1_b": u(ks[1], (16,), 1 * 9),
        "conv2_w": u(ks[2], (32, 16, 3, 3), 16 * 9),
        "conv2_b": u(ks[3], (32,), 16 * 9),
        "conv3_w": u(ks[4], (64, 32, 3, 3), 32 * 9),
        "conv3_b": u(ks[5], (64,), 32 * 9),
        "lin1_w": u(ks[6], (32, 64), 64),
        "lin1_b": u(ks[7], (32,), 64),
        "lin2_w": u(ks[8], (1, 32), 32),
        "lin2_b": u(ks[9], (1,), 32),
    }


if __name__ == "__main__":
    key = jax.random.PRNGKey(0)
    k_params, k_x = jax.random.split(key)
    params = init_params(k_params)

    # batch=2, 1 channel, 16x16 spatial (after three 2x2 pools -> 2x2x64 -> view(-1,64) -> 8 rows)
    x = jax.random.normal(k_x, (2, 1, 16, 16), jnp.float32)

    out = jax.jit(netz_forward)(x, params)
    out = jax.block_until_ready(out)
    ref = jax.jit(netz_reference)(x, params)

    assert out.shape == (8, 1)
    assert bool(jnp.all(out >= 0.5))                      # sigmoid(relu(.)) >= 0.5
    assert bool(jnp.allclose(out, ref, atol=5e-3, rtol=5e-3)), (
        "max abs diff vs reference: %f" % float(jnp.max(jnp.abs(out - ref))))
    print("KERNEL_OK")
</pallas_src>

<mosaic_0001>
module attributes {stable_mosaic.version = 11 : i64} {
  func.func @_netz_kernel(%arg0: memref<512x128xf32, #tpu.memory_space<vmem>>, %arg1: memref<9x128x128xf32, #tpu.memory_space<vmem>>, %arg2: memref<1x128xf32, #tpu.memory_space<vmem>>, %arg3: memref<9x512x1xf32, #tpu.memory_space<vmem>>, %arg4: memref<128x512xf32, #tpu.memory_space<vmem>>, %arg5: memref<9x128x128xf32, #tpu.memory_space<vmem>>, %arg6: memref<1x128xf32, #tpu.memory_space<vmem>>, %arg7: memref<9x128x1xf32, #tpu.memory_space<vmem>>, %arg8: memref<32x128xf32, #tpu.memory_space<vmem>>, %arg9: memref<9x128x128xf32, #tpu.memory_space<vmem>>, %arg10: memref<1x128xf32, #tpu.memory_space<vmem>>, %arg11: memref<9x32x1xf32, #tpu.memory_space<vmem>>, %arg12: memref<8x32xf32, #tpu.memory_space<vmem>>, %arg13: memref<4x2x8xf32, #tpu.memory_space<vmem>>, %arg14: memref<4x128x128xf32, #tpu.memory_space<vmem>>, %arg15: memref<1x128xf32, #tpu.memory_space<vmem>>, %arg16: memref<128x128xf32, #tpu.memory_space<vmem>>, %arg17: memref<1x128xf32, #tpu.memory_space<vmem>>, %arg18: memref<2x128xf32, #tpu.memory_space<vmem>>, %arg19: memref<560x128xf32, #tpu.memory_space<vmem>>, %arg20: memref<160x128xf32, #tpu.memory_space<vmem>>, %arg21: memref<48x128xf32, #tpu.memory_space<vmem>>) attributes {dimension_semantics = [], scalar_prefetch = 0 : i64, scratch_operands = 3 : i64, tpu.core_type = #tpu.core_type<tc>} {
    %c0 = arith.constant 0 : index
    %c0_0 = arith.constant 0 : index
    %0 = vector.load %arg0[%c0, %c0_0] : memref<512x128xf32, #tpu.memory_space<vmem>>, vector<512x128xf32>
    %cst = arith.constant 0.000000e+00 : f32
    %1 = vector.broadcast %cst : f32 to vector<560x128xf32>
    %c0_1 = arith.constant 0 : index
    %c0_2 = arith.constant 0 : index
    %2 = vector.load %arg19[%c0_1, %c0_2] : memref<560x128xf32, #tpu.memory_space<vmem>>, vector<560x128xf32>
    tpu.vector_store %arg19[%c0_1, %c0_2], %1 {strides = array<i32>} : memref<560x128xf32, #tpu.memory_space<vmem>>, vector<560x128xf32>,
    %c24 = arith.constant 24 : index
    %c0_3 = arith.constant 0 : index
    %3 = vector.load %arg19[%c24, %c0_3] : memref<560x128xf32, #tpu.memory_space<vmem>>, vector<512x128xf32>
    tpu.vector_store %arg19[%c24, %c0_3], %0 {strides = array<i32>} : memref<560x128xf32, #tpu.memory_space<vmem>>, vector<512x128xf32>,
    %c0_4 = arith.constant 0 : index
    %c0_5 = arith.constant 0 : index
    %4 = vector.load %arg2[%c0_4, %c0_5] : memref<1x128xf32, #tpu.memory_space<vmem>>, vector<1x128xf32>
    %5 = vector.shape_cast %4 : vector<1x128xf32> to vector<1x128xf32>
    %6 = vector.broadcast %5 : vector<1x128xf32> to vector<512x128xf32>
    %c7 = arith.constant 7 : index
    %c0_6 = arith.constant 0 : index
    %7 = vector.load %arg19[%c7, %c0_6] : memref<560x128xf32, #tpu.memory_space<vmem>>, vector<512x128xf32>
    %c0_7 = arith.constant 0 : index
    %c0_8 = arith.constant 0 : index
    %c0_9 = arith.constant 0 : index
    %8 = vector.load %arg3[%c0_7, %c0_8, %c0_9] : memref<9x512x1xf32, #tpu.memory_space<vmem>>, vector<1x512x1xf32>
    %9 = vector.shape_cast %8 : vector<1x512x1xf32> to vector<512x1xf32>
    %10 = vector.broadcast %9 : vector<512x1xf32> to vector<512x128xf32>
    %11 = arith.mulf %7, %10 : vector<512x128xf32>
    %c0_10 = arith.constant 0 : index
    %c0_11 = arith.constant 0 : index
    %c0_12 = arith.constant 0 : index
    %12 = vector.load %arg1[%c0_10, %c0_11, %c0_12] : memref<9x128x128xf32, #tpu.memory_space<vmem>>, vector<1x128x128xf32>
    %13 = vector.shape_cast %12 : vector<1x128x128xf32> to vector<128x128xf32>
    %cst_13 = arith.constant dense<0.000000e+00> : vector<512x128xf32>
    %14 = tpu.matmul %11, %13, %cst_13 {dimension_numbers = #tpu.dot_dimension_numbers<[1], [0], [0], [1], [0, 0, 1, 1], [], []>} : vector<512x128xf32>, vector<128x128xf32>, vector<512x128xf32> -> vector<512x128xf32>
    %15 = arith.addf %6, %14 : vector<512x128xf32>
    %c8 = arith.constant 8 : index
    %c0_14 = arith.constant 0 : index
    %16 = vector.load %arg19[%c8, %c0_14] : memref<560x128xf32, #tpu.memory_space<vmem>>, vector<512x128xf32>
    %c1 = arith.constant 1 : index
    %c0_15 = arith.constant 0 : index
    %c0_16 = arith.constant 0 : index
    %17 = vector.load %arg3[%c1, %c0_15, %c0_16] : memref<9x512x1xf32, #tpu.memory_space<vmem>>, vector<1x512x1xf32>
    %18 = vector.shape_cast %17 : vector<1x512x1xf32> to vector<512x1xf32>
    %19 = vector.broadcast %18 : vector<512x1xf32> to vector<512x128xf32>
    %20 = arith.mulf %16, %19 : vector<512x128xf32>
    %c1_17 = arith.constant 1 : index
    %c0_18 = arith.constant 0 : index
    %c0_19 = arith.constant 0 : index
    %21 = vector.load %arg1[%c1_17, %c0_18, %c0_19] : memref<9x128x128xf32, #tpu.memory_space<vmem>>, vector<1x128x128xf32>
    %22 = vector.shape_cast %21 : vector<1x128x128xf32> to vector<128x128xf32>
    %cst_20 = arith.constant dense<0.000000e+00> : vector<512x128xf32>
    %23 = tpu.matmul %20, %22, %cst_20 {dimension_numbers = #tpu.dot_dimension_numbers<[1], [0], [0], [1], [0, 0, 1, 1], [], []>} : vector<512x128xf32>, vector<128x128xf32>, vector<512x128xf32> -> vector<512x128xf32>
    %24 = arith.addf %15, %23 : vector<512x128xf32>
    %c9 = arith.constant 9 : index
    %c0_21 = arith.constant 0 : index
    %25 = vector.load %arg19[%c9, %c0_21] : memref<560x128xf32, #tpu.memory_space<vmem>>, vector<512x128xf32>
    %c2 = arith.constant 2 : index
    %c0_22 = arith.constant 0 : index
    %c0_23 = arith.constant 0 : index
    %26 = vector.load %arg3[%c2, %c0_22, %c0_23] : memref<9x512x1xf32, #tpu.memory_space<vmem>>, vector<1x512x1xf32>
    %27 = vector.shape_cast %26 : vector<1x512x1xf32> to vector<512x1xf32>
    %28 = vector.broadcast %27 : vector<512x1xf32> to vector<512x128xf32>
    %29 = arith.mulf %25, %28 : vector<512x128xf32>
    %c2_24 = arith.constant 2 : index
    %c0_25 = arith.constant 0 : index
    %c0_26 = arith.constant 0 : index
    %30 = vector.load %arg1[%c2_24, %c0_25, %c0_26] : memref<9x128x128xf32, #tpu.memory_space<vmem>>, vector<1x128x128xf32>
    %31 = vector.shape_cast %30 : vector<1x128x128xf32> to vector<128x128xf32>
    %cst_27 = arith.constant dense<0.000000e+00> : vector<512x128xf32>
    %32 = tpu.matmul %29, %31, %cst_27 {dimension_numbers = #tpu.dot_dimension_numbers<[1], [0], [0], [1], [0, 0, 1, 1], [], []>} : vector<512x128xf32>, vector<128x128xf32>, vector<512x128xf32> -> vector<512x128xf32>
    %33 = arith.addf %24, %32 : vector<512x128xf32>
    %c23 = arith.constant 23 : index
    %c0_28 = arith.constant 0 : index
    %34 = vector.load %arg19[%c23, %c0_28] : memref<560x128xf32, #tpu.memory_space<vmem>>, vector<512x128xf32>
    %c3 = arith.constant 3 : index
    %c0_29 = arith.constant 0 : index
    %c0_30 = arith.constant 0 : index
    %35 = vector.load %arg3[%c3, %c0_29, %c0_30] : memref<9x512x1xf32, #tpu.memory_space<vmem>>, vector<1x512x1xf32>
    %36 = vector.shape_cast %35 : vector<1x512x1xf32> to vector<512x1xf32>
    %37 = vector.broadcast %36 : vector<512x1xf32> to vector<512x128xf32>
    %38 = arith.mulf %34, %37 : vector<512x128xf32>
    %c3_31 = arith.constant 3 : index
    %c0_32 = arith.constant 0 : index
    %c0_33 = arith.constant 0 : index
    %39 = vector.load %arg1[%c3_31, %c0_32, %c0_33] : memref<9x128x128xf32, #tpu.memory_space<vmem>>, vector<1x128x128xf32>
    %40 = vector.shape_cast %39 : vector<1x128x128xf32> to vector<128x128xf32>
    %cst_34 = arith.constant dense<0.000000e+00> : vector<512x128xf32>
    %41 = tpu.matmul %38, %40, %cst_34 {dimension_numbers = #tpu.dot_dimension_numbers<[1], [0], [0], [1], [0, 0, 1, 1], [], []>} : vector<512x128xf32>, vector<128x128xf32>, vector<512x128xf32> -> vector<512x128xf32>
    %42 = arith.addf %33, %41 : vector<512x128xf32>
    %c24_35 = arith.constant 24 : index
    %c0_36 = arith.constant 0 : index
    %43 = vector.load %arg19[%c24_35, %c0_36] : memref<560x128xf32, #tpu.memory_space<vmem>>, vector<512x128xf32>
    %c4 = arith.constant 4 : index
    %c0_37 = arith.constant 0 : index
    %c0_38 = arith.constant 0 : index
    %44 = vector.load %arg3[%c4, %c0_37, %c0_38] : memref<9x512x1xf32, #tpu.memory_space<vmem>>, vector<1x512x1xf32>
    %45 = vector.shape_cast %44 : vector<1x512x1xf32> to vector<512x1xf32>
    %46 = vector.broadcast %45 : vector<512x1xf32> to vector<512x128xf32>
    %47 = arith.mulf %43, %46 : vector<512x128xf32>
    %c4_39 = arith.constant 4 : index
    %c0_40 = arith.constant 0 : index
    %c0_41 = arith.constant 0 : index
    %48 = vector.load %arg1[%c4_39, %c0_40, %c0_41] : memref<9x128x128xf32, #tpu.memory_space<vmem>>, vector<1x128x128xf32>
    %49 = vector.shape_cast %48 : vector<1x128x128xf32> to vector<128x128xf32>
    %cst_42 = arith.constant dense<0.000000e+00> : vector<512x128xf32>
    %50 = tpu.matmul %47, %49, %cst_42 {dimension_numbers = #tpu.dot_dimension_numbers<[1], [0], [0], [1], [0, 0, 1, 1], [], []>} : vector<512x128xf32>, vector<128x128xf32>, vector<512x128xf32> -> vector<512x128xf32>
    %51 = arith.addf %42, %50 : vector<512x128xf32>
    %c25 = arith.constant 25 : index
    %c0_43 = arith.constant 0 : index
    %52 = vector.load %arg19[%c25, %c0_43] : memref<560x128xf32, #tpu.memory_space<vmem>>, vector<512x128xf32>
    %c5 = arith.constant 5 : index
    %c0_44 = arith.constant 0 : index
    %c0_45 = arith.constant 0 : index
    %53 = vector.load %arg3[%c5, %c0_44, %c0_45] : memref<9x512x1xf32, #tpu.memory_space<vmem>>, vector<1x512x1xf32>
    %54 = vector.shape_cast %53 : vector<1x512x1xf32> to vector<512x1xf32>
    %55 = vector.broadcast %54 : vector<512x1xf32> to vector<512x128xf32>
    %56 = arith.mulf %52, %55 : vector<512x128xf32>
    %c5_46 = arith.constant 5 : index
    %c0_47 = arith.constant 0 : index
    %c0_48 = arith.constant 0 : index
    %57 = vector.load %arg1[%c5_46, %c0_47, %c0_48] : memref<9x128x128xf32, #tpu.memory_space<vmem>>, vector<1x128x128xf32>
    %58 = vector.shape_cast %57 : vector<1x128x128xf32> to vector<128x128xf32>
    %cst_49 = arith.constant dense<0.000000e+00> : vector<512x128xf32>
    %59 = tpu.matmul %56, %58, %cst_49 {dimension_numbers = #tpu.dot_dimension_numbers<[1], [0], [0], [1], [0, 0, 1, 1], [], []>} : vector<512x128xf32>, vector<128x128xf32>, vector<512x128xf32> -> vector<512x128xf32>
    %60 = arith.addf %51, %59 : vector<512x128xf32>
    %c39 = arith.constant 39 : index
    %c0_50 = arith.constant 0 : index
    %61 = vector.load %arg19[%c39, %c0_50] : memref<560x128xf32, #tpu.memory_space<vmem>>, vector<512x128xf32>
    %c6 = arith.constant 6 : index
    %c0_51 = arith.constant 0 : index
    %c0_52 = arith.constant 0 : index
    %62 = vector.load %arg3[%c6, %c0_51, %c0_52] : memref<9x512x1xf32, #tpu.memory_space<vmem>>, vector<1x512x1xf32>
    %63 = vector.shape_cast %62 : vector<1x512x1xf32> to vector<512x1xf32>
    %64 = vector.broadcast %63 : vector<512x1xf32> to vector<512x128xf32>
    %65 = arith.mulf %61, %64 : vector<512x128xf32>
    %c6_53 = arith.constant 6 : index
    %c0_54 = arith.constant 0 : index
    %c0_55 = arith.constant 0 : index
    %66 = vector.load %arg1[%c6_53, %c0_54, %c0_55] : memref<9x128x128xf32, #tpu.memory_space<vmem>>, vector<1x128x128xf32>
    %67 = vector.shape_cast %66 : vector<1x128x128xf32> to vector<128x128xf32>
    %cst_56 = arith.constant dense<0.000000e+00> : vector<512x128xf32>
    %68 = tpu.matmul %65, %67, %cst_56 {dimension_numbers = #tpu.dot_dimension_numbers<[1], [0], [0], [1], [0, 0, 1, 1], [], []>} : vector<512x128xf32>, vector<128x128xf32>, vector<512x128xf32> -> vector<512x128xf32>
    %69 = arith.addf %60, %68 : vector<512x128xf32>
    %c40 = arith.constant 40 : index
    %c0_57 = arith.constant 0 : index
    %70 = vector.load %arg19[%c40, %c0_57] : memref<560x128xf32, #tpu.memory_space<vmem>>, vector<512x128xf32>
    %c7_58 = arith.constant 7 : index
    %c0_59 = arith.constant 0 : index
    %c0_60 = arith.constant 0 : index
    %71 = vector.load %arg3[%c7_58, %c0_59, %c0_60] : memref<9x512x1xf32, #tpu.memory_space<vmem>>, vector<1x512x1xf32>
    %72 = vector.shape_cast %71 : vector<1x512x1xf32> to vector<512x1xf32>
    %73 = vector.broadcast %72 : vector<512x1xf32> to vector<512x128xf32>
    %74 = arith.mulf %70, %73 : vector<512x128xf32>
    %c7_61 = arith.constant 7 : index
    %c0_62 = arith.constant 0 : index
    %c0_63 = arith.constant 0 : index
    %75 = vector.load %arg1[%c7_61, %c0_62, %c0_63] : memref<9x128x128xf32, #tpu.memory_space<vmem>>, vector<1x128x128xf32>
    %76 = vector.shape_cast %75 : vector<1x128x128xf32> to vector<128x128xf32>
    %cst_64 = arith.constant dense<0.000000e+00> : vector<512x128xf32>
    %77 = tpu.matmul %74, %76, %cst_64 {dimension_numbers = #tpu.dot_dimension_numbers<[1], [0], [0], [1], [0, 0, 1, 1], [], []>} : vector<512x128xf32>, vector<128x128xf32>, vector<512x128xf32> -> vector<512x128xf32>
    %78 = arith.addf %69, %77 : vector<512x128xf32>
    %c41 = arith.constant 41 : index
    %c0_65 = arith.constant 0 : index
    %79 = vector.load %arg19[%c41, %c0_65] : memref<560x128xf32, #tpu.memory_space<vmem>>, vector<512x128xf32>
    %c8_66 = arith.constant 8 : index
    %c0_67 = arith.constant 0 : index
    %c0_68 = arith.constant 0 : index
    %80 = vector.load %arg3[%c8_66, %c0_67, %c0_68] : memref<9x512x1xf32, #tpu.memory_space<vmem>>, vector<1x512x1xf32>
    %81 = vector.shape_cast %80 : vector<1x512x1xf32> to vector<512x1xf32>
    %82 = vector.broadcast %81 : vector<512x1xf32> to vector<512x128xf32>
    %83 = arith.mulf %79, %82 : vector<512x128xf32>
    %c8_69 = arith.constant 8 : index
    %c0_70 = arith.constant 0 : index
    %c0_71 = arith.constant 0 : index
    %84 = vector.load %arg1[%c8_69, %c0_70, %c0_71] : memref<9x128x128xf32, #tpu.memory_space<vmem>>, vector<1x128x128xf32>
    %85 = vector.shape_cast %84 : vector<1x128x128xf32> to vector<128x128xf32>
    %cst_72 = arith.constant dense<0.000000e+00> : vector<512x128xf32>
    %86 = tpu.matmul %83, %85, %cst_72 {dimension_numbers = #tpu.dot_dimension_numbers<[1], [0], [0], [1], [0, 0, 1, 1], [], []>} : vector<512x128xf32>, vector<128x128xf32>, vector<512x128xf32> -> vector<512x128xf32>
    %87 = arith.addf %78, %86 : vector<512x128xf32>
    %c24_73 = arith.constant 24 : index
    %c0_74 = arith.constant 0 : index
    %88 = vector.load %arg19[%c24_73, %c0_74] : memref<560x128xf32, #tpu.memory_space<vmem>>, vector<512x128xf32>
    tpu.vector_store %arg19[%c24_73, %c0_74], %87 {strides = array<i32>} : memref<560x128xf32, #tpu.memory_space<vmem>>, vector<512x128xf32>,
    %c25_75 = arith.constant 25 : index
    %c0_76 = arith.constant 0 : index
    %89 = vector.load %arg19[%c25_75, %c0_76] : memref<560x128xf32, #tpu.memory_space<vmem>>, vector<512x128xf32>
    %90 = arith.maximumf %87, %89 : vector<512x128xf32>
    %c40_77 = arith.constant 40 : index
    %c0_78 = arith.constant 0 : index
    %91 = vector.load %arg19[%c40_77, %c0_78] : memref<560x128xf32, #tpu.memory_space<vmem>>, vector<512x128xf32>
    %c41_79 = arith.constant 41 : index
    %c0_80 = arith.constant 0 : index
    %92 = vector.load %arg19[%c41_79, %c0_80] : memref<560x128xf32, #tpu.memory_space<vmem>>, vector<512x128xf32>
    %93 = arith.maximumf %91, %92 : vector<512x128xf32>
    %94 = arith.maximumf %90, %93 : vector<512x128xf32>
    %cst_81 = arith.constant 0.000000e+00 : f32
    %95 = vector.broadcast %cst_81 : f32 to vector<512x128xf32>
    %96 = arith.maximumf %94, %95 : vector<512x128xf32>
    %c0_82 = arith.constant 0 : index
    %c0_83 = arith.constant 0 : index
    %97 = vector.load %arg4[%c0_82, %c0_83] : memref<128x512xf32, #tpu.memory_space<vmem>>, vector<128x512xf32>
    %cst_84 = arith.constant dense<0.000000e+00> : vector<128x128xf32>
    %98 = tpu.matmul %97, %96, %cst_84 {dimension_numbers = #tpu.dot_dimension_numbers<[1], [0], [0], [1], [0, 0, 1, 1], [], []>} : vector<128x512xf32>, vector<512x128xf32>, vector<128x128xf32> -> vector<128x128xf32>
    %cst_85 = arith.constant 0.000000e+00 : f32
    %99 = vector.broadcast %cst_85 : f32 to vector<160x128xf32>
    %c0_86 = arith.constant 0 : index
    %c0_87 = arith.constant 0 : index
    %100 = vector.load %arg20[%c0_86, %c0_87] : memref<160x128xf32, #tpu.memory_space<vmem>>, vector<160x128xf32>
    tpu.vector_store %arg20[%c0_86, %c0_87], %99 {strides = array<i32>} : memref<160x128xf32, #tpu.memory_space<vmem>>, vector<160x128xf32>,
    %c16 = arith.constant 16 : index
    %c0_88 = arith.constant 0 : index
    %101 = vector.load %arg20[%c16, %c0_88] : memref<160x128xf32, #tpu.memory_space<vmem>>, vector<128x128xf32>
    tpu.vector_store %arg20[%c16, %c0_88], %98 {strides = array<i32>} : memref<160x128xf32, #tpu.memory_space<vmem>>, vector<128x128xf32>,
    %c0_89 = arith.constant 0 : index
    %c0_90 = arith.constant 0 : index
    %102 = vector.load %arg6[%c0_89, %c0_90] : memref<1x128xf32, #tpu.memory_space<vmem>>, vector<1x128xf32>
    %103 = vector.shape_cast %102 : vector<1x128xf32> to vector<1x128xf32>
    %104 = vector.broadcast %103 : vector<1x128xf32> to vector<128x128xf32>
    %c7_91 = arith.constant 7 : index
    %c0_92 = arith.constant 0 : index
    %105 = vector.load %arg20[%c7_91, %c0_92] : memref<160x128xf32, #tpu.memory_space<vmem>>, vector<128x128xf32>
    %c0_93 = arith.constant 0 : index
    %c0_94 = arith.constant 0 : index
    %c0_95 = arith.constant 0 : index
    %106 = vector.load %arg7[%c0_93, %c0_94, %c0_95] : memref<9x128x1xf32, #tpu.memory_space<vmem>>, vector<1x128x1xf32>
    %107 = vector.shape_cast %106 : vector<1x128x1xf32> to vector<128x1xf32>
    %108 = vector.broadcast %107 : vector<128x1xf32> to vector<128x128xf32>
    %109 = arith.mulf %105, %108 : vector<128x128xf32>
    %c0_96 = arith.constant 0 : index
    %c0_97 = arith.constant 0 : index
    %c0_98 = arith.constant 0 : index
    %110 = vector.load %arg5[%c0_96, %c0_97, %c0_98] : memref<9x128x128xf32, #tpu.memory_space<vmem>>, vector<1x128x128xf32>
    %111 = vector.shape_cast %110 : vector<1x128x128xf32> to vector<128x128xf32>
    %cst_99 = arith.constant dense<0.000000e+00> : vector<128x128xf32>
    %112 = tpu.matmul %109, %111, %cst_99 {dimension_numbers = #tpu.dot_dimension_numbers<[1], [0], [0], [1], [0, 0, 1, 1], [], []>} : vector<128x128xf32>, vector<128x128xf32>, vector<128x128xf32> -> vector<128x128xf32>
    %113 = arith.addf %104, %112 : vector<128x128xf32>
    %c8_100 = arith.constant 8 : index
    %c0_101 = arith.constant 0 : index
    %114 = vector.load %arg20[%c8_100, %c0_101] : memref<160x128xf32, #tpu.memory_space<vmem>>, vector<128x128xf32>
    %c1_102 = arith.constant 1 : index
    %c0_103 = arith.constant 0 : index
    %c0_104 = arith.constant 0 : index
    %115 = vector.load %arg7[%c1_102, %c0_103, %c0_104] : memref<9x128x1xf32, #tpu.memory_space<vmem>>, vector<1x128x1xf32>
    %116 = vector.shape_cast %115 : vector<1x128x1xf32> to vector<128x1xf32>
    %117 = vector.broadcast %116 : vector<128x1xf32> to vector<128x128xf32>
    %118 = arith.mulf %114, %117 : vector<128x128xf32>
    %c1_105 = arith.constant 1 : index
    %c0_106 = arith.constant 0 : index
    %c0_107 = arith.constant 0 : index
    %119 = vector.load %arg5[%c1_105, %c0_106, %c0_107] : memref<9x128x128xf32, #tpu.memory_space<vmem>>, vector<1x128x128xf32>
    %120 = vector.shape_cast %119 : vector<1x128x128xf32> to vector<128x128xf32>
    %cst_108 = arith.constant dense<0.000000e+00> : vector<128x128xf32>
    %121 = tpu.matmul %118, %120, %cst_108 {dimension_numbers = #tpu.dot_dimension_numbers<[1], [0], [0], [1], [0, 0, 1, 1], [], []>} : vector<128x128xf32>, vector<128x128xf32>, vector<128x128xf32> -> vector<128x128xf32>
    %122 = arith.addf %113, %121 : vector<128x128xf32>
    %c9_109 = arith.constant 9 : index
    %c0_110 = arith.constant 0 : index
    %123 = vector.load %arg20[%c9_109, %c0_110] : memref<160x128xf32, #tpu.memory_space<vmem>>, vector<128x128xf32>
    %c2_111 = arith.constant 2 : index
    %c0_112 = arith.constant 0 : index
    %c0_113 = arith.constant 0 : index
    %124 = vector.load %arg7[%c2_111, %c0_112, %c0_113] : memref<9x128x1xf32, #tpu.memory_space<vmem>>, vector<1x128x1xf32>
    %125 = vector.shape_cast %124 : vector<1x128x1xf32> to vector<128x1xf32>
    %126 = vector.broadcast %125 : vector<128x1xf32> to vector<128x128xf32>
    %127 = arith.mulf %123, %126 : vector<128x128xf32>
    %c2_114 = arith.constant 2 : index
    %c0_115 = arith.constant 0 : index
    %c0_116 = arith.constant 0 : index
    %128 = vector.load %arg5[%c2_114, %c0_115, %c0_116] : memref<9x128x128xf32, #tpu.memory_space<vmem>>, vector<1x128x128xf32>
    %129 = vector.shape_cast %128 : vector<1x128x128xf32> to vector<128x128xf32>
    %cst_117 = arith.constant dense<0.000000e+00> : vector<128x128xf32>
    %130 = tpu.matmul %127, %129, %cst_117 {dimension_numbers = #tpu.dot_dimension_numbers<[1], [0], [0], [1], [0, 0, 1, 1], [], []>} : vector<128x128xf32>, vector<128x128xf32>, vector<128x128xf32> -> vector<128x128xf32>
    %131 = arith.addf %122, %130 : vector<128x128xf32>
    %c15 = arith.constant 15 : index
    %c0_118 = arith.constant 0 : index
    %132 = vector.load %arg20[%c15, %c0_118] : memref<160x128xf32, #tpu.memory_space<vmem>>, vector<128x128xf32>
    %c3_119 = arith.constant 3 : index
    %c0_120 = arith.constant 0 : index
    %c0_121 = arith.constant 0 : index
    %133 = vector.load %arg7[%c3_119, %c0_120, %c0_121] : memref<9x128x1xf32, #tpu.memory_space<vmem>>, vector<1x128x1xf32>
    %134 = vector.shape_cast %133 : vector<1x128x1xf32> to vector<128x1xf32>
    %135 = vector.broadcast %134 : vector<128x1xf32> to vector<128x128xf32>
    %136 = arith.mulf %132, %135 : vector<128x128xf32>
    %c3_122 = arith.constant 3 : index
    %c0_123 = arith.constant 0 : index
    %c0_124 = arith.constant 0 : index
    %137 = vector.load %arg5[%c3_122, %c0_123, %c0_124] : memref<9x128x128xf32, #tpu.memory_space<vmem>>, vector<1x128x128xf32>
    %138 = vector.shape_cast %137 : vector<1x128x128xf32> to vector<128x128xf32>
    %cst_125 = arith.constant dense<0.000000e+00> : vector<128x128xf32>
    %139 = tpu.matmul %136, %138, %cst_125 {dimension_numbers = #tpu.dot_dimension_numbers<[1], [0], [0], [1], [0, 0, 1, 1], [], []>} : vector<128x128xf32>, vector<128x128xf32>, vector<128x128xf32> -> vector<128x128xf32>
    %140 = arith.addf %131, %139 : vector<128x128xf32>
    %c16_126 = arith.constant 16 : index
    %c0_127 = arith.constant 0 : index
    %141 = vector.load %arg20[%c16_126, %c0_127] : memref<160x128xf32, #tpu.memory_space<vmem>>, vector<128x128xf32>
    %c4_128 = arith.constant 4 : index
    %c0_129 = arith.constant 0 : index
    %c0_130 = arith.constant 0 : index
    %142 = vector.load %arg7[%c4_128, %c0_129, %c0_130] : memref<9x128x1xf32, #tpu.memory_space<vmem>>, vector<1x128x1xf32>
    %143 = vector.shape_cast %142 : vector<1x128x1xf32> to vector<128x1xf32>
    %144 = vector.broadcast %143 : vector<128x1xf32> to vector<128x128xf32>
    %145 = arith.mulf %141, %144 : vector<128x128xf32>
    %c4_131 = arith.constant 4 : index
    %c0_132 = arith.constant 0 : index
    %c0_133 = arith.constant 0 : index
    %146 = vector.load %arg5[%c4_131, %c0_132, %c0_133] : memref<9x128x128xf32, #tpu.memory_space<vmem>>, vector<1x128x128xf32>
    %147 = vector.shape_cast %146 : vector<1x128x128xf32> to vector<128x128xf32>
    %cst_134 = arith.constant dense<0.000000e+00> : vector<128x128xf32>
    %148 = tpu.matmul %145, %147, %cst_134 {dimension_numbers = #tpu.dot_dimension_numbers<[1], [0], [0], [1], [0, 0, 1, 1], [], []>} : vector<128x128xf32>, vector<128x128xf32>, vector<128x128xf32> -> vector<128x128xf32>
    %149 = arith.addf %140, %148 : vector<128x128xf32>
    %c17 = arith.constant 17 : index
    %c0_135 = arith.constant 0 : index
    %150 = vector.load %arg20[%c17, %c0_135] : memref<160x128xf32, #tpu.memory_space<vmem>>, vector<128x128xf32>
    %c5_136 = arith.constant 5 : index
    %c0_137 = arith.constant 0 : index
    %c0_138 = arith.constant 0 : index
    %151 = vector.load %arg7[%c5_136, %c0_137, %c0_138] : memref<9x128x1xf32, #tpu.memory_space<vmem>>, vector<1x128x1xf32>
    %152 = vector.shape_cast %151 : vector<1x128x1xf32> to vector<128x1xf32>
    %153 = vector.broadcast %152 : vector<128x1xf32> to vector<128x128xf32>
    %154 = arith.mulf %150, %153 : vector<128x128xf32>
    %c5_139 = arith.constant 5 : index
    %c0_140 = arith.constant 0 : index
    %c0_141 = arith.constant 0 : index
    %155 = vector.load %arg5[%c5_139, %c0_140, %c0_141] : memref<9x128x128xf32, #tpu.memory_space<vmem>>, vector<1x128x128xf32>
    %156 = vector.shape_cast %155 : vector<1x128x128xf32> to vector<128x128xf32>
    %cst_142 = arith.constant dense<0.000000e+00> : vector<128x128xf32>
    %157 = tpu.matmul %154, %156, %cst_142 {dimension_numbers = #tpu.dot_dimension_numbers<[1], [0], [0], [1], [0, 0, 1, 1], [], []>} : vector<128x128xf32>, vector<128x128xf32>, vector<128x128xf32> -> vector<128x128xf32>
    %158 = arith.addf %149, %157 : vector<128x128xf32>
    %c23_143 = arith.constant 23 : index
    %c0_144 = arith.constant 0 : index
    %159 = vector.load %arg20[%c23_143, %c0_144] : memref<160x128xf32, #tpu.memory_space<vmem>>, vector<128x128xf32>
    %c6_145 = arith.constant 6 : index
    %c0_146 = arith.constant 0 : index
    %c0_147 = arith.constant 0 : index
    %160 = vector.load %arg7[%c6_145, %c0_146, %c0_147] : memref<9x128x1xf32, #tpu.memory_space<vmem>>, vector<1x128x1xf32>
    %161 = vector.shape_cast %160 : vector<1x128x1xf32> to vector<128x1xf32>
    %162 = vector.broadcast %161 : vector<128x1xf32> to vector<128x128xf32>
    %163 = arith.mulf %159, %162 : vector<128x128xf32>
    %c6_148 = arith.constant 6 : index
    %c0_149 = arith.constant 0 : index
    %c0_150 = arith.constant 0 : index
    %164 = vector.load %arg5[%c6_148, %c0_149, %c0_150] : memref<9x128x128xf32, #tpu.memory_space<vmem>>, vector<1x128x128xf32>
    %165 = vector.shape_cast %164 : vector<1x128x128xf32> to vector<128x128xf32>
    %cst_151 = arith.constant dense<0.000000e+00> : vector<128x128xf32>
    %166 = tpu.matmul %163, %165, %cst_151 {dimension_numbers = #tpu.dot_dimension_numbers<[1], [0], [0], [1], [0, 0, 1, 1], [], []>} : vector<128x128xf32>, vector<128x128xf32>, vector<128x128xf32> -> vector<128x128xf32>
    %167 = arith.addf %158, %166 : vector<128x128xf32>
    %c24_152 = arith.constant 24 : index
    %c0_153 = arith.constant 0 : index
    %168 = vector.load %arg20[%c24_152, %c0_153] : memref<160x128xf32, #tpu.memory_space<vmem>>, vector<128x128xf32>
    %c7_154 = arith.constant 7 : index
    %c0_155 = arith.constant 0 : index
    %c0_156 = arith.constant 0 : index
    %169 = vector.load %arg7[%c7_154, %c0_155, %c0_156] : memref<9x128x1xf32, #tpu.memory_space<vmem>>, vector<1x128x1xf32>
    %170 = vector.shape_cast %169 : vector<1x128x1xf32> to vector<128x1xf32>
    %171 = vector.broadcast %170 : vector<128x1xf32> to vector<128x128xf32>
    %172 = arith.mulf %168, %171 : vector<128x128xf32>
    %c7_157 = arith.constant 7 : index
    %c0_158 = arith.constant 0 : index
    %c0_159 = arith.constant 0 : index
    %173 = vector.load %arg5[%c7_157, %c0_158, %c0_159] : memref<9x128x128xf32, #tpu.memory_space<vmem>>, vector<1x128x128xf32>
    %174 = vector.shape_cast %173 : vector<1x128x128xf32> to vector<128x128xf32>
    %cst_160 = arith.constant dense<0.000000e+00> : vector<128x128xf32>
    %175 = tpu.matmul %172, %174, %cst_160 {dimension_numbers = #tpu.dot_dimension_numbers<[1], [0], [0], [1], [0, 0, 1, 1], [], []>} : vector<128x128xf32>, vector<128x128xf32>, vector<128x128xf32> -> vector<128x128xf32>
    %176 = arith.addf %167, %175 : vector<128x128xf32>
    %c25_161 = arith.constant 25 : index
    %c0_162 = arith.constant 0 : index
    %177 = vector.load %arg20[%c25_161, %c0_162] : memref<160x128xf32, #tpu.memory_space<vmem>>, vector<128x128xf32>
    %c8_163 = arith.constant 8 : index
    %c0_164 = arith.constant 0 : index
    %c0_165 = arith.constant 0 : index
    %178 = vector.load %arg7[%c8_163, %c0_164, %c0_165] : memref<9x128x1xf32, #tpu.memory_space<vmem>>, vector<1x128x1xf32>
    %179 = vector.shape_cast %178 : vector<1x128x1xf32> to vector<128x1xf32>
    %180 = vector.broadcast %179 : vector<128x1xf32> to vector<128x128xf32>
    %181 = arith.mulf %177, %180 : vector<128x128xf32>
    %c8_166 = arith.constant 8 : index
    %c0_167 = arith.constant 0 : index
    %c0_168 = arith.constant 0 : index
    %182 = vector.load %arg5[%c8_166, %c0_167, %c0_168] : memref<9x128x128xf32, #tpu.memory_space<vmem>>, vector<1x128x128xf32>
    %183 = vector.shape_cast %182 : vector<1x128x128xf32> to vector<128x128xf32>
    %cst_169 = arith.constant dense<0.000000e+00> : vector<128x128xf32>
    %184 = tpu.matmul %181, %183, %cst_169 {dimension_numbers = #tpu.dot_dimension_numbers<[1], [0], [0], [1], [0, 0, 1, 1], [], []>} : vector<128x128xf32>, vector<128x128xf32>, vector<128x128xf32> -> vector<128x128xf32>
    %185 = arith.addf %176, %184 : vector<128x128xf32>
    %c16_170 = arith.constant 16 : index
    %c0_171 = arith.constant 0 : index
    %186 = vector.load %arg20[%c16_170, %c0_171] : memref<160x128xf32, #tpu.memory_space<vmem>>, vector<128x128xf32>
    tpu.vector_store %arg20[%c16_170, %c0_171], %185 {strides = array<i32>} : memref<160x128xf32, #tpu.memory_space<vmem>>, vector<128x128xf32>,
    %c17_172 = arith.constant 17 : index
    %c0_173 = arith.constant 0 : index
    %187 = vector.load %arg20[%c17_172, %c0_173] : memref<160x128xf32, #tpu.memory_space<vmem>>, vector<128x128xf32>
    %188 = arith.maximumf %185, %187 : vector<128x128xf32>
    %c24_174 = arith.constant 24 : index
    %c0_175 = arith.constant 0 : index
    %189 = vector.load %arg20[%c24_174, %c0_175] : memref<160x128xf32, #tpu.memory_space<vmem>>, vector<128x128xf32>
    %c25_176 = arith.constant 25 : index
    %c0_177 = arith.constant 0 : index
    %190 = vector.load %arg20[%c25_176, %c0_177] : memref<160x128xf32, #tpu.memory_space<vmem>>, vector<128x128xf32>
    %191 = arith.maximumf %189, %190 : vector<128x128xf32>
    %192 = arith.maximumf %188, %191 : vector<128x128xf32>
    %cst_178 = arith.constant 0.000000e+00 : f32
    %193 = vector.broadcast %cst_178 : f32 to vector<128x128xf32>
    %194 = arith.maximumf %192, %193 : vector<128x128xf32>
    %c0_179 = arith.constant 0 : index
    %c0_180 = arith.constant 0 : index
    %195 = vector.load %arg8[%c0_179, %c0_180] : memref<32x128xf32, #tpu.memory_space<vmem>>, vector<32x128xf32>
    %cst_181 = arith.constant dense<0.000000e+00> : vector<32x128xf32>
    %196 = tpu.matmul %195, %194, %cst_181 {dimension_numbers = #tpu.dot_dimension_numbers<[1], [0], [0], [1], [0, 0, 1, 1], [], []>} : vector<32x128xf32>, vector<128x128xf32>, vector<32x128xf32> -> vector<32x128xf32>
    %cst_182 = arith.constant 0.000000e+00 : f32
    %197 = vector.broadcast %cst_182 : f32 to vector<48x128xf32>
    %c0_183 = arith.constant 0 : index
    %c0_184 = arith.constant 0 : index
    %198 = vector.load %arg21[%c0_183, %c0_184] : memref<48x128xf32, #tpu.memory_space<vmem>>, vector<48x128xf32>
    tpu.vector_store %arg21[%c0_183, %c0_184], %197 {strides = array<i32>} : memref<48x128xf32, #tpu.memory_space<vmem>>, vector<48x128xf32>,
    %c8_185 = arith.constant 8 : index
    %c0_186 = arith.constant 0 : index
    %199 = vector.load %arg21[%c8_185, %c0_186] : memref<48x128xf32, #tpu.memory_space<vmem>>, vector<32x128xf32>
    tpu.vector_store %arg21[%c8_185, %c0_186], %196 {strides = array<i32>} : memref<48x128xf32, #tpu.memory_space<vmem>>, vector<32x128xf32>,
    %c0_187 = arith.constant 0 : index
    %c0_188 = arith.constant 0 : index
    %200 = vector.load %arg10[%c0_187, %c0_188] : memref<1x128xf32, #tpu.memory_space<vmem>>, vector<1x128xf32>
    %201 = vector.shape_cast %200 : vector<1x128xf32> to vector<1x128xf32>
    %202 = vector.broadcast %201 : vector<1x128xf32> to vector<32x128xf32>
    %c3_189 = arith.constant 3 : index
    %c0_190 = arith.constant 0 : index
    %203 = vector.load %arg21[%c3_189, %c0_190] : memref<48x128xf32, #tpu.memory_space<vmem>>, vector<32x128xf32>
    %c0_191 = arith.constant 0 : index
    %c0_192 = arith.constant 0 : index
    %c0_193 = arith.constant 0 : index
    %204 = vector.load %arg11[%c0_191, %c0_192, %c0_193] : memref<9x32x1xf32, #tpu.memory_space<vmem>>, vector<1x32x1xf32>
    %205 = vector.shape_cast %204 : vector<1x32x1xf32> to vector<32x1xf32>
    %206 = vector.broadcast %205 : vector<32x1xf32> to vector<32x128xf32>
    %207 = arith.mulf %203, %206 : vector<32x128xf32>
    %c0_194 = arith.constant 0 : index
    %c0_195 = arith.constant 0 : index
    %c0_196 = arith.constant 0 : index
    %208 = vector.load %arg9[%c0_194, %c0_195, %c0_196] : memref<9x128x128xf32, #tpu.memory_space<vmem>>, vector<1x128x128xf32>
    %209 = vector.shape_cast %208 : vector<1x128x128xf32> to vector<128x128xf32>
    %cst_197 = arith.constant dense<0.000000e+00> : vector<32x128xf32>
    %210 = tpu.matmul %207, %209, %cst_197 {dimension_numbers = #tpu.dot_dimension_numbers<[1], [0], [0], [1], [0, 0, 1, 1], [], []>} : vector<32x128xf32>, vector<128x128xf32>, vector<32x128xf32> -> vector<32x128xf32>
    %211 = arith.addf %202, %210 : vector<32x128xf32>
    %c4_198 = arith.constant 4 : index
    %c0_199 = arith.constant 0 : index
    %212 = vector.load %arg21[%c4_198, %c0_199] : memref<48x128xf32, #tpu.memory_space<vmem>>, vector<32x128xf32>
    %c1_200 = arith.constant 1 : index
    %c0_201 = arith.constant 0 : index
    %c0_202 = arith.constant 0 : index
    %213 = vector.load %arg11[%c1_200, %c0_201, %c0_202] : memref<9x32x1xf32, #tpu.memory_space<vmem>>, vector<1x32x1xf32>
    %214 = vector.shape_cast %213 : vector<1x32x1xf32> to vector<32x1xf32>
    %215 = vector.broadcast %214 : vector<32x1xf32> to vector<32x128xf32>
    %216 = arith.mulf %212, %215 : vector<32x128xf32>
    %c1_203 = arith.constant 1 : index
    %c0_204 = arith.constant 0 : index
    %c0_205 = arith.constant 0 : index
    %217 = vector.load %arg9[%c1_203, %c0_204, %c0_205] : memref<9x128x128xf32, #tpu.memory_space<vmem>>, vector<1x128x128xf32>
    %218 = vector.shape_cast %217 : vector<1x128x128xf32> to vector<128x128xf32>
    %cst_206 = arith.constant dense<0.000000e+00> : vector<32x128xf32>
    %219 = tpu.matmul %216, %218, %cst_206 {dimension_numbers = #tpu.dot_dimension_numbers<[1], [0], [0], [1], [0, 0, 1, 1], [], []>} : vector<32x128xf32>, vector<128x128xf32>, vector<32x128xf32> -> vector<32x128xf32>
    %220 = arith.addf %211, %219 : vector<32x128xf32>
    %c5_207 = arith.constant 5 : index
    %c0_208 = arith.constant 0 : index
    %221 = vector.load %arg21[%c5_207, %c0_208] : memref<48x128xf32, #tpu.memory_space<vmem>>, vector<32x128xf32>
    %c2_209 = arith.constant 2 : index
    %c0_210 = arith.constant 0 : index
    %c0_211 = arith.constant 0 : index
    %222 = vector.load %arg11[%c2_209, %c0_210, %c0_211] : memref<9x32x1xf32, #tpu.memory_space<vmem>>, vector<1x32x1xf32>
    %223 = vector.shape_cast %222 : vector<1x32x1xf32> to vector<32x1xf32>
    %224 = vector.broadcast %223 : vector<32x1xf32> to vector<32x128xf32>
    %225 = arith.mulf %221, %224 : vector<32x128xf32>
    %c2_212 = arith.constant 2 : index
    %c0_213 = arith.constant 0 : index
    %c0_214 = arith.constant 0 : index
    %226 = vector.load %arg9[%c2_212, %c0_213, %c0_214] : memref<9x128x128xf32, #tpu.memory_space<vmem>>, vector<1x128x128xf32>
    %227 = vector.shape_cast %226 : vector<1x128x128xf32> to vector<128x128xf32>
    %cst_215 = arith.constant dense<0.000000e+00> : vector<32x128xf32>
    %228 = tpu.matmul %225, %227, %cst_215 {dimension_numbers = #tpu.dot_dimension_numbers<[1], [0], [0], [1], [0, 0, 1, 1], [], []>} : vector<32x128xf32>, vector<128x128xf32>, vector<32x128xf32> -> vector<32x128xf32>
    %229 = arith.addf %220, %228 : vector<32x128xf32>
    %c7_216 = arith.constant 7 : index
    %c0_217 = arith.constant 0 : index
    %230 = vector.load %arg21[%c7_216, %c0_217] : memref<48x128xf32, #tpu.memory_space<vmem>>, vector<32x128xf32>
    %c3_218 = arith.constant 3 : index
    %c0_219 = arith.constant 0 : index
    %c0_220 = arith.constant 0 : index
    %231 = vector.load %arg11[%c3_218, %c0_219, %c0_220] : memref<9x32x1xf32, #tpu.memory_space<vmem>>, vector<1x32x1xf32>
    %232 = vector.shape_cast %231 : vector<1x32x1xf32> to vector<32x1xf32>
    %233 = vector.broadcast %232 : vector<32x1xf32> to vector<32x128xf32>
    %234 = arith.mulf %230, %233 : vector<32x128xf32>
    %c3_221 = arith.constant 3 : index
    %c0_222 = arith.constant 0 : index
    %c0_223 = arith.constant 0 : index
    %235 = vector.load %arg9[%c3_221, %c0_222, %c0_223] : memref<9x128x128xf32, #tpu.memory_space<vmem>>, vector<1x128x128xf32>
    %236 = vector.shape_cast %235 : vector<1x128x128xf32> to vector<128x128xf32>
    %cst_224 = arith.constant dense<0.000000e+00> : vector<32x128xf32>
    %237 = tpu.matmul %234, %236, %cst_224 {dimension_numbers = #tpu.dot_dimension_numbers<[1], [0], [0], [1], [0, 0, 1, 1], [], []>} : vector<32x128xf32>, vector<128x128xf32>, vector<32x128xf32> -> vector<32x128xf32>
    %238 = arith.addf %229, %237 : vector<32x128xf32>
    %c8_225 = arith.constant 8 : index
    %c0_226 = arith.constant 0 : index
    %239 = vector.load %arg21[%c8_225, %c0_226] : memref<48x128xf32, #tpu.memory_space<vmem>>, vector<32x128xf32>
    %c4_227 = arith.constant 4 : index
    %c0_228 = arith.constant 0 : index
    %c0_229 = arith.constant 0 : index
    %240 = vector.load %arg11[%c4_227, %c0_228, %c0_229] : memref<9x32x1xf32, #tpu.memory_space<vmem>>, vector<1x32x1xf32>
    %241 = vector.shape_cast %240 : vector<1x32x1xf32> to vector<32x1xf32>
    %242 = vector.broadcast %241 : vector<32x1xf32> to vector<32x128xf32>
    %243 = arith.mulf %239, %242 : vector<32x128xf32>
    %c4_230 = arith.constant 4 : index
    %c0_231 = arith.constant 0 : index
    %c0_232 = arith.constant 0 : index
    %244 = vector.load %arg9[%c4_230, %c0_231, %c0_232] : memref<9x128x128xf32, #tpu.memory_space<vmem>>, vector<1x128x128xf32>
    %245 = vector.shape_cast %244 : vector<1x128x128xf32> to vector<128x128xf32>
    %cst_233 = arith.constant dense<0.000000e+00> : vector<32x128xf32>
    %246 = tpu.matmul %243, %245, %cst_233 {dimension_numbers = #tpu.dot_dimension_numbers<[1], [0], [0], [1], [0, 0, 1, 1], [], []>} : vector<32x128xf32>, vector<128x128xf32>, vector<32x128xf32> -> vector<32x128xf32>
    %247 = arith.addf %238, %246 : vector<32x128xf32>
    %c9_234 = arith.constant 9 : index
    %c0_235 = arith.constant 0 : index
    %248 = vector.load %arg21[%c9_234, %c0_235] : memref<48x128xf32, #tpu.memory_space<vmem>>, vector<32x128xf32>
    %c5_236 = arith.constant 5 : index
    %c0_237 = arith.constant 0 : index
    %c0_238 = arith.constant 0 : index
    %249 = vector.load %arg11[%c5_236, %c0_237, %c0_238] : memref<9x32x1xf32, #tpu.memory_space<vmem>>, vector<1x32x1xf32>
    %250 = vector.shape_cast %249 : vector<1x32x1xf32> to vector<32x1xf32>
    %251 = vector.broadcast %250 : vector<32x1xf32> to vector<32x128xf32>
    %252 = arith.mulf %248, %251 : vector<32x128xf32>
    %c5_239 = arith.constant 5 : index
    %c0_240 = arith.constant 0 : index
    %c0_241 = arith.constant 0 : index
    %253 = vector.load %arg9[%c5_239, %c0_240, %c0_241] : memref<9x128x128xf32, #tpu.memory_space<vmem>>, vector<1x128x128xf32>
    %254 = vector.shape_cast %253 : vector<1x128x128xf32> to vector<128x128xf32>
    %cst_242 = arith.constant dense<0.000000e+00> : vector<32x128xf32>
    %255 = tpu.matmul %252, %254, %cst_242 {dimension_numbers = #tpu.dot_dimension_numbers<[1], [0], [0], [1], [0, 0, 1, 1], [], []>} : vector<32x128xf32>, vector<128x128xf32>, vector<32x128xf32> -> vector<32x128xf32>
    %256 = arith.addf %247, %255 : vector<32x128xf32>
    %c11 = arith.constant 11 : index
    %c0_243 = arith.constant 0 : index
    %257 = vector.load %arg21[%c11, %c0_243] : memref<48x128xf32, #tpu.memory_space<vmem>>, vector<32x128xf32>
    %c6_244 = arith.constant 6 : index
    %c0_245 = arith.constant 0 : index
    %c0_246 = arith.constant 0 : index
    %258 = vector.load %arg11[%c6_244, %c0_245, %c0_246] : memref<9x32x1xf32, #tpu.memory_space<vmem>>, vector<1x32x1xf32>
    %259 = vector.shape_cast %258 : vector<1x32x1xf32> to vector<32x1xf32>
    %260 = vector.broadcast %259 : vector<32x1xf32> to vector<32x128xf32>
    %261 = arith.mulf %257, %260 : vector<32x128xf32>
    %c6_247 = arith.constant 6 : index
    %c0_248 = arith.constant 0 : index
    %c0_249 = arith.constant 0 : index
    %262 = vector.load %arg9[%c6_247, %c0_248, %c0_249] : memref<9x128x128xf32, #tpu.memory_space<vmem>>, vector<1x128x128xf32>
    %263 = vector.shape_cast %262 : vector<1x128x128xf32> to vector<128x128xf32>
    %cst_250 = arith.constant dense<0.000000e+00> : vector<32x128xf32>
    %264 = tpu.matmul %261, %263, %cst_250 {dimension_numbers = #tpu.dot_dimension_numbers<[1], [0], [0], [1], [0, 0, 1, 1], [], []>} : vector<32x128xf32>, vector<128x128xf32>, vector<32x128xf32> -> vector<32x128xf32>
    %265 = arith.addf %256, %264 : vector<32x128xf32>
    %c12 = arith.constant 12 : index
    %c0_251 = arith.constant 0 : index
    %266 = vector.load %arg21[%c12, %c0_251] : memref<48x128xf32, #tpu.memory_space<vmem>>, vector<32x128xf32>
    %c7_252 = arith.constant 7 : index
    %c0_253 = arith.constant 0 : index
    %c0_254 = arith.constant 0 : index
    %267 = vector.load %arg11[%c7_252, %c0_253, %c0_254] : memref<9x32x1xf32, #tpu.memory_space<vmem>>, vector<1x32x1xf32>
    %268 = vector.shape_cast %267 : vector<1x32x1xf32> to vector<32x1xf32>
    %269 = vector.broadcast %268 : vector<32x1xf32> to vector<32x128xf32>
    %270 = arith.mulf %266, %269 : vector<32x128xf32>
    %c7_255 = arith.constant 7 : index
    %c0_256 = arith.constant 0 : index
    %c0_257 = arith.constant 0 : index
    %271 = vector.load %arg9[%c7_255, %c0_256, %c0_257] : memref<9x128x128xf32, #tpu.memory_space<vmem>>, vector<1x128x128xf32>
    %272 = vector.shape_cast %271 : vector<1x128x128xf32> to vector<128x128xf32>
    %cst_258 = arith.constant dense<0.000000e+00> : vector<32x128xf32>
    %273 = tpu.matmul %270, %272, %cst_258 {dimension_numbers = #tpu.dot_dimension_numbers<[1], [0], [0], [1], [0, 0, 1, 1], [], []>} : vector<32x128xf32>, vector<128x128xf32>, vector<32x128xf32> -> vector<32x128xf32>
    %274 = arith.addf %265, %273 : vector<32x128xf32>
    %c13 = arith.constant 13 : index
    %c0_259 = arith.constant 0 : index
    %275 = vector.load %arg21[%c13, %c0_259] : memref<48x128xf32, #tpu.memory_space<vmem>>, vector<32x128xf32>
    %c8_260 = arith.constant 8 : index
    %c0_261 = arith.constant 0 : index
    %c0_262 = arith.constant 0 : index
    %276 = vector.load %arg11[%c8_260, %c0_261, %c0_262] : memref<9x32x1xf32, #tpu.memory_space<vmem>>, vector<1x32x1xf32>
    %277 = vector.shape_cast %276 : vector<1x32x1xf32> to vector<32x1xf32>
    %278 = vector.broadcast %277 : vector<32x1xf32> to vector<32x128xf32>
    %279 = arith.mulf %275, %278 : vector<32x128xf32>
    %c8_263 = arith.constant 8 : index
    %c0_264 = arith.constant 0 : index
    %c0_265 = arith.constant 0 : index
    %280 = vector.load %arg9[%c8_263, %c0_264, %c0_265] : memref<9x128x128xf32, #tpu.memory_space<vmem>>, vector<1x128x128xf32>
    %281 = vector.shape_cast %280 : vector<1x128x128xf32> to vector<128x128xf32>
    %cst_266 = arith.constant dense<0.000000e+00> : vector<32x128xf32>
    %282 = tpu.matmul %279, %281, %cst_266 {dimension_numbers = #tpu.dot_dimension_numbers<[1], [0], [0], [1], [0, 0, 1, 1], [], []>} : vector<32x128xf32>, vector<128x128xf32>, vector<32x128xf32> -> vector<32x128xf32>
    %283 = arith.addf %274, %282 : vector<32x128xf32>
    %c8_267 = arith.constant 8 : index
    %c0_268 = arith.constant 0 : index
    %284 = vector.load %arg21[%c8_267, %c0_268] : memref<48x128xf32, #tpu.memory_space<vmem>>, vector<32x128xf32>
    tpu.vector_store %arg21[%c8_267, %c0_268], %283 {strides = array<i32>} : memref<48x128xf32, #tpu.memory_space<vmem>>, vector<32x128xf32>,
    %c9_269 = arith.constant 9 : index
    %c0_270 = arith.constant 0 : index
    %285 = vector.load %arg21[%c9_269, %c0_270] : memref<48x128xf32, #tpu.memory_space<vmem>>, vector<32x128xf32>
    %286 = arith.maximumf %283, %285 : vector<32x128xf32>
    %c12_271 = arith.constant 12 : index
    %c0_272 = arith.constant 0 : index
    %287 = vector.load %arg21[%c12_271, %c0_272] : memref<48x128xf32, #tpu.memory_space<vmem>>, vector<32x128xf32>
    %c13_273 = arith.constant 13 : index
    %c0_274 = arith.constant 0 : index
    %288 = vector.load %arg21[%c13_273, %c0_274] : memref<48x128xf32, #tpu.memory_space<vmem>>, vector<32x128xf32>
    %289 = arith.maximumf %287, %288 : vector<32x128xf32>
    %290 = arith.maximumf %286, %289 : vector<32x128xf32>
    %cst_275 = arith.constant 0.000000e+00 : f32
    %291 = vector.broadcast %cst_275 : f32 to vector<32x128xf32>
    %292 = arith.maximumf %290, %291 : vector<32x128xf32>
    %c0_276 = arith.constant 0 : index
    %c0_277 = arith.constant 0 : index
    %293 = vector.load %arg12[%c0_276, %c0_277] : memref<8x32xf32, #tpu.memory_space<vmem>>, vector<8x32xf32>
    %cst_278 = arith.constant dense<0.000000e+00> : vector<8x128xf32>
    %294 = tpu.matmul %293, %292, %cst_278 {dimension_numbers = #tpu.dot_dimension_numbers<[1], [0], [0], [1], [0, 0, 1, 1], [], []>} : vector<8x32xf32>, vector<32x128xf32>, vector<8x128xf32> -> vector<8x128xf32>
    %cst_279 = arith.constant 0.000000e+00 : f32
    %295 = vector.broadcast %cst_279 : f32 to vector<2x128xf32>
    %c0_280 = arith.constant 0 : index
    %c0_281 = arith.constant 0 : index
    %c0_282 = arith.constant 0 : index
    %296 = vector.load %arg13[%c0_280, %c0_281, %c0_282] : memref<4x2x8xf32, #tpu.memory_space<vmem>>, vector<1x2x8xf32>
    %297 = vector.shape_cast %296 : vector<1x2x8xf32> to vector<2x8xf32>
    %cst_283 = arith.constant dense<0.000000e+00> : vector<2x128xf32>
    %298 = tpu.matmul %297, %294, %cst_283 {dimension_numbers = #tpu.dot_dimension_numbers<[1], [0], [0], [1], [0, 0, 1, 1], [], []>} : vector<2x8xf32>, vector<8x128xf32>, vector<2x128xf32> -> vector<2x128xf32>
    %c0_284 = arith.constant 0 : index
    %c0_285 = arith.constant 0 : index
    %c0_286 = arith.constant 0 : index
    %299 = vector.load %arg14[%c0_284, %c0_285, %c0_286] : memref<4x128x128xf32, #tpu.memory_space<vmem>>, vector<1x128x128xf32>
    %300 = vector.shape_cast %299 : vector<1x128x128xf32> to vector<128x128xf32>
    %cst_287 = arith.constant dense<0.000000e+00> : vector<2x128xf32>
    %301 = tpu.matmul %298, %300, %cst_287 {dimension_numbers = #tpu.dot_dimension_numbers<[1], [0], [0], [1], [0, 0, 1, 1], [], []>} : vector<2x128xf32>, vector<128x128xf32>, vector<2x128xf32> -> vector<2x128xf32>
    %302 = arith.addf %295, %301 : vector<2x128xf32>
    %c1_288 = arith.constant 1 : index
    %c0_289 = arith.constant 0 : index
    %c0_290 = arith.constant 0 : index
    %303 = vector.load %arg13[%c1_288, %c0_289, %c0_290] : memref<4x2x8xf32, #tpu.memory_space<vmem>>, vector<1x2x8xf32>
    %304 = vector.shape_cast %303 : vector<1x2x8xf32> to vector<2x8xf32>
    %cst_291 = arith.constant dense<0.000000e+00> : vector<2x128xf32>
    %305 = tpu.matmul %304, %294, %cst_291 {dimension_numbers = #tpu.dot_dimension_numbers<[1], [0], [0], [1], [0, 0, 1, 1], [], []>} : vector<2x8xf32>, vector<8x128xf32>, vector<2x128xf32> -> vector<2x128xf32>
    %c1_292 = arith.constant 1 : index
    %c0_293 = arith.constant 0 : index
    %c0_294 = arith.constant 0 : index
    %306 = vector.load %arg14[%c1_292, %c0_293, %c0_294] : memref<4x128x128xf32, #tpu.memory_space<vmem>>, vector<1x128x128xf32>
    %307 = vector.shape_cast %306 : vector<1x128x128xf32> to vector<128x128xf32>
    %cst_295 = arith.constant dense<0.000000e+00> : vector<2x128xf32>
    %308 = tpu.matmul %305, %307, %cst_295 {dimension_numbers = #tpu.dot_dimension_numbers<[1], [0], [0], [1], [0, 0, 1, 1], [], []>} : vector<2x128xf32>, vector<128x128xf32>, vector<2x128xf32> -> vector<2x128xf32>
    %309 = arith.addf %302, %308 : vector<2x128xf32>
    %c2_296 = arith.constant 2 : index
    %c0_297 = arith.constant 0 : index
    %c0_298 = arith.constant 0 : index
    %310 = vector.load %arg13[%c2_296, %c0_297, %c0_298] : memref<4x2x8xf32, #tpu.memory_space<vmem>>, vector<1x2x8xf32>
    %311 = vector.shape_cast %310 : vector<1x2x8xf32> to vector<2x8xf32>
    %cst_299 = arith.constant dense<0.000000e+00> : vector<2x128xf32>
    %312 = tpu.matmul %311, %294, %cst_299 {dimension_numbers = #tpu.dot_dimension_numbers<[1], [0], [0], [1], [0, 0, 1, 1], [], []>} : vector<2x8xf32>, vector<8x128xf32>, vector<2x128xf32> -> vector<2x128xf32>
    %c2_300 = arith.constant 2 : index
    %c0_301 = arith.constant 0 : index
    %c0_302 = arith.constant 0 : index
    %313 = vector.load %arg14[%c2_300, %c0_301, %c0_302] : memref<4x128x128xf32, #tpu.memory_space<vmem>>, vector<1x128x128xf32>
    %314 = vector.shape_cast %313 : vector<1x128x128xf32> to vector<128x128xf32>
    %cst_303 = arith.constant dense<0.000000e+00> : vector<2x128xf32>
    %315 = tpu.matmul %312, %314, %cst_303 {dimension_numbers = #tpu.dot_dimension_numbers<[1], [0], [0], [1], [0, 0, 1, 1], [], []>} : vector<2x128xf32>, vector<128x128xf32>, vector<2x128xf32> -> vector<2x128xf32>
    %316 = arith.addf %309, %315 : vector<2x128xf32>
    %c3_304 = arith.constant 3 : index
    %c0_305 = arith.constant 0 : index
    %c0_306 = arith.constant 0 : index
    %317 = vector.load %arg13[%c3_304, %c0_305, %c0_306] : memref<4x2x8xf32, #tpu.memory_space<vmem>>, vector<1x2x8xf32>
    %318 = vector.shape_cast %317 : vector<1x2x8xf32> to vector<2x8xf32>
    %cst_307 = arith.constant dense<0.000000e+00> : vector<2x128xf32>
    %319 = tpu.matmul %318, %294, %cst_307 {dimension_numbers = #tpu.dot_dimension_numbers<[1], [0], [0], [1], [0, 0, 1, 1], [], []>} : vector<2x8xf32>, vector<8x128xf32>, vector<2x128xf32> -> vector<2x128xf32>
    %c3_308 = arith.constant 3 : index
    %c0_309 = arith.constant 0 : index
    %c0_310 = arith.constant 0 : index
    %320 = vector.load %arg14[%c3_308, %c0_309, %c0_310] : memref<4x128x128xf32, #tpu.memory_space<vmem>>, vector<1x128x128xf32>
    %321 = vector.shape_cast %320 : vector<1x128x128xf32> to vector<128x128xf32>
    %cst_311 = arith.constant dense<0.000000e+00> : vector<2x128xf32>
    %322 = tpu.matmul %319, %321, %cst_311 {dimension_numbers = #tpu.dot_dimension_numbers<[1], [0], [0], [1], [0, 0, 1, 1], [], []>} : vector<2x128xf32>, vector<128x128xf32>, vector<2x128xf32> -> vector<2x128xf32>
    %323 = arith.addf %316, %322 : vector<2x128xf32>
    %c0_312 = arith.constant 0 : index
    %c0_313 = arith.constant 0 : index
    %324 = vector.load %arg15[%c0_312, %c0_313] : memref<1x128xf32, #tpu.memory_space<vmem>>, vector<1x128xf32>
    %325 = vector.broadcast %324 : vector<1x128xf32> to vector<2x128xf32>
    %326 = arith.addf %323, %325 : vector<2x128xf32>
    %cst_314 = arith.constant 0.000000e+00 : f32
    %327 = vector.broadcast %cst_314 : f32 to vector<2x128xf32>
    %328 = arith.maximumf %326, %327 : vector<2x128xf32>
    %c0_315 = arith.constant 0 : index
    %c0_316 = arith.constant 0 : index
    %329 = vector.load %arg16[%c0_315, %c0_316] : memref<128x128xf32, #tpu.memory_space<vmem>>, vector<128x128xf32>
    %cst_317 = arith.constant dense<0.000000e+00> : vector<2x128xf32>
    %330 = tpu.matmul %328, %329, %cst_317 {dimension_numbers = #tpu.dot_dimension_numbers<[1], [0], [0], [1], [0, 0, 1, 1], [], []>} : vector<2x128xf32>, vector<128x128xf32>, vector<2x128xf32> -> vector<2x128xf32>
    %c0_318 = arith.constant 0 : index
    %c0_319 = arith.constant 0 : index
    %331 = vector.load %arg17[%c0_318, %c0_319] : memref<1x128xf32, #tpu.memory_space<vmem>>, vector<1x128xf32>
    %332 = vector.broadcast %331 : vector<1x128xf32> to vector<2x128xf32>
    %333 = arith.addf %330, %332 : vector<2x128xf32>
    %cst_320 = arith.constant 0.000000e+00 : f32
    %334 = vector.broadcast %cst_320 : f32 to vector<2x128xf32>
    %335 = arith.maximumf %333, %334 : vector<2x128xf32>
    %cst_321 = arith.constant 0.000000e+00 : f32
    %336 = vector.broadcast %cst_321 : f32 to vector<2x128xf32>
    %337 = arith.subf %336, %335 : vector<2x128xf32>
    %338 = math.exp %337 : vector<2x128xf32>
    %cst_322 = arith.constant 1.000000e+00 : f32
    %339 = vector.broadcast %cst_322 : f32 to vector<2x128xf32>
    %340 = arith.addf %339, %338 : vector<2x128xf32>
    %cst_323 = arith.constant 1.000000e+00 : f32
    %341 = vector.broadcast %cst_323 : f32 to vector<2x128xf32>
    %342 = arith.divf %341, %340 : vector<2x128xf32>
    %c0_324 = arith.constant 0 : index
    %c0_325 = arith.constant 0 : index
    %343 = vector.load %arg18[%c0_324, %c0_325] : memref<2x128xf32, #tpu.memory_space<vmem>>, vector<2x128xf32>
    tpu.vector_store %arg18[%c0_324, %c0_325], %342 {strides = array<i32>} : memref<2x128xf32, #tpu.memory_space<vmem>>, vector<2x128xf32>,
    return
  }
}

</mosaic_0001>

<llo_original>
// kernel: tile.8
$region0: #{tile.8}
  #allocation2 [shape = 's32[1]{0}', space=sflag, size = 0x4, scoped, tag = 'scoped memory for tile.8']
  %s0 = inlined_call_operand.hbm [shape: f32[32], index: 0, kind: input, shape index: {}]
  %s1 = inlined_call_operand.vmem [shape: f32[4,32], index: 1, kind: output, shape index: {}]
  $region1: #{tile.8} parent=0
    #allocation0 [shape = 'u8[512]{0}', space=vmem, size = 0x400, scoped, tag = 'operand span for operand 0']
    #allocation1 [shape = 's32[1]{0}', space=sflag, size = 0x4, scoped, tag = 'scoped memory for tile.8']
    %2 = vsyncpa [#allocation1], 0
    // Predicated region
    $region2: #{tile.8} parent=1 // pred_check
      _
    $region3: #{tile.8} parent=1 // pred_check_branch
      %4 = sbr.rel (0) target = $region5
    $region4: #{tile.8} parent=1 // pred_region
      %6 = vsyncadd [#allocation1], 0
      %s8 = sshll.u32 %s0, 4
      %s9 = int_to_ptr.hbm [resolvable:$true] %s8
      %s10 = sshll.u32 [#allocation0], 4
      %s11 = int_to_ptr.vmem [resolvable:$true] %s10
      %13 = dma.hbm_to_vmem [thread:$0]  %s9, 16, %s11, [#allocation1]
    $region5: #{tile.8} parent=1 // pred_fallthru
      _
    // Predicated region
    $region6: #{tile.8} parent=1 // pred_check
      _
    $region7: #{tile.8} parent=1 // pred_check_branch
      %15 = sbr.rel (0) target = $region9
    $region8: #{tile.8} parent=1 // pred_region
      %17 = dma.done [#allocation1], 16
    $region9: #{tile.8} parent=1 // pred_fallthru
      _
    %v18 = vld [vmem:[#allocation0] ss:$0 sm:$0xff]
    %19 = vst [vmem:[%s1] sm:$0xf] %v18
    %20 = vsyncpa [#allocation1], 1

// kernel: tile.9
$region0: #{tile.9}
  %s0 = inlined_call_operand.vmem [shape: f32[4,32], index: 0, kind: input, shape index: {}]
  %s1 = inlined_call_operand.vmem [shape: f32[1,128], index: 1, kind: output, shape index: {}]
  $region1: #{tile.9} parent=0
    #allocation0 [shape = 'u8[4096]{0}', space=vmem, size = 0x1000, scoped, tag = 'scoped mem for output reshape']
    #allocation1 [shape = 'u8[4096]{0}', space=vmem, size = 0x1000, scoped, tag = 'scoped mem for input reshape']
    %s3 = ssub.s32 16, 1
    %v4 = vld [vmem:[%s0] sm:%s3]
    %5 = vst [vmem:[#allocation1] sm:%s3] %v4
    %v6 = vld [vmem:[#allocation1] sm:$0x1]
    %vm7 = vcmask 261120
    %8 = vst.msk [vmem:[#allocation0] sm:$0x1] %vm7, %v6
    %s9 = scalar_lea.vmem [#allocation1], 3
    %v10 = vld [vmem:[%s9] sm:$0x1]
    %11 = vrot.lane.b32.xlu0 %v10, 96
    %v12 = vpop.permute.xlu0 %11
    %vm13 = vcmask 1048320
    %14 = vst.msk [vmem:[#allocation0] sm:$0x1] %vm13, %v12
    %s15 = scalar_lea.vmem [#allocation1], 2
    %v16 = vld [vmem:[%s15] sm:$0x1]
    %17 = vrot.lane.b32.xlu0 %v16, 64
    %v18 = vpop.permute.xlu0 %17
    %vm19 = vcmask 785920
    %20 = vst.msk [vmem:[#allocation0] sm:$0x1] %vm19, %v18
    %s21 = scalar_lea.vmem [#allocation1], 1
    %v22 = vld [vmem:[%s21] sm:$0x1]
    %23 = vrot.lane.b32.xlu0 %v22, 32
    %v24 = vpop.permute.xlu0 %23
    %vm25 = vcmask 523520
    %26 = vst.msk [vmem:[#allocation0] sm:$0x1] %vm25, %v24
    %s28 = ssub.s32 2, 1
    %v29 = vld [vmem:[#allocation0] sm:%s28]
    %s31 = ssub.s32 2, 1
    %32 = vst [vmem:[%s1] sm:%s31] %v29

// kernel: netz_forward.1
$region0: #{netz_forward.1}
  #allocation0 [shape = 'u32[]', space=smem, size = 0x4, offset = 0x4, fixed_abs, tag = 'smem constant byte address 0x4 - core index']
  #allocation1 [shape = 'u32[72,128]{1,0:T(1,128)}', space=vmem, size = 0x9000, scoped, tag = 'internal scratch']
  #allocation2 [shape = 'f32[560,128]{1,0:T(8,128)}', space=vmem, size = 0x46000, scoped, tag = 'scratch operand']
  #allocation3 [shape = 'f32[160,128]{1,0:T(8,128)}', space=vmem, size = 0x14000, scoped, tag = 'scratch operand']
  #allocation4 [shape = 'f32[48,128]{1,0:T(8,128)}', space=vmem, size = 0x6000, scoped, tag = 'scratch operand']
  %s0 = inlined_call_operand.vmem [shape: f32[512,128], index: 0, kind: input, shape index: {}]
  %s1 = inlined_call_operand.vmem [shape: f32[9,128,128], index: 1, kind: input, shape index: {}]
  %s2 = inlined_call_operand.vmem [shape: f32[1,128], index: 2, kind: input, shape index: {}]
  %s3 = inlined_call_operand.vmem [shape: f32[9,512,1], index: 3, kind: input, shape index: {}]
  %s4 = inlined_call_operand.vmem [shape: f32[128,512], index: 4, kind: input, shape index: {}]
  %s5 = inlined_call_operand.vmem [shape: f32[9,128,128], index: 5, kind: input, shape index: {}]
  %s6 = inlined_call_operand.vmem [shape: f32[1,128], index: 6, kind: input, shape index: {}]
  %s7 = inlined_call_operand.vmem [shape: f32[9,128,1], index: 7, kind: input, shape index: {}]
  %s8 = inlined_call_operand.vmem [shape: f32[32,128], index: 8, kind: input, shape index: {}]
  %s9 = inlined_call_operand.vmem [shape: f32[9,128,128], index: 9, kind: input, shape index: {}]
  %s10 = inlined_call_operand.vmem [shape: f32[1,128], index: 10, kind: input, shape index: {}]
  %s11 = inlined_call_operand.vmem [shape: f32[9,32,1], index: 11, kind: input, shape index: {}]
  %s12 = inlined_call_operand.vmem [shape: f32[8,32], index: 12, kind: input, shape index: {}]
  %s13 = inlined_call_operand.vmem [shape: f32[4,2,8], index: 13, kind: input, shape index: {}]
  %s14 = inlined_call_operand.vmem [shape: f32[4,128,128], index: 14, kind: input, shape index: {}]
  %s15 = inlined_call_operand.vmem [shape: f32[1,128], index: 15, kind: input, shape index: {}]
  %s16 = inlined_call_operand.vmem [shape: f32[128,128], index: 16, kind: input, shape index: {}]
  %s17 = inlined_call_operand.vmem [shape: f32[1,128], index: 17, kind: input, shape index: {}]
  %s18 = inlined_call_operand.vmem [shape: f32[2,128], index: 18, kind: output, shape index: {}]
  %s19 = sld [smem:[#allocation0]]
  $region82: #{netz_forward.1} parent=0
    _
  %s21 = ssub.s32 1, %s19
  %s22 = scalar_select 0, %s21, %s19
  // Predicated region
  $region2: #{netz_forward.1} parent=0 // pred_check
    _
  $region3: #{netz_forward.1} parent=0 // pred_check_branch
    %24 = sbr.rel (0) target = $region5
  $region4: #{netz_forward.1} parent=0 // pred_region
    _
  $region5: #{netz_forward.1} parent=0 // pred_fallthru
    _
  // Predicated region
  $region6: #{netz_forward.1} parent=0 // pred_check
    _
  $region7: #{netz_forward.1} parent=0 // pred_check_branch
    %26 = sbr.rel (0) target = $region9
  $region8: #{netz_forward.1} parent=0 // pred_region
    _
  $region9: #{netz_forward.1} parent=0 // pred_fallthru
    _
  // Predicated region
  $region10: #{netz_forward.1} parent=0 // pred_check
    _
  $region11: #{netz_forward.1} parent=0 // pred_check_branch
    %28 = sbr.rel (0) target = $region13
  $region12: #{netz_forward.1} parent=0 // pred_region
    _
  $region13: #{netz_forward.1} parent=0 // pred_fallthru
    _
  // Predicated region
  $region14: #{netz_forward.1} parent=0 // pred_check
    _
  $region15: #{netz_forward.1} parent=0 // pred_check_branch
    %30 = sbr.rel (0) target = $region17
  $region16: #{netz_forward.1} parent=0 // pred_region
    _
  $region17: #{netz_forward.1} parent=0 // pred_fallthru
    _
  // Predicated region
  $region18: #{netz_forward.1} parent=0 // pred_check
    _
  $region19: #{netz_forward.1} parent=0 // pred_check_branch
    %32 = sbr.rel (0) target = $region21
  $region20: #{netz_forward.1} parent=0 // pred_region
    _
  $region21: #{netz_forward.1} parent=0 // pred_fallthru
    _
  // Predicated region
  $region22: #{netz_forward.1} parent=0 // pred_check
    _
  $region23: #{netz_forward.1} parent=0 // pred_check_branch
    %34 = sbr.rel (0) target = $region25
  $region24: #{netz_forward.1} parent=0 // pred_region
    _
  $region25: #{netz_forward.1} parent=0 // pred_fallthru
    _
  // Predicated region
  $region26: #{netz_forward.1} parent=0 // pred_check
    _
  $region27: #{netz_forward.1} parent=0 // pred_check_branch
    %36 = sbr.rel (0) target = $region29
  $region28: #{netz_forward.1} parent=0 // pred_region
    _
  $region29: #{netz_forward.1} parent=0 // pred_fallthru
    _
  // Predicated region
  $region30: #{netz_forward.1} parent=0 // pred_check
    _
  $region31: #{netz_forward.1} parent=0 // pred_check_branch
    %38 = sbr.rel (0) target = $region33
  $region32: #{netz_forward.1} parent=0 // pred_region
    _
  $region33: #{netz_forward.1} parent=0 // pred_fallthru
    _
  // Predicated region
  $region34: #{netz_forward.1} parent=0 // pred_check
    _
  $region35: #{netz_forward.1} parent=0 // pred_check_branch
    %40 = sbr.rel (0) target = $region37
  $region36: #{netz_forward.1} parent=0 // pred_region
    _
  $region37: #{netz_forward.1} parent=0 // pred_fallthru
    _
  // Predicated region
  $region38: #{netz_forward.1} parent=0 // pred_check
    _
  $region39: #{netz_forward.1} parent=0 // pred_check_branch
    %42 = sbr.rel (0) target = $region41
  $region40: #{netz_forward.1} parent=0 // pred_region
    _
  $region41: #{netz_forward.1} parent=0 // pred_fallthru
    _
  // Predicated region
  $region42: #{netz_forward.1} parent=0 // pred_check
    _
  $region43: #{netz_forward.1} parent=0 // pred_check_branch
    %44 = sbr.rel (0) target = $region45
  $region44: #{netz_forward.1} parent=0 // pred_region
    _
  $region45: #{netz_forward.1} parent=0 // pred_fallthru
    _
  // Predicated region
  $region46: #{netz_forward.1} parent=0 // pred_check
    _
  $region47: #{netz_forward.1} parent=0 // pred_check_branch
    %46 = sbr.rel (0) target = $region49
  $region48: #{netz_forward.1} parent=0 // pred_region
    _
  $region49: #{netz_forward.1} parent=0 // pred_fallthru
    _
  // Predicated region
  $region50: #{netz_forward.1} parent=0 // pred_check
    _
  $region51: #{netz_forward.1} parent=0 // pred_check_branch
    %48 = sbr.rel (0) target = $region53
  $region52: #{netz_forward.1} parent=0 // pred_region
    _
  $region53: #{netz_forward.1} parent=0 // pred_fallthru
    _
  // Predicated region
  $region54: #{netz_forward.1} parent=0 // pred_check
    _
  $region55: #{netz_forward.1} parent=0 // pred_check_branch
    %50 = sbr.rel (0) target = $region57
  $region56: #{netz_forward.1} parent=0 // pred_region
    _
  $region57: #{netz_forward.1} parent=0 // pred_fallthru
    _
  // Predicated region
  $region58: #{netz_forward.1} parent=0 // pred_check
    _
  $region59: #{netz_forward.1} parent=0 // pred_check_branch
    %52 = sbr.rel (0) target = $region61
  $region60: #{netz_forward.1} parent=0 // pred_region
    _
  $region61: #{netz_forward.1} parent=0 // pred_fallthru
    _
  // Predicated region
  $region62: #{netz_forward.1} parent=0 // pred_check
    _
  $region63: #{netz_forward.1} parent=0 // pred_check_branch
    %54 = sbr.rel (0) target = $region65
  $region64: #{netz_forward.1} parent=0 // pred_region
    _
  $region65: #{netz_forward.1} parent=0 // pred_fallthru
    _
  // Predicated region
  $region66: #{netz_forward.1} parent=0 // pred_check
    _
  $region67: #{netz_forward.1} parent=0 // pred_check_branch
    %56 = sbr.rel (0) target = $region69
  $region68: #{netz_forward.1} parent=0 // pred_region
    _
  $region69: #{netz_forward.1} parent=0 // pred_fallthru
    _
  // Predicated region
  $region70: #{netz_forward.1} parent=0 // pred_check
    _
  $region71: #{netz_forward.1} parent=0 // pred_check_branch
    %58 = sbr.rel (0) target = $region73
  $region72: #{netz_forward.1} parent=0 // pred_region
    _
  $region73: #{netz_forward.1} parent=0 // pred_fallthru
    _
  %v59 = vld [vmem:[%s0] sm:$0xff]
  %v60 = vld [vmem:[%s0 + $0x8] sm:$0xff]
  %v61 = vld [vmem:[%s0 + $0x10] sm:$0xff]
  %v62 = vld [vmem:[%s0 + $0x18] sm:$0xff]
  %v63 = vld [vmem:[%s0 + $0x20] sm:$0xff]
  %v64 = vld [vmem:[%s0 + $0x28] sm:$0xff]
  %v65 = vld [vmem:[%s0 + $0x30] sm:$0xff]
  %v66 = vld [vmem:[%s0 + $0x38] sm:$0xff]
  %v67 = vld [vmem:[%s0 + $0x40] sm:$0xff]
  %v68 = vld [vmem:[%s0 + $0x48] sm:$0xff]
  %v69 = vld [vmem:[%s0 + $0x50] sm:$0xff]
  %v70 = vld [vmem:[%s0 + $0x58] sm:$0xff]
  %v71 = vld [vmem:[%s0 + $0x60] sm:$0xff]
  %v72 = vld [vmem:[%s0 + $0x68] sm:$0xff]
  %v73 = vld [vmem:[%s0 + $0x70] sm:$0xff]
  %v74 = vld [vmem:[%s0 + $0x78] sm:$0xff]
  %v75 = vld [vmem:[%s0 + $0x80] sm:$0xff]
  %v76 = vld [vmem:[%s0 + $0x88] sm:$0xff]
  %v77 = vld [vmem:[%s0 + $0x90] sm:$0xff]
  %v78 = vld [vmem:[%s0 + $0x98] sm:$0xff]
  %v79 = vld [vmem:[%s0 + $0xa0] sm:$0xff]
  %v80 = vld [vmem:[%s0 + $0xa8] sm:$0xff]
  %v81 = vld [vmem:[%s0 + $0xb0] sm:$0xff]
  %v82 = vld [vmem:[%s0 + $0xb8] sm:$0xff]
  %v83 = vld [vmem:[%s0 + $0xc0] sm:$0xff]
  %v84 = vld [vmem:[%s0 + $0xc8] sm:$0xff]
  %v85 = vld [vmem:[%s0 + $0xd0] sm:$0xff]
  %v86 = vld [vmem:[%s0 + $0xd8] sm:$0xff]
  %v87 = vld [vmem:[%s0 + $0xe0] sm:$0xff]
  %v88 = vld [vmem:[%s0 + $0xe8] sm:$0xff]
  %v89 = vld [vmem:[%s0 + $0xf0] sm:$0xff]
  %v90 = vld [vmem:[%s0 + $0xf8] sm:$0xff]
  %v91 = vld [vmem:[%s0 + $0x100] sm:$0xff]
  %v92 = vld [vmem:[%s0 + $0x108] sm:$0xff]
  %v93 = vld [vmem:[%s0 + $0x110] sm:$0xff]
  %v94 = vld [vmem:[%s0 + $0x118] sm:$0xff]
  %v95 = vld [vmem:[%s0 + $0x120] sm:$0xff]
  %v96 = vld [vmem:[%s0 + $0x128] sm:$0xff]
  %v97 = vld [vmem:[%s0 + $0x130] sm:$0xff]
  %v98 = vld [vmem:[%s0 + $0x138] sm:$0xff]
  %v99 = vld [vmem:[%s0 + $0x140] sm:$0xff]
  %v100 = vld [vmem:[%s0 + $0x148] sm:$0xff]
  %v101 = vld [vmem:[%s0 + $0x150] sm:$0xff]
  %v102 = vld [vmem:[%s0 + $0x158] sm:$0xff]
  %v103 = vld [vmem:[%s0 + $0x160] sm:$0xff]
  %v104 = vld [vmem:[%s0 + $0x168] sm:$0xff]
  %v105 = vld [vmem:[%s0 + $0x170] sm:$0xff]
  %v106 = vld [vmem:[%s0 + $0x178] sm:$0xff]
  %v107 = vld [vmem:[%s0 + $0x180] sm:$0xff]
  %v108 = vld [vmem:[%s0 + $0x188] sm:$0xff]
  %v109 = vld [vmem:[%s0 + $0x190] sm:$0xff]
  %v110 = vld [vmem:[%s0 + $0x198] sm:$0xff]
  %v111 = vld [vmem:[%s0 + $0x1a0] sm:$0xff]
  %v112 = vld [vmem:[%s0 + $0x1a8] sm:$0xff]
  %v113 = vld [vmem:[%s0 + $0x1b0] sm:$0xff]
  %v114 = vld [vmem:[%s0 + $0x1b8] sm:$0xff]
  %v115 = vld [vmem:[%s0 + $0x1c0] sm:$0xff]
  %v116 = vld [vmem:[%s0 + $0x1c8] sm:$0xff]
  %v117 = vld [vmem:[%s0 + $0x1d0] sm:$0xff]
  %v118 = vld [vmem:[%s0 + $0x1d8] sm:$0xff]
  %v119 = vld [vmem:[%s0 + $0x1e0] sm:$0xff]
  %v120 = vld [vmem:[%s0 + $0x1e8] sm:$0xff]
  %v121 = vld [vmem:[%s0 + $0x1f0] sm:$0xff]
  %v122 = vld [vmem:[%s0 + $0x1f8] sm:$0xff]
  %123 = vst [vmem:[#allocation2] sm:$0xff] 0.0
  %124 = vst [vmem:[#allocation2 + $0x8] sm:$0xff] 0.0
  %125 = vst [vmem:[#allocation2 + $0x10] sm:$0xff] 0.0
  %126 = vst [vmem:[#allocation2 + $0x18] sm:$0xff] 0.0
  %127 = vst [vmem:[#allocation2 + $0x20] sm:$0xff] 0.0
  %128 = vst [vmem:[#allocation2 + $0x28] sm:$0xff] 0.0
  %129 = vst [vmem:[#allocation2 + $0x30] sm:$0xff] 0.0
  %130 = vst [vmem:[#allocation2 + $0x38] sm:$0xff] 0.0
  %131 = vst [vmem:[#allocation2 + $0x40] sm:$0xff] 0.0
  %132 = vst [vmem:[#allocation2 + $0x48] sm:$0xff] 0.0
  %133 = vst [vmem:[#allocation2 + $0x50] sm:$0xff] 0.0
  %134 = vst [vmem:[#allocation2 + $0x58] sm:$0xff] 0.0
  %135 = vst [vmem:[#allocation2 + $0x60] sm:$0xff] 0.0
  %136 = vst [vmem:[#allocation2 + $0x68] sm:$0xff] 0.0
  %137 = vst [vmem:[#allocation2 + $0x70] sm:$0xff] 0.0
  %138 = vst [vmem:[#allocation2 + $0x78] sm:$0xff] 0.0
  %139 = vst [vmem:[#allocation2 + $0x80] sm:$0xff] 0.0
  %140 = vst [vmem:[#allocation2 + $0x88] sm:$0xff] 0.0
  %141 = vst [vmem:[#allocation2 + $0x90] sm:$0xff] 0.0
  %142 = vst [vmem:[#allocation2 + $0x98] sm:$0xff] 0.0
  %143 = vst [vmem:[#allocation2 + $0xa0] sm:$0xff] 0.0
  %144 = vst [vmem:[#allocation2 + $0xa8] sm:$0xff] 0.0
  %145 = vst [vmem:[#allocation2 + $0xb0] sm:$0xff] 0.0
  %146 = vst [vmem:[#allocation2 + $0xb8] sm:$0xff] 0.0
  %147 = vst [vmem:[#allocation2 + $0xc0] sm:$0xff] 0.0
  %148 = vst [vmem:[#allocation2 + $0xc8] sm:$0xff] 0.0
  %149 = vst [vmem:[#allocation2 + $0xd0] sm:$0xff] 0.0
  %150 = vst [vmem:[#allocation2 + $0xd8] sm:$0xff] 0.0
  %151 = vst [vmem:[#allocation2 + $0xe0] sm:$0xff] 0.0
  %152 = vst [vmem:[#allocation2 + $0xe8] sm:$0xff] 0.0
  %153 = vst [vmem:[#allocation2 + $0xf0] sm:$0xff] 0.0
  %154 = vst [vmem:[#allocation2 + $0xf8] sm:$0xff] 0.0
  %155 = vst [vmem:[#allocation2 + $0x100] sm:$0xff] 0.0
  %156 = vst [vmem:[#allocation2 + $0x108] sm:$0xff] 0.0
  %157 = vst [vmem:[#allocation2 + $0x110] sm:$0xff] 0.0
  %158 = vst [vmem:[#allocation2 + $0x118] sm:$0xff] 0.0
  %159 = vst [vmem:[#allocation2 + $0x120] sm:$0xff] 0.0
  %160 = vst [vmem:[#allocation2 + $0x128] sm:$0xff] 0.0
  %161 = vst [vmem:[#allocation2 + $0x130] sm:$0xff] 0.0
  %162 = vst [vmem:[#allocation2 + $0x138] sm:$0xff] 0.0
  %163 = vst [vmem:[#allocation2 + $0x140] sm:$0xff] 0.0
  %164 = vst [vmem:[#allocation2 + $0x148] sm:$0xff] 0.0
  %165 = vst [vmem:[#allocation2 + $0x150] sm:$0xff] 0.0
  %166 = vst [vmem:[#allocation2 + $0x158] sm:$0xff] 0.0
  %167 = vst [vmem:[#allocation2 + $0x160] sm:$0xff] 0.0
  %168 = vst [vmem:[#allocation2 + $0x168] sm:$0xff] 0.0
  %169 = vst [vmem:[#allocation2 + $0x170] sm:$0xff] 0.0
  %170 = vst [vmem:[#allocation2 + $0x178] sm:$0xff] 0.0
  %171 = vst [vmem:[#allocation2 + $0x180] sm:$0xff] 0.0
  %172 = vst [vmem:[#allocation2 + $0x188] sm:$0xff] 0.0
  %173 = vst [vmem:[#allocation2 + $0x190] sm:$0xff] 0.0
  %174 = vst [vmem:[#allocation2 + $0x198] sm:$0xff] 0.0
  %175 = vst [vmem:[#allocation2 + $0x1a0] sm:$0xff] 0.0
  %176 = vst [vmem:[#allocation2 + $0x1a8] sm:$0xff] 0.0
  %177 = vst [vmem:[#allocation2 + $0x1b0] sm:$0xff] 0.0
  %178 = vst [vmem:[#allocation2 + $0x1b8] sm:$0xff] 0.0
  %179 = vst [vmem:[#allocation2 + $0x1c0] sm:$0xff] 0.0
  %180 = vst [vmem:[#allocation2 + $0x1c8] sm:$0xff] 0.0
  %181 = vst [vmem:[#allocation2 + $0x1d0] sm:$0xff] 0.0
  %182 = vst [vmem:[#allocation2 + $0x1d8] sm:$0xff] 0.0
  %183 = vst [vmem:[#allocation2 + $0x1e0] sm:$0xff] 0.0
  %184 = vst [vmem:[#allocation2 + $0x1e8] sm:$0xff] 0.0
  %185 = vst [vmem:[#allocation2 + $0x1f0] sm:$0xff] 0.0
  %186 = vst [vmem:[#allocation2 + $0x1f8] sm:$0xff] 0.0
  %187 = vst [vmem:[#allocation2 + $0x200] sm:$0xff] 0.0
  %188 = vst [vmem:[#allocation2 + $0x208] sm:$0xff] 0.0
  %189 = vst [vmem:[#allocation2 + $0x210] sm:$0xff] 0.0
  %190 = vst [vmem:[#allocation2 + $0x218] sm:$0xff] 0.0
  %191 = vst [vmem:[#allocation2 + $0x220] sm:$0xff] 0.0
  %192 = vst [vmem:[#allocation2 + $0x228] sm:$0xff] 0.0
  %193 = vst [vmem:[#allocation2 + $0x18] sm:$0xff] %v59
  %194 = vst [vmem:[#allocation2 + $0x20] sm:$0xff] %v60
  %195 = vst [vmem:[#allocation2 + $0x28] sm:$0xff] %v61
  %196 = vst [vmem:[#allocation2 + $0x30] sm:$0xff] %v62
  %197 = vst [vmem:[#allocation2 + $0x38] sm:$0xff] %v63
  %198 = vst [vmem:[#allocation2 + $0x40] sm:$0xff] %v64
  %199 = vst [vmem:[#allocation2 + $0x48] sm:$0xff] %v65
  %200 = vst [vmem:[#allocation2 + $0x50] sm:$0xff] %v66
  %201 = vst [vmem:[#allocation2 + $0x58] sm:$0xff] %v67
  %202 = vst [vmem:[#allocation2 + $0x60] sm:$0xff] %v68
  %203 = vst [vmem:[#allocation2 + $0x68] sm:$0xff] %v69
  %204 = vst [vmem:[#allocation2 + $0x70] sm:$0xff] %v70
  %205 = vst [vmem:[#allocation2 + $0x78] sm:$0xff] %v71
  %206 = vst [vmem:[#allocation2 + $0x80] sm:$0xff] %v72
  %207 = vst [vmem:[#allocation2 + $0x88] sm:$0xff] %v73
  %208 = vst [vmem:[#allocation2 + $0x90] sm:$0xff] %v74
  %209 = vst [vmem:[#allocation2 + $0x98] sm:$0xff] %v75
  %210 = vst [vmem:[#allocation2 + $0xa0] sm:$0xff] %v76
  %211 = vst [vmem:[#allocation2 + $0xa8] sm:$0xff] %v77
  %212 = vst [vmem:[#allocation2 + $0xb0] sm:$0xff] %v78
  %213 = vst [vmem:[#allocation2 + $0xb8] sm:$0xff] %v79
  %214 = vst [vmem:[#allocation2 + $0xc0] sm:$0xff] %v80
  %215 = vst [vmem:[#allocation2 + $0xc8] sm:$0xff] %v81
  %216 = vst [vmem:[#allocation2 + $0xd0] sm:$0xff] %v82
  %217 = vst [vmem:[#allocation2 + $0xd8] sm:$0xff] %v83
  %218 = vst [vmem:[#allocation2 + $0xe0] sm:$0xff] %v84
  %219 = vst [vmem:[#allocation2 + $0xe8] sm:$0xff] %v85
  %220 = vst [vmem:[#allocation2 + $0xf0] sm:$0xff] %v86
  %221 = vst [vmem:[#allocation2 + $0xf8] sm:$0xff] %v87
  %222 = vst [vmem:[#allocation2 + $0x100] sm:$0xff] %v88
  %223 = vst [vmem:[#allocation2 + $0x108] sm:$0xff] %v89
  %224 = vst [vmem:[#allocation2 + $0x110] sm:$0xff] %v90
  %225 = vst [vmem:[#allocation2 + $0x118] sm:$0xff] %v91
  %226 = vst [vmem:[#allocation2 + $0x120] sm:$0xff] %v92
  %227 = vst [vmem:[#allocation2 + $0x128] sm:$0xff] %v93
  %228 = vst [vmem:[#allocation2 + $0x130] sm:$0xff] %v94
  %229 = vst [vmem:[#allocation2 + $0x138] sm:$0xff] %v95
  %230 = vst [vmem:[#allocation2 + $0x140] sm:$0xff] %v96
  %231 = vst [vmem:[#allocation2 + $0x148] sm:$0xff] %v97
  %232 = vst [vmem:[#allocation2 + $0x150] sm:$0xff] %v98
  %233 = vst [vmem:[#allocation2 + $0x158] sm:$0xff] %v99
  %234 = vst [vmem:[#allocation2 + $0x160] sm:$0xff] %v100
  %235 = vst [vmem:[#allocation2 + $0x168] sm:$0xff] %v101
  %236 = vst [vmem:[#allocation2 + $0x170] sm:$0xff] %v102
  %237 = vst [vmem:[#allocation2 + $0x178] sm:$0xff] %v103
  %238 = vst [vmem:[#allocation2 + $0x180] sm:$0xff] %v104
  %239 = vst [vmem:[#allocation2 + $0x188] sm:$0xff] %v105
  %240 = vst [vmem:[#allocation2 + $0x190] sm:$0xff] %v106
  %241 = vst [vmem:[#allocation2 + $0x198] sm:$0xff] %v107
  %242 = vst [vmem:[#allocation2 + $0x1a0] sm:$0xff] %v108
  %243 = vst [vmem:[#allocation2 + $0x1a8] sm:$0xff] %v109
  %244 = vst [vmem:[#allocation2 + $0x1b0] sm:$0xff] %v110
  %245 = vst [vmem:[#allocation2 + $0x1b8] sm:$0xff] %v111
  %246 = vst [vmem:[#allocation2 + $0x1c0] sm:$0xff] %v112
  %247 = vst [vmem:[#allocation2 + $0x1c8] sm:$0xff] %v113
  %248 = vst [vmem:[#allocation2 + $0x1d0] sm:$0xff] %v114
  %249 = vst [vmem:[#allocation2 + $0x1d8] sm:$0xff] %v115
  %250 = vst [vmem:[#allocation2 + $0x1e0] sm:$0xff] %v116
  %251 = vst [vmem:[#allocation2 + $0x1e8] sm:$0xff] %v117
  %252 = vst [vmem:[#allocation2 + $0x1f0] sm:$0xff] %v118
  %253 = vst [vmem:[#allocation2 + $0x1f8] sm:$0xff] %v119
  %254 = vst [vmem:[#allocation2 + $0x200] sm:$0xff] %v120
  %255 = vst [vmem:[#allocation2 + $0x208] sm:$0xff] %v121
  %256 = vst [vmem:[#allocation2 + $0x210] sm:$0xff] %v122
  %v257 = vld [vmem:[%s2] sm:$0x1]
  %v259 = vperm.slane %v257, 0
  %v261 = vld [vmem:[#allocation2 + $0x7] sm:$0xff]
  %v262 = vld [vmem:[#allocation2 + $0xf] sm:$0xff]
  %v263 = vld [vmem:[#allocation2 + $0x17] sm:$0xff]
  %v264 = vld [vmem:[#allocation2 + $0x1f] sm:$0xff]
  %v265 = vld [vmem:[#allocation2 + $0x27] sm:$0xff]
  %v266 = vld [vmem:[#allocation2 + $0x2f] sm:$0xff]
  %v267 = vld [vmem:[#allocation2 + $0x37] sm:$0xff]
  %v268 = vld [vmem:[#allocation2 + $0x3f] sm:$0xff]
  %v269 = vld [vmem:[#allocation2 + $0x47] sm:$0xff]
  %v270 = vld [vmem:[#allocation2 + $0x4f] sm:$0xff]
  %v271 = vld [vmem:[#allocation2 + $0x57] sm:$0xff]
  %v272 = vld [vmem:[#allocation2 + $0x5f] sm:$0xff]
  %v273 = vld [vmem:[#allocation2 + $0x67] sm:$0xff]
  %v274 = vld [vmem:[#allocation2 + $0x6f] sm:$0xff]
  %v275 = vld [vmem:[#allocation2 + $0x77] sm:$0xff]
  %v276 = vld [vmem:[#allocation2 + $0x7f] sm:$0xff]
  %v277 = vld [vmem:[#allocation2 + $0x87] sm:$0xff]
  %v278 = vld [vmem:[#allocation2 + $0x8f] sm:$0xff]
  %v279 = vld [vmem:[#allocation2 + $0x97] sm:$0xff]
  %v280 = vld [vmem:[#allocation2 + $0x9f] sm:$0xff]
  %v281 = vld [vmem:[#allocation2 + $0xa7] sm:$0xff]
  %v282 = vld [vmem:[#allocation2 + $0xaf] sm:$0xff]
  %v283 = vld [vmem:[#allocation2 + $0xb7] sm:$0xff]
  %v284 = vld [vmem:[#allocation2 + $0xbf] sm:$0xff]
  %v285 = vld [vmem:[#allocation2 + $0xc7] sm:$0xff]
  %v286 = vld [vmem:[#allocation2 + $0xcf] sm:$0xff]
  %v287 = vld [vmem:[#allocation2 + $0xd7] sm:$0xff]
  %v288 = vld [vmem:[#allocation2 + $0xdf] sm:$0xff]
  %v289 = vld [vmem:[#allocation2 + $0xe7] sm:$0xff]
  %v290 = vld [vmem:[#allocation2 + $0xef] sm:$0xff]
  %v291 = vld [vmem:[#allocation2 + $0xf7] sm:$0xff]
  %v292 = vld [vmem:[#allocation2 + $0xff] sm:$0xff]
  %v293 = vld [vmem:[#allocation2 + $0x107] sm:$0xff]
  %v294 = vld [vmem:[#allocation2 + $0x10f] sm:$0xff]
  %v295 = vld [vmem:[#allocation2 + $0x117] sm:$0xff]
  %v296 = vld [vmem:[#allocation2 + $0x11f] sm:$0xff]
  %v297 = vld [vmem:[#allocation2 + $0x127] sm:$0xff]
  %v298 = vld [vmem:[#allocation2 + $0x12f] sm:$0xff]
  %v299 = vld [vmem:[#allocation2 + $0x137] sm:$0xff]
  %v300 = vld [vmem:[#allocation2 + $0x13f] sm:$0xff]
  %v301 = vld [vmem:[#allocation2 + $0x147] sm:$0xff]
  %v302 = vld [vmem:[#allocation2 + $0x14f] sm:$0xff]
  %v303 = vld [vmem:[#allocation2 + $0x157] sm:$0xff]
  %v304 = vld [vmem:[#allocation2 + $0x15f] sm:$0xff]
  %v305 = vld [vmem:[#allocation2 + $0x167] sm:$0xff]
  %v306 = vld [vmem:[#allocation2 + $0x16f] sm:$0xff]
  %v307 = vld [vmem:[#allocation2 + $0x177] sm:$0xff]
  %v308 = vld [vmem:[#allocation2 + $0x17f] sm:$0xff]
  %v309 = vld [vmem:[#allocation2 + $0x187] sm:$0xff]
  %v310 = vld [vmem:[#allocation2 + $0x18f] sm:$0xff]
  %v311 = vld [vmem:[#allocation2 + $0x197] sm:$0xff]
  %v312 = vld [vmem:[#allocation2 + $0x19f] sm:$0xff]
  %v313 = vld [vmem:[#allocation2 + $0x1a7] sm:$0xff]
  %v314 = vld [vmem:[#allocation2 + $0x1af] sm:$0xff]
  %v315 = vld [vmem:[#allocation2 + $0x1b7] sm:$0xff]
  %v316 = vld [vmem:[#allocation2 + $0x1bf] sm:$0xff]
  %v317 = vld [vmem:[#allocation2 + $0x1c7] sm:$0xff]
  %v318 = vld [vmem:[#allocation2 + $0x1cf] sm:$0xff]
  %v319 = vld [vmem:[#allocation2 + $0x1d7] sm:$0xff]
  %v320 = vld [vmem:[#allocation2 + $0x1df] sm:$0xff]
  %v321 = vld [vmem:[#allocation2 + $0x1e7] sm:$0xff]
  %v322 = vld [vmem:[#allocation2 + $0x1ef] sm:$0xff]
  %v323 = vld [vmem:[#allocation2 + $0x1f7] sm:$0xff]
  %v324 = vld [vmem:[#allocation2 + $0x1ff] sm:$0xff]
  %v325 = vld [vmem:[%s3] sm:$0xff]
  %v326 = vld [vmem:[%s3 + $0x8] sm:$0xff]
  %v327 = vld [vmem:[%s3 + $0x10] sm:$0xff]
  %v328 = vld [vmem:[%s3 + $0x18] sm:$0xff]
  %v329 = vld [vmem:[%s3 + $0x20] sm:$0xff]
  %v330 = vld [vmem:[%s3 + $0x28] sm:$0xff]
  %v331 = vld [vmem:[%s3 + $0x30] sm:$0xff]
  %v332 = vld [vmem:[%s3 + $0x38] sm:$0xff]
  %v333 = vld [vmem:[%s3 + $0x40] sm:$0xff]
  %v334 = vld [vmem:[%s3 + $0x48] sm:$0xff]
  %v335 = vld [vmem:[%s3 + $0x50] sm:$0xff]
  %v336 = vld [vmem:[%s3 + $0x58] sm:$0xff]
  %v337 = vld [vmem:[%s3 + $0x60] sm:$0xff]
  %v338 = vld [vmem:[%s3 + $0x68] sm:$0xff]
  %v339 = vld [vmem:[%s3 + $0x70] sm:$0xff]
  %v340 = vld [vmem:[%s3 + $0x78] sm:$0xff]
  %v341 = vld [vmem:[%s3 + $0x80] sm:$0xff]
  %v342 = vld [vmem:[%s3 + $0x88] sm:$0xff]
  %v343 = vld [vmem:[%s3 + $0x90] sm:$0xff]
  %v344 = vld [vmem:[%s3 + $0x98] sm:$0xff]
  %v345 = vld [vmem:[%s3 + $0xa0] sm:$0xff]
  %v346 = vld [vmem:[%s3 + $0xa8] sm:$0xff]
  %v347 = vld [vmem:[%s3 + $0xb0] sm:$0xff]
  %v348 = vld [vmem:[%s3 + $0xb8] sm:$0xff]
  %v349 = vld [vmem:[%s3 + $0xc0] sm:$0xff]
  %v350 = vld [vmem:[%s3 + $0xc8] sm:$0xff]
  %v351 = vld [vmem:[%s3 + $0xd0] sm:$0xff]
  %v352 = vld [vmem:[%s3 + $0xd8] sm:$0xff]
  %v353 = vld [vmem:[%s3 + $0xe0] sm:$0xff]
  %v354 = vld [vmem:[%s3 + $0xe8] sm:$0xff]
  %v355 = vld [vmem:[%s3 + $0xf0] sm:$0xff]
  %v356 = vld [vmem:[%s3 + $0xf8] sm:$0xff]
  %v357 = vld [vmem:[%s3 + $0x100] sm:$0xff]
  %v358 = vld [vmem:[%s3 + $0x108] sm:$0xff]
  %v359 = vld [vmem:[%s3 + $0x110] sm:$0xff]
  %v360 = vld [vmem:[%s3 + $0x118] sm:$0xff]
  %v361 = vld [vmem:[%s3 + $0x120] sm:$0xff]
  %v362 = vld [vmem:[%s3 + $0x128] sm:$0xff]
  %v363 = vld [vmem:[%s3 + $0x130] sm:$0xff]
  %v364 = vld [vmem:[%s3 + $0x138] sm:$0xff]
  %v365 = vld [vmem:[%s3 + $0x140] sm:$0xff]
  %v366 = vld [vmem:[%s3 + $0x148] sm:$0xff]
  %v367 = vld [vmem:[%s3 + $0x150] sm:$0xff]
  %v368 = vld [vmem:[%s3 + $0x158] sm:$0xff]
  %v369 = vld [vmem:[%s3 + $0x160] sm:$0xff]
  %v370 = vld [vmem:[%s3 + $0x168] sm:$0xff]
  %v371 = vld [vmem:[%s3 + $0x170] sm:$0xff]
  %v372 = vld [vmem:[%s3 + $0x178] sm:$0xff]
  %v373 = vld [vmem:[%s3 + $0x180] sm:$0xff]
  %v374 = vld [vmem:[%s3 + $0x188] sm:$0xff]
  %v375 = vld [vmem:[%s3 + $0x190] sm:$0xff]
  %v376 = vld [vmem:[%s3 + $0x198] sm:$0xff]
  %v377 = vld [vmem:[%s3 + $0x1a0] sm:$0xff]
  %v378 = vld [vmem:[%s3 + $0x1a8] sm:$0xff]
  %v379 = vld [vmem:[%s3 + $0x1b0] sm:$0xff]
  %v380 = vld [vmem:[%s3 + $0x1b8] sm:$0xff]
  %v381 = vld [vmem:[%s3 + $0x1c0] sm:$0xff]
  %v382 = vld [vmem:[%s3 + $0x1c8] sm:$0xff]
  %v383 = vld [vmem:[%s3 + $0x1d0] sm:$0xff]
  %v384 = vld [vmem:[%s3 + $0x1d8] sm:$0xff]
  %v385 = vld [vmem:[%s3 + $0x1e0] sm:$0xff]
  %v386 = vld [vmem:[%s3 + $0x1e8] sm:$0xff]
  %v387 = vld [vmem:[%s3 + $0x1f0] sm:$0xff]
  %v388 = vld [vmem:[%s3 + $0x1f8] sm:$0xff]
  %390 = vset.pattern.permute.xlu0 0
  %391 = vperm.xlu0 %390, %v325
  %v392 = vpop.permute.xlu0 %391
  %395 = vset.pattern.permute.xlu0 0
  %396 = vperm.xlu0 %395, %v326
  %v397 = vpop.permute.xlu0 %396
  %400 = vset.pattern.permute.xlu0 0
  %401 = vperm.xlu0 %400, %v327
  %v402 = vpop.permute.xlu0 %401
  %405 = vset.pattern.permute.xlu0 0
  %406 = vperm.xlu0 %405, %v328
  %v407 = vpop.permute.xlu0 %406
  %410 = vset.pattern.permute.xlu0 0
  %411 = vperm.xlu0 %410, %v329
  %v412 = vpop.permute.xlu0 %411
  %415 = vset.pattern.permute.xlu0 0
  %416 = vperm.xlu0 %415, %v330
  %v417 = vpop.permute.xlu0 %416
  %420 = vset.pattern.permute.xlu0 0
  %421 = vperm.xlu0 %420, %v331
  %v422 = vpop.permute.xlu0 %421
  %425 = vset.pattern.permute.xlu0 0
  %426 = vperm.xlu0 %425, %v332
  %v427 = vpop.permute.xlu0 %426
  %430 = vset.pattern.permute.xlu0 0
  %431 = vperm.xlu0 %430, %v333
  %v432 = vpop.permute.xlu0 %431
  %435 = vset.pattern.permute.xlu0 0
  %436 = vperm.xlu0 %435, %v334
  %v437 = vpop.permute.xlu0 %436
  %440 = vset.pattern.permute.xlu0 0
  %441 = vperm.xlu0 %440, %v335
  %v442 = vpop.permute.xlu0 %441
  %445 = vset.pattern.permute.xlu0 0
  %446 = vperm.xlu0 %445, %v336
  %v447 = vpop.permute.xlu0 %446
  %450 = vset.pattern.permute.xlu0 0
  %451 = vperm.xlu0 %450, %v337
  %v452 = vpop.permute.xlu0 %451
  %455 = vset.pattern.permute.xlu0 0
  %456 = vperm.xlu0 %455, %v338
  %v457 = vpop.permute.xlu0 %456
  %460 = vset.pattern.permute.xlu0 0
  %461 = vperm.xlu0 %460, %v339
  %v462 = vpop.permute.xlu0 %461
  %465 = vset.pattern.permute.xlu0 0
  %466 = vperm.xlu0 %465, %v340
  %v467 = vpop.permute.xlu0 %466
  %470 = vset.pattern.permute.xlu0 0
  %471 = vperm.xlu0 %470, %v341
  %v472 = vpop.permute.xlu0 %471
  %475 = vset.pattern.permute.xlu0 0
  %476 = vperm.xlu0 %475, %v342
  %v477 = vpop.permute.xlu0 %476
  %480 = vset.pattern.permute.xlu0 0
  %481 = vperm.xlu0 %480, %v343
  %v482 = vpop.permute.xlu0 %481
  %485 = vset.pattern.permute.xlu0 0
  %486 = vperm.xlu0 %485, %v344
  %v487 = vpop.permute.xlu0 %486
  %490 = vset.pattern.permute.xlu0 0
  %491 = vperm.xlu0 %490, %v345
  %v492 = vpop.permute.xlu0 %491
  %495 = vset.pattern.permute.xlu0 0
  %496 = vperm.xlu0 %495, %v346
  %v497 = vpop.permute.xlu0 %496
  %500 = vset.pattern.permute.xlu0 0
  %501 = vperm.xlu0 %500, %v347
  %v502 = vpop.permute.xlu0 %501
  %505 = vset.pattern.permute.xlu0 0
  %506 = vperm.xlu0 %505, %v348
  %v507 = vpop.permute.xlu0 %506
  %510 = vset.pattern.permute.xlu0 0
  %511 = vperm.xlu0 %510, %v349
  %v512 = vpop.permute.xlu0 %511
  %515 = vset.pattern.permute.xlu0 0
  %516 = vperm.xlu0 %515, %v350
  %v517 = vpop.permute.xlu0 %516
  %520 = vset.pattern.permute.xlu0 0
  %521 = vperm.xlu0 %520, %v351
  %v522 = vpop.permute.xlu0 %521
  %525 = vset.pattern.permute.xlu0 0
  %526 = vperm.xlu0 %525, %v352
  %v527 = vpop.permute.xlu0 %526
  %530 = vset.pattern.permute.xlu0 0
  %531 = vperm.xlu0 %530, %v353
  %v532 = vpop.permute.xlu0 %531
  %535 = vset.pattern.permute.xlu0 0
  %536 = vperm.xlu0 %535, %v354
  %v537 = vpop.permute.xlu0 %536
  %540 = vset.pattern.permute.xlu0 0
  %541 = vperm.xlu0 %540, %v355
  %v542 = vpop.permute.xlu0 %541
  %545 = vset.pattern.permute.xlu0 0
  %546 = vperm.xlu0 %545, %v356
  %v547 = vpop.permute.xlu0 %546
  %550 = vset.pattern.permute.xlu0 0
  %551 = vperm.xlu0 %550, %v357
  %v552 = vpop.permute.xlu0 %551
  %555 = vset.pattern.permute.xlu0 0
  %556 = vperm.xlu0 %555, %v358
  %v557 = vpop.permute.xlu0 %556
  %560 = vset.pattern.permute.xlu0 0
  %561 = vperm.xlu0 %560, %v359
  %v562 = vpop.permute.xlu0 %561
  %565 = vset.pattern.permute.xlu0 0
  %566 = vperm.xlu0 %565, %v360
  %v567 = vpop.permute.xlu0 %566
  %570 = vset.pattern.permute.xlu0 0
  %571 = vperm.xlu0 %570, %v361
  %v572 = vpop.permute.xlu0 %571
  %575 = vset.pattern.permute.xlu0 0
  %576 = vperm.xlu0 %575, %v362
  %v577 = vpop.permute.xlu0 %576
  %580 = vset.pattern.permute.xlu0 0
  %581 = vperm.xlu0 %580, %v363
  %v582 = vpop.permute.xlu0 %581
  %585 = vset.pattern.permute.xlu0 0
  %586 = vperm.xlu0 %585, %v364
  %v587 = vpop.permute.xlu0 %586
  %590 = vset.pattern.permute.xlu0 0
  %591 = vperm.xlu0 %590, %v365
  %v592 = vpop.permute.xlu0 %591
  %595 = vset.pattern.permute.xlu0 0
  %596 = vperm.xlu0 %595, %v366
  %v597 = vpop.permute.xlu0 %596
  %600 = vset.pattern.permute.xlu0 0
  %601 = vperm.xlu0 %600, %v367
  %v602 = vpop.permute.xlu0 %601
  %605 = vset.pattern.permute.xlu0 0
  %606 = vperm.xlu0 %605, %v368
  %v607 = vpop.permute.xlu0 %606
  %610 = vset.pattern.permute.xlu0 0
  %611 = vperm.xlu0 %610, %v369
  %v612 = vpop.permute.xlu0 %611
  %615 = vset.pattern.permute.xlu0 0
  %616 = vperm.xlu0 %615, %v370
  %v617 = vpop.permute.xlu0 %616
  %620 = vset.pattern.permute.xlu0 0
  %621 = vperm.xlu0 %620, %v371
  %v622 = vpop.permute.xlu0 %621
  %625 = vset.pattern.permute.xlu0 0
  %626 = vperm.xlu0 %625, %v372
  %v627 = vpop.permute.xlu0 %626
  %630 = vset.pattern.permute.xlu0 0
  %631 = vperm.xlu0 %630, %v373
  %v632 = vpop.permute.xlu0 %631
  %635 = vset.pattern.permute.xlu0 0
  %636 = vperm.xlu0 %635, %v374
  %v637 = vpop.permute.xlu0 %636
  %640 = vset.pattern.permute.xlu0 0
  %641 = vperm.xlu0 %640, %v375
  %v642 = vpop.permute.xlu0 %641
  %645 = vset.pattern.permute.xlu0 0
  %646 = vperm.xlu0 %645, %v376
  %v647 = vpop.permute.xlu0 %646
  %650 = vset.pattern.permute.xlu0 0
  %651 = vperm.xlu0 %650, %v377
  %v652 = vpop.permute.xlu0 %651
  %655 = vset.pattern.permute.xlu0 0
  %656 = vperm.xlu0 %655, %v378
  %v657 = vpop.permute.xlu0 %656
  %660 = vset.pattern.permute.xlu0 0
  %661 = vperm.xlu0 %660, %v379
  %v662 = vpop.permute.xlu0 %661
  %665 = vset.pattern.permute.xlu0 0
  %666 = vperm.xlu0 %665, %v380
  %v667 = vpop.permute.xlu0 %666
  %670 = vset.pattern.permute.xlu0 0
  %671 = vperm.xlu0 %670, %v381
  %v672 = vpop.permute.xlu0 %671
  %675 = vset.pattern.permute.xlu0 0
  %676 = vperm.xlu0 %675, %v382
  %v677 = vpop.permute.xlu0 %676
  %680 = vset.pattern.permute.xlu0 0
  %681 = vperm.xlu0 %680, %v383
  %v682 = vpop.permute.xlu0 %681
  %685 = vset.pattern.permute.xlu0 0
  %686 = vperm.xlu0 %685, %v384
  %v687 = vpop.permute.xlu0 %686
  %690 = vset.pattern.permute.xlu0 0
  %691 = vperm.xlu0 %690, %v385
  %v692 = vpop.permute.xlu0 %691
  %695 = vset.pattern.permute.xlu0 0
  %696 = vperm.xlu0 %695, %v386
  %v697 = vpop.permute.xlu0 %696
  %700 = vset.pattern.permute.xlu0 0
  %701 = vperm.xlu0 %700, %v387
  %v702 = vpop.permute.xlu0 %701
  %705 = vset.pattern.permute.xlu0 0
  %706 = vperm.xlu0 %705, %v388
  %v707 = vpop.permute.xlu0 %706
  %v709 = vmul.f32 %v261, %v392
  %v710 = vmul.f32 %v262, %v397
  %v711 = vmul.f32 %v263, %v402
  %v712 = vmul.f32 %v264, %v407
  %v713 = vmul.f32 %v265, %v412
  %v714 = vmul.f32 %v266, %v417
  %v715 = vmul.f32 %v267, %v422
  %v716 = vmul.f32 %v268, %v427
  %v717 = vmul.f32 %v269, %v432
  %v718 = vmul.f32 %v270, %v437
  %v719 = vmul.f32 %v271, %v442
  %v720 = vmul.f32 %v272, %v447
  %v721 = vmul.f32 %v273, %v452
  %v722 = vmul.f32 %v274, %v457
  %v723 = vmul.f32 %v275, %v462
  %v724 = vmul.f32 %v276, %v467
  %v725 = vmul.f32 %v277, %v472
  %v726 = vmul.f32 %v278, %v477
  %v727 = vmul.f32 %v279, %v482
  %v728 = vmul.f32 %v280, %v487
  %v729 = vmul.f32 %v281, %v492
  %v730 = vmul.f32 %v282, %v497
  %v731 = vmul.f32 %v283, %v502
  %v732 = vmul.f32 %v284, %v507
  %v733 = vmul.f32 %v285, %v512
  %v734 = vmul.f32 %v286, %v517
  %v735 = vmul.f32 %v287, %v522
  %v736 = vmul.f32 %v288, %v527
  %v737 = vmul.f32 %v289, %v532
  %v738 = vmul.f32 %v290, %v537
  %v739 = vmul.f32 %v291, %v542
  %v740 = vmul.f32 %v292, %v547
  %v741 = vmul.f32 %v293, %v552
  %v742 = vmul.f32 %v294, %v557
  %v743 = vmul.f32 %v295, %v562
  %v744 = vmul.f32 %v296, %v567
  %v745 = vmul.f32 %v297, %v572
  %v746 = vmul.f32 %v298, %v577
  %v747 = vmul.f32 %v299, %v582
  %v748 = vmul.f32 %v300, %v587
  %v749 = vmul.f32 %v301, %v592
  %v750 = vmul.f32 %v302, %v597
  %v751 = vmul.f32 %v303, %v602
  %v752 = vmul.f32 %v304, %v607
  %v753 = vmul.f32 %v305, %v612
  %v754 = vmul.f32 %v306, %v617
  %v755 = vmul.f32 %v307, %v622
  %v756 = vmul.f32 %v308, %v627
  %v757 = vmul.f32 %v309, %v632
  %v758 = vmul.f32 %v310, %v637
  %v759 = vmul.f32 %v311, %v642
  %v760 = vmul.f32 %v312, %v647
  %v761 = vmul.f32 %v313, %v652
  %v762 = vmul.f32 %v314, %v657
  %v763 = vmul.f32 %v315, %v662
  %v764 = vmul.f32 %v316, %v667
  %v765 = vmul.f32 %v317, %v672
  %v766 = vmul.f32 %v318, %v677
  %v767 = vmul.f32 %v319, %v682
  %v768 = vmul.f32 %v320, %v687
  %v769 = vmul.f32 %v321, %v692
  %v770 = vmul.f32 %v322, %v697
  %v771 = vmul.f32 %v323, %v702
  %v772 = vmul.f32 %v324, %v707
  %v773 = vld [vmem:[%s1] sm:$0xff]
  %v774 = vld [vmem:[%s1 + $0x8] sm:$0xff]
  %v775 = vld [vmem:[%s1 + $0x10] sm:$0xff]
  %v776 = vld [vmem:[%s1 + $0x18] sm:$0xff]
  %v777 = vld [vmem:[%s1 + $0x20] sm:$0xff]
  %v778 = vld [vmem:[%s1 + $0x28] sm:$0xff]
  %v779 = vld [vmem:[%s1 + $0x30] sm:$0xff]
  %v780 = vld [vmem:[%s1 + $0x38] sm:$0xff]
  %v781 = vld [vmem:[%s1 + $0x40] sm:$0xff]
  %v782 = vld [vmem:[%s1 + $0x48] sm:$0xff]
  %v783 = vld [vmem:[%s1 + $0x50] sm:$0xff]
  %v784 = vld [vmem:[%s1 + $0x58] sm:$0xff]
  %v785 = vld [vmem:[%s1 + $0x60] sm:$0xff]
  %v786 = vld [vmem:[%s1 + $0x68] sm:$0xff]
  %v787 = vld [vmem:[%s1 + $0x70] sm:$0xff]
  %v788 = vld [vmem:[%s1 + $0x78] sm:$0xff]
  %789 = vmatpush.msra.mxu0 %v788
  %790 = vmatpush.msra.mxu0 %v787
  %791 = vmatpush.msra.mxu0 %v786
  %792 = vmatpush.msra.mxu0 %v785
  %793 = vmatpush.msra.mxu0 %v784
  %794 = vmatpush.msra.mxu0 %v783
  %795 = vmatpush.msra.mxu0 %v782
  %796 = vmatpush.msra.mxu0 %v781
  %797 = vmatpush.msra.mxu0 %v780
  %798 = vmatpush.msra.mxu0 %v779
  %799 = vmatpush.msra.mxu0 %v778
  %800 = vmatpush.msra.mxu0 %v777
  %801 = vmatpush.msra.mxu0 %v776
  %802 = vmatpush.msra.mxu0 %v775
  %803 = vmatpush.msra.mxu0 %v774
  %804 = vmatpush.msra.mxu0 %v773
  %805 = vmatmul.f32.gmra.mxu0 %v709
  %v806 = vpop.f32.mrf.mxu0
  %v807 = vadd.f32 0.0, %v806
  %808 = vmatmul.f32.gmra.mxu0 %v710
  %v809 = vpop.f32.mrf.mxu0
  %v810 = vadd.f32 0.0, %v809
  %811 = vmatmul.f32.gmra.mxu0 %v711
  %v812 = vpop.f32.mrf.mxu0
  %v813 = vadd.f32 0.0, %v812
  %814 = vmatmul.f32.gmra.mxu0 %v712
  %v815 = vpop.f32.mrf.mxu0
  %v816 = vadd.f32 0.0, %v815
  %817 = vmatmul.f32.gmra.mxu0 %v713
  %v818 = vpop.f32.mrf.mxu0
  %v819 = vadd.f32 0.0, %v818
  %820 = vmatmul.f32.gmra.mxu0 %v714
  %v821 = vpop.f32.mrf.mxu0
  %v822 = vadd.f32 0.0, %v821
  %823 = vmatmul.f32.gmra.mxu0 %v715
  %v824 = vpop.f32.mrf.mxu0
  %v825 = vadd.f32 0.0, %v824
  %826 = vmatmul.f32.gmra.mxu0 %v716
  %v827 = vpop.f32.mrf.mxu0
  %v828 = vadd.f32 0.0, %v827
  %829 = vmatmul.f32.gmra.mxu0 %v717
  %v830 = vpop.f32.mrf.mxu0
  %v831 = vadd.f32 0.0, %v830
  %832 = vmatmul.f32.gmra.mxu0 %v718
  %v833 = vpop.f32.mrf.mxu0
  %v834 = vadd.f32 0.0, %v833
  %835 = vmatmul.f32.gmra.mxu0 %v719
  %v836 = vpop.f32.mrf.mxu0
  %v837 = vadd.f32 0.0, %v836
  %838 = vmatmul.f32.gmra.mxu0 %v720
  %v839 = vpop.f32.mrf.mxu0
  %v840 = vadd.f32 0.0, %v839
  %841 = vmatmul.f32.gmra.mxu0 %v721
  %v842 = vpop.f32.mrf.mxu0
  %v843 = vadd.f32 0.0, %v842
  %844 = vmatmul.f32.gmra.mxu0 %v722
  %v845 = vpop.f32.mrf.mxu0
  %v846 = vadd.f32 0.0, %v845
  %847 = vmatmul.f32.gmra.mxu0 %v723
  %v848 = vpop.f32.mrf.mxu0
  %v849 = vadd.f32 0.0, %v848
  %850 = vmatmul.f32.gmra.mxu0 %v724
  %v851 = vpop.f32.mrf.mxu0
  %v852 = vadd.f32 0.0, %v851
  %853 = vmatmul.f32.gmra.mxu0 %v725
  %v854 = vpop.f32.mrf.mxu0
  %v855 = vadd.f32 0.0, %v854
  %856 = vmatmul.f32.gmra.mxu0 %v726
  %v857 = vpop.f32.mrf.mxu0
  %v858 = vadd.f32 0.0, %v857
  %859 = vmatmul.f32.gmra.mxu0 %v727
  %v860 = vpop.f32.mrf.mxu0
  %v861 = vadd.f32 0.0, %v860
  %862 = vmatmul.f32.gmra.mxu0 %v728
  %v863 = vpop.f32.mrf.mxu0
  %v864 = vadd.f32 0.0, %v863
  %865 = vmatmul.f32.gmra.mxu0 %v729
  %v866 = vpop.f32.mrf.mxu0
  %v867 = vadd.f32 0.0, %v866
  %868 = vmatmul.f32.gmra.mxu0 %v730
  %v869 = vpop.f32.mrf.mxu0
  %v870 = vadd.f32 0.0, %v869
  %871 = vmatmul.f32.gmra.mxu0 %v731
  %v872 = vpop.f32.mrf.mxu0
  %v873 = vadd.f32 0.0, %v872
  %874 = vmatmul.f32.gmra.mxu0 %v732
  %v875 = vpop.f32.mrf.mxu0
  %v876 = vadd.f32 0.0, %v875
  %877 = vmatmul.f32.gmra.mxu0 %v733
  %v878 = vpop.f32.mrf.mxu0
  %v879 = vadd.f32 0.0, %v878
  %880 = vmatmul.f32.gmra.mxu0 %v734
  %v881 = vpop.f32.mrf.mxu0
  %v882 = vadd.f32 0.0, %v881
  %883 = vmatmul.f32.gmra.mxu0 %v735
  %v884 = vpop.f32.mrf.mxu0
  %v885 = vadd.f32 0.0, %v884
  %886 = vmatmul.f32.gmra.mxu0 %v736
  %v887 = vpop.f32.mrf.mxu0
  %v888 = vadd.f32 0.0, %v887
  %889 = vmatmul.f32.gmra.mxu0 %v737
  %v890 = vpop.f32.mrf.mxu0
  %v891 = vadd.f32 0.0, %v890
  %892 = vmatmul.f32.gmra.mxu0 %v738
  %v893 = vpop.f32.mrf.mxu0
  %v894 = vadd.f32 0.0, %v893
  %895 = vmatmul.f32.gmra.mxu0 %v739
  %v896 = vpop.f32.mrf.mxu0
  %v897 = vadd.f32 0.0, %v896
  %898 = vmatmul.f32.gmra.mxu0 %v740
  %v899 = vpop.f32.mrf.mxu0
  %v900 = vadd.f32 0.0, %v899
  %901 = vmatmul.f32.gmra.mxu0 %v741
  %v902 = vpop.f32.mrf.mxu0
  %v903 = vadd.f32 0.0, %v902
  %904 = vmatmul.f32.gmra.mxu0 %v742
  %v905 = vpop.f32.mrf.mxu0
  %v906 = vadd.f32 0.0, %v905
  %907 = vmatmul.f32.gmra.mxu0 %v743
  %v908 = vpop.f32.mrf.mxu0
  %v909 = vadd.f32 0.0, %v908
  %910 = vmatmul.f32.gmra.mxu0 %v744
  %v911 = vpop.f32.mrf.mxu0
  %v912 = vadd.f32 0.0, %v911
  %913 = vmatmul.f32.gmra.mxu0 %v745
  %v914 = vpop.f32.mrf.mxu0
  %v915 = vadd.f32 0.0, %v914
  %916 = vmatmul.f32.gmra.mxu0 %v746
  %v917 = vpop.f32.mrf.mxu0
  %v918 = vadd.f32 0.0, %v917
  %919 = vmatmul.f32.gmra.mxu0 %v747
  %v920 = vpop.f32.mrf.mxu0
  %v921 = vadd.f32 0.0, %v920
  %922 = vmatmul.f32.gmra.mxu0 %v748
  %v923 = vpop.f32.mrf.mxu0
  %v924 = vadd.f32 0.0, %v923
  %925 = vmatmul.f32.gmra.mxu0 %v749
  %v926 = vpop.f32.mrf.mxu0
  %v927 = vadd.f32 0.0, %v926
  %928 = vmatmul.f32.gmra.mxu0 %v750
  %v929 = vpop.f32.mrf.mxu0
  %v930 = vadd.f32 0.0, %v929
  %931 = vmatmul.f32.gmra.mxu0 %v751
  %v932 = vpop.f32.mrf.mxu0
  %v933 = vadd.f32 0.0, %v932
  %934 = vmatmul.f32.gmra.mxu0 %v752
  %v935 = vpop.f32.mrf.mxu0
  %v936 = vadd.f32 0.0, %v935
  %937 = vmatmul.f32.gmra.mxu0 %v753
  %v938 = vpop.f32.mrf.mxu0
  %v939 = vadd.f32 0.0, %v938
  %940 = vmatmul.f32.gmra.mxu0 %v754
  %v941 = vpop.f32.mrf.mxu0
  %v942 = vadd.f32 0.0, %v941
  %943 = vmatmul.f32.gmra.mxu0 %v755
  %v944 = vpop.f32.mrf.mxu0
  %v945 = vadd.f32 0.0, %v944
  %946 = vmatmul.f32.gmra.mxu0 %v756
  %v947 = vpop.f32.mrf.mxu0
  %v948 = vadd.f32 0.0, %v947
  %949 = vmatmul.f32.gmra.mxu0 %v757
  %v950 = vpop.f32.mrf.mxu0
  %v951 = vadd.f32 0.0, %v950
  %952 = vmatmul.f32.gmra.mxu0 %v758
  %v953 = vpop.f32.mrf.mxu0
  %v954 = vadd.f32 0.0, %v953
  %955 = vmatmul.f32.gmra.mxu0 %v759
  %v956 = vpop.f32.mrf.mxu0
  %v957 = vadd.f32 0.0, %v956
  %958 = vmatmul.f32.gmra.mxu0 %v760
  %v959 = vpop.f32.mrf.mxu0
  %v960 = vadd.f32 0.0, %v959
  %961 = vmatmul.f32.gmra.mxu0 %v761
  %v962 = vpop.f32.mrf.mxu0
  %v963 = vadd.f32 0.0, %v962
  %964 = vmatmul.f32.gmra.mxu0 %v762
  %v965 = vpop.f32.mrf.mxu0
  %v966 = vadd.f32 0.0, %v965
  %967 = vmatmul.f32.gmra.mxu0 %v763
  %v968 = vpop.f32.mrf.mxu0
  %v969 = vadd.f32 0.0, %v968
  %970 = vmatmul.f32.gmra.mxu0 %v764
  %v971 = vpop.f32.mrf.mxu0
  %v972 = vadd.f32 0.0, %v971
  %973 = vmatmul.f32.gmra.mxu0 %v765
  %v974 = vpop.f32.mrf.mxu0
  %v975 = vadd.f32 0.0, %v974
  %976 = vmatmul.f32.gmra.mxu0 %v766
  %v977 = vpop.f32.mrf.mxu0
  %v978 = vadd.f32 0.0, %v977
  %979 = vmatmul.f32.gmra.mxu0 %v767
  %v980 = vpop.f32.mrf.mxu0
  %v981 = vadd.f32 0.0, %v980
  %982 = vmatmul.f32.gmra.mxu0 %v768
  %v983 = vpop.f32.mrf.mxu0
  %v984 = vadd.f32 0.0, %v983
  %985 = vmatmul.f32.gmra.mxu0 %v769
  %v986 = vpop.f32.mrf.mxu0
  %v987 = vadd.f32 0.0, %v986
  %988 = vmatmul.f32.gmra.mxu0 %v770
  %v989 = vpop.f32.mrf.mxu0
  %v990 = vadd.f32 0.0, %v989
  %991 = vmatmul.f32.gmra.mxu0 %v771
  %v992 = vpop.f32.mrf.mxu0
  %v993 = vadd.f32 0.0, %v992
  %994 = vmatmul.f32.gmra.mxu0 %v772
  %v995 = vpop.f32.mrf.mxu0
  %v996 = vadd.f32 0.0, %v995
  %997 = vdwg.mxu0
  %v998 = vadd.f32 %v259, %v807
  %v999 = vadd.f32 %v259, %v810
  %v1000 = vadd.f32 %v259, %v813
  %v1001 = vadd.f32 %v259, %v816
  %v1002 = vadd.f32 %v259, %v819
  %v1003 = vadd.f32 %v259, %v822
  %v1004 = vadd.f32 %v259, %v825
  %v1005 = vadd.f32 %v259, %v828
  %v1006 = vadd.f32 %v259, %v831
  %v1007 = vadd.f32 %v259, %v834
  %v1008 = vadd.f32 %v259, %v837
  %v1009 = vadd.f32 %v259, %v840
  %v1010 = vadd.f32 %v259, %v843
  %v1011 = vadd.f32 %v259, %v846
  %v1012 = vadd.f32 %v259, %v849
  %v1013 = vadd.f32 %v259, %v852
  %v1014 = vadd.f32 %v259, %v855
  %v1015 = vadd.f32 %v259, %v858
  %v1016 = vadd.f32 %v259, %v861
  %v1017 = vadd.f32 %v259, %v864
  %v1018 = vadd.f32 %v259, %v867
  %v1019 = vadd.f32 %v259, %v870
  %v1020 = vadd.f32 %v259, %v873
  %v1021 = vadd.f32 %v259, %v876
  %v1022 = vadd.f32 %v259, %v879
  %v1023 = vadd.f32 %v259, %v882
  %v1024 = vadd.f32 %v259, %v885
  %v1025 = vadd.f32 %v259, %v888
  %v1026 = vadd.f32 %v259, %v891
  %v1027 = vadd.f32 %v259, %v894
  %v1028 = vadd.f32 %v259, %v897
  %v1029 = vadd.f32 %v259, %v900
  %v1030 = vadd.f32 %v259, %v903
  %v1031 = vadd.f32 %v259, %v906
  %v1032 = vadd.f32 %v259, %v909
  %v1033 = vadd.f32 %v259, %v912
  %v1034 = vadd.f32 %v259, %v915
  %v1035 = vadd.f32 %v259, %v918
  %v1036 = vadd.f32 %v259, %v921
  %v1037 = vadd.f32 %v259, %v924
  %v1038 = vadd.f32 %v259, %v927
  %v1039 = vadd.f32 %v259, %v930
  %v1040 = vadd.f32 %v259, %v933
  %v1041 = vadd.f32 %v259, %v936
  %v1042 = vadd.f32 %v259, %v939
  %v1043 = vadd.f32 %v259, %v942
  %v1044 = vadd.f32 %v259, %v945
  %v1045 = vadd.f32 %v259, %v948
  %v1046 = vadd.f32 %v259, %v951
  %v1047 = vadd.f32 %v259, %v954
  %v1048 = vadd.f32 %v259, %v957
  %v1049 = vadd.f32 %v259, %v960
  %v1050 = vadd.f32 %v259, %v963
  %v1051 = vadd.f32 %v259, %v966
  %v1052 = vadd.f32 %v259, %v969
  %v1053 = vadd.f32 %v259, %v972
  %v1054 = vadd.f32 %v259, %v975
  %v1055 = vadd.f32 %v259, %v978
  %v1056 = vadd.f32 %v259, %v981
  %v1057 = vadd.f32 %v259, %v984
  %v1058 = vadd.f32 %v259, %v987
  %v1059 = vadd.f32 %v259, %v990
  %v1060 = vadd.f32 %v259, %v993
  %v1061 = vadd.f32 %v259, %v996
  %v1062 = vld [vmem:[#allocation2 + $0x8] sm:$0xff]
  %v1063 = vld [vmem:[#allocation2 + $0x10] sm:$0xff]
  %v1064 = vld [vmem:[#allocation2 + $0x18] sm:$0xff]
  %v1065 = vld [vmem:[#allocation2 + $0x20] sm:$0xff]
  %v1066 = vld [vmem:[#allocation2 + $0x28] sm:$0xff]
  %v1067 = vld [vmem:[#allocation2 + $0x30] sm:$0xff]
  %v1068 = vld [vmem:[#allocation2 + $0x38] sm:$0xff]
  %v1069 = vld [vmem:[#allocation2 + $0x40] sm:$0xff]
  %v1070 = vld [vmem:[#allocation2 + $0x48] sm:$0xff]
  %v1071 = vld [vmem:[#allocation2 + $0x50] sm:$0xff]
  %v1072 = vld [vmem:[#allocation2 + $0x58] sm:$0xff]
  %v1073 = vld [vmem:[#allocation2 + $0x60] sm:$0xff]
  %v1074 = vld [vmem:[#allocation2 + $0x68] sm:$0xff]
  %v1075 = vld [vmem:[#allocation2 + $0x70] sm:$0xff]
  %v1076 = vld [vmem:[#allocation2 + $0x78] sm:$0xff]
  %v1077 = vld [vmem:[#allocation2 + $0x80] sm:$0xff]
  %v1078 = vld [vmem:[#allocation2 + $0x88] sm:$0xff]
  %v1079 = vld [vmem:[#allocation2 + $0x90] sm:$0xff]
  %v1080 = vld [vmem:[#allocation2 + $0x98] sm:$0xff]
  %v1081 = vld [vmem:[#allocation2 + $0xa0] sm:$0xff]
  %v1082 = vld [vmem:[#allocation2 + $0xa8] sm:$0xff]
  %v1083 = vld [vmem:[#allocation2 + $0xb0] sm:$0xff]
  %v1084 = vld [vmem:[#allocation2 + $0xb8] sm:$0xff]
  %v1085 = vld [vmem:[#allocation2 + $0xc0] sm:$0xff]
  %v1086 = vld [vmem:[#allocation2 + $0xc8] sm:$0xff]
  %v1087 = vld [vmem:[#allocation2 + $0xd0] sm:$0xff]
  %v1088 = vld [vmem:[#allocation2 + $0xd8] sm:$0xff]
  %v1089 = vld [vmem:[#allocation2 + $0xe0] sm:$0xff]
  %v1090 = vld [vmem:[#allocation2 + $0xe8] sm:$0xff]
  %v1091 = vld [vmem:[#allocation2 + $0xf0] sm:$0xff]
  %v1092 = vld [vmem:[#allocation2 + $0xf8] sm:$0xff]
  %v1093 = vld [vmem:[#allocation2 + $0x100] sm:$0xff]
  %v1094 = vld [vmem:[#allocation2 + $0x108] sm:$0xff]
  %v1095 = vld [vmem:[#allocation2 + $0x110] sm:$0xff]
  %v1096 = vld [vmem:[#allocation2 + $0x118] sm:$0xff]
  %v1097 = vld [vmem:[#allocation2 + $0x120] sm:$0xff]
  %v1098 = vld [vmem:[#allocation2 + $0x128] sm:$0xff]
  %v1099 = vld [vmem:[#allocation2 + $0x130] sm:$0xff]
  %v1100 = vld [vmem:[#allocation2 + $0x138] sm:$0xff]
  %v1101 = vld [vmem:[#allocation2 + $0x140] sm:$0xff]
  %v1102 = vld [vmem:[#allocation2 + $0x148] sm:$0xff]
  %v1103 = vld [vmem:[#allocation2 + $0x150] sm:$0xff]
  %v1104 = vld [vmem:[#allocation2 + $0x158] sm:$0xff]
  %v1105 = vld [vmem:[#allocation2 + $0x160] sm:$0xff]
  %v1106 = vld [vmem:[#allocation2 + $0x168] sm:$0xff]
  %v1107 = vld [vmem:[#allocation2 + $0x170] sm:$0xff]
  %v1108 = vld [vmem:[#allocation2 + $0x178] sm:$0xff]
  %v1109 = vld [vmem:[#allocation2 + $0x180] sm:$0xff]
  %v1110 = vld [vmem:[#allocation2 + $0x188] sm:$0xff]
  %v1111 = vld [vmem:[#allocation2 + $0x190] sm:$0xff]
  %v1112 = vld [vmem:[#allocation2 + $0x198] sm:$0xff]
  %v1113 = vld [vmem:[#allocation2 + $0x1a0] sm:$0xff]
  %v1114 = vld [vmem:[#allocation2 + $0x1a8] sm:$0xff]
  %v1115 = vld [vmem:[#allocation2 + $0x1b0] sm:$0xff]
  %v1116 = vld [vmem:[#allocation2 + $0x1b8] sm:$0xff]
  %v1117 = vld [vmem:[#allocation2 + $0x1c0] sm:$0xff]
  %v1118 = vld [vmem:[#allocation2 + $0x1c8] sm:$0xff]
  %v1119 = vld [vmem:[#allocation2 + $0x1d0] sm:$0xff]
  %v1120 = vld [vmem:[#allocation2 + $0x1d8] sm:$0xff]
  %v1121 = vld [vmem:[#allocation2 + $0x1e0] sm:$0xff]
  %v1122 = vld [vmem:[#allocation2 + $0x1e8] sm:$0xff]
  %v1123 = vld [vmem:[#allocation2 + $0x1f0] sm:$0xff]
  %v1124 = vld [vmem:[#allocation2 + $0x1f8] sm:$0xff]
  %v1125 = vld [vmem:[#allocation2 + $0x200] sm:$0xff]
  %s1126 = scalar_lea.vmem %s3, 512
  %v1127 = vld [vmem:[%s1126] sm:$0xff]
  %v1128 = vld [vmem:[%s1126 + $0x8] sm:$0xff]
  %v1129 = vld [vmem:[%s1126 + $0x10] sm:$0xff]
  %v1130 = vld [vmem:[%s1126 + $0x18] sm:$0xff]
  %v1131 = vld [vmem:[%s1126 + $0x20] sm:$0xff]
  %v1132 = vld [vmem:[%s1126 + $0x28] sm:$0xff]
  %v1133 = vld [vmem:[%s1126 + $0x30] sm:$0xff]
  %v1134 = vld [vmem:[%s1126 + $0x38] sm:$0xff]
  %v1135 = vld [vmem:[%s1126 + $0x40] sm:$0xff]
  %v1136 = vld [vmem:[%s1126 + $0x48] sm:$0xff]
  %v1137 = vld [vmem:[%s1126 + $0x50] sm:$0xff]
  %v1138 = vld [vmem:[%s1126 + $0x58] sm:$0xff]
  %v1139 = vld [vmem:[%s1126 + $0x60] sm:$0xff]
  %v1140 = vld [vmem:[%s1126 + $0x68] sm:$0xff]
  %v1141 = vld [vmem:[%s1126 + $0x70] sm:$0xff]
  %v1142 = vld [vmem:[%s1126 + $0x78] sm:$0xff]
  %v1143 = vld [vmem:[%s1126 + $0x80] sm:$0xff]
  %v1144 = vld [vmem:[%s1126 + $0x88] sm:$0xff]
  %v1145 = vld [vmem:[%s1126 + $0x90] sm:$0xff]
  %v1146 = vld [vmem:[%s1126 + $0x98] sm:$0xff]
  %v1147 = vld [vmem:[%s1126 + $0xa0] sm:$0xff]
  %v1148 = vld [vmem:[%s1126 + $0xa8] sm:$0xff]
  %v1149 = vld [vmem:[%s1126 + $0xb0] sm:$0xff]
  %v1150 = vld [vmem:[%s1126 + $0xb8] sm:$0xff]
  %v1151 = vld [vmem:[%s1126 + $0xc0] sm:$0xff]
  %v1152 = vld [vmem:[%s1126 + $0xc8] sm:$0xff]
  %v1153 = vld [vmem:[%s1126 + $0xd0] sm:$0xff]
  %v1154 = vld [vmem:[%s1126 + $0xd8] sm:$0xff]
  %v1155 = vld [vmem:[%s1126 + $0xe0] sm:$0xff]
  %v1156 = vld [vmem:[%s1126 + $0xe8] sm:$0xff]
  %v1157 = vld [vmem:[%s1126 + $0xf0] sm:$0xff]
  %v1158 = vld [vmem:[%s1126 + $0xf8] sm:$0xff]
  %v1159 = vld [vmem:[%s1126 + $0x100] sm:$0xff]
  %v1160 = vld [vmem:[%s1126 + $0x108] sm:$0xff]
  %v1161 = vld [vmem:[%s1126 + $0x110] sm:$0xff]
  %v1162 = vld [vmem:[%s1126 + $0x118] sm:$0xff]
  %v1163 = vld [vmem:[%s1126 + $0x120] sm:$0xff]
  %v1164 = vld [vmem:[%s1126 + $0x128] sm:$0xff]
  %v1165 = vld [vmem:[%s1126 + $0x130] sm:$0xff]
  %v1166 = vld [vmem:[%s1126 + $0x138] sm:$0xff]
  %v1167 = vld [vmem:[%s1126 + $0x140] sm:$0xff]
  %v1168 = vld [vmem:[%s1126 + $0x148] sm:$0xff]
  %v1169 = vld [vmem:[%s1126 + $0x150] sm:$0xff]
  %v1170 = vld [vmem:[%s1126 + $0x158] sm:$0xff]
  %v1171 = vld [vmem:[%s1126 + $0x160] sm:$0xff]
  %v1172 = vld [vmem:[%s1126 + $0x168] sm:$0xff]
  %v1173 = vld [vmem:[%s1126 + $0x170] sm:$0xff]
  %v1174 = vld [vmem:[%s1126 + $0x178] sm:$0xff]
  %v1175 = vld [vmem:[%s1126 + $0x180] sm:$0xff]
  %v1176 = vld [vmem:[%s1126 + $0x188] sm:$0xff]
  %v1177 = vld [vmem:[%s1126 + $0x190] sm:$0xff]
  %v1178 = vld [vmem:[%s1126 + $0x198] sm:$0xff]
  %v1179 = vld [vmem:[%s1126 + $0x1a0] sm:$0xff]
  %v1180 = vld [vmem:[%s1126 + $0x1a8] sm:$0xff]
  %v1181 = vld [vmem:[%s1126 + $0x1b0] sm:$0xff]
  %v1182 = vld [vmem:[%s1126 + $0x1b8] sm:$0xff]
  %v1183 = vld [vmem:[%s1126 + $0x1c0] sm:$0xff]
  %v1184 = vld [vmem:[%s1126 + $0x1c8] sm:$0xff]
  %v1185 = vld [vmem:[%s1126 + $0x1d0] sm:$0xff]
  %v1186 = vld [vmem:[%s1126 + $0x1d8] sm:$0xff]
  %v1187 = vld [vmem:[%s1126 + $0x1e0] sm:$0xff]
  %v1188 = vld [vmem:[%s1126 + $0x1e8] sm:$0xff]
  %v1189 = vld [vmem:[%s1126 + $0x1f0] sm:$0xff]
  %v1190 = vld [vmem:[%s1126 + $0x1f8] sm:$0xff]
  %1192 = vset.pattern.permute.xlu0 0
  %1193 = vperm.xlu0 %1192, %v1127
  %v1194 = vpop.permute.xlu0 %1193
  %1197 = vset.pattern.permute.xlu0 0
  %1198 = vperm.xlu0 %1197, %v1128
  %v1199 = vpop.permute.xlu0 %1198
  %1202 = vset.pattern.permute.xlu0 0
  %1203 = vperm.xlu0 %1202, %v1129
  %v1204 = vpop.permute.xlu0 %1203
  %1207 = vset.pattern.permute.xlu0 0
  %1208 = vperm.xlu0 %1207, %v1130
  %v1209 = vpop.permute.xlu0 %1208
  %1212 = vset.pattern.permute.xlu0 0
  %1213 = vperm.xlu0 %1212, %v1131
  %v1214 = vpop.permute.xlu0 %1213
  %1217 = vset.pattern.permute.xlu0 0
  %1218 = vperm.xlu0 %1217, %v1132
  %v1219 = vpop.permute.xlu0 %1218
  %1222 = vset.pattern.permute.xlu0 0
  %1223 = vperm.xlu0 %1222, %v1133
  %v1224 = vpop.permute.xlu0 %1223
  %1227 = vset.pattern.permute.xlu0 0
  %1228 = vperm.xlu0 %1227, %v1134
  %v1229 = vpop.permute.xlu0 %1228
  %1232 = vset.pattern.permute.xlu0 0
  %1233 = vperm.xlu0 %1232, %v1135
  %v1234 = vpop.permute.xlu0 %1233
  %1237 = vset.pattern.permute.xlu0 0
  %1238 = vperm.xlu0 %1237, %v1136
  %v1239 = vpop.permute.xlu0 %1238
  %1242 = vset.pattern.permute.xlu0 0
  %1243 = vperm.xlu0 %1242, %v1137
  %v1244 = vpop.permute.xlu0 %1243
  %1247 = vset.pattern.permute.xlu0 0
  %1248 = vperm.xlu0 %1247, %v1138
  %v1249 = vpop.permute.xlu0 %1248
  %1252 = vset.pattern.permute.xlu0 0
  %1253 = vperm.xlu0 %1252, %v1139
  %v1254 = vpop.permute.xlu0 %1253
  %1257 = vset.pattern.permute.xlu0 0
  %1258 = vperm.xlu0 %1257, %v1140
  %v1259 = vpop.permute.xlu0 %1258
  %1262 = vset.pattern.permute.xlu0 0
  %1263 = vperm.xlu0 %1262, %v1141
  %v1264 = vpop.permute.xlu0 %1263
  %1267 = vset.pattern.permute.xlu0 0
  %1268 = vperm.xlu0 %1267, %v1142
  %v1269 = vpop.permute.xlu0 %1268
  %1272 = vset.pattern.permute.xlu0 0
  %1273 = vperm.xlu0 %1272, %v1143
  %v1274 = vpop.permute.xlu0 %1273
  %1277 = vset.pattern.permute.xlu0 0
  %1278 = vperm.xlu0 %1277, %v1144
  %v1279 = vpop.permute.xlu0 %1278
  %1282 = vset.pattern.permute.xlu0 0
  %1283 = vperm.xlu0 %1282, %v1145
  %v1284 = vpop.permute.xlu0 %1283
  %1287 = vset.pattern.permute.xlu0 0
  %1288 = vperm.xlu0 %1287, %v1146
  %v1289 = vpop.permute.xlu0 %1288
  %1292 = vset.pattern.permute.xlu0 0
  %1293 = vperm.xlu0 %1292, %v1147
  %v1294 = vpop.permute.xlu0 %1293
  %1297 = vset.pattern.permute.xlu0 0
  %1298 = vperm.xlu0 %1297, %v1148
  %v1299 = vpop.permute.xlu0 %1298
  %1302 = vset.pattern.permute.xlu0 0
  %1303 = vperm.xlu0 %1302, %v1149
  %v1304 = vpop.permute.xlu0 %1303
  %1307 = vset.pattern.permute.xlu0 0
  %1308 = vperm.xlu0 %1307, %v1150
  %v1309 = vpop.permute.xlu0 %1308
  %1312 = vset.pattern.permute.xlu0 0
  %1313 = vperm.xlu0 %1312, %v1151
  %v1314 = vpop.permute.xlu0 %1313
  %1317 = vset.pattern.permute.xlu0 0
  %1318 = vperm.xlu0 %1317, %v1152
  %v1319 = vpop.permute.xlu0 %1318
  %1322 = vset.pattern.permute.xlu0 0
  %1323 = vperm.xlu0 %1322, %v1153
  %v1324 = vpop.permute.xlu0 %1323
  %1327 = vset.pattern.permute.xlu0 0
  %1328 = vperm.xlu0 %1327, %v1154
  %v1329 = vpop.permute.xlu0 %1328
  %1332 = vset.pattern.permute.xlu0 0
  %1333 = vperm.xlu0 %1332, %v1155
  %v1334 = vpop.permute.xlu0 %1333
  %1337 = vset.pattern.permute.xlu0 0
  %1338 = vperm.xlu0 %1337, %v1156
  %v1339 = vpop.permute.xlu0 %1338
  %1342 = vset.pattern.permute.xlu0 0
  %1343 = vperm.xlu0 %1342, %v1157
  %v1344 = vpop.permute.xlu0 %1343
  %1347 = vset.pattern.permute.xlu0 0
  %1348 = vperm.xlu0 %1347, %v1158
  %v1349 = vpop.permute.xlu0 %1348
  %1352 = vset.pattern.permute.xlu0 0
  %1353 = vperm.xlu0 %1352, %v1159
  %v1354 = vpop.permute.xlu0 %1353
  %1357 = vset.pattern.permute.xlu0 0
  %1358 = vperm.xlu0 %1357, %v1160
  %v1359 = vpop.permute.xlu0 %1358
  %1362 = vset.pattern.permute.xlu0 0
  %1363 = vperm.xlu0 %1362, %v1161
  %v1364 = vpop.permute.xlu0 %1363
  %1367 = vset.pattern.permute.xlu0 0
  %1368 = vperm.xlu0 %1367, %v1162
  %v1369 = vpop.permute.xlu0 %1368
  %1372 = vset.pattern.permute.xlu0 0
  %1373 = vperm.xlu0 %1372, %v1163
  %v1374 = vpop.permute.xlu0 %1373
  %1377 = vset.pattern.permute.xlu0 0
  %1378 = vperm.xlu0 %1377, %v1164
  %v1379 = vpop.permute.xlu0 %1378
  %1382 = vset.pattern.permute.xlu0 0
  %1383 = vperm.xlu0 %1382, %v1165
  %v1384 = vpop.permute.xlu0 %1383
  %1387 = vset.pattern.permute.xlu0 0
  %1388 = vperm.xlu0 %1387, %v1166
  %v1389 = vpop.permute.xlu0 %1388
  %1392 = vset.pattern.permute.xlu0 0
  %1393 = vperm.xlu0 %1392, %v1167
  %v1394 = vpop.permute.xlu0 %1393
  %1397 = vset.pattern.permute.xlu0 0
  %1398 = vperm.xlu0 %1397, %v1168
  %v1399 = vpop.permute.xlu0 %1398
  %1402 = vset.pattern.permute.xlu0 0
  %1403 = vperm.xlu0 %1402, %v1169
  %v1404 = vpop.permute.xlu0 %1403
  %1407 = vset.pattern.permute.xlu0 0
  %1408 = vperm.xlu0 %1407, %v1170
  %v1409 = vpop.permute.xlu0 %1408
  %1412 = vset.pattern.permute.xlu0 0
  %1413 = vperm.xlu0 %1412, %v1171
  %v1414 = vpop.permute.xlu0 %1413
  %1417 = vset.pattern.permute.xlu0 0
  %1418 = vperm.xlu0 %1417, %v1172
  %v1419 = vpop.permute.xlu0 %1418
  %1422 = vset.pattern.permute.xlu0 0
  %1423 = vperm.xlu0 %1422, %v1173
  %v1424 = vpop.permute.xlu0 %1423
  %1427 = vset.pattern.permute.xlu0 0
  %1428 = vperm.xlu0 %1427, %v1174
  %v1429 = vpop.permute.xlu0 %1428
  %1432 = vset.pattern.permute.xlu0 0
  %1433 = vperm.xlu0 %1432, %v1175
  %v1434 = vpop.permute.xlu0 %1433
  %1437 = vset.pattern.permute.xlu0 0
  %1438 = vperm.xlu0 %1437, %v1176
  %v1439 = vpop.permute.xlu0 %1438
  %1442 = vset.pattern.permute.xlu0 0
  %1443 = vperm.xlu0 %1442, %v1177
  %v1444 = vpop.permute.xlu0 %1443
  %1447 = vset.pattern.permute.xlu0 0
  %1448 = vperm.xlu0 %1447, %v1178
  %v1449 = vpop.permute.xlu0 %1448
  %1452 = vset.pattern.permute.xlu0 0
  %1453 = vperm.xlu0 %1452, %v1179
  %v1454 = vpop.permute.xlu0 %1453
  %1457 = vset.pattern.permute.xlu0 0
  %1458 = vperm.xlu0 %1457, %v1180
  %v1459 = vpop.permute.xlu0 %1458
  %1462 = vset.pattern.permute.xlu0 0
  %1463 = vperm.xlu0 %1462, %v1181
  %v1464 = vpop.permute.xlu0 %1463
  %1467 = vset.pattern.permute.xlu0 0
  %1468 = vperm.xlu0 %1467, %v1182
  %v1469 = vpop.permute.xlu0 %1468
  %1472 = vset.pattern.permute.xlu0 0
  %1473 = vperm.xlu0 %1472, %v1183
  %v1474 = vpop.permute.xlu0 %1473
  %1477 = vset.pattern.permute.xlu0 0
  %1478 = vperm.xlu0 %1477, %v1184
  %v1479 = vpop.permute.xlu0 %1478
  %1482 = vset.pattern.permute.xlu0 0
  %1483 = vperm.xlu0 %1482, %v1185
  %v1484 = vpop.permute.xlu0 %1483
  %1487 = vset.pattern.permute.xlu0 0
  %1488 = vperm.xlu0 %1487, %v1186
  %v1489 = vpop.permute.xlu0 %1488
  %1492 = vset.pattern.permute.xlu0 0
  %1493 = vperm.xlu0 %1492, %v1187
  %v1494 = vpop.permute.xlu0 %1493
  %1497 = vset.pattern.permute.xlu0 0
  %1498 = vperm.xlu0 %1497, %v1188
  %v1499 = vpop.permute.xlu0 %1498
  %1502 = vset.pattern.permute.xlu0 0
  %1503 = vperm.xlu0 %1502, %v1189
  %v1504 = vpop.permute.xlu0 %1503
  %1507 = vset.pattern.permute.xlu0 0
  %1508 = vperm.xlu0 %1507, %v1190
  %v1509 = vpop.permute.xlu0 %1508
  %v1511 = vmul.f32 %v1062, %v1194
  %v1512 = vmul.f32 %v1063, %v1199
  %v1513 = vmul.f32 %v1064, %v1204
  %v1514 = vmul.f32 %v1065, %v1209
  %v1515 = vmul.f32 %v1066, %v1214
  %v1516 = vmul.f32 %v1067, %v1219
  %v1517 = vmul.f32 %v1068, %v1224
  %v1518 = vmul.f32 %v1069, %v1229
  %v1519 = vmul.f32 %v1070, %v1234
  %v1520 = vmul.f32 %v1071, %v1239
  %v1521 = vmul.f32 %v1072, %v1244
  %v1522 = vmul.f32 %v1073, %v1249
  %v1523 = vmul.f32 %v1074, %v1254
  %v1524 = vmul.f32 %v1075, %v1259
  %v1525 = vmul.f32 %v1076, %v1264
  %v1526 = vmul.f32 %v1077, %v1269
  %v1527 = vmul.f32 %v1078, %v1274
  %v1528 = vmul.f32 %v1079, %v1279
  %v1529 = vmul.f32 %v1080, %v1284
  %v1530 = vmul.f32 %v1081, %v1289
  %v1531 = vmul.f32 %v1082, %v1294
  %v1532 = vmul.f32 %v1083, %v1299
  %v1533 = vmul.f32 %v1084, %v1304
  %v1534 = vmul.f32 %v1085, %v1309
  %v1535 = vmul.f32 %v1086, %v1314
  %v1536 = vmul.f32 %v1087, %v1319
  %v1537 = vmul.f32 %v1088, %v1324
  %v1538 = vmul.f32 %v1089, %v1329
  %v1539 = vmul.f32 %v1090, %v1334
  %v1540 = vmul.f32 %v1091, %v1339
  %v1541 = vmul.f32 %v1092, %v1344
  %v1542 = vmul.f32 %v1093, %v1349
  %v1543 = vmul.f32 %v1094, %v1354
  %v1544 = vmul.f32 %v1095, %v1359
  %v1545 = vmul.f32 %v1096, %v1364
  %v1546 = vmul.f32 %v1097, %v1369
  %v1547 = vmul.f32 %v1098, %v1374
  %v1548 = vmul.f32 %v1099, %v1379
  %v1549 = vmul.f32 %v1100, %v1384
  %v1550 = vmul.f32 %v1101, %v1389
  %v1551 = vmul.f32 %v1102, %v1394
  %v1552 = vmul.f32 %v1103, %v1399
  %v1553 = vmul.f32 %v1104, %v1404
  %v1554 = vmul.f32 %v1105, %v1409
  %v1555 = vmul.f32 %v1106, %v1414
  %v1556 = vmul.f32 %v1107, %v1419
  %v1557 = vmul.f32 %v1108, %v1424
  %v1558 = vmul.f32 %v1109, %v1429
  %v1559 = vmul.f32 %v1110, %v1434
  %v1560 = vmul.f32 %v1111, %v1439
  %v1561 = vmul.f32 %v1112, %v1444
  %v1562 = vmul.f32 %v1113, %v1449
  %v1563 = vmul.f32 %v1114, %v1454
  %v1564 = vmul.f32 %v1115, %v1459
  %v1565 = vmul.f32 %v1116, %v1464
  %v1566 = vmul.f32 %v1117, %v1469
  %v1567 = vmul.f32 %v1118, %v1474
  %v1568 = vmul.f32 %v1119, %v1479
  %v1569 = vmul.f32 %v1120, %v1484
  %v1570 = vmul.f32 %v1121, %v1489
  %v1571 = vmul.f32 %v1122, %v1494
  %v1572 = vmul.f32 %v1123, %v1499
  %v1573 = vmul.f32 %v1124, %v1504
  %v1574 = vmul.f32 %v1125, %v1509
  %s1575 = scalar_lea.vmem %s1, 128
  %v1576 = vld [vmem:[%s1575] sm:$0xff]
  %v1577 = vld [vmem:[%s1575 + $0x8] sm:$0xff]
  %v1578 = vld [vmem:[%s1575 + $0x10] sm:$0xff]
  %v1579 = vld [vmem:[%s1575 + $0x18] sm:$0xff]
  %v1580 = vld [vmem:[%s1575 + $0x20] sm:$0xff]
  %v1581 = vld [vmem:[%s1575 + $0x28] sm:$0xff]
  %v1582 = vld [vmem:[%s1575 + $0x30] sm:$0xff]
  %v1583 = vld [vmem:[%s1575 + $0x38] sm:$0xff]
  %v1584 = vld [vmem:[%s1575 + $0x40] sm:$0xff]
  %v1585 = vld [vmem:[%s1575 + $0x48] sm:$0xff]
  %v1586 = vld [vmem:[%s1575 + $0x50] sm:$0xff]
  %v1587 = vld [vmem:[%s1575 + $0x58] sm:$0xff]
  %v1588 = vld [vmem:[%s1575 + $0x60] sm:$0xff]
  %v1589 = vld [vmem:[%s1575 + $0x68] sm:$0xff]
  %v1590 = vld [vmem:[%s1575 + $0x70] sm:$0xff]
  %v1591 = vld [vmem:[%s1575 + $0x78] sm:$0xff]
  %1592 = vmatpush.msra.mxu0 %v1591
  %1593 = vmatpush.msra.mxu0 %v1590
  %1594 = vmatpush.msra.mxu0 %v1589
  %1595 = vmatpush.msra.mxu0 %v1588
  %1596 = vmatpush.msra.mxu0 %v1587
  %1597 = vmatpush.msra.mxu0 %v1586
  %1598 = vmatpush.msra.mxu0 %v1585
  %1599 = vmatpush.msra.mxu0 %v1584
  %1600 = vmatpush.msra.mxu0 %v1583
  %1601 = vmatpush.msra.mxu0 %v1582
  %1602 = vmatpush.msra.mxu0 %v1581
  %1603 = vmatpush.msra.mxu0 %v1580
  %1604 = vmatpush.msra.mxu0 %v1579
  %1605 = vmatpush.msra.mxu0 %v1578
  %1606 = vmatpush.msra.mxu0 %v1577
  %1607 = vmatpush.msra.mxu0 %v1576
  %1608 = vmatmul.f32.gmra.mxu0 %v1511
  %v1609 = vpop.f32.mrf.mxu0
  %v1610 = vadd.f32 0.0, %v1609
  %1611 = vmatmul.f32.gmra.mxu0 %v1512
  %v1612 = vpop.f32.mrf.mxu0
  %v1613 = vadd.f32 0.0, %v1612
  %1614 = vmatmul.f32.gmra.mxu0 %v1513
  %v1615 = vpop.f32.mrf.mxu0
  %v1616 = vadd.f32 0.0, %v1615
  %1617 = vmatmul.f32.gmra.mxu0 %v1514
  %v1618 = vpop.f32.mrf.mxu0
  %v1619 = vadd.f32 0.0, %v1618
  %1620 = vmatmul.f32.gmra.mxu0 %v1515
  %v1621 = vpop.f32.mrf.mxu0
  %v1622 = vadd.f32 0.0, %v1621
  %1623 = vmatmul.f32.gmra.mxu0 %v1516
  %v1624 = vpop.f32.mrf.mxu0
  %v1625 = vadd.f32 0.0, %v1624
  %1626 = vmatmul.f32.gmra.mxu0 %v1517
  %v1627 = vpop.f32.mrf.mxu0
  %v1628 = vadd.f32 0.0, %v1627
  %1629 = vmatmul.f32.gmra.mxu0 %v1518
  %v1630 = vpop.f32.mrf.mxu0
  %v1631 = vadd.f32 0.0, %v1630
  %1632 = vmatmul.f32.gmra.mxu0 %v1519
  %v1633 = vpop.f32.mrf.mxu0
  %v1634 = vadd.f32 0.0, %v1633
  %1635 = vmatmul.f32.gmra.mxu0 %v1520
  %v1636 = vpop.f32.mrf.mxu0
  %v1637 = vadd.f32 0.0, %v1636
  %1638 = vmatmul.f32.gmra.mxu0 %v1521
  %v1639 = vpop.f32.mrf.mxu0
  %v1640 = vadd.f32 0.0, %v1639
  %1641 = vmatmul.f32.gmra.mxu0 %v1522
  %v1642 = vpop.f32.mrf.mxu0
  %v1643 = vadd.f32 0.0, %v1642
  %1644 = vmatmul.f32.gmra.mxu0 %v1523
  %v1645 = vpop.f32.mrf.mxu0
  %v1646 = vadd.f32 0.0, %v1645
  %1647 = vmatmul.f32.gmra.mxu0 %v1524
  %v1648 = vpop.f32.mrf.mxu0
  %v1649 = vadd.f32 0.0, %v1648
  %1650 = vmatmul.f32.gmra.mxu0 %v1525
  %v1651 = vpop.f32.mrf.mxu0
  %v1652 = vadd.f32 0.0, %v1651
  %1653 = vmatmul.f32.gmra.mxu0 %v1526
  %v1654 = vpop.f32.mrf.mxu0
  %v1655 = vadd.f32 0.0, %v1654
  %1656 = vmatmul.f32.gmra.mxu0 %v1527
  %v1657 = vpop.f32.mrf.mxu0
  %v1658 = vadd.f32 0.0, %v1657
  %1659 = vmatmul.f32.gmra.mxu0 %v1528
  %v1660 = vpop.f32.mrf.mxu0
  %v1661 = vadd.f32 0.0, %v1660
  %1662 = vmatmul.f32.gmra.mxu0 %v1529
  %v1663 = vpop.f32.mrf.mxu0
  %v1664 = vadd.f32 0.0, %v1663
  %1665 = vmatmul.f32.gmra.mxu0 %v1530
  %v1666 = vpop.f32.mrf.mxu0
  %v1667 = vadd.f32 0.0, %v1666
  %1668 = vmatmul.f32.gmra.mxu0 %v1531
  %v1669 = vpop.f32.mrf.mxu0
  %v1670 = vadd.f32 0.0, %v1669
  %1671 = vmatmul.f32.gmra.mxu0 %v1532
  %v1672 = vpop.f32.mrf.mxu0
  %v1673 = vadd.f32 0.0, %v1672
  %1674 = vmatmul.f32.gmra.mxu0 %v1533
  %v1675 = vpop.f32.mrf.mxu0
  %v1676 = vadd.f32 0.0, %v1675
  %1677 = vmatmul.f32.gmra.mxu0 %v1534
  %v1678 = vpop.f32.mrf.mxu0
  %v1679 = vadd.f32 0.0, %v1678
  %1680 = vmatmul.f32.gmra.mxu0 %v1535
  %v1681 = vpop.f32.mrf.mxu0
  %v1682 = vadd.f32 0.0, %v1681
  %1683 = vmatmul.f32.gmra.mxu0 %v1536
  %v1684 = vpop.f32.mrf.mxu0
  %v1685 = vadd.f32 0.0, %v1684
  %1686 = vmatmul.f32.gmra.mxu0 %v1537
  %v1687 = vpop.f32.mrf.mxu0
  %v1688 = vadd.f32 0.0, %v1687
  %1689 = vmatmul.f32.gmra.mxu0 %v1538
  %v1690 = vpop.f32.mrf.mxu0
  %v1691 = vadd.f32 0.0, %v1690
  %1692 = vmatmul.f32.gmra.mxu0 %v1539
  %v1693 = vpop.f32.mrf.mxu0
  %v1694 = vadd.f32 0.0, %v1693
  %1695 = vmatmul.f32.gmra.mxu0 %v1540
  %v1696 = vpop.f32.mrf.mxu0
  %v1697 = vadd.f32 0.0, %v1696
  %1698 = vmatmul.f32.gmra.mxu0 %v1541
  %v1699 = vpop.f32.mrf.mxu0
  %v1700 = vadd.f32 0.0, %v1699
  %1701 = vmatmul.f32.gmra.mxu0 %v1542
  %v1702 = vpop.f32.mrf.mxu0
  %v1703 = vadd.f32 0.0, %v1702
  %1704 = vmatmul.f32.gmra.mxu0 %v1543
  %v1705 = vpop.f32.mrf.mxu0
  %v1706 = vadd.f32 0.0, %v1705
  %1707 = vmatmul.f32.gmra.mxu0 %v1544
  %v1708 = vpop.f32.mrf.mxu0
  %v1709 = vadd.f32 0.0, %v1708
  %1710 = vmatmul.f32.gmra.mxu0 %v1545
  %v1711 = vpop.f32.mrf.mxu0
  %v1712 = vadd.f32 0.0, %v1711
  %1713 = vmatmul.f32.gmra.mxu0 %v1546
  %v1714 = vpop.f32.mrf.mxu0
  %v1715 = vadd.f32 0.0, %v1714
  %1716 = vmatmul.f32.gmra.mxu0 %v1547
  %v1717 = vpop.f32.mrf.mxu0
  %v1718 = vadd.f32 0.0, %v1717
  %1719 = vmatmul.f32.gmra.mxu0 %v1548
  %v1720 = vpop.f32.mrf.mxu0
  %v1721 = vadd.f32 0.0, %v1720
  %1722 = vmatmul.f32.gmra.mxu0 %v1549
  %v1723 = vpop.f32.mrf.mxu0
  %v1724 = vadd.f32 0.0, %v1723
  %1725 = vmatmul.f32.gmra.mxu0 %v1550
  %v1726 = vpop.f32.mrf.mxu0
  %v1727 = vadd.f32 0.0, %v1726
  %1728 = vmatmul.f32.gmra.mxu0 %v1551
  %v1729 = vpop.f32.mrf.mxu0
  %v1730 = vadd.f32 0.0, %v1729
  %1731 = vmatmul.f32.gmra.mxu0 %v1552
  %v1732 = vpop.f32.mrf.mxu0
  %v1733 = vadd.f32 0.0, %v1732
  %1734 = vmatmul.f32.gmra.mxu0 %v1553
  %v1735 = vpop.f32.mrf.mxu0
  %v1736 = vadd.f32 0.0, %v1735
  %1737 = vmatmul.f32.gmra.mxu0 %v1554
  %v1738 = vpop.f32.mrf.mxu0
  %v1739 = vadd.f32 0.0, %v1738
  %1740 = vmatmul.f32.gmra.mxu0 %v1555
  %v1741 = vpop.f32.mrf.mxu0
  %v1742 = vadd.f32 0.0, %v1741
  %1743 = vmatmul.f32.gmra.mxu0 %v1556
  %v1744 = vpop.f32.mrf.mxu0
  %v1745 = vadd.f32 0.0, %v1744
  %1746 = vmatmul.f32.gmra.mxu0 %v1557
  %v1747 = vpop.f32.mrf.mxu0
  %v1748 = vadd.f32 0.0, %v1747
  %1749 = vmatmul.f32.gmra.mxu0 %v1558
  %v1750 = vpop.f32.mrf.mxu0
  %v1751 = vadd.f32 0.0, %v1750
  %1752 = vmatmul.f32.gmra.mxu0 %v1559
  %v1753 = vpop.f32.mrf.mxu0
  %v1754 = vadd.f32 0.0, %v1753
  %1755 = vmatmul.f32.gmra.mxu0 %v1560
  %v1756 = vpop.f32.mrf.mxu0
  %v1757 = vadd.f32 0.0, %v1756
  %1758 = vmatmul.f32.gmra.mxu0 %v1561
  %v1759 = vpop.f32.mrf.mxu0
  %v1760 = vadd.f32 0.0, %v1759
  %1761 = vmatmul.f32.gmra.mxu0 %v1562
  %v1762 = vpop.f32.mrf.mxu0
  %v1763 = vadd.f32 0.0, %v1762
  %1764 = vmatmul.f32.gmra.mxu0 %v1563
  %v1765 = vpop.f32.mrf.mxu0
  %v1766 = vadd.f32 0.0, %v1765
  %1767 = vmatmul.f32.gmra.mxu0 %v1564
  %v1768 = vpop.f32.mrf.mxu0
  %v1769 = vadd.f32 0.0, %v1768
  %1770 = vmatmul.f32.gmra.mxu0 %v1565
  %v1771 = vpop.f32.mrf.mxu0
  %v1772 = vadd.f32 0.0, %v1771
  %1773 = vmatmul.f32.gmra.mxu0 %v1566
  %v1774 = vpop.f32.mrf.mxu0
  %v1775 = vadd.f32 0.0, %v1774
  %1776 = vmatmul.f32.gmra.mxu0 %v1567
  %v1777 = vpop.f32.mrf.mxu0
  %v1778 = vadd.f32 0.0, %v1777
  %1779 = vmatmul.f32.gmra.mxu0 %v1568
  %v1780 = vpop.f32.mrf.mxu0
  %v1781 = vadd.f32 0.0, %v1780
  %1782 = vmatmul.f32.gmra.mxu0 %v1569
  %v1783 = vpop.f32.mrf.mxu0
  %v1784 = vadd.f32 0.0, %v1783
  %1785 = vmatmul.f32.gmra.mxu0 %v1570
  %v1786 = vpop.f32.mrf.mxu0
  %v1787 = vadd.f32 0.0, %v1786
  %1788 = vmatmul.f32.gmra.mxu0 %v1571
  %v1789 = vpop.f32.mrf.mxu0
  %v1790 = vadd.f32 0.0, %v1789
  %1791 = vmatmul.f32.gmra.mxu0 %v1572
  %v1792 = vpop.f32.mrf.mxu0
  %v1793 = vadd.f32 0.0, %v1792
  %1794 = vmatmul.f32.gmra.mxu0 %v1573
  %v1795 = vpop.f32.mrf.mxu0
  %v1796 = vadd.f32 0.0, %v1795
  %1797 = vmatmul.f32.gmra.mxu0 %v1574
  %v1798 = vpop.f32.mrf.mxu0
  %v1799 = vadd.f32 0.0, %v1798
  %1800 = vdwg.mxu0
  %v1801 = vadd.f32 %v998, %v1610
  %v1802 = vadd.f32 %v999, %v1613
  %v1803 = vadd.f32 %v1000, %v1616
  %v1804 = vadd.f32 %v1001, %v1619
  %v1805 = vadd.f32 %v1002, %v1622
  %v1806 = vadd.f32 %v1003, %v1625
  %v1807 = vadd.f32 %v1004, %v1628
  %v1808 = vadd.f32 %v1005, %v1631
  %v1809 = vadd.f32 %v1006, %v1634
  %v1810 = vadd.f32 %v1007, %v1637
  %v1811 = vadd.f32 %v1008, %v1640
  %v1812 = vadd.f32 %v1009, %v1643
  %v1813 = vadd.f32 %v1010, %v1646
  %v1814 = vadd.f32 %v1011, %v1649
  %v1815 = vadd.f32 %v1012, %v1652
  %v1816 = vadd.f32 %v1013, %v1655
  %v1817 = vadd.f32 %v1014, %v1658
  %v1818 = vadd.f32 %v1015, %v1661
  %v1819 = vadd.f32 %v1016, %v1664
  %v1820 = vadd.f32 %v1017, %v1667
  %v1821 = vadd.f32 %v1018, %v1670
  %v1822 = vadd.f32 %v1019, %v1673
  %v1823 = vadd.f32 %v1020, %v1676
  %v1824 = vadd.f32 %v1021, %v1679
  %v1825 = vadd.f32 %v1022, %v1682
  %v1826 = vadd.f32 %v1023, %v1685
  %v1827 = vadd.f32 %v1024, %v1688
  %v1828 = vadd.f32 %v1025, %v1691
  %v1829 = vadd.f32 %v1026, %v1694
  %v1830 = vadd.f32 %v1027, %v1697
  %v1831 = vadd.f32 %v1028, %v1700
  %v1832 = vadd.f32 %v1029, %v1703
  %v1833 = vadd.f32 %v1030, %v1706
  %v1834 = vadd.f32 %v1031, %v1709
  %v1835 = vadd.f32 %v1032, %v1712
  %v1836 = vadd.f32 %v1033, %v1715
  %v1837 = vadd.f32 %v1034, %v1718
  %v1838 = vadd.f32 %v1035, %v1721
  %v1839 = vadd.f32 %v1036, %v1724
  %v1840 = vadd.f32 %v1037, %v1727
  %v1841 = vadd.f32 %v1038, %v1730
  %v1842 = vadd.f32 %v1039, %v1733
  %v1843 = vadd.f32 %v1040, %v1736
  %v1844 = vadd.f32 %v1041, %v1739
  %v1845 = vadd.f32 %v1042, %v1742
  %v1846 = vadd.f32 %v1043, %v1745
  %v1847 = vadd.f32 %v1044, %v1748
  %v1848 = vadd.f32 %v1045, %v1751
  %v1849 = vadd.f32 %v1046, %v1754
  %v1850 = vadd.f32 %v1047, %v1757
  %v1851 = vadd.f32 %v1048, %v1760
  %v1852 = vadd.f32 %v1049, %v1763
  %v1853 = vadd.f32 %v1050, %v1766
  %v1854 = vadd.f32 %v1051, %v1769
  %v1855 = vadd.f32 %v1052, %v1772
  %v1856 = vadd.f32 %v1053, %v1775
  %v1857 = vadd.f32 %v1054, %v1778
  %v1858 = vadd.f32 %v1055, %v1781
  %v1859 = vadd.f32 %v1056, %v1784
  %v1860 = vadd.f32 %v1057, %v1787
  %v1861 = vadd.f32 %v1058, %v1790
  %v1862 = vadd.f32 %v1059, %v1793
  %v1863 = vadd.f32 %v1060, %v1796
  %v1864 = vadd.f32 %v1061, %v1799
  %v1865 = vld [vmem:[#allocation2 + $0x9] sm:$0xff]
  %v1866 = vld [vmem:[#allocation2 + $0x11] sm:$0xff]
  %v1867 = vld [vmem:[#allocation2 + $0x19] sm:$0xff]
  %v1868 = vld [vmem:[#allocation2 + $0x21] sm:$0xff]
  %v1869 = vld [vmem:[#allocation2 + $0x29] sm:$0xff]
  %v1870 = vld [vmem:[#allocation2 + $0x31] sm:$0xff]
  %v1871 = vld [vmem:[#allocation2 + $0x39] sm:$0xff]
  %v1872 = vld [vmem:[#allocation2 + $0x41] sm:$0xff]
  %v1873 = vld [vmem:[#allocation2 + $0x49] sm:$0xff]
  %v1874 = vld [vmem:[#allocation2 + $0x51] sm:$0xff]
  %v1875 = vld [vmem:[#allocation2 + $0x59] sm:$0xff]
  %v1876 = vld [vmem:[#allocation2 + $0x61] sm:$0xff]
  %v1877 = vld [vmem:[#allocation2 + $0x69] sm:$0xff]
  %v1878 = vld [vmem:[#allocation2 + $0x71] sm:$0xff]
  %v1879 = vld [vmem:[#allocation2 + $0x79] sm:$0xff]
  %v1880 = vld [vmem:[#allocation2 + $0x81] sm:$0xff]
  %v1881 = vld [vmem:[#allocation2 + $0x89] sm:$0xff]
  %v1882 = vld [vmem:[#allocation2 + $0x91] sm:$0xff]
  %v1883 = vld [vmem:[#allocation2 + $0x99] sm:$0xff]
  %v1884 = vld [vmem:[#allocation2 + $0xa1] sm:$0xff]
  %v1885 = vld [vmem:[#allocation2 + $0xa9] sm:$0xff]
  %v1886 = vld [vmem:[#allocation2 + $0xb1] sm:$0xff]
  %v1887 = vld [vmem:[#allocation2 + $0xb9] sm:$0xff]
  %v1888 = vld [vmem:[#allocation2 + $0xc1] sm:$0xff]
  %v1889 = vld [vmem:[#allocation2 + $0xc9] sm:$0xff]
  %v1890 = vld [vmem:[#allocation2 + $0xd1] sm:$0xff]
  %v1891 = vld [vmem:[#allocation2 + $0xd9] sm:$0xff]
  %v1892 = vld [vmem:[#allocation2 + $0xe1] sm:$0xff]
  %v1893 = vld [vmem:[#allocation2 + $0xe9] sm:$0xff]
  %v1894 = vld [vmem:[#allocation2 + $0xf1] sm:$0xff]
  %v1895 = vld [vmem:[#allocation2 + $0xf9] sm:$0xff]
  %v1896 = vld [vmem:[#allocation2 + $0x101] sm:$0xff]
  %v1897 = vld [vmem:[#allocation2 + $0x109] sm:$0xff]
  %v1898 = vld [vmem:[#allocation2 + $0x111] sm:$0xff]
  %v1899 = vld [vmem:[#allocation2 + $0x119] sm:$0xff]
  %v1900 = vld [vmem:[#allocation2 + $0x121] sm:$0xff]
  %v1901 = vld [vmem:[#allocation2 + $0x129] sm:$0xff]
  %v1902 = vld [vmem:[#allocation2 + $0x131] sm:$0xff]
  %v1903 = vld [vmem:[#allocation2 + $0x139] sm:$0xff]
  %v1904 = vld [vmem:[#allocation2 + $0x141] sm:$0xff]
  %v1905 = vld [vmem:[#allocation2 + $0x149] sm:$0xff]
  %v1906 = vld [vmem:[#allocation2 + $0x151] sm:$0xff]
  %v1907 = vld [vmem:[#allocation2 + $0x159] sm:$0xff]
  %v1908 = vld [vmem:[#allocation2 + $0x161] sm:$0xff]
  %v1909 = vld [vmem:[#allocation2 + $0x169] sm:$0xff]
  %v1910 = vld [vmem:[#allocation2 + $0x171] sm:$0xff]
  %v1911 = vld [vmem:[#allocation2 + $0x179] sm:$0xff]
  %v1912 = vld [vmem:[#allocation2 + $0x181] sm:$0xff]
  %v1913 = vld [vmem:[#allocation2 + $0x189] sm:$0xff]
  %v1914 = vld [vmem:[#allocation2 + $0x191] sm:$0xff]
  %v1915 = vld [vmem:[#allocation2 + $0x199] sm:$0xff]
  %v1916 = vld [vmem:[#allocation2 + $0x1a1] sm:$0xff]
  %v1917 = vld [vmem:[#allocation2 + $0x1a9] sm:$0xff]
  %v1918 = vld [vmem:[#allocation2 + $0x1b1] sm:$0xff]
  %v1919 = vld [vmem:[#allocation2 + $0x1b9] sm:$0xff]
  %v1920 = vld [vmem:[#allocation2 + $0x1c1] sm:$0xff]
  %v1921 = vld [vmem:[#allocation2 + $0x1c9] sm:$0xff]
  %v1922 = vld [vmem:[#allocation2 + $0x1d1] sm:$0xff]
  %v1923 = vld [vmem:[#allocation2 + $0x1d9] sm:$0xff]
  %v1924 = vld [vmem:[#allocation2 + $0x1e1] sm:$0xff]
  %v1925 = vld [vmem:[#allocation2 + $0x1e9] sm:$0xff]
  %v1926 = vld [vmem:[#allocation2 + $0x1f1] sm:$0xff]
  %v1927 = vld [vmem:[#allocation2 + $0x1f9] sm:$0xff]
  %v1928 = vld [vmem:[#allocation2 + $0x201] sm:$0xff]
  %s1929 = scalar_lea.vmem %s3, 1024
  %v1930 = vld [vmem:[%s1929] sm:$0xff]
  %v1931 = vld [vmem:[%s1929 + $0x8] sm:$0xff]
  %v1932 = vld [vmem:[%s1929 + $0x10] sm:$0xff]
  %v1933 = vld [vmem:[%s1929 + $0x18] sm:$0xff]
  %v1934 = vld [vmem:[%s1929 + $0x20] sm:$0xff]
  %v1935 = vld [vmem:[%s1929 + $0x28] sm:$0xff]
  %v1936 = vld [vmem:[%s1929 + $0x30] sm:$0xff]
  %v1937 = vld [vmem:[%s1929 + $0x38] sm:$0xff]
  %v1938 = vld [vmem:[%s1929 + $0x40] sm:$0xff]
  %v1939 = vld [vmem:[%s1929 + $0x48] sm:$0xff]
  %v1940 = vld [vmem:[%s1929 + $0x50] sm:$0xff]
  %v1941 = vld [vmem:[%s1929 + $0x58] sm:$0xff]
  %v1942 = vld [vmem:[%s1929 + $0x60] sm:$0xff]
  %v1943 = vld [vmem:[%s1929 + $0x68] sm:$0xff]
  %v1944 = vld [vmem:[%s1929 + $0x70] sm:$0xff]
  %v1945 = vld [vmem:[%s1929 + $0x78] sm:$0xff]
  %v1946 = vld [vmem:[%s1929 + $0x80] sm:$0xff]
  %v1947 = vld [vmem:[%s1929 + $0x88] sm:$0xff]
  %v1948 = vld [vmem:[%s1929 + $0x90] sm:$0xff]
  %v1949 = vld [vmem:[%s1929 + $0x98] sm:$0xff]
  %v1950 = vld [vmem:[%s1929 + $0xa0] sm:$0xff]
  %v1951 = vld [vmem:[%s1929 + $0xa8] sm:$0xff]
  %v1952 = vld [vmem:[%s1929 + $0xb0] sm:$0xff]
  %v1953 = vld [vmem:[%s1929 + $0xb8] sm:$0xff]
  %v1954 = vld [vmem:[%s1929 + $0xc0] sm:$0xff]
  %v1955 = vld [vmem:[%s1929 + $0xc8] sm:$0xff]
  %v1956 = vld [vmem:[%s1929 + $0xd0] sm:$0xff]
  %v1957 = vld [vmem:[%s1929 + $0xd8] sm:$0xff]
  %v1958 = vld [vmem:[%s1929 + $0xe0] sm:$0xff]
  %v1959 = vld [vmem:[%s1929 + $0xe8] sm:$0xff]
  %v1960 = vld [vmem:[%s1929 + $0xf0] sm:$0xff]
  %v1961 = vld [vmem:[%s1929 + $0xf8] sm:$0xff]
  %v1962 = vld [vmem:[%s1929 + $0x100] sm:$0xff]
  %v1963 = vld [vmem:[%s1929 + $0x108] sm:$0xff]
  %v1964 = vld [vmem:[%s1929 + $0x110] sm:$0xff]
  %v1965 = vld [vmem:[%s1929 + $0x118] sm:$0xff]
  %v1966 = vld [vmem:[%s1929 + $0x120] sm:$0xff]
  %v1967 = vld [vmem:[%s1929 + $0x128] sm:$0xff]
  %v1968 = vld [vmem:[%s1929 + $0x130] sm:$0xff]
  %v1969 = vld [vmem:[%s1929 + $0x138] sm:$0xff]
  %v1970 = vld [vmem:[%s1929 + $0x140] sm:$0xff]
  %v1971 = vld [vmem:[%s1929 + $0x148] sm:$0xff]
  %v1972 = vld [vmem:[%s1929 + $0x150] sm:$0xff]
  %v1973 = vld [vmem:[%s1929 + $0x158] sm:$0xff]
  %v1974 = vld [vmem:[%s1929 + $0x160] sm:$0xff]
  %v1975 = vld [vmem:[%s1929 + $0x168] sm:$0xff]
  %v1976 = vld [vmem:[%s1929 + $0x170] sm:$0xff]
  %v1977 = vld [vmem:[%s1929 + $0x178] sm:$0xff]
  %v1978 = vld [vmem:[%s1929 + $0x180] sm:$0xff]
  %v1979 = vld [vmem:[%s1929 + $0x188] sm:$0xff]
  %v1980 = vld [vmem:[%s1929 + $0x190] sm:$0xff]
  %v1981 = vld [vmem:[%s1929 + $0x198] sm:$0xff]
  %v1982 = vld [vmem:[%s1929 + $0x1a0] sm:$0xff]
  %v1983 = vld [vmem:[%s1929 + $0x1a8] sm:$0xff]
  %v1984 = vld [vmem:[%s1929 + $0x1b0] sm:$0xff]
  %v1985 = vld [vmem:[%s1929 + $0x1b8] sm:$0xff]
  %v1986 = vld [vmem:[%s1929 + $0x1c0] sm:$0xff]
  %v1987 = vld [vmem:[%s1929 + $0x1c8] sm:$0xff]
  %v1988 = vld [vmem:[%s1929 + $0x1d0] sm:$0xff]
  %v1989 = vld [vmem:[%s1929 + $0x1d8] sm:$0xff]
  %v1990 = vld [vmem:[%s1929 + $0x1e0] sm:$0xff]
  %v1991 = vld [vmem:[%s1929 + $0x1e8] sm:$0xff]
  %v1992 = vld [vmem:[%s1929 + $0x1f0] sm:$0xff]
  %v1993 = vld [vmem:[%s1929 + $0x1f8] sm:$0xff]
  %1995 = vset.pattern.permute.xlu0 0
  %1996 = vperm.xlu0 %1995, %v1930
  %v1997 = vpop.permute.xlu0 %1996
  %2000 = vset.pattern.permute.xlu0 0
  %2001 = vperm.xlu0 %2000, %v1931
  %v2002 = vpop.permute.xlu0 %2001
  %2005 = vset.pattern.permute.xlu0 0
  %2006 = vperm.xlu0 %2005, %v1932
  %v2007 = vpop.permute.xlu0 %2006
  %2010 = vset.pattern.permute.xlu0 0
  %2011 = vperm.xlu0 %2010, %v1933
  %v2012 = vpop.permute.xlu0 %2011
  %2015 = vset.pattern.permute.xlu0 0
  %2016 = vperm.xlu0 %2015, %v1934
  %v2017 = vpop.permute.xlu0 %2016
  %2020 = vset.pattern.permute.xlu0 0
  %2021 = vperm.xlu0 %2020, %v1935
  %v2022 = vpop.permute.xlu0 %2021
  %2025 = vset.pattern.permute.xlu0 0
  %2026 = vperm.xlu0 %2025, %v1936
  %v2027 = vpop.permute.xlu0 %2026
  %2030 = vset.pattern.permute.xlu0 0
  %2031 = vperm.xlu0 %2030, %v1937
  %v2032 = vpop.permute.xlu0 %2031
  %2035 = vset.pattern.permute.xlu0 0
  %2036 = vperm.xlu0 %2035, %v1938
  %v2037 = vpop.permute.xlu0 %2036
  %2040 = vset.pattern.permute.xlu0 0
  %2041 = vperm.xlu0 %2040, %v1939
  %v2042 = vpop.permute.xlu0 %2041
  %2045 = vset.pattern.permute.xlu0 0
  %2046 = vperm.xlu0 %2045, %v1940
  %v2047 = vpop.permute.xlu0 %2046
  %2050 = vset.pattern.permute.xlu0 0
  %2051 = vperm.xlu0 %2050, %v1941
  %v2052 = vpop.permute.xlu0 %2051
  %2055 = vset.pattern.permute.xlu0 0
  %2056 = vperm.xlu0 %2055, %v1942
  %v2057 = vpop.permute.xlu0 %2056
  %2060 = vset.pattern.permute.xlu0 0
  %2061 = vperm.xlu0 %2060, %v1943
  %v2062 = vpop.permute.xlu0 %2061
  %2065 = vset.pattern.permute.xlu0 0
  %2066 = vperm.xlu0 %2065, %v1944
  %v2067 = vpop.permute.xlu0 %2066
  %2070 = vset.pattern.permute.xlu0 0
  %2071 = vperm.xlu0 %2070, %v1945
  %v2072 = vpop.permute.xlu0 %2071
  %2075 = vset.pattern.permute.xlu0 0
  %2076 = vperm.xlu0 %2075, %v1946
  %v2077 = vpop.permute.xlu0 %2076
  %2080 = vset.pattern.permute.xlu0 0
  %2081 = vperm.xlu0 %2080, %v1947
  %v2082 = vpop.permute.xlu0 %2081
  %2085 = vset.pattern.permute.xlu0 0
  %2086 = vperm.xlu0 %2085, %v1948
  %v2087 = vpop.permute.xlu0 %2086
  %2090 = vset.pattern.permute.xlu0 0
  %2091 = vperm.xlu0 %2090, %v1949
  %v2092 = vpop.permute.xlu0 %2091
  %2095 = vset.pattern.permute.xlu0 0
  %2096 = vperm.xlu0 %2095, %v1950
  %v2097 = vpop.permute.xlu0 %2096
  %2100 = vset.pattern.permute.xlu0 0
  %2101 = vperm.xlu0 %2100, %v1951
  %v2102 = vpop.permute.xlu0 %2101
  %2105 = vset.pattern.permute.xlu0 0
  %2106 = vperm.xlu0 %2105, %v1952
  %v2107 = vpop.permute.xlu0 %2106
  %2110 = vset.pattern.permute.xlu0 0
  %2111 = vperm.xlu0 %2110, %v1953
  %v2112 = vpop.permute.xlu0 %2111
  %2115 = vset.pattern.permute.xlu0 0
  %2116 = vperm.xlu0 %2115, %v1954
  %v2117 = vpop.permute.xlu0 %2116
  %2120 = vset.pattern.permute.xlu0 0
  %2121 = vperm.xlu0 %2120, %v1955
  %v2122 = vpop.permute.xlu0 %2121
  %2125 = vset.pattern.permute.xlu0 0
  %2126 = vperm.xlu0 %2125, %v1956
  %v2127 = vpop.permute.xlu0 %2126
  %2130 = vset.pattern.permute.xlu0 0
  %2131 = vperm.xlu0 %2130, %v1957
  %v2132 = vpop.permute.xlu0 %2131
  %2135 = vset.pattern.permute.xlu0 0
  %2136 = vperm.xlu0 %2135, %v1958
  %v2137 = vpop.permute.xlu0 %2136
  %2140 = vset.pattern.permute.xlu0 0
  %2141 = vperm.xlu0 %2140, %v1959
  %v2142 = vpop.permute.xlu0 %2141
  %2145 = vset.pattern.permute.xlu0 0
  %2146 = vperm.xlu0 %2145, %v1960
  %v2147 = vpop.permute.xlu0 %2146
  %2150 = vset.pattern.permute.xlu0 0
  %2151 = vperm.xlu0 %2150, %v1961
  %v2152 = vpop.permute.xlu0 %2151
  %2155 = vset.pattern.permute.xlu0 0
  %2156 = vperm.xlu0 %2155, %v1962
  %v2157 = vpop.permute.xlu0 %2156
  %2160 = vset.pattern.permute.xlu0 0
  %2161 = vperm.xlu0 %2160, %v1963
  %v2162 = vpop.permute.xlu0 %2161
  %2165 = vset.pattern.permute.xlu0 0
  %2166 = vperm.xlu0 %2165, %v1964
  %v2167 = vpop.permute.xlu0 %2166
  %2170 = vset.pattern.permute.xlu0 0
  %2171 = vperm.xlu0 %2170, %v1965
  %v2172 = vpop.permute.xlu0 %2171
  %2175 = vset.pattern.permute.xlu0 0
  %2176 = vperm.xlu0 %2175, %v1966
  %v2177 = vpop.permute.xlu0 %2176
  %2180 = vset.pattern.permute.xlu0 0
  %2181 = vperm.xlu0 %2180, %v1967
  %v2182 = vpop.permute.xlu0 %2181
  %2185 = vset.pattern.permute.xlu0 0
  %2186 = vperm.xlu0 %2185, %v1968
  %v2187 = vpop.permute.xlu0 %2186
  %2190 = vset.pattern.permute.xlu0 0
  %2191 = vperm.xlu0 %2190, %v1969
  %v2192 = vpop.permute.xlu0 %2191
  %2195 = vset.pattern.permute.xlu0 0
  %2196 = vperm.xlu0 %2195, %v1970
  %v2197 = vpop.permute.xlu0 %2196
  %2200 = vset.pattern.permute.xlu0 0
  %2201 = vperm.xlu0 %2200, %v1971
  %v2202 = vpop.permute.xlu0 %2201
  %2205 = vset.pattern.permute.xlu0 0
  %2206 = vperm.xlu0 %2205, %v1972
  %v2207 = vpop.permute.xlu0 %2206
  %2210 = vset.pattern.permute.xlu0 0
  %2211 = vperm.xlu0 %2210, %v1973
  %v2212 = vpop.permute.xlu0 %2211
  %2215 = vset.pattern.permute.xlu0 0
  %2216 = vperm.xlu0 %2215, %v1974
  %v2217 = vpop.permute.xlu0 %2216
  %2220 = vset.pattern.permute.xlu0 0
  %2221 = vperm.xlu0 %2220, %v1975
  %v2222 = vpop.permute.xlu0 %2221
  %2225 = vset.pattern.permute.xlu0 0
  %2226 = vperm.xlu0 %2225, %v1976
  %v2227 = vpop.permute.xlu0 %2226
  %2230 = vset.pattern.permute.xlu0 0
  %2231 = vperm.xlu0 %2230, %v1977
  %v2232 = vpop.permute.xlu0 %2231
  %2235 = vset.pattern.permute.xlu0 0
  %2236 = vperm.xlu0 %2235, %v1978
  %v2237 = vpop.permute.xlu0 %2236
  %2240 = vset.pattern.permute.xlu0 0
  %2241 = vperm.xlu0 %2240, %v1979
  %v2242 = vpop.permute.xlu0 %2241
  %2245 = vset.pattern.permute.xlu0 0
  %2246 = vperm.xlu0 %2245, %v1980
  %v2247 = vpop.permute.xlu0 %2246
  %2250 = vset.pattern.permute.xlu0 0
  %2251 = vperm.xlu0 %2250, %v1981
  %v2252 = vpop.permute.xlu0 %2251
  %2255 = vset.pattern.permute.xlu0 0
  %2256 = vperm.xlu0 %2255, %v1982
  %v2257 = vpop.permute.xlu0 %2256
  %2260 = vset.pattern.permute.xlu0 0
  %2261 = vperm.xlu0 %2260, %v1983
  %v2262 = vpop.permute.xlu0 %2261
  %2265 = vset.pattern.permute.xlu0 0
  %2266 = vperm.xlu0 %2265, %v1984
  %v2267 = vpop.permute.xlu0 %2266
  %2270 = vset.pattern.permute.xlu0 0
  %2271 = vperm.xlu0 %2270, %v1985
  %v2272 = vpop.permute.xlu0 %2271
  %2275 = vset.pattern.permute.xlu0 0
  %2276 = vperm.xlu0 %2275, %v1986
  %v2277 = vpop.permute.xlu0 %2276
  %2280 = vset.pattern.permute.xlu0 0
  %2281 = vperm.xlu0 %2280, %v1987
  %v2282 = vpop.permute.xlu0 %2281
  %2285 = vset.pattern.permute.xlu0 0
  %2286 = vperm.xlu0 %2285, %v1988
  %v2287 = vpop.permute.xlu0 %2286
  %2290 = vset.pattern.permute.xlu0 0
  %2291 = vperm.xlu0 %2290, %v1989
  %v2292 = vpop.permute.xlu0 %2291
  %2295 = vset.pattern.permute.xlu0 0
  %2296 = vperm.xlu0 %2295, %v1990
  %v2297 = vpop.permute.xlu0 %2296
  %2300 = vset.pattern.permute.xlu0 0
  %2301 = vperm.xlu0 %2300, %v1991
  %v2302 = vpop.permute.xlu0 %2301
  %2305 = vset.pattern.permute.xlu0 0
  %2306 = vperm.xlu0 %2305, %v1992
  %v2307 = vpop.permute.xlu0 %2306
  %2310 = vset.pattern.permute.xlu0 0
  %2311 = vperm.xlu0 %2310, %v1993
  %v2312 = vpop.permute.xlu0 %2311
  %v2314 = vmul.f32 %v1865, %v1997
  %v2315 = vmul.f32 %v1866, %v2002
  %v2316 = vmul.f32 %v1867, %v2007
  %v2317 = vmul.f32 %v1868, %v2012
  %v2318 = vmul.f32 %v1869, %v2017
  %v2319 = vmul.f32 %v1870, %v2022
  %v2320 = vmul.f32 %v1871, %v2027
  %v2321 = vmul.f32 %v1872, %v2032
  %v2322 = vmul.f32 %v1873, %v2037
  %v2323 = vmul.f32 %v1874, %v2042
  %v2324 = vmul.f32 %v1875, %v2047
  %v2325 = vmul.f32 %v1876, %v2052
  %v2326 = vmul.f32 %v1877, %v2057
  %v2327 = vmul.f32 %v1878, %v2062
  %v2328 = vmul.f32 %v1879, %v2067
  %v2329 = vmul.f32 %v1880, %v2072
  %v2330 = vmul.f32 %v1881, %v2077
  %v2331 = vmul.f32 %v1882, %v2082
  %v2332 = vmul.f32 %v1883, %v2087
  %v2333 = vmul.f32 %v1884, %v2092
  %v2334 = vmul.f32 %v1885, %v2097
  %v2335 = vmul.f32 %v1886, %v2102
  %v2336 = vmul.f32 %v1887, %v2107
  %v2337 = vmul.f32 %v1888, %v2112
  %v2338 = vmul.f32 %v1889, %v2117
  %v2339 = vmul.f32 %v1890, %v2122
  %v2340 = vmul.f32 %v1891, %v2127
  %v2341 = vmul.f32 %v1892, %v2132
  %v2342 = vmul.f32 %v1893, %v2137
  %v2343 = vmul.f32 %v1894, %v2142
  %v2344 = vmul.f32 %v1895, %v2147
  %v2345 = vmul.f32 %v1896, %v2152
  %v2346 = vmul.f32 %v1897, %v2157
  %v2347 = vmul.f32 %v1898, %v2162
  %v2348 = vmul.f32 %v1899, %v2167
  %v2349 = vmul.f32 %v1900, %v2172
  %v2350 = vmul.f32 %v1901, %v2177
  %v2351 = vmul.f32 %v1902, %v2182
  %v2352 = vmul.f32 %v1903, %v2187
  %v2353 = vmul.f32 %v1904, %v2192
  %v2354 = vmul.f32 %v1905, %v2197
  %v2355 = vmul.f32 %v1906, %v2202
  %v2356 = vmul.f32 %v1907, %v2207
  %v2357 = vmul.f32 %v1908, %v2212
  %v2358 = vmul.f32 %v1909, %v2217
  %v2359 = vmul.f32 %v1910, %v2222
  %v2360 = vmul.f32 %v1911, %v2227
  %v2361 = vmul.f32 %v1912, %v2232
  %v2362 = vmul.f32 %v1913, %v2237
  %v2363 = vmul.f32 %v1914, %v2242
  %v2364 = vmul.f32 %v1915, %v2247
  %v2365 = vmul.f32 %v1916, %v2252
  %v2366 = vmul.f32 %v1917, %v2257
  %v2367 = vmul.f32 %v1918, %v2262
  %v2368 = vmul.f32 %v1919, %v2267
  %v2369 = vmul.f32 %v1920, %v2272
  %v2370 = vmul.f32 %v1921, %v2277
  %v2371 = vmul.f32 %v1922, %v2282
  %v2372 = vmul.f32 %v1923, %v2287
  %v2373 = vmul.f32 %v1924, %v2292
  %v2374 = vmul.f32 %v1925, %v2297
  %v2375 = vmul.f32 %v1926, %v2302
  %v2376 = vmul.f32 %v1927, %v2307
  %v2377 = vmul.f32 %v1928, %v2312
  %s2378 = scalar_lea.vmem %s1, 256
  %v2379 = vld [vmem:[%s2378] sm:$0xff]
  %v2380 = vld [vmem:[%s2378 + $0x8] sm:$0xff]
  %v2381 = vld [vmem:[%s2378 + $0x10] sm:$0xff]
  %v2382 = vld [vmem:[%s2378 + $0x18] sm:$0xff]
  %v2383 = vld [vmem:[%s2378 + $0x20] sm:$0xff]
  %v2384 = vld [vmem:[%s2378 + $0x28] sm:$0xff]
  %v2385 = vld [vmem:[%s2378 + $0x30] sm:$0xff]
  %v2386 = vld [vmem:[%s2378 + $0x38] sm:$0xff]
  %v2387 = vld [vmem:[%s2378 + $0x40] sm:$0xff]
  %v2388 = vld [vmem:[%s2378 + $0x48] sm:$0xff]
  %v2389 = vld [vmem:[%s2378 + $0x50] sm:$0xff]
  %v2390 = vld [vmem:[%s2378 + $0x58] sm:$0xff]
  %v2391 = vld [vmem:[%s2378 + $0x60] sm:$0xff]
  %v2392 = vld [vmem:[%s2378 + $0x68] sm:$0xff]
  %v2393 = vld [vmem:[%s2378 + $0x70] sm:$0xff]
  %v2394 = vld [vmem:[%s2378 + $0x78] sm:$0xff]
  %2395 = vmatpush.msra.mxu0 %v2394
  %2396 = vmatpush.msra.mxu0 %v2393
  %2397 = vmatpush.msra.mxu0 %v2392
  %2398 = vmatpush.msra.mxu0 %v2391
  %2399 = vmatpush.msra.mxu0 %v2390
  %2400 = vmatpush.msra.mxu0 %v2389
  %2401 = vmatpush.msra.mxu0 %v2388
  %2402 = vmatpush.msra.mxu0 %v2387
  %2403 = vmatpush.msra.mxu0 %v2386
  %2404 = vmatpush.msra.mxu0 %v2385
  %2405 = vmatpush.msra.mxu0 %v2384
  %2406 = vmatpush.msra.mxu0 %v2383
  %2407 = vmatpush.msra.mxu0 %v2382
  %2408 = vmatpush.msra.mxu0 %v2381
  %2409 = vmatpush.msra.mxu0 %v2380
  %2410 = vmatpush.msra.mxu0 %v2379
  %2411 = vmatmul.f32.gmra.mxu0 %v2314
  %v2412 = vpop.f32.mrf.mxu0
  %v2413 = vadd.f32 0.0, %v2412
  %2414 = vmatmul.f32.gmra.mxu0 %v2315
  %v2415 = vpop.f32.mrf.mxu0
  %v2416 = vadd.f32 0.0, %v2415
  %2417 = vmatmul.f32.gmra.mxu0 %v2316
  %v2418 = vpop.f32.mrf.mxu0
  %v2419 = vadd.f32 0.0, %v2418
  %2420 = vmatmul.f32.gmra.mxu0 %v2317
  %v2421 = vpop.f32.mrf.mxu0
  %v2422 = vadd.f32 0.0, %v2421
  %2423 = vmatmul.f32.gmra.mxu0 %v2318
  %v2424 = vpop.f32.mrf.mxu0
  %v2425 = vadd.f32 0.0, %v2424
  %2426 = vmatmul.f32.gmra.mxu0 %v2319
  %v2427 = vpop.f32.mrf.mxu0
  %v2428 = vadd.f32 0.0, %v2427
  %2429 = vmatmul.f32.gmra.mxu0 %v2320
  %v2430 = vpop.f32.mrf.mxu0
  %v2431 = vadd.f32 0.0, %v2430
  %2432 = vmatmul.f32.gmra.mxu0 %v2321
  %v2433 = vpop.f32.mrf.mxu0
  %v2434 = vadd.f32 0.0, %v2433
  %2435 = vmatmul.f32.gmra.mxu0 %v2322
  %v2436 = vpop.f32.mrf.mxu0
  %v2437 = vadd.f32 0.0, %v2436
  %2438 = vmatmul.f32.gmra.mxu0 %v2323
  %v2439 = vpop.f32.mrf.mxu0
  %v2440 = vadd.f32 0.0, %v2439
  %2441 = vmatmul.f32.gmra.mxu0 %v2324
  %v2442 = vpop.f32.mrf.mxu0
  %v2443 = vadd.f32 0.0, %v2442
  %2444 = vmatmul.f32.gmra.mxu0 %v2325
  %v2445 = vpop.f32.mrf.mxu0
  %v2446 = vadd.f32 0.0, %v2445
  %2447 = vmatmul.f32.gmra.mxu0 %v2326
  %v2448 = vpop.f32.mrf.mxu0
  %v2449 = vadd.f32 0.0, %v2448
  %2450 = vmatmul.f32.gmra.mxu0 %v2327
  %v2451 = vpop.f32.mrf.mxu0
  %v2452 = vadd.f32 0.0, %v2451
  %2453 = vmatmul.f32.gmra.mxu0 %v2328
  %v2454 = vpop.f32.mrf.mxu0
  %v2455 = vadd.f32 0.0, %v2454
  %2456 = vmatmul.f32.gmra.mxu0 %v2329
  %v2457 = vpop.f32.mrf.mxu0
  %v2458 = vadd.f32 0.0, %v2457
  %2459 = vmatmul.f32.gmra.mxu0 %v2330
  %v2460 = vpop.f32.mrf.mxu0
  %v2461 = vadd.f32 0.0, %v2460
  %2462 = vmatmul.f32.gmra.mxu0 %v2331
  %v2463 = vpop.f32.mrf.mxu0
  %v2464 = vadd.f32 0.0, %v2463
  %2465 = vmatmul.f32.gmra.mxu0 %v2332
  %v2466 = vpop.f32.mrf.mxu0
  %v2467 = vadd.f32 0.0, %v2466
  %2468 = vmatmul.f32.gmra.mxu0 %v2333
  %v2469 = vpop.f32.mrf.mxu0
  %v2470 = vadd.f32 0.0, %v2469
  %2471 = vmatmul.f32.gmra.mxu0 %v2334
  %v2472 = vpop.f32.mrf.mxu0
  %v2473 = vadd.f32 0.0, %v2472
  %2474 = vmatmul.f32.gmra.mxu0 %v2335
  %v2475 = vpop.f32.mrf.mxu0
  %v2476 = vadd.f32 0.0, %v2475
  %2477 = vmatmul.f32.gmra.mxu0 %v2336
  %v2478 = vpop.f32.mrf.mxu0
  %v2479 = vadd.f32 0.0, %v2478
  %2480 = vmatmul.f32.gmra.mxu0 %v2337
  %v2481 = vpop.f32.mrf.mxu0
  %v2482 = vadd.f32 0.0, %v2481
  %2483 = vmatmul.f32.gmra.mxu0 %v2338
  %v2484 = vpop.f32.mrf.mxu0
  %v2485 = vadd.f32 0.0, %v2484
  %2486 = vmatmul.f32.gmra.mxu0 %v2339
  %v2487 = vpop.f32.mrf.mxu0
  %v2488 = vadd.f32 0.0, %v2487
  %2489 = vmatmul.f32.gmra.mxu0 %v2340
  %v2490 = vpop.f32.mrf.mxu0
  %v2491 = vadd.f32 0.0, %v2490
  %2492 = vmatmul.f32.gmra.mxu0 %v2341
  %v2493 = vpop.f32.mrf.mxu0
  %v2494 = vadd.f32 0.0, %v2493
  %2495 = vmatmul.f32.gmra.mxu0 %v2342
  %v2496 = vpop.f32.mrf.mxu0
  %v2497 = vadd.f32 0.0, %v2496
  %2498 = vmatmul.f32.gmra.mxu0 %v2343
  %v2499 = vpop.f32.mrf.mxu0
  %v2500 = vadd.f32 0.0, %v2499
  %2501 = vmatmul.f32.gmra.mxu0 %v2344
  %v2502 = vpop.f32.mrf.mxu0
  %v2503 = vadd.f32 0.0, %v2502
  %2504 = vmatmul.f32.gmra.mxu0 %v2345
  %v2505 = vpop.f32.mrf.mxu0
  %v2506 = vadd.f32 0.0, %v2505
  %2507 = vmatmul.f32.gmra.mxu0 %v2346
  %v2508 = vpop.f32.mrf.mxu0
  %v2509 = vadd.f32 0.0, %v2508
  %2510 = vmatmul.f32.gmra.mxu0 %v2347
  %v2511 = vpop.f32.mrf.mxu0
  %v2512 = vadd.f32 0.0, %v2511
  %2513 = vmatmul.f32.gmra.mxu0 %v2348
  %v2514 = vpop.f32.mrf.mxu0
  %v2515 = vadd.f32 0.0, %v2514
  %2516 = vmatmul.f32.gmra.mxu0 %v2349
  %v2517 = vpop.f32.mrf.mxu0
  %v2518 = vadd.f32 0.0, %v2517
  %2519 = vmatmul.f32.gmra.mxu0 %v2350
  %v2520 = vpop.f32.mrf.mxu0
  %v2521 = vadd.f32 0.0, %v2520
  %2522 = vmatmul.f32.gmra.mxu0 %v2351
  %v2523 = vpop.f32.mrf.mxu0
  %v2524 = vadd.f32 0.0, %v2523
  %2525 = vmatmul.f32.gmra.mxu0 %v2352
  %v2526 = vpop.f32.mrf.mxu0
  %v2527 = vadd.f32 0.0, %v2526
  %2528 = vmatmul.f32.gmra.mxu0 %v2353
  %v2529 = vpop.f32.mrf.mxu0
  %v2530 = vadd.f32 0.0, %v2529
  %2531 = vmatmul.f32.gmra.mxu0 %v2354
  %v2532 = vpop.f32.mrf.mxu0
  %v2533 = vadd.f32 0.0, %v2532
  %2534 = vmatmul.f32.gmra.mxu0 %v2355
  %v2535 = vpop.f32.mrf.mxu0
  %v2536 = vadd.f32 0.0, %v2535
  %2537 = vmatmul.f32.gmra.mxu0 %v2356
  %v2538 = vpop.f32.mrf.mxu0
  %v2539 = vadd.f32 0.0, %v2538
  %2540 = vmatmul.f32.gmra.mxu0 %v2357
  %v2541 = vpop.f32.mrf.mxu0
  %v2542 = vadd.f32 0.0, %v2541
  %2543 = vmatmul.f32.gmra.mxu0 %v2358
  %v2544 = vpop.f32.mrf.mxu0
  %v2545 = vadd.f32 0.0, %v2544
  %2546 = vmatmul.f32.gmra.mxu0 %v2359
  %v2547 = vpop.f32.mrf.mxu0
  %v2548 = vadd.f32 0.0, %v2547
  %2549 = vmatmul.f32.gmra.mxu0 %v2360
  %v2550 = vpop.f32.mrf.mxu0
  %v2551 = vadd.f32 0.0, %v2550
  %2552 = vmatmul.f32.gmra.mxu0 %v2361
  %v2553 = vpop.f32.mrf.mxu0
  %v2554 = vadd.f32 0.0, %v2553
  %2555 = vmatmul.f32.gmra.mxu0 %v2362
  %v2556 = vpop.f32.mrf.mxu0
  %v2557 = vadd.f32 0.0, %v2556
  %2558 = vmatmul.f32.gmra.mxu0 %v2363
  %v2559 = vpop.f32.mrf.mxu0
  %v2560 = vadd.f32 0.0, %v2559
  %2561 = vmatmul.f32.gmra.mxu0 %v2364
  %v2562 = vpop.f32.mrf.mxu0
  %v2563 = vadd.f32 0.0, %v2562
  %2564 = vmatmul.f32.gmra.mxu0 %v2365
  %v2565 = vpop.f32.mrf.mxu0
  %v2566 = vadd.f32 0.0, %v2565
  %2567 = vmatmul.f32.gmra.mxu0 %v2366
  %v2568 = vpop.f32.mrf.mxu0
  %v2569 = vadd.f32 0.0, %v2568
  %2570 = vmatmul.f32.gmra.mxu0 %v2367
  %v2571 = vpop.f32.mrf.mxu0
  %v2572 = vadd.f32 0.0, %v2571
  %2573 = vmatmul.f32.gmra.mxu0 %v2368
  %v2574 = vpop.f32.mrf.mxu0
  %v2575 = vadd.f32 0.0, %v2574
  %2576 = vmatmul.f32.gmra.mxu0 %v2369
  %v2577 = vpop.f32.mrf.mxu0
  %v2578 = vadd.f32 0.0, %v2577
  %2579 = vmatmul.f32.gmra.mxu0 %v2370
  %v2580 = vpop.f32.mrf.mxu0
  %v2581 = vadd.f32 0.0, %v2580
  %2582 = vmatmul.f32.gmra.mxu0 %v2371
  %v2583 = vpop.f32.mrf.mxu0
  %v2584 = vadd.f32 0.0, %v2583
  %2585 = vmatmul.f32.gmra.mxu0 %v2372
  %v2586 = vpop.f32.mrf.mxu0
  %v2587 = vadd.f32 0.0, %v2586
  %2588 = vmatmul.f32.gmra.mxu0 %v2373
  %v2589 = vpop.f32.mrf.mxu0
  %v2590 = vadd.f32 0.0, %v2589
  %2591 = vmatmul.f32.gmra.mxu0 %v2374
  %v2592 = vpop.f32.mrf.mxu0
  %v2593 = vadd.f32 0.0, %v2592
  %2594 = vmatmul.f32.gmra.mxu0 %v2375
  %v2595 = vpop.f32.mrf.mxu0
  %v2596 = vadd.f32 0.0, %v2595
  %2597 = vmatmul.f32.gmra.mxu0 %v2376
  %v2598 = vpop.f32.mrf.mxu0
  %v2599 = vadd.f32 0.0, %v2598
  %2600 = vmatmul.f32.gmra.mxu0 %v2377
  %v2601 = vpop.f32.mrf.mxu0
  %v2602 = vadd.f32 0.0, %v2601
  %2603 = vdwg.mxu0
  %v2604 = vadd.f32 %v1801, %v2413
  %v2605 = vadd.f32 %v1802, %v2416
  %v2606 = vadd.f32 %v1803, %v2419
  %v2607 = vadd.f32 %v1804, %v2422
  %v2608 = vadd.f32 %v1805, %v2425
  %v2609 = vadd.f32 %v1806, %v2428
  %v2610 = vadd.f32 %v1807, %v2431
  %v2611 = vadd.f32 %v1808, %v2434
  %v2612 = vadd.f32 %v1809, %v2437
  %v2613 = vadd.f32 %v1810, %v2440
  %v2614 = vadd.f32 %v1811, %v2443
  %v2615 = vadd.f32 %v1812, %v2446
  %v2616 = vadd.f32 %v1813, %v2449
  %v2617 = vadd.f32 %v1814, %v2452
  %v2618 = vadd.f32 %v1815, %v2455
  %v2619 = vadd.f32 %v1816, %v2458
  %v2620 = vadd.f32 %v1817, %v2461
  %v2621 = vadd.f32 %v1818, %v2464
  %v2622 = vadd.f32 %v1819, %v2467
  %v2623 = vadd.f32 %v1820, %v2470
  %v2624 = vadd.f32 %v1821, %v2473
  %v2625 = vadd.f32 %v1822, %v2476
  %v2626 = vadd.f32 %v1823, %v2479
  %v2627 = vadd.f32 %v1824, %v2482
  %v2628 = vadd.f32 %v1825, %v2485
  %v2629 = vadd.f32 %v1826, %v2488
  %v2630 = vadd.f32 %v1827, %v2491
  %v2631 = vadd.f32 %v1828, %v2494
  %v2632 = vadd.f32 %v1829, %v2497
  %v2633 = vadd.f32 %v1830, %v2500
  %v2634 = vadd.f32 %v1831, %v2503
  %v2635 = vadd.f32 %v1832, %v2506
  %v2636 = vadd.f32 %v1833, %v2509
  %v2637 = vadd.f32 %v1834, %v2512
  %v2638 = vadd.f32 %v1835, %v2515
  %v2639 = vadd.f32 %v1836, %v2518
  %v2640 = vadd.f32 %v1837, %v2521
  %v2641 = vadd.f32 %v1838, %v2524
  %v2642 = vadd.f32 %v1839, %v2527
  %v2643 = vadd.f32 %v1840, %v2530
  %v2644 = vadd.f32 %v1841, %v2533
  %v2645 = vadd.f32 %v1842, %v2536
  %v2646 = vadd.f32 %v1843, %v2539
  %v2647 = vadd.f32 %v1844, %v2542
  %v2648 = vadd.f32 %v1845, %v2545
  %v2649 = vadd.f32 %v1846, %v2548
  %v2650 = vadd.f32 %v1847, %v2551
  %v2651 = vadd.f32 %v1848, %v2554
  %v2652 = vadd.f32 %v1849, %v2557
  %v2653 = vadd.f32 %v1850, %v2560
  %v2654 = vadd.f32 %v1851, %v2563
  %v2655 = vadd.f32 %v1852, %v2566
  %v2656 = vadd.f32 %v1853, %v2569
  %v2657 = vadd.f32 %v1854, %v2572
  %v2658 = vadd.f32 %v1855, %v2575
  %v2659 = vadd.f32 %v1856, %v2578
  %v2660 = vadd.f32 %v1857, %v2581
  %v2661 = vadd.f32 %v1858, %v2584
  %v2662 = vadd.f32 %v1859, %v2587
  %v2663 = vadd.f32 %v1860, %v2590
  %v2664 = vadd.f32 %v1861, %v2593
  %v2665 = vadd.f32 %v1862, %v2596
  %v2666 = vadd.f32 %v1863, %v2599
  %v2667 = vadd.f32 %v1864, %v2602
  %v2668 = vld [vmem:[#allocation2 + $0x17] sm:$0xff]
  %v2669 = vld [vmem:[#allocation2 + $0x1f] sm:$0xff]
  %v2670 = vld [vmem:[#allocation2 + $0x27] sm:$0xff]
  %v2671 = vld [vmem:[#allocation2 + $0x2f] sm:$0xff]
  %v2672 = vld [vmem:[#allocation2 + $0x37] sm:$0xff]
  %v2673 = vld [vmem:[#allocation2 + $0x3f] sm:$0xff]
  %v2674 = vld [vmem:[#allocation2 + $0x47] sm:$0xff]
  %v2675 = vld [vmem:[#allocation2 + $0x4f] sm:$0xff]
  %v2676 = vld [vmem:[#allocation2 + $0x57] sm:$0xff]
  %v2677 = vld [vmem:[#allocation2 + $0x5f] sm:$0xff]
  %v2678 = vld [vmem:[#allocation2 + $0x67] sm:$0xff]
  %v2679 = vld [vmem:[#allocation2 + $0x6f] sm:$0xff]
  %v2680 = vld [vmem:[#allocation2 + $0x77] sm:$0xff]
  %v2681 = vld [vmem:[#allocation2 + $0x7f] sm:$0xff]
  %v2682 = vld [vmem:[#allocation2 + $0x87] sm:$0xff]
  %v2683 = vld [vmem:[#allocation2 + $0x8f] sm:$0xff]
  %v2684 = vld [vmem:[#allocation2 + $0x97] sm:$0xff]
  %v2685 = vld [vmem:[#allocation2 + $0x9f] sm:$0xff]
  %v2686 = vld [vmem:[#allocation2 + $0xa7] sm:$0xff]
  %v2687 = vld [vmem:[#allocation2 + $0xaf] sm:$0xff]
  %v2688 = vld [vmem:[#allocation2 + $0xb7] sm:$0xff]
  %v2689 = vld [vmem:[#allocation2 + $0xbf] sm:$0xff]
  %v2690 = vld [vmem:[#allocation2 + $0xc7] sm:$0xff]
  %v2691 = vld [vmem:[#allocation2 + $0xcf] sm:$0xff]
  %v2692 = vld [vmem:[#allocation2 + $0xd7] sm:$0xff]
  %v2693 = vld [vmem:[#allocation2 + $0xdf] sm:$0xff]
  %v2694 = vld [vmem:[#allocation2 + $0xe7] sm:$0xff]
  %v2695 = vld [vmem:[#allocation2 + $0xef] sm:$0xff]
  %v2696 = vld [vmem:[#allocation2 + $0xf7] sm:$0xff]
  %v2697 = vld [vmem:[#allocation2 + $0xff] sm:$0xff]
  %v2698 = vld [vmem:[#allocation2 + $0x107] sm:$0xff]
  %v2699 = vld [vmem:[#allocation2 + $0x10f] sm:$0xff]
  %v2700 = vld [vmem:[#allocation2 + $0x117] sm:$0xff]
  %v2701 = vld [vmem:[#allocation2 + $0x11f] sm:$0xff]
  %v2702 = vld [vmem:[#allocation2 + $0x127] sm:$0xff]
  %v2703 = vld [vmem:[#allocation2 + $0x12f] sm:$0xff]
  %v2704 = vld [vmem:[#allocation2 + $0x137] sm:$0xff]
  %v2705 = vld [vmem:[#allocation2 + $0x13f] sm:$0xff]
  %v2706 = vld [vmem:[#allocation2 + $0x147] sm:$0xff]
  %v2707 = vld [vmem:[#allocation2 + $0x14f] sm:$0xff]
  %v2708 = vld [vmem:[#allocation2 + $0x157] sm:$0xff]
  %v2709 = vld [vmem:[#allocation2 + $0x15f] sm:$0xff]
  %v2710 = vld [vmem:[#allocation2 + $0x167] sm:$0xff]
  %v2711 = vld [vmem:[#allocation2 + $0x16f] sm:$0xff]
  %v2712 = vld [vmem:[#allocation2 + $0x177] sm:$0xff]
  %v2713 = vld [vmem:[#allocation2 + $0x17f] sm:$0xff]
  %v2714 = vld [vmem:[#allocation2 + $0x187] sm:$0xff]
  %v2715 = vld [vmem:[#allocation2 + $0x18f] sm:$0xff]
  %v2716 = vld [vmem:[#allocation2 + $0x197] sm:$0xff]
  %v2717 = vld [vmem:[#allocation2 + $0x19f] sm:$0xff]
  %v2718 = vld [vmem:[#allocation2 + $0x1a7] sm:$0xff]
  %v2719 = vld [vmem:[#allocation2 + $0x1af] sm:$0xff]
  %v2720 = vld [vmem:[#allocation2 + $0x1b7] sm:$0xff]
  %v2721 = vld [vmem:[#allocation2 + $0x1bf] sm:$0xff]
  %v2722 = vld [vmem:[#allocation2 + $0x1c7] sm:$0xff]
  %v2723 = vld [vmem:[#allocation2 + $0x1cf] sm:$0xff]
  %v2724 = vld [vmem:[#allocation2 + $0x1d7] sm:$0xff]
  %v2725 = vld [vmem:[#allocation2 + $0x1df] sm:$0xff]
  %v2726 = vld [vmem:[#allocation2 + $0x1e7] sm:$0xff]
  %v2727 = vld [vmem:[#allocation2 + $0x1ef] sm:$0xff]
  %v2728 = vld [vmem:[#allocation2 + $0x1f7] sm:$0xff]
  %v2729 = vld [vmem:[#allocation2 + $0x1ff] sm:$0xff]
  %v2730 = vld [vmem:[#allocation2 + $0x207] sm:$0xff]
  %v2731 = vld [vmem:[#allocation2 + $0x20f] sm:$0xff]
  %s2732 = scalar_lea.vmem %s3, 1536
  %v2733 = vld [vmem:[%s2732] sm:$0xff]
  %v2734 = vld [vmem:[%s2732 + $0x8] sm:$0xff]
  %v2735 = vld [vmem:[%s2732 + $0x10] sm:$0xff]
  %v2736 = vld [vmem:[%s2732 + $0x18] sm:$0xff]
  %v2737 = vld [vmem:[%s2732 + $0x20] sm:$0xff]
  %v2738 = vld [vmem:[%s2732 + $0x28] sm:$0xff]
  %v2739 = vld [vmem:[%s2732 + $0x30] sm:$0xff]
  %v2740 = vld [vmem:[%s2732 + $0x38] sm:$0xff]
  %v2741 = vld [vmem:[%s2732 + $0x40] sm:$0xff]
  %v2742 = vld [vmem:[%s2732 + $0x48] sm:$0xff]
  %v2743 = vld [vmem:[%s2732 + $0x50] sm:$0xff]
  %v2744 = vld [vmem:[%s2732 + $0x58] sm:$0xff]
  %v2745 = vld [vmem:[%s2732 + $0x60] sm:$0xff]
  %v2746 = vld [vmem:[%s2732 + $0x68] sm:$0xff]
  %v2747 = vld [vmem:[%s2732 + $0x70] sm:$0xff]
  %v2748 = vld [vmem:[%s2732 + $0x78] sm:$0xff]
  %v2749 = vld [vmem:[%s2732 + $0x80] sm:$0xff]
  %v2750 = vld [vmem:[%s2732 + $0x88] sm:$0xff]
  %v2751 = vld [vmem:[%s2732 + $0x90] sm:$0xff]
  %v2752 = vld [vmem:[%s2732 + $0x98] sm:$0xff]
  %v2753 = vld [vmem:[%s2732 + $0xa0] sm:$0xff]
  %v2754 = vld [vmem:[%s2732 + $0xa8] sm:$0xff]
  %v2755 = vld [vmem:[%s2732 + $0xb0] sm:$0xff]
  %v2756 = vld [vmem:[%s2732 + $0xb8] sm:$0xff]
  %v2757 = vld [vmem:[%s2732 + $0xc0] sm:$0xff]
  %v2758 = vld [vmem:[%s2732 + $0xc8] sm:$0xff]
  %v2759 = vld [vmem:[%s2732 + $0xd0] sm:$0xff]
  %v2760 = vld [vmem:[%s2732 + $0xd8] sm:$0xff]
  %v2761 = vld [vmem:[%s2732 + $0xe0] sm:$0xff]
  %v2762 = vld [vmem:[%s2732 + $0xe8] sm:$0xff]
  %v2763 = vld [vmem:[%s2732 + $0xf0] sm:$0xff]
  %v2764 = vld [vmem:[%s2732 + $0xf8] sm:$0xff]
  %v2765 = vld [vmem:[%s2732 + $0x100] sm:$0xff]
  %v2766 = vld [vmem:[%s2732 + $0x108] sm:$0xff]
  %v2767 = vld [vmem:[%s2732 + $0x110] sm:$0xff]
  %v2768 = vld [vmem:[%s2732 + $0x118] sm:$0xff]
  %v2769 = vld [vmem:[%s2732 + $0x120] sm:$0xff]
  %v2770 = vld [vmem:[%s2732 + $0x128] sm:$0xff]
  %v2771 = vld [vmem:[%s2732 + $0x130] sm:$0xff]
  %v2772 = vld [vmem:[%s2732 + $0x138] sm:$0xff]
  %v2773 = vld [vmem:[%s2732 + $0x140] sm:$0xff]
  %v2774 = vld [vmem:[%s2732 + $0x148] sm:$0xff]
  %v2775 = vld [vmem:[%s2732 + $0x150] sm:$0xff]
  %v2776 = vld [vmem:[%s2732 + $0x158] sm:$0xff]
  %v2777 = vld [vmem:[%s2732 + $0x160] sm:$0xff]
  %v2778 = vld [vmem:[%s2732 + $0x168] sm:$0xff]
  %v2779 = vld [vmem:[%s2732 + $0x170] sm:$0xff]
  %v2780 = vld [vmem:[%s2732 + $0x178] sm:$0xff]
  %v2781 = vld [vmem:[%s2732 + $0x180] sm:$0xff]
  %v2782 = vld [vmem:[%s2732 + $0x188] sm:$0xff]
  %v2783 = vld [vmem:[%s2732 + $0x190] sm:$0xff]
  %v2784 = vld [vmem:[%s2732 + $0x198] sm:$0xff]
  %v2785 = vld [vmem:[%s2732 + $0x1a0] sm:$0xff]
  %v2786 = vld [vmem:[%s2732 + $0x1a8] sm:$0xff]
  %v2787 = vld [vmem:[%s2732 + $0x1b0] sm:$0xff]
  %v2788 = vld [vmem:[%s2732 + $0x1b8] sm:$0xff]
  %v2789 = vld [vmem:[%s2732 + $0x1c0] sm:$0xff]
  %v2790 = vld [vmem:[%s2732 + $0x1c8] sm:$0xff]
  %v2791 = vld [vmem:[%s2732 + $0x1d0] sm:$0xff]
  %v2792 = vld [vmem:[%s2732 + $0x1d8] sm:$0xff]
  %v2793 = vld [vmem:[%s2732 + $0x1e0] sm:$0xff]
  %v2794 = vld [vmem:[%s2732 + $0x1e8] sm:$0xff]
  %v2795 = vld [vmem:[%s2732 + $0x1f0] sm:$0xff]
  %v2796 = vld [vmem:[%s2732 + $0x1f8] sm:$0xff]
  %2798 = vset.pattern.permute.xlu0 0
  %2799 = vperm.xlu0 %2798, %v2733
  %v2800 = vpop.permute.xlu0 %2799
  %2803 = vset.pattern.permute.xlu0 0
  %2804 = vperm.xlu0 %2803, %v2734
  %v2805 = vpop.permute.xlu0 %2804
  %2808 = vset.pattern.permute.xlu0 0
  %2809 = vperm.xlu0 %2808, %v2735
  %v2810 = vpop.permute.xlu0 %2809
  %2813 = vset.pattern.permute.xlu0 0
  %2814 = vperm.xlu0 %2813, %v2736
  %v2815 = vpop.permute.xlu0 %2814
  %2818 = vset.pattern.permute.xlu0 0
  %2819 = vperm.xlu0 %2818, %v2737
  %v2820 = vpop.permute.xlu0 %2819
  %2823 = vset.pattern.permute.xlu0 0
  %2824 = vperm.xlu0 %2823, %v2738
  %v2825 = vpop.permute.xlu0 %2824
  %2828 = vset.pattern.permute.xlu0 0
  %2829 = vperm.xlu0 %2828, %v2739
  %v2830 = vpop.permute.xlu0 %2829
  %2833 = vset.pattern.permute.xlu0 0
  %2834 = vperm.xlu0 %2833, %v2740
  %v2835 = vpop.permute.xlu0 %2834
  %2838 = vset.pattern.permute.xlu0 0
  %2839 = vperm.xlu0 %2838, %v2741
  %v2840 = vpop.permute.xlu0 %2839
  %2843 = vset.pattern.permute.xlu0 0
  %2844 = vperm.xlu0 %2843, %v2742
  %v2845 = vpop.permute.xlu0 %2844
  %2848 = vset.pattern.permute.xlu0 0
  %2849 = vperm.xlu0 %2848, %v2743
  %v2850 = vpop.permute.xlu0 %2849
  %2853 = vset.pattern.permute.xlu0 0
  %2854 = vperm.xlu0 %2853, %v2744
  %v2855 = vpop.permute.xlu0 %2854
  %2858 = vset.pattern.permute.xlu0 0
  %2859 = vperm.xlu0 %2858, %v2745
  %v2860 = vpop.permute.xlu0 %2859
  %2863 = vset.pattern.permute.xlu0 0
  %2864 = vperm.xlu0 %2863, %v2746
  %v2865 = vpop.permute.xlu0 %2864
  %2868 = vset.pattern.permute.xlu0 0
  %2869 = vperm.xlu0 %2868, %v2747
  %v2870 = vpop.permute.xlu0 %2869
  %2873 = vset.pattern.permute.xlu0 0
  %2874 = vperm.xlu0 %2873, %v2748
  %v2875 = vpop.permute.xlu0 %2874
  %2878 = vset.pattern.permute.xlu0 0
  %2879 = vperm.xlu0 %2878, %v2749
  %v2880 = vpop.permute.xlu0 %2879
  %2883 = vset.pattern.permute.xlu0 0
  %2884 = vperm.xlu0 %2883, %v2750
  %v2885 = vpop.permute.xlu0 %2884
  %2888 = vset.pattern.permute.xlu0 0
  %2889 = vperm.xlu0 %2888, %v2751
  %v2890 = vpop.permute.xlu0 %2889
  %2893 = vset.pattern.permute.xlu0 0
  %2894 = vperm.xlu0 %2893, %v2752
  %v2895 = vpop.permute.xlu0 %2894
  %2898 = vset.pattern.permute.xlu0 0
  %2899 = vperm.xlu0 %2898, %v2753
  %v2900 = vpop.permute.xlu0 %2899
  %2903 = vset.pattern.permute.xlu0 0
  %2904 = vperm.xlu0 %2903, %v2754
  %v2905 = vpop.permute.xlu0 %2904
  %2908 = vset.pattern.permute.xlu0 0
  %2909 = vperm.xlu0 %2908, %v2755
  %v2910 = vpop.permute.xlu0 %2909
  %2913 = vset.pattern.permute.xlu0 0
  %2914 = vperm.xlu0 %2913, %v2756
  %v2915 = vpop.permute.xlu0 %2914
  %2918 = vset.pattern.permute.xlu0 0
  %2919 = vperm.xlu0 %2918, %v2757
  %v2920 = vpop.permute.xlu0 %2919
  %2923 = vset.pattern.permute.xlu0 0
  %2924 = vperm.xlu0 %2923, %v2758
  %v2925 = vpop.permute.xlu0 %2924
  %2928 = vset.pattern.permute.xlu0 0
  %2929 = vperm.xlu0 %2928, %v2759
  %v2930 = vpop.permute.xlu0 %2929
  %2933 = vset.pattern.permute.xlu0 0
  %2934 = vperm.xlu0 %2933, %v2760
  %v2935 = vpop.permute.xlu0 %2934
  %2938 = vset.pattern.permute.xlu0 0
  %2939 = vperm.xlu0 %2938, %v2761
  %v2940 = vpop.permute.xlu0 %2939
  %2943 = vset.pattern.permute.xlu0 0
  %2944 = vperm.xlu0 %2943, %v2762
  %v2945 = vpop.permute.xlu0 %2944
  %2948 = vset.pattern.permute.xlu0 0
  %2949 = vperm.xlu0 %2948, %v2763
  %v2950 = vpop.permute.xlu0 %2949
  %2953 = vset.pattern.permute.xlu0 0
  %2954 = vperm.xlu0 %2953, %v2764
  %v2955 = vpop.permute.xlu0 %2954
  %2958 = vset.pattern.permute.xlu0 0
  %2959 = vperm.xlu0 %2958, %v2765
  %v2960 = vpop.permute.xlu0 %2959
  %2963 = vset.pattern.permute.xlu0 0
  %2964 = vperm.xlu0 %2963, %v2766
  %v2965 = vpop.permute.xlu0 %2964
  %2968 = vset.pattern.permute.xlu0 0
  %2969 = vperm.xlu0 %2968, %v2767
  %v2970 = vpop.permute.xlu0 %2969
  %2973 = vset.pattern.permute.xlu0 0
  %2974 = vperm.xlu0 %2973, %v2768
  %v2975 = vpop.permute.xlu0 %2974
  %2978 = vset.pattern.permute.xlu0 0
  %2979 = vperm.xlu0 %2978, %v2769
  %v2980 = vpop.permute.xlu0 %2979
  %2983 = vset.pattern.permute.xlu0 0
  %2984 = vperm.xlu0 %2983, %v2770
  %v2985 = vpop.permute.xlu0 %2984
  %2988 = vset.pattern.permute.xlu0 0
  %2989 = vperm.xlu0 %2988, %v2771
  %v2990 = vpop.permute.xlu0 %2989
  %2993 = vset.pattern.permute.xlu0 0
  %2994 = vperm.xlu0 %2993, %v2772
  %v2995 = vpop.permute.xlu0 %2994
  %2998 = vset.pattern.permute.xlu0 0
  %2999 = vperm.xlu0 %2998, %v2773
  %v3000 = vpop.permute.xlu0 %2999
  %3003 = vset.pattern.permute.xlu0 0
  %3004 = vperm.xlu0 %3003, %v2774
  %v3005 = vpop.permute.xlu0 %3004
  %3008 = vset.pattern.permute.xlu0 0
  %3009 = vperm.xlu0 %3008, %v2775
  %v3010 = vpop.permute.xlu0 %3009
  %3013 = vset.pattern.permute.xlu0 0
  %3014 = vperm.xlu0 %3013, %v2776
  %v3015 = vpop.permute.xlu0 %3014
  %3018 = vset.pattern.permute.xlu0 0
  %3019 = vperm.xlu0 %3018, %v2777
  %v3020 = vpop.permute.xlu0 %3019
  %3023 = vset.pattern.permute.xlu0 0
  %3024 = vperm.xlu0 %3023, %v2778
  %v3025 = vpop.permute.xlu0 %3024
  %3028 = vset.pattern.permute.xlu0 0
  %3029 = vperm.xlu0 %3028, %v2779
  %v3030 = vpop.permute.xlu0 %3029
  %3033 = vset.pattern.permute.xlu0 0
  %3034 = vperm.xlu0 %3033, %v2780
  %v3035 = vpop.permute.xlu0 %3034
  %3038 = vset.pattern.permute.xlu0 0
  %3039 = vperm.xlu0 %3038, %v2781
  %v3040 = vpop.permute.xlu0 %3039
  %3043 = vset.pattern.permute.xlu0 0
  %3044 = vperm.xlu0 %3043, %v2782
  %v3045 = vpop.permute.xlu0 %3044
  %3048 = vset.pattern.permute.xlu0 0
  %3049 = vperm.xlu0 %3048, %v2783
  %v3050 = vpop.permute.xlu0 %3049
  %3053 = vset.pattern.permute.xlu0 0
  %3054 = vperm.xlu0 %3053, %v2784
  %v3055 = vpop.permute.xlu0 %3054
  %3058 = vset.pattern.permute.xlu0 0
  %3059 = vperm.xlu0 %3058, %v2785
  %v3060 = vpop.permute.xlu0 %3059
  %3063 = vset.pattern.permute.xlu0 0
  %3064 = vperm.xlu0 %3063, %v2786
  %v3065 = vpop.permute.xlu0 %3064
  %3068 = vset.pattern.permute.xlu0 0
  %3069 = vperm.xlu0 %3068, %v2787
  %v3070 = vpop.permute.xlu0 %3069
  %3073 = vset.pattern.permute.xlu0 0
  %3074 = vperm.xlu0 %3073, %v2788
  %v3075 = vpop.permute.xlu0 %3074
  %3078 = vset.pattern.permute.xlu0 0
  %3079 = vperm.xlu0 %3078, %v2789
  %v3080 = vpop.permute.xlu0 %3079
  %3083 = vset.pattern.permute.xlu0 0
  %3084 = vperm.xlu0 %3083, %v2790
  %v3085 = vpop.permute.xlu0 %3084
  %3088 = vset.pattern.permute.xlu0 0
  %3089 = vperm.xlu0 %3088, %v2791
  %v3090 = vpop.permute.xlu0 %3089
  %3093 = vset.pattern.permute.xlu0 0
  %3094 = vperm.xlu0 %3093, %v2792
  %v3095 = vpop.permute.xlu0 %3094
  %3098 = vset.pattern.permute.xlu0 0
  %3099 = vperm.xlu0 %3098, %v2793
  %v3100 = vpop.permute.xlu0 %3099
  %3103 = vset.pattern.permute.xlu0 0
  %3104 = vperm.xlu0 %3103, %v2794
  %v3105 = vpop.permute.xlu0 %3104
  %3108 = vset.pattern.permute.xlu0 0
  %3109 = vperm.xlu0 %3108, %v2795
  %v3110 = vpop.permute.xlu0 %3109
  %3113 = vset.pattern.permute.xlu0 0
  %3114 = vperm.xlu0 %3113, %v2796
  %v3115 = vpop.permute.xlu0 %3114
  %v3117 = vmul.f32 %v2668, %v2800
  %v3118 = vmul.f32 %v2669, %v2805
  %v3119 = vmul.f32 %v2670, %v2810
  %v3120 = vmul.f32 %v2671, %v2815
  %v3121 = vmul.f32 %v2672, %v2820
  %v3122 = vmul.f32 %v2673, %v2825
  %v3123 = vmul.f32 %v2674, %v2830
  %v3124 = vmul.f32 %v2675, %v2835
  %v3125 = vmul.f32 %v2676, %v2840
  %v3126 = vmul.f32 %v2677, %v2845
  %v3127 = vmul.f32 %v2678, %v2850
  %v3128 = vmul.f32 %v2679, %v2855
  %v3129 = vmul.f32 %v2680, %v2860
  %v3130 = vmul.f32 %v2681, %v2865
  %v3131 = vmul.f32 %v2682, %v2870
  %v3132 = vmul.f32 %v2683, %v2875
  %v3133 = vmul.f32 %v2684, %v2880
  %v3134 = vmul.f32 %v2685, %v2885
  %v3135 = vmul.f32 %v2686, %v2890
  %v3136 = vmul.f32 %v2687, %v2895
  %v3137 = vmul.f32 %v2688, %v2900
  %v3138 = vmul.f32 %v2689, %v2905
  %v3139 = vmul.f32 %v2690, %v2910
  %v3140 = vmul.f32 %v2691, %v2915
  %v3141 = vmul.f32 %v2692, %v2920
  %v3142 = vmul.f32 %v2693, %v2925
  %v3143 = vmul.f32 %v2694, %v2930
  %v3144 = vmul.f32 %v2695, %v2935
  %v3145 = vmul.f32 %v2696, %v2940
  %v3146 = vmul.f32 %v2697, %v2945
  %v3147 = vmul.f32 %v2698, %v2950
  %v3148 = vmul.f32 %v2699, %v2955
  %v3149 = vmul.f32 %v2700, %v2960
  %v3150 = vmul.f32 %v2701, %v2965
  %v3151 = vmul.f32 %v2702, %v2970
  %v3152 = vmul.f32 %v2703, %v2975
  %v3153 = vmul.f32 %v2704, %v2980
  %v3154 = vmul.f32 %v2705, %v2985
  %v3155 = vmul.f32 %v2706, %v2990
  %v3156 = vmul.f32 %v2707, %v2995
  %v3157 = vmul.f32 %v2708, %v3000
  %v3158 = vmul.f32 %v2709, %v3005
  %v3159 = vmul.f32 %v2710, %v3010
  %v3160 = vmul.f32 %v2711, %v3015
  %v3161 = vmul.f32 %v2712, %v3020
  %v3162 = vmul.f32 %v2713, %v3025
  %v3163 = vmul.f32 %v2714, %v3030
  %v3164 = vmul.f32 %v2715, %v3035
  %v3165 = vmul.f32 %v2716, %v3040
  %v3166 = vmul.f32 %v2717, %v3045
  %v3167 = vmul.f32 %v2718, %v3050
  %v3168 = vmul.f32 %v2719, %v3055
  %v3169 = vmul.f32 %v2720, %v3060
  %v3170 = vmul.f32 %v2721, %v3065
  %v3171 = vmul.f32 %v2722, %v3070
  %v3172 = vmul.f32 %v2723, %v3075
  %v3173 = vmul.f32 %v2724, %v3080
  %v3174 = vmul.f32 %v2725, %v3085
  %v3175 = vmul.f32 %v2726, %v3090
  %v3176 = vmul.f32 %v2727, %v3095
  %v3177 = vmul.f32 %v2728, %v3100
  %v3178 = vmul.f32 %v2729, %v3105
  %v3179 = vmul.f32 %v2730, %v3110
  %v3180 = vmul.f32 %v2731, %v3115
  %s3181 = scalar_lea.vmem %s1, 384
  %v3182 = vld [vmem:[%s3181] sm:$0xff]
  %v3183 = vld [vmem:[%s3181 + $0x8] sm:$0xff]
  %v3184 = vld [vmem:[%s3181 + $0x10] sm:$0xff]
  %v3185 = vld [vmem:[%s3181 + $0x18] sm:$0xff]
  %v3186 = vld [vmem:[%s3181 + $0x20] sm:$0xff]
  %v3187 = vld [vmem:[%s3181 + $0x28] sm:$0xff]
  %v3188 = vld [vmem:[%s3181 + $0x30] sm:$0xff]
  %v3189 = vld [vmem:[%s3181 + $0x38] sm:$0xff]
  %v3190 = vld [vmem:[%s3181 + $0x40] sm:$0xff]
  %v3191 = vld [vmem:[%s3181 + $0x48] sm:$0xff]
  %v3192 = vld [vmem:[%s3181 + $0x50] sm:$0xff]
  %v3193 = vld [vmem:[%s3181 + $0x58] sm:$0xff]
  %v3194 = vld [vmem:[%s3181 + $0x60] sm:$0xff]
  %v3195 = vld [vmem:[%s3181 + $0x68] sm:$0xff]
  %v3196 = vld [vmem:[%s3181 + $0x70] sm:$0xff]
  %v3197 = vld [vmem:[%s3181 + $0x78] sm:$0xff]
  %3198 = vmatpush.msra.mxu0 %v3197
  %3199 = vmatpush.msra.mxu0 %v3196
  %3200 = vmatpush.msra.mxu0 %v3195
  %3201 = vmatpush.msra.mxu0 %v3194
  %3202 = vmatpush.msra.mxu0 %v3193
  %3203 = vmatpush.msra.mxu0 %v3192
  %3204 = vmatpush.msra.mxu0 %v3191
  %3205 = vmatpush.msra.mxu0 %v3190
  %3206 = vmatpush.msra.mxu0 %v3189
  %3207 = vmatpush.msra.mxu0 %v3188
  %3208 = vmatpush.msra.mxu0 %v3187
  %3209 = vmatpush.msra.mxu0 %v3186
  %3210 = vmatpush.msra.mxu0 %v3185
  %3211 = vmatpush.msra.mxu0 %v3184
  %3212 = vmatpush.msra.mxu0 %v3183
  %3213 = vmatpush.msra.mxu0 %v3182
  %3214 = vmatmul.f32.gmra.mxu0 %v3117
  %v3215 = vpop.f32.mrf.mxu0
  %v3216 = vadd.f32 0.0, %v3215
  %3217 = vmatmul.f32.gmra.mxu0 %v3118
  %v3218 = vpop.f32.mrf.mxu0
  %v3219 = vadd.f32 0.0, %v3218
  %3220 = vmatmul.f32.gmra.mxu0 %v3119
  %v3221 = vpop.f32.mrf.mxu0
  %v3222 = vadd.f32 0.0, %v3221
  %3223 = vmatmul.f32.gmra.mxu0 %v3120
  %v3224 = vpop.f32.mrf.mxu0
  %v3225 = vadd.f32 0.0, %v3224
  %3226 = vmatmul.f32.gmra.mxu0 %v3121
  %v3227 = vpop.f32.mrf.mxu0
  %v3228 = vadd.f32 0.0, %v3227
  %3229 = vmatmul.f32.gmra.mxu0 %v3122
  %v3230 = vpop.f32.mrf.mxu0
  %v3231 = vadd.f32 0.0, %v3230
  %3232 = vmatmul.f32.gmra.mxu0 %v3123
  %v3233 = vpop.f32.mrf.mxu0
  %v3234 = vadd.f32 0.0, %v3233
  %3235 = vmatmul.f32.gmra.mxu0 %v3124
  %v3236 = vpop.f32.mrf.mxu0
  %v3237 = vadd.f32 0.0, %v3236
  %3238 = vmatmul.f32.gmra.mxu0 %v3125
  %v3239 = vpop.f32.mrf.mxu0
  %v3240 = vadd.f32 0.0, %v3239
  %3241 = vmatmul.f32.gmra.mxu0 %v3126
  %v3242 = vpop.f32.mrf.mxu0
  %v3243 = vadd.f32 0.0, %v3242
  %3244 = vmatmul.f32.gmra.mxu0 %v3127
  %v3245 = vpop.f32.mrf.mxu0
  %v3246 = vadd.f32 0.0, %v3245
  %3247 = vmatmul.f32.gmra.mxu0 %v3128
  %v3248 = vpop.f32.mrf.mxu0
  %v3249 = vadd.f32 0.0, %v3248
  %3250 = vmatmul.f32.gmra.mxu0 %v3129
  %v3251 = vpop.f32.mrf.mxu0
  %v3252 = vadd.f32 0.0, %v3251
  %3253 = vmatmul.f32.gmra.mxu0 %v3130
  %v3254 = vpop.f32.mrf.mxu0
  %v3255 = vadd.f32 0.0, %v3254
  %3256 = vmatmul.f32.gmra.mxu0 %v3131
  %v3257 = vpop.f32.mrf.mxu0
  %v3258 = vadd.f32 0.0, %v3257
  %3259 = vmatmul.f32.gmra.mxu0 %v3132
  %v3260 = vpop.f32.mrf.mxu0
  %v3261 = vadd.f32 0.0, %v3260
  %3262 = vmatmul.f32.gmra.mxu0 %v3133
  %v3263 = vpop.f32.mrf.mxu0
  %v3264 = vadd.f32 0.0, %v3263
  %3265 = vmatmul.f32.gmra.mxu0 %v3134
  %v3266 = vpop.f32.mrf.mxu0
  %v3267 = vadd.f32 0.0, %v3266
  %3268 = vmatmul.f32.gmra.mxu0 %v3135
  %v3269 = vpop.f32.mrf.mxu0
  %v3270 = vadd.f32 0.0, %v3269
  %3271 = vmatmul.f32.gmra.mxu0 %v3136
  %v3272 = vpop.f32.mrf.mxu0
  %v3273 = vadd.f32 0.0, %v3272
  %3274 = vmatmul.f32.gmra.mxu0 %v3137
  %v3275 = vpop.f32.mrf.mxu0
  %v3276 = vadd.f32 0.0, %v3275
  %3277 = vmatmul.f32.gmra.mxu0 %v3138
  %v3278 = vpop.f32.mrf.mxu0
  %v3279 = vadd.f32 0.0, %v3278
  %3280 = vmatmul.f32.gmra.mxu0 %v3139
  %v3281 = vpop.f32.mrf.mxu0
  %v3282 = vadd.f32 0.0, %v3281
  %3283 = vmatmul.f32.gmra.mxu0 %v3140
  %v3284 = vpop.f32.mrf.mxu0
  %v3285 = vadd.f32 0.0, %v3284
  %3286 = vmatmul.f32.gmra.mxu0 %v3141
  %v3287 = vpop.f32.mrf.mxu0
  %v3288 = vadd.f32 0.0, %v3287
  %3289 = vmatmul.f32.gmra.mxu0 %v3142
  %v3290 = vpop.f32.mrf.mxu0
  %v3291 = vadd.f32 0.0, %v3290
  %3292 = vmatmul.f32.gmra.mxu0 %v3143
  %v3293 = vpop.f32.mrf.mxu0
  %v3294 = vadd.f32 0.0, %v3293
  %3295 = vmatmul.f32.gmra.mxu0 %v3144
  %v3296 = vpop.f32.mrf.mxu0
  %v3297 = vadd.f32 0.0, %v3296
  %3298 = vmatmul.f32.gmra.mxu0 %v3145
  %v3299 = vpop.f32.mrf.mxu0
  %v3300 = vadd.f32 0.0, %v3299
  %3301 = vmatmul.f32.gmra.mxu0 %v3146
  %v3302 = vpop.f32.mrf.mxu0
  %v3303 = vadd.f32 0.0, %v3302
  %3304 = vmatmul.f32.gmra.mxu0 %v3147
  %v3305 = vpop.f32.mrf.mxu0
  %v3306 = vadd.f32 0.0, %v3305
  %3307 = vmatmul.f32.gmra.mxu0 %v3148
  %v3308 = vpop.f32.mrf.mxu0
  %v3309 = vadd.f32 0.0, %v3308
  %3310 = vmatmul.f32.gmra.mxu0 %v3149
  %v3311 = vpop.f32.mrf.mxu0
  %v3312 = vadd.f32 0.0, %v3311
  %3313 = vmatmul.f32.gmra.mxu0 %v3150
  %v3314 = vpop.f32.mrf.mxu0
  %v3315 = vadd.f32 0.0, %v3314
  %3316 = vmatmul.f32.gmra.mxu0 %v3151
  %v3317 = vpop.f32.mrf.mxu0
  %v3318 = vadd.f32 0.0, %v3317
  %3319 = vmatmul.f32.gmra.mxu0 %v3152
  %v3320 = vpop.f32.mrf.mxu0
  %v3321 = vadd.f32 0.0, %v3320
  %3322 = vmatmul.f32.gmra.mxu0 %v3153
  %v3323 = vpop.f32.mrf.mxu0
  %v3324 = vadd.f32 0.0, %v3323
  %3325 = vmatmul.f32.gmra.mxu0 %v3154
  %v3326 = vpop.f32.mrf.mxu0
  %v3327 = vadd.f32 0.0, %v3326
  %3328 = vmatmul.f32.gmra.mxu0 %v3155
  %v3329 = vpop.f32.mrf.mxu0
  %v3330 = vadd.f32 0.0, %v3329
  %3331 = vmatmul.f32.gmra.mxu0 %v3156
  %v3332 = vpop.f32.mrf.mxu0
  %v3333 = vadd.f32 0.0, %v3332
  %3334 = vmatmul.f32.gmra.mxu0 %v3157
  %v3335 = vpop.f32.mrf.mxu0
  %v3336 = vadd.f32 0.0, %v3335
  %3337 = vmatmul.f32.gmra.mxu0 %v3158
  %v3338 = vpop.f32.mrf.mxu0
  %v3339 = vadd.f32 0.0, %v3338
  %3340 = vmatmul.f32.gmra.mxu0 %v3159
  %v3341 = vpop.f32.mrf.mxu0
  %v3342 = vadd.f32 0.0, %v3341
  %3343 = vmatmul.f32.gmra.mxu0 %v3160
  %v3344 = vpop.f32.mrf.mxu0
  %v3345 = vadd.f32 0.0, %v3344
  %3346 = vmatmul.f32.gmra.mxu0 %v3161
  %v3347 = vpop.f32.mrf.mxu0
  %v3348 = vadd.f32 0.0, %v3347
  %3349 = vmatmul.f32.gmra.mxu0 %v3162
  %v3350 = vpop.f32.mrf.mxu0
  %v3351 = vadd.f32 0.0, %v3350
  %3352 = vmatmul.f32.gmra.mxu0 %v3163
  %v3353 = vpop.f32.mrf.mxu0
  %v3354 = vadd.f32 0.0, %v3353
  %3355 = vmatmul.f32.gmra.mxu0 %v3164
  %v3356 = vpop.f32.mrf.mxu0
  %v3357 = vadd.f32 0.0, %v3356
  %3358 = vmatmul.f32.gmra.mxu0 %v3165
  %v3359 = vpop.f32.mrf.mxu0
  %v3360 = vadd.f32 0.0, %v3359
  %3361 = vmatmul.f32.gmra.mxu0 %v3166
  %v3362 = vpop.f32.mrf.mxu0
  %v3363 = vadd.f32 0.0, %v3362
  %3364 = vmatmul.f32.gmra.mxu0 %v3167
  %v3365 = vpop.f32.mrf.mxu0
  %v3366 = vadd.f32 0.0, %v3365
  %3367 = vmatmul.f32.gmra.mxu0 %v3168
  %v3368 = vpop.f32.mrf.mxu0
  %v3369 = vadd.f32 0.0, %v3368
  %3370 = vmatmul.f32.gmra.mxu0 %v3169
  %v3371 = vpop.f32.mrf.mxu0
  %v3372 = vadd.f32 0.0, %v3371
  %3373 = vmatmul.f32.gmra.mxu0 %v3170
  %v3374 = vpop.f32.mrf.mxu0
  %v3375 = vadd.f32 0.0, %v3374
  %3376 = vmatmul.f32.gmra.mxu0 %v3171
  %v3377 = vpop.f32.mrf.mxu0
  %v3378 = vadd.f32 0.0, %v3377
  %3379 = vmatmul.f32.gmra.mxu0 %v3172
  %v3380 = vpop.f32.mrf.mxu0
  %v3381 = vadd.f32 0.0, %v3380
  %3382 = vmatmul.f32.gmra.mxu0 %v3173
  %v3383 = vpop.f32.mrf.mxu0
  %v3384 = vadd.f32 0.0, %v3383
  %3385 = vmatmul.f32.gmra.mxu0 %v3174
  %v3386 = vpop.f32.mrf.mxu0
  %v3387 = vadd.f32 0.0, %v3386
  %3388 = vmatmul.f32.gmra.mxu0 %v3175
  %v3389 = vpop.f32.mrf.mxu0
  %v3390 = vadd.f32 0.0, %v3389
  %3391 = vmatmul.f32.gmra.mxu0 %v3176
  %v3392 = vpop.f32.mrf.mxu0
  %v3393 = vadd.f32 0.0, %v3392
  %3394 = vmatmul.f32.gmra.mxu0 %v3177
  %v3395 = vpop.f32.mrf.mxu0
  %v3396 = vadd.f32 0.0, %v3395
  %3397 = vmatmul.f32.gmra.mxu0 %v3178
  %v3398 = vpop.f32.mrf.mxu0
  %v3399 = vadd.f32 0.0, %v3398
  %3400 = vmatmul.f32.gmra.mxu0 %v3179
  %v3401 = vpop.f32.mrf.mxu0
  %v3402 = vadd.f32 0.0, %v3401
  %3403 = vmatmul.f32.gmra.mxu0 %v3180
  %v3404 = vpop.f32.mrf.mxu0
  %v3405 = vadd.f32 0.0, %v3404
  %3406 = vdwg.mxu0
  %v3407 = vadd.f32 %v2604, %v3216
  %v3408 = vadd.f32 %v2605, %v3219
  %v3409 = vadd.f32 %v2606, %v3222
  %v3410 = vadd.f32 %v2607, %v3225
  %v3411 = vadd.f32 %v2608, %v3228
  %v3412 = vadd.f32 %v2609, %v3231
  %v3413 = vadd.f32 %v2610, %v3234
  %v3414 = vadd.f32 %v2611, %v3237
  %v3415 = vadd.f32 %v2612, %v3240
  %v3416 = vadd.f32 %v2613, %v3243
  %v3417 = vadd.f32 %v2614, %v3246
  %v3418 = vadd.f32 %v2615, %v3249
  %v3419 = vadd.f32 %v2616, %v3252
  %v3420 = vadd.f32 %v2617, %v3255
  %v3421 = vadd.f32 %v2618, %v3258
  %v3422 = vadd.f32 %v2619, %v3261
  %v3423 = vadd.f32 %v2620, %v3264
  %v3424 = vadd.f32 %v2621, %v3267
  %v3425 = vadd.f32 %v2622, %v3270
  %v3426 = vadd.f32 %v2623, %v3273
  %v3427 = vadd.f32 %v2624, %v3276
  %v3428 = vadd.f32 %v2625, %v3279
  %v3429 = vadd.f32 %v2626, %v3282
  %v3430 = vadd.f32 %v2627, %v3285
  %v3431 = vadd.f32 %v2628, %v3288
  %v3432 = vadd.f32 %v2629, %v3291
  %v3433 = vadd.f32 %v2630, %v3294
  %v3434 = vadd.f32 %v2631, %v3297
  %v3435 = vadd.f32 %v2632, %v3300
  %v3436 = vadd.f32 %v2633, %v3303
  %v3437 = vadd.f32 %v2634, %v3306
  %v3438 = vadd.f32 %v2635, %v3309
  %v3439 = vadd.f32 %v2636, %v3312
  %v3440 = vadd.f32 %v2637, %v3315
  %v3441 = vadd.f32 %v2638, %v3318
  %v3442 = vadd.f32 %v2639, %v3321
  %v3443 = vadd.f32 %v2640, %v3324
  %v3444 = vadd.f32 %v2641, %v3327
  %v3445 = vadd.f32 %v2642, %v3330
  %v3446 = vadd.f32 %v2643, %v3333
  %v3447 = vadd.f32 %v2644, %v3336
  %v3448 = vadd.f32 %v2645, %v3339
  %v3449 = vadd.f32 %v2646, %v3342
  %v3450 = vadd.f32 %v2647, %v3345
  %v3451 = vadd.f32 %v2648, %v3348
  %v3452 = vadd.f32 %v2649, %v3351
  %v3453 = vadd.f32 %v2650, %v3354
  %v3454 = vadd.f32 %v2651, %v3357
  %v3455 = vadd.f32 %v2652, %v3360
  %v3456 = vadd.f32 %v2653, %v3363
  %v3457 = vadd.f32 %v2654, %v3366
  %v3458 = vadd.f32 %v2655, %v3369
  %v3459 = vadd.f32 %v2656, %v3372
  %v3460 = vadd.f32 %v2657, %v3375
  %v3461 = vadd.f32 %v2658, %v3378
  %v3462 = vadd.f32 %v2659, %v3381
  %v3463 = vadd.f32 %v2660, %v3384
  %v3464 = vadd.f32 %v2661, %v3387
  %v3465 = vadd.f32 %v2662, %v3390
  %v3466 = vadd.f32 %v2663, %v3393
  %v3467 = vadd.f32 %v2664, %v3396
  %v3468 = vadd.f32 %v2665, %v3399
  %v3469 = vadd.f32 %v2666, %v3402
  %v3470 = vadd.f32 %v2667, %v3405
  %v3471 = vld [vmem:[#allocation2 + $0x18] sm:$0xff]
  %v3472 = vld [vmem:[#allocation2 + $0x20] sm:$0xff]
  %v3473 = vld [vmem:[#allocation2 + $0x28] sm:$0xff]
  %v3474 = vld [vmem:[#allocation2 + $0x30] sm:$0xff]
  %v3475 = vld [vmem:[#allocation2 + $0x38] sm:$0xff]
  %v3476 = vld [vmem:[#allocation2 + $0x40] sm:$0xff]
  %v3477 = vld [vmem:[#allocation2 + $0x48] sm:$0xff]
  %v3478 = vld [vmem:[#allocation2 + $0x50] sm:$0xff]
  %v3479 = vld [vmem:[#allocation2 + $0x58] sm:$0xff]
  %v3480 = vld [vmem:[#allocation2 + $0x60] sm:$0xff]
  %v3481 = vld [vmem:[#allocation2 + $0x68] sm:$0xff]
  %v3482 = vld [vmem:[#allocation2 + $0x70] sm:$0xff]
  %v3483 = vld [vmem:[#allocation2 + $0x78] sm:$0xff]
  %v3484 = vld [vmem:[#allocation2 + $0x80] sm:$0xff]
  %v3485 = vld [vmem:[#allocation2 + $0x88] sm:$0xff]
  %v3486 = vld [vmem:[#allocation2 + $0x90] sm:$0xff]
  %v3487 = vld [vmem:[#allocation2 + $0x98] sm:$0xff]
  %v3488 = vld [vmem:[#allocation2 + $0xa0] sm:$0xff]
  %v3489 = vld [vmem:[#allocation2 + $0xa8] sm:$0xff]
  %v3490 = vld [vmem:[#allocation2 + $0xb0] sm:$0xff]
  %v3491 = vld [vmem:[#allocation2 + $0xb8] sm:$0xff]
  %v3492 = vld [vmem:[#allocation2 + $0xc0] sm:$0xff]
  %v3493 = vld [vmem:[#allocation2 + $0xc8] sm:$0xff]
  %v3494 = vld [vmem:[#allocation2 + $0xd0] sm:$0xff]
  %v3495 = vld [vmem:[#allocation2 + $0xd8] sm:$0xff]
  %v3496 = vld [vmem:[#allocation2 + $0xe0] sm:$0xff]
  %v3497 = vld [vmem:[#allocation2 + $0xe8] sm:$0xff]
  %v3498 = vld [vmem:[#allocation2 + $0xf0] sm:$0xff]
  %v3499 = vld [vmem:[#allocation2 + $0xf8] sm:$0xff]
  %v3500 = vld [vmem:[#allocation2 + $0x100] sm:$0xff]
  %v3501 = vld [vmem:[#allocation2 + $0x108] sm:$0xff]
  %v3502 = vld [vmem:[#allocation2 + $0x110] sm:$0xff]
  %v3503 = vld [vmem:[#allocation2 + $0x118] sm:$0xff]
  %v3504 = vld [vmem:[#allocation2 + $0x120] sm:$0xff]
  %v3505 = vld [vmem:[#allocation2 + $0x128] sm:$0xff]
  %v3506 = vld [vmem:[#allocation2 + $0x130] sm:$0xff]
  %v3507 = vld [vmem:[#allocation2 + $0x138] sm:$0xff]
  %v3508 = vld [vmem:[#allocation2 + $0x140] sm:$0xff]
  %v3509 = vld [vmem:[#allocation2 + $0x148] sm:$0xff]
  %v3510 = vld [vmem:[#allocation2 + $0x150] sm:$0xff]
  %v3511 = vld [vmem:[#allocation2 + $0x158] sm:$0xff]
  %v3512 = vld [vmem:[#allocation2 + $0x160] sm:$0xff]
  %v3513 = vld [vmem:[#allocation2 + $0x168] sm:$0xff]
  %v3514 = vld [vmem:[#allocation2 + $0x170] sm:$0xff]
  %v3515 = vld [vmem:[#allocation2 + $0x178] sm:$0xff]
  %v3516 = vld [vmem:[#allocation2 + $0x180] sm:$0xff]
  %v3517 = vld [vmem:[#allocation2 + $0x188] sm:$0xff]
  %v3518 = vld [vmem:[#allocation2 + $0x190] sm:$0xff]
  %v3519 = vld [vmem:[#allocation2 + $0x198] sm:$0xff]
  %v3520 = vld [vmem:[#allocation2 + $0x1a0] sm:$0xff]
  %v3521 = vld [vmem:[#allocation2 + $0x1a8] sm:$0xff]
  %v3522 = vld [vmem:[#allocation2 + $0x1b0] sm:$0xff]
  %v3523 = vld [vmem:[#allocation2 + $0x1b8] sm:$0xff]
  %v3524 = vld [vmem:[#allocation2 + $0x1c0] sm:$0xff]
  %v3525 = vld [vmem:[#allocation2 + $0x1c8] sm:$0xff]
  %v3526 = vld [vmem:[#allocation2 + $0x1d0] sm:$0xff]
  %v3527 = vld [vmem:[#allocation2 + $0x1d8] sm:$0xff]
  %v3528 = vld [vmem:[#allocation2 + $0x1e0] sm:$0xff]
  %v3529 = vld [vmem:[#allocation2 + $0x1e8] sm:$0xff]
  %v3530 = vld [vmem:[#allocation2 + $0x1f0] sm:$0xff]
  %v3531 = vld [vmem:[#allocation2 + $0x1f8] sm:$0xff]
  %v3532 = vld [vmem:[#allocation2 + $0x200] sm:$0xff]
  %v3533 = vld [vmem:[#allocation2 + $0x208] sm:$0xff]
  %v3534 = vld [vmem:[#allocation2 + $0x210] sm:$0xff]
  %s3535 = scalar_lea.vmem %s3, 2048
  %v3536 = vld [vmem:[%s3535] sm:$0xff]
  %v3537 = vld [vmem:[%s3535 + $0x8] sm:$0xff]
  %v3538 = vld [vmem:[%s3535 + $0x10] sm:$0xff]
  %v3539 = vld [vmem:[%s3535 + $0x18] sm:$0xff]
  %v3540 = vld [vmem:[%s3535 + $0x20] sm:$0xff]
  %v3541 = vld [vmem:[%s3535 + $0x28] sm:$0xff]
  %v3542 = vld [vmem:[%s3535 + $0x30] sm:$0xff]
  %v3543 = vld [vmem:[%s3535 + $0x38] sm:$0xff]
  %v3544 = vld [vmem:[%s3535 + $0x40] sm:$0xff]
  %v3545 = vld [vmem:[%s3535 + $0x48] sm:$0xff]
  %v3546 = vld [vmem:[%s3535 + $0x50] sm:$0xff]
  %v3547 = vld [vmem:[%s3535 + $0x58] sm:$0xff]
  %v3548 = vld [vmem:[%s3535 + $0x60] sm:$0xff]
  %v3549 = vld [vmem:[%s3535 + $0x68] sm:$0xff]
  %v3550 = vld [vmem:[%s3535 + $0x70] sm:$0xff]
  %v3551 = vld [vmem:[%s3535 + $0x78] sm:$0xff]
  %v3552 = vld [vmem:[%s3535 + $0x80] sm:$0xff]
  %v3553 = vld [vmem:[%s3535 + $0x88] sm:$0xff]
  %v3554 = vld [vmem:[%s3535 + $0x90] sm:$0xff]
  %v3555 = vld [vmem:[%s3535 + $0x98] sm:$0xff]
  %v3556 = vld [vmem:[%s3535 + $0xa0] sm:$0xff]
  %v3557 = vld [vmem:[%s3535 + $0xa8] sm:$0xff]
  %v3558 = vld [vmem:[%s3535 + $0xb0] sm:$0xff]
  %v3559 = vld [vmem:[%s3535 + $0xb8] sm:$0xff]
  %v3560 = vld [vmem:[%s3535 + $0xc0] sm:$0xff]
  %v3561 = vld [vmem:[%s3535 + $0xc8] sm:$0xff]
  %v3562 = vld [vmem:[%s3535 + $0xd0] sm:$0xff]
  %v3563 = vld [vmem:[%s3535 + $0xd8] sm:$0xff]
  %v3564 = vld [vmem:[%s3535 + $0xe0] sm:$0xff]
  %v3565 = vld [vmem:[%s3535 + $0xe8] sm:$0xff]
  %v3566 = vld [vmem:[%s3535 + $0xf0] sm:$0xff]
  %v3567 = vld [vmem:[%s3535 + $0xf8] sm:$0xff]
  %v3568 = vld [vmem:[%s3535 + $0x100] sm:$0xff]
  %v3569 = vld [vmem:[%s3535 + $0x108] sm:$0xff]
  %v3570 = vld [vmem:[%s3535 + $0x110] sm:$0xff]
  %v3571 = vld [vmem:[%s3535 + $0x118] sm:$0xff]
  %v3572 = vld [vmem:[%s3535 + $0x120] sm:$0xff]
  %v3573 = vld [vmem:[%s3535 + $0x128] sm:$0xff]
  %v3574 = vld [vmem:[%s3535 + $0x130] sm:$0xff]
  %v3575 = vld [vmem:[%s3535 + $0x138] sm:$0xff]
  %v3576 = vld [vmem:[%s3535 + $0x140] sm:$0xff]
  %v3577 = vld [vmem:[%s3535 + $0x148] sm:$0xff]
  %v3578 = vld [vmem:[%s3535 + $0x150] sm:$0xff]
  %v3579 = vld [vmem:[%s3535 + $0x158] sm:$0xff]
  %v3580 = vld [vmem:[%s3535 + $0x160] sm:$0xff]
  %v3581 = vld [vmem:[%s3535 + $0x168] sm:$0xff]
  %v3582 = vld [vmem:[%s3535 + $0x170] sm:$0xff]
  %v3583 = vld [vmem:[%s3535 + $0x178] sm:$0xff]
  %v3584 = vld [vmem:[%s3535 + $0x180] sm:$0xff]
  %v3585 = vld [vmem:[%s3535 + $0x188] sm:$0xff]
  %v3586 = vld [vmem:[%s3535 + $0x190] sm:$0xff]
  %v3587 = vld [vmem:[%s3535 + $0x198] sm:$0xff]
  %v3588 = vld [vmem:[%s3535 + $0x1a0] sm:$0xff]
  %v3589 = vld [vmem:[%s3535 + $0x1a8] sm:$0xff]
  %v3590 = vld [vmem:[%s3535 + $0x1b0] sm:$0xff]
  %v3591 = vld [vmem:[%s3535 + $0x1b8] sm:$0xff]
  %v3592 = vld [vmem:[%s3535 + $0x1c0] sm:$0xff]
  %v3593 = vld [vmem:[%s3535 + $0x1c8] sm:$0xff]
  %v3594 = vld [vmem:[%s3535 + $0x1d0] sm:$0xff]
  %v3595 = vld [vmem:[%s3535 + $0x1d8] sm:$0xff]
  %v3596 = vld [vmem:[%s3535 + $0x1e0] sm:$0xff]
  %v3597 = vld [vmem:[%s3535 + $0x1e8] sm:$0xff]
  %v3598 = vld [vmem:[%s3535 + $0x1f0] sm:$0xff]
  %v3599 = vld [vmem:[%s3535 + $0x1f8] sm:$0xff]
  %3601 = vset.pattern.permute.xlu0 0
  %3602 = vperm.xlu0 %3601, %v3536
  %v3603 = vpop.permute.xlu0 %3602
  %3606 = vset.pattern.permute.xlu0 0
  %3607 = vperm.xlu0 %3606, %v3537
  %v3608 = vpop.permute.xlu0 %3607
  %3611 = vset.pattern.permute.xlu0 0
  %3612 = vperm.xlu0 %3611, %v3538
  %v3613 = vpop.permute.xlu0 %3612
  %3616 = vset.pattern.permute.xlu0 0
  %3617 = vperm.xlu0 %3616, %v3539
  %v3618 = vpop.permute.xlu0 %3617
  %3621 = vset.pattern.permute.xlu0 0
  %3622 = vperm.xlu0 %3621, %v3540
  %v3623 = vpop.permute.xlu0 %3622
  %3626 = vset.pattern.permute.xlu0 0
  %3627 = vperm.xlu0 %3626, %v3541
  %v3628 = vpop.permute.xlu0 %3627
  %3631 = vset.pattern.permute.xlu0 0
  %3632 = vperm.xlu0 %3631, %v3542
  %v3633 = vpop.permute.xlu0 %3632
  %3636 = vset.pattern.permute.xlu0 0
  %3637 = vperm.xlu0 %3636, %v3543
  %v3638 = vpop.permute.xlu0 %3637
  %3641 = vset.pattern.permute.xlu0 0
  %3642 = vperm.xlu0 %3641, %v3544
  %v3643 = vpop.permute.xlu0 %3642
  %3646 = vset.pattern.permute.xlu0 0
  %3647 = vperm.xlu0 %3646, %v3545
  %v3648 = vpop.permute.xlu0 %3647
  %3651 = vset.pattern.permute.xlu0 0
  %3652 = vperm.xlu0 %3651, %v3546
  %v3653 = vpop.permute.xlu0 %3652
  %3656 = vset.pattern.permute.xlu0 0
  %3657 = vperm.xlu0 %3656, %v3547
  %v3658 = vpop.permute.xlu0 %3657
  %3661 = vset.pattern.permute.xlu0 0
  %3662 = vperm.xlu0 %3661, %v3548
  %v3663 = vpop.permute.xlu0 %3662
  %3666 = vset.pattern.permute.xlu0 0
  %3667 = vperm.xlu0 %3666, %v3549
  %v3668 = vpop.permute.xlu0 %3667
  %3671 = vset.pattern.permute.xlu0 0
  %3672 = vperm.xlu0 %3671, %v3550
  %v3673 = vpop.permute.xlu0 %3672
  %3676 = vset.pattern.permute.xlu0 0
  %3677 = vperm.xlu0 %3676, %v3551
  %v3678 = vpop.permute.xlu0 %3677
  %3681 = vset.pattern.permute.xlu0 0
  %3682 = vperm.xlu0 %3681, %v3552
  %v3683 = vpop.permute.xlu0 %3682
  %3686 = vset.pattern.permute.xlu0 0
  %3687 = vperm.xlu0 %3686, %v3553
  %v3688 = vpop.permute.xlu0 %3687
  %3691 = vset.pattern.permute.xlu0 0
  %3692 = vperm.xlu0 %3691, %v3554
  %v3693 = vpop.permute.xlu0 %3692
  %3696 = vset.pattern.permute.xlu0 0
  %3697 = vperm.xlu0 %3696, %v3555
  %v3698 = vpop.permute.xlu0 %3697
  %3701 = vset.pattern.permute.xlu0 0
  %3702 = vperm.xlu0 %3701, %v3556
  %v3703 = vpop.permute.xlu0 %3702
  %3706 = vset.pattern.permute.xlu0 0
  %3707 = vperm.xlu0 %3706, %v3557
  %v3708 = vpop.permute.xlu0 %3707
  %3711 = vset.pattern.permute.xlu0 0
  %3712 = vperm.xlu0 %3711, %v3558
  %v3713 = vpop.permute.xlu0 %3712
  %3716 = vset.pattern.permute.xlu0 0
  %3717 = vperm.xlu0 %3716, %v3559
  %v3718 = vpop.permute.xlu0 %3717
  %3721 = vset.pattern.permute.xlu0 0
  %3722 = vperm.xlu0 %3721, %v3560
  %v3723 = vpop.permute.xlu0 %3722
  %3726 = vset.pattern.permute.xlu0 0
  %3727 = vperm.xlu0 %3726, %v3561
  %v3728 = vpop.permute.xlu0 %3727
  %3731 = vset.pattern.permute.xlu0 0
  %3732 = vperm.xlu0 %3731, %v3562
  %v3733 = vpop.permute.xlu0 %3732
  %3736 = vset.pattern.permute.xlu0 0
  %3737 = vperm.xlu0 %3736, %v3563
  %v3738 = vpop.permute.xlu0 %3737
  %3741 = vset.pattern.permute.xlu0 0
  %3742 = vperm.xlu0 %3741, %v3564
  %v3743 = vpop.permute.xlu0 %3742
  %3746 = vset.pattern.permute.xlu0 0
  %3747 = vperm.xlu0 %3746, %v3565
  %v3748 = vpop.permute.xlu0 %3747
  %3751 = vset.pattern.permute.xlu0 0
  %3752 = vperm.xlu0 %3751, %v3566
  %v3753 = vpop.permute.xlu0 %3752
  %3756 = vset.pattern.permute.xlu0 0
  %3757 = vperm.xlu0 %3756, %v3567
  %v3758 = vpop.permute.xlu0 %3757
  %3761 = vset.pattern.permute.xlu0 0
  %3762 = vperm.xlu0 %3761, %v3568
  %v3763 = vpop.permute.xlu0 %3762
  %3766 = vset.pattern.permute.xlu0 0
  %3767 = vperm.xlu0 %3766, %v3569
  %v3768 = vpop.permute.xlu0 %3767
  %3771 = vset.pattern.permute.xlu0 0
  %3772 = vperm.xlu0 %3771, %v3570
  %v3773 = vpop.permute.xlu0 %3772
  %3776 = vset.pattern.permute.xlu0 0
  %3777 = vperm.xlu0 %3776, %v3571
  %v3778 = vpop.permute.xlu0 %3777
  %3781 = vset.pattern.permute.xlu0 0
  %3782 = vperm.xlu0 %3781, %v3572
  %v3783 = vpop.permute.xlu0 %3782
  %3786 = vset.pattern.permute.xlu0 0
  %3787 = vperm.xlu0 %3786, %v3573
  %v3788 = vpop.permute.xlu0 %3787
  %3791 = vset.pattern.permute.xlu0 0
  %3792 = vperm.xlu0 %3791, %v3574
  %v3793 = vpop.permute.xlu0 %3792
  %3796 = vset.pattern.permute.xlu0 0
  %3797 = vperm.xlu0 %3796, %v3575
  %v3798 = vpop.permute.xlu0 %3797
  %3801 = vset.pattern.permute.xlu0 0
  %3802 = vperm.xlu0 %3801, %v3576
  %v3803 = vpop.permute.xlu0 %3802
  %3806 = vset.pattern.permute.xlu0 0
  %3807 = vperm.xlu0 %3806, %v3577
  %v3808 = vpop.permute.xlu0 %3807
  %3811 = vset.pattern.permute.xlu0 0
  %3812 = vperm.xlu0 %3811, %v3578
  %v3813 = vpop.permute.xlu0 %3812
  %3816 = vset.pattern.permute.xlu0 0
  %3817 = vperm.xlu0 %3816, %v3579
  %v3818 = vpop.permute.xlu0 %3817
  %3821 = vset.pattern.permute.xlu0 0
  %3822 = vperm.xlu0 %3821, %v3580
  %v3823 = vpop.permute.xlu0 %3822
  %3826 = vset.pattern.permute.xlu0 0
  %3827 = vperm.xlu0 %3826, %v3581
  %v3828 = vpop.permute.xlu0 %3827
  %3831 = vset.pattern.permute.xlu0 0
  %3832 = vperm.xlu0 %3831, %v3582
  %v3833 = vpop.permute.xlu0 %3832
  %3836 = vset.pattern.permute.xlu0 0
  %3837 = vperm.xlu0 %3836, %v3583
  %v3838 = vpop.permute.xlu0 %3837
  %3841 = vset.pattern.permute.xlu0 0
  %3842 = vperm.xlu0 %3841, %v3584
  %v3843 = vpop.permute.xlu0 %3842
  %3846 = vset.pattern.permute.xlu0 0
  %3847 = vperm.xlu0 %3846, %v3585
  %v3848 = vpop.permute.xlu0 %3847
  %3851 = vset.pattern.permute.xlu0 0
  %3852 = vperm.xlu0 %3851, %v3586
  %v3853 = vpop.permute.xlu0 %3852
  %3856 = vset.pattern.permute.xlu0 0
  %3857 = vperm.xlu0 %3856, %v3587
  %v3858 = vpop.permute.xlu0 %3857
  %3861 = vset.pattern.permute.xlu0 0
  %3862 = vperm.xlu0 %3861, %v3588
  %v3863 = vpop.permute.xlu0 %3862
  %3866 = vset.pattern.permute.xlu0 0
  %3867 = vperm.xlu0 %3866, %v3589
  %v3868 = vpop.permute.xlu0 %3867
  %3871 = vset.pattern.permute.xlu0 0
  %3872 = vperm.xlu0 %3871, %v3590
  %v3873 = vpop.permute.xlu0 %3872
  %3876 = vset.pattern.permute.xlu0 0
  %3877 = vperm.xlu0 %3876, %v3591
  %v3878 = vpop.permute.xlu0 %3877
  %3881 = vset.pattern.permute.xlu0 0
  %3882 = vperm.xlu0 %3881, %v3592
  %v3883 = vpop.permute.xlu0 %3882
  %3886 = vset.pattern.permute.xlu0 0
  %3887 = vperm.xlu0 %3886, %v3593
  %v3888 = vpop.permute.xlu0 %3887
  %3891 = vset.pattern.permute.xlu0 0
  %3892 = vperm.xlu0 %3891, %v3594
  %v3893 = vpop.permute.xlu0 %3892
  %3896 = vset.pattern.permute.xlu0 0
  %3897 = vperm.xlu0 %3896, %v3595
  %v3898 = vpop.permute.xlu0 %3897
  %3901 = vset.pattern.permute.xlu0 0
  %3902 = vperm.xlu0 %3901, %v3596
  %v3903 = vpop.permute.xlu0 %3902
  %3906 = vset.pattern.permute.xlu0 0
  %3907 = vperm.xlu0 %3906, %v3597
  %v3908 = vpop.permute.xlu0 %3907
  %3911 = vset.pattern.permute.xlu0 0
  %3912 = vperm.xlu0 %3911, %v3598
  %v3913 = vpop.permute.xlu0 %3912
  %3916 = vset.pattern.permute.xlu0 0
  %3917 = vperm.xlu0 %3916, %v3599
  %v3918 = vpop.permute.xlu0 %3917
  %v3920 = vmul.f32 %v3471, %v3603
  %v3921 = vmul.f32 %v3472, %v3608
  %v3922 = vmul.f32 %v3473, %v3613
  %v3923 = vmul.f32 %v3474, %v3618
  %v3924 = vmul.f32 %v3475, %v3623
  %v3925 = vmul.f32 %v3476, %v3628
  %v3926 = vmul.f32 %v3477, %v3633
  %v3927 = vmul.f32 %v3478, %v3638
  %v3928 = vmul.f32 %v3479, %v3643
  %v3929 = vmul.f32 %v3480, %v3648
  %v3930 = vmul.f32 %v3481, %v3653
  %v3931 = vmul.f32 %v3482, %v3658
  %v3932 = vmul.f32 %v3483, %v3663
  %v3933 = vmul.f32 %v3484, %v3668
  %v3934 = vmul.f32 %v3485, %v3673
  %v3935 = vmul.f32 %v3486, %v3678
  %v3936 = vmul.f32 %v3487, %v3683
  %v3937 = vmul.f32 %v3488, %v3688
  %v3938 = vmul.f32 %v3489, %v3693
  %v3939 = vmul.f32 %v3490, %v3698
  %v3940 = vmul.f32 %v3491, %v3703
  %v3941 = vmul.f32 %v3492, %v3708
  %v3942 = vmul.f32 %v3493, %v3713
  %v3943 = vmul.f32 %v3494, %v3718
  %v3944 = vmul.f32 %v3495, %v3723
  %v3945 = vmul.f32 %v3496, %v3728
  %v3946 = vmul.f32 %v3497, %v3733
  %v3947 = vmul.f32 %v3498, %v3738
  %v3948 = vmul.f32 %v3499, %v3743
  %v3949 = vmul.f32 %v3500, %v3748
  %v3950 = vmul.f32 %v3501, %v3753
  %v3951 = vmul.f32 %v3502, %v3758
  %v3952 = vmul.f32 %v3503, %v3763
  %v3953 = vmul.f32 %v3504, %v3768
  %v3954 = vmul.f32 %v3505, %v3773
  %v3955 = vmul.f32 %v3506, %v3778
  %v3956 = vmul.f32 %v3507, %v3783
  %v3957 = vmul.f32 %v3508, %v3788
  %v3958 = vmul.f32 %v3509, %v3793
  %v3959 = vmul.f32 %v3510, %v3798
  %v3960 = vmul.f32 %v3511, %v3803
  %v3961 = vmul.f32 %v3512, %v3808
  %v3962 = vmul.f32 %v3513, %v3813
  %v3963 = vmul.f32 %v3514, %v3818
  %v3964 = vmul.f32 %v3515, %v3823
  %v3965 = vmul.f32 %v3516, %v3828
  %v3966 = vmul.f32 %v3517, %v3833
  %v3967 = vmul.f32 %v3518, %v3838
  %v3968 = vmul.f32 %v3519, %v3843
  %v3969 = vmul.f32 %v3520, %v3848
  %v3970 = vmul.f32 %v3521, %v3853
  %v3971 = vmul.f32 %v3522, %v3858
  %v3972 = vmul.f32 %v3523, %v3863
  %v3973 = vmul.f32 %v3524, %v3868
  %v3974 = vmul.f32 %v3525, %v3873
  %v3975 = vmul.f32 %v3526, %v3878
  %v3976 = vmul.f32 %v3527, %v3883
  %v3977 = vmul.f32 %v3528, %v3888
  %v3978 = vmul.f32 %v3529, %v3893
  %v3979 = vmul.f32 %v3530, %v3898
  %v3980 = vmul.f32 %v3531, %v3903
  %v3981 = vmul.f32 %v3532, %v3908
  %v3982 = vmul.f32 %v3533, %v3913
  %v3983 = vmul.f32 %v3534, %v3918
  %s3984 = scalar_lea.vmem %s1, 512
  %v3985 = vld [vmem:[%s3984] sm:$0xff]
  %v3986 = vld [vmem:[%s3984 + $0x8] sm:$0xff]
  %v3987 = vld [vmem:[%s3984 + $0x10] sm:$0xff]
  %v3988 = vld [vmem:[%s3984 + $0x18] sm:$0xff]
  %v3989 = vld [vmem:[%s3984 + $0x20] sm:$0xff]
  %v3990 = vld [vmem:[%s3984 + $0x28] sm:$0xff]
  %v3991 = vld [vmem:[%s3984 + $0x30] sm:$0xff]
  %v3992 = vld [vmem:[%s3984 + $0x38] sm:$0xff]
  %v3993 = vld [vmem:[%s3984 + $0x40] sm:$0xff]
  %v3994 = vld [vmem:[%s3984 + $0x48] sm:$0xff]
  %v3995 = vld [vmem:[%s3984 + $0x50] sm:$0xff]
  %v3996 = vld [vmem:[%s3984 + $0x58] sm:$0xff]
  %v3997 = vld [vmem:[%s3984 + $0x60] sm:$0xff]
  %v3998 = vld [vmem:[%s3984 + $0x68] sm:$0xff]
  %v3999 = vld [vmem:[%s3984 + $0x70] sm:$0xff]
  %v4000 = vld [vmem:[%s3984 + $0x78] sm:$0xff]
  %4001 = vmatpush.msra.mxu0 %v4000
  %4002 = vmatpush.msra.mxu0 %v3999
  %4003 = vmatpush.msra.mxu0 %v3998
  %4004 = vmatpush.msra.mxu0 %v3997
  %4005 = vmatpush.msra.mxu0 %v3996
  %4006 = vmatpush.msra.mxu0 %v3995
  %4007 = vmatpush.msra.mxu0 %v3994
  %4008 = vmatpush.msra.mxu0 %v3993
  %4009 = vmatpush.msra.mxu0 %v3992
  %4010 = vmatpush.msra.mxu0 %v3991
  %4011 = vmatpush.msra.mxu0 %v3990
  %4012 = vmatpush.msra.mxu0 %v3989
  %4013 = vmatpush.msra.mxu0 %v3988
  %4014 = vmatpush.msra.mxu0 %v3987
  %4015 = vmatpush.msra.mxu0 %v3986
  %4016 = vmatpush.msra.mxu0 %v3985
  %4017 = vmatmul.f32.gmra.mxu0 %v3920
  %v4018 = vpop.f32.mrf.mxu0
  %v4019 = vadd.f32 0.0, %v4018
  %4020 = vmatmul.f32.gmra.mxu0 %v3921
  %v4021 = vpop.f32.mrf.mxu0
  %v4022 = vadd.f32 0.0, %v4021
  %4023 = vmatmul.f32.gmra.mxu0 %v3922
  %v4024 = vpop.f32.mrf.mxu0
  %v4025 = vadd.f32 0.0, %v4024
  %4026 = vmatmul.f32.gmra.mxu0 %v3923
  %v4027 = vpop.f32.mrf.mxu0
  %v4028 = vadd.f32 0.0, %v4027
  %4029 = vmatmul.f32.gmra.mxu0 %v3924
  %v4030 = vpop.f32.mrf.mxu0
  %v4031 = vadd.f32 0.0, %v4030
  %4032 = vmatmul.f32.gmra.mxu0 %v3925
  %v4033 = vpop.f32.mrf.mxu0
  %v4034 = vadd.f32 0.0, %v4033
  %4035 = vmatmul.f32.gmra.mxu0 %v3926
  %v4036 = vpop.f32.mrf.mxu0
  %v4037 = vadd.f32 0.0, %v4036
  %4038 = vmatmul.f32.gmra.mxu0 %v3927
  %v4039 = vpop.f32.mrf.mxu0
  %v4040 = vadd.f32 0.0, %v4039
  %4041 = vmatmul.f32.gmra.mxu0 %v3928
  %v4042 = vpop.f32.mrf.mxu0
  %v4043 = vadd.f32 0.0, %v4042
  %4044 = vmatmul.f32.gmra.mxu0 %v3929
  %v4045 = vpop.f32.mrf.mxu0
  %v4046 = vadd.f32 0.0, %v4045
  %4047 = vmatmul.f32.gmra.mxu0 %v3930
  %v4048 = vpop.f32.mrf.mxu0
  %v4049 = vadd.f32 0.0, %v4048
  %4050 = vmatmul.f32.gmra.mxu0 %v3931
  %v4051 = vpop.f32.mrf.mxu0
  %v4052 = vadd.f32 0.0, %v4051
  %4053 = vmatmul.f32.gmra.mxu0 %v3932
  %v4054 = vpop.f32.mrf.mxu0
  %v4055 = vadd.f32 0.0, %v4054
  %4056 = vmatmul.f32.gmra.mxu0 %v3933
  %v4057 = vpop.f32.mrf.mxu0
  %v4058 = vadd.f32 0.0, %v4057
  %4059 = vmatmul.f32.gmra.mxu0 %v3934
  %v4060 = vpop.f32.mrf.mxu0
  %v4061 = vadd.f32 0.0, %v4060
  %4062 = vmatmul.f32.gmra.mxu0 %v3935
  %v4063 = vpop.f32.mrf.mxu0
  %v4064 = vadd.f32 0.0, %v4063
  %4065 = vmatmul.f32.gmra.mxu0 %v3936
  %v4066 = vpop.f32.mrf.mxu0
  %v4067 = vadd.f32 0.0, %v4066
  %4068 = vmatmul.f32.gmra.mxu0 %v3937
  %v4069 = vpop.f32.mrf.mxu0
  %v4070 = vadd.f32 0.0, %v4069
  %4071 = vmatmul.f32.gmra.mxu0 %v3938
  %v4072 = vpop.f32.mrf.mxu0
  %v4073 = vadd.f32 0.0, %v4072
  %4074 = vmatmul.f32.gmra.mxu0 %v3939
  %v4075 = vpop.f32.mrf.mxu0
  %v4076 = vadd.f32 0.0, %v4075
  %4077 = vmatmul.f32.gmra.mxu0 %v3940
  %v4078 = vpop.f32.mrf.mxu0
  %v4079 = vadd.f32 0.0, %v4078
  %4080 = vmatmul.f32.gmra.mxu0 %v3941
  %v4081 = vpop.f32.mrf.mxu0
  %v4082 = vadd.f32 0.0, %v4081
  %4083 = vmatmul.f32.gmra.mxu0 %v3942
  %v4084 = vpop.f32.mrf.mxu0
  %v4085 = vadd.f32 0.0, %v4084
  %4086 = vmatmul.f32.gmra.mxu0 %v3943
  %v4087 = vpop.f32.mrf.mxu0
  %v4088 = vadd.f32 0.0, %v4087
  %4089 = vmatmul.f32.gmra.mxu0 %v3944
  %v4090 = vpop.f32.mrf.mxu0
  %v4091 = vadd.f32 0.0, %v4090
  %4092 = vmatmul.f32.gmra.mxu0 %v3945
  %v4093 = vpop.f32.mrf.mxu0
  %v4094 = vadd.f32 0.0, %v4093
  %4095 = vmatmul.f32.gmra.mxu0 %v3946
  %v4096 = vpop.f32.mrf.mxu0
  %v4097 = vadd.f32 0.0, %v4096
  %4098 = vmatmul.f32.gmra.mxu0 %v3947
  %v4099 = vpop.f32.mrf.mxu0
  %v4100 = vadd.f32 0.0, %v4099
  %4101 = vmatmul.f32.gmra.mxu0 %v3948
  %v4102 = vpop.f32.mrf.mxu0
  %v4103 = vadd.f32 0.0, %v4102
  %4104 = vmatmul.f32.gmra.mxu0 %v3949
  %v4105 = vpop.f32.mrf.mxu0
  %v4106 = vadd.f32 0.0, %v4105
  %4107 = vmatmul.f32.gmra.mxu0 %v3950
  %v4108 = vpop.f32.mrf.mxu0
  %v4109 = vadd.f32 0.0, %v4108
  %4110 = vmatmul.f32.gmra.mxu0 %v3951
  %v4111 = vpop.f32.mrf.mxu0
  %v4112 = vadd.f32 0.0, %v4111
  %4113 = vmatmul.f32.gmra.mxu0 %v3952
  %v4114 = vpop.f32.mrf.mxu0
  %v4115 = vadd.f32 0.0, %v4114
  %4116 = vmatmul.f32.gmra.mxu0 %v3953
  %v4117 = vpop.f32.mrf.mxu0
  %v4118 = vadd.f32 0.0, %v4117
  %4119 = vmatmul.f32.gmra.mxu0 %v3954
  %v4120 = vpop.f32.mrf.mxu0
  %v4121 = vadd.f32 0.0, %v4120
  %4122 = vmatmul.f32.gmra.mxu0 %v3955
  %v4123 = vpop.f32.mrf.mxu0
  %v4124 = vadd.f32 0.0, %v4123
  %4125 = vmatmul.f32.gmra.mxu0 %v3956
  %v4126 = vpop.f32.mrf.mxu0
  %v4127 = vadd.f32 0.0, %v4126
  %4128 = vmatmul.f32.gmra.mxu0 %v3957
  %v4129 = vpop.f32.mrf.mxu0
  %v4130 = vadd.f32 0.0, %v4129
  %4131 = vmatmul.f32.gmra.mxu0 %v3958
  %v4132 = vpop.f32.mrf.mxu0
  %v4133 = vadd.f32 0.0, %v4132
  %4134 = vmatmul.f32.gmra.mxu0 %v3959
  %v4135 = vpop.f32.mrf.mxu0
  %v4136 = vadd.f32 0.0, %v4135
  %4137 = vmatmul.f32.gmra.mxu0 %v3960
  %v4138 = vpop.f32.mrf.mxu0
  %v4139 = vadd.f32 0.0, %v4138
  %4140 = vmatmul.f32.gmra.mxu0 %v3961
  %v4141 = vpop.f32.mrf.mxu0
  %v4142 = vadd.f32 0.0, %v4141
  %4143 = vmatmul.f32.gmra.mxu0 %v3962
  %v4144 = vpop.f32.mrf.mxu0
  %v4145 = vadd.f32 0.0, %v4144
  %4146 = vmatmul.f32.gmra.mxu0 %v3963
  %v4147 = vpop.f32.mrf.mxu0
  %v4148 = vadd.f32 0.0, %v4147
  %4149 = vmatmul.f32.gmra.mxu0 %v3964
  %v4150 = vpop.f32.mrf.mxu0
  %v4151 = vadd.f32 0.0, %v4150
  %4152 = vmatmul.f32.gmra.mxu0 %v3965
  %v4153 = vpop.f32.mrf.mxu0
  %v4154 = vadd.f32 0.0, %v4153
  %4155 = vmatmul.f32.gmra.mxu0 %v3966
  %v4156 = vpop.f32.mrf.mxu0
  %v4157 = vadd.f32 0.0, %v4156
  %4158 = vmatmul.f32.gmra.mxu0 %v3967
  %v4159 = vpop.f32.mrf.mxu0
  %v4160 = vadd.f32 0.0, %v4159
  %4161 = vmatmul.f32.gmra.mxu0 %v3968
  %v4162 = vpop.f32.mrf.mxu0
  %v4163 = vadd.f32 0.0, %v4162
  %4164 = vmatmul.f32.gmra.mxu0 %v3969
  %v4165 = vpop.f32.mrf.mxu0
  %v4166 = vadd.f32 0.0, %v4165
  %4167 = vmatmul.f32.gmra.mxu0 %v3970
  %v4168 = vpop.f32.mrf.mxu0
  %v4169 = vadd.f32 0.0, %v4168
  %4170 = vmatmul.f32.gmra.mxu0 %v3971
  %v4171 = vpop.f32.mrf.mxu0
  %v4172 = vadd.f32 0.0, %v4171
  %4173 = vmatmul.f32.gmra.mxu0 %v3972
  %v4174 = vpop.f32.mrf.mxu0
  %v4175 = vadd.f32 0.0, %v4174
  %4176 = vmatmul.f32.gmra.mxu0 %v3973
  %v4177 = vpop.f32.mrf.mxu0
  %v4178 = vadd.f32 0.0, %v4177
  %4179 = vmatmul.f32.gmra.mxu0 %v3974
  %v4180 = vpop.f32.mrf.mxu0
  %v4181 = vadd.f32 0.0, %v4180
  %4182 = vmatmul.f32.gmra.mxu0 %v3975
  %v4183 = vpop.f32.mrf.mxu0
  %v4184 = vadd.f32 0.0, %v4183
  %4185 = vmatmul.f32.gmra.mxu0 %v3976
  %v4186 = vpop.f32.mrf.mxu0
  %v4187 = vadd.f32 0.0, %v4186
  %4188 = vmatmul.f32.gmra.mxu0 %v3977
  %v4189 = vpop.f32.mrf.mxu0
  %v4190 = vadd.f32 0.0, %v4189
  %4191 = vmatmul.f32.gmra.mxu0 %v3978
  %v4192 = vpop.f32.mrf.mxu0
  %v4193 = vadd.f32 0.0, %v4192
  %4194 = vmatmul.f32.gmra.mxu0 %v3979
  %v4195 = vpop.f32.mrf.mxu0
  %v4196 = vadd.f32 0.0, %v4195
  %4197 = vmatmul.f32.gmra.mxu0 %v3980
  %v4198 = vpop.f32.mrf.mxu0
  %v4199 = vadd.f32 0.0, %v4198
  %4200 = vmatmul.f32.gmra.mxu0 %v3981
  %v4201 = vpop.f32.mrf.mxu0
  %v4202 = vadd.f32 0.0, %v4201
  %4203 = vmatmul.f32.gmra.mxu0 %v3982
  %v4204 = vpop.f32.mrf.mxu0
  %v4205 = vadd.f32 0.0, %v4204
  %4206 = vmatmul.f32.gmra.mxu0 %v3983
  %v4207 = vpop.f32.mrf.mxu0
  %v4208 = vadd.f32 0.0, %v4207
  %4209 = vdwg.mxu0
  %v4210 = vadd.f32 %v3407, %v4019
  %v4211 = vadd.f32 %v3408, %v4022
  %v4212 = vadd.f32 %v3409, %v4025
  %v4213 = vadd.f32 %v3410, %v4028
  %v4214 = vadd.f32 %v3411, %v4031
  %v4215 = vadd.f32 %v3412, %v4034
  %v4216 = vadd.f32 %v3413, %v4037
  %v4217 = vadd.f32 %v3414, %v4040
  %v4218 = vadd.f32 %v3415, %v4043
  %v4219 = vadd.f32 %v3416, %v4046
  %v4220 = vadd.f32 %v3417, %v4049
  %v4221 = vadd.f32 %v3418, %v4052
  %v4222 = vadd.f32 %v3419, %v4055
  %v4223 = vadd.f32 %v3420, %v4058
  %v4224 = vadd.f32 %v3421, %v4061
  %v4225 = vadd.f32 %v3422, %v4064
  %v4226 = vadd.f32 %v3423, %v4067
  %v4227 = vadd.f32 %v3424, %v4070
  %v4228 = vadd.f32 %v3425, %v4073
  %v4229 = vadd.f32 %v3426, %v4076
  %v4230 = vadd.f32 %v3427, %v4079
  %v4231 = vadd.f32 %v3428, %v4082
  %v4232 = vadd.f32 %v3429, %v4085
  %v4233 = vadd.f32 %v3430, %v4088
  %v4234 = vadd.f32 %v3431, %v4091
  %v4235 = vadd.f32 %v3432, %v4094
  %v4236 = vadd.f32 %v3433, %v4097
  %v4237 = vadd.f32 %v3434, %v4100
  %v4238 = vadd.f32 %v3435, %v4103
  %v4239 = vadd.f32 %v3436, %v4106
  %v4240 = vadd.f32 %v3437, %v4109
  %v4241 = vadd.f32 %v3438, %v4112
  %v4242 = vadd.f32 %v3439, %v4115
  %v4243 = vadd.f32 %v3440, %v4118
  %v4244 = vadd.f32 %v3441, %v4121
  %v4245 = vadd.f32 %v3442, %v4124
  %v4246 = vadd.f32 %v3443, %v4127
  %v4247 = vadd.f32 %v3444, %v4130
  %v4248 = vadd.f32 %v3445, %v4133
  %v4249 = vadd.f32 %v3446, %v4136
  %v4250 = vadd.f32 %v3447, %v4139
  %v4251 = vadd.f32 %v3448, %v4142
  %v4252 = vadd.f32 %v3449, %v4145
  %v4253 = vadd.f32 %v3450, %v4148
  %v4254 = vadd.f32 %v3451, %v4151
  %v4255 = vadd.f32 %v3452, %v4154
  %v4256 = vadd.f32 %v3453, %v4157
  %v4257 = vadd.f32 %v3454, %v4160
  %v4258 = vadd.f32 %v3455, %v4163
  %v4259 = vadd.f32 %v3456, %v4166
  %v4260 = vadd.f32 %v3457, %v4169
  %v4261 = vadd.f32 %v3458, %v4172
  %v4262 = vadd.f32 %v3459, %v4175
  %v4263 = vadd.f32 %v3460, %v4178
  %v4264 = vadd.f32 %v3461, %v4181
  %v4265 = vadd.f32 %v3462, %v4184
  %v4266 = vadd.f32 %v3463, %v4187
  %v4267 = vadd.f32 %v3464, %v4190
  %v4268 = vadd.f32 %v3465, %v4193
  %v4269 = vadd.f32 %v3466, %v4196
  %v4270 = vadd.f32 %v3467, %v4199
  %v4271 = vadd.f32 %v3468, %v4202
  %v4272 = vadd.f32 %v3469, %v4205
  %v4273 = vadd.f32 %v3470, %v4208
  %v4274 = vld [vmem:[#allocation2 + $0x19] sm:$0xff]
  %v4275 = vld [vmem:[#allocation2 + $0x21] sm:$0xff]
  %v4276 = vld [vmem:[#allocation2 + $0x29] sm:$0xff]
  %v4277 = vld [vmem:[#allocation2 + $0x31] sm:$0xff]
  %v4278 = vld [vmem:[#allocation2 + $0x39] sm:$0xff]
  %v4279 = vld [vmem:[#allocation2 + $0x41] sm:$0xff]
  %v4280 = vld [vmem:[#allocation2 + $0x49] sm:$0xff]
  %v4281 = vld [vmem:[#allocation2 + $0x51] sm:$0xff]
  %v4282 = vld [vmem:[#allocation2 + $0x59] sm:$0xff]
  %v4283 = vld [vmem:[#allocation2 + $0x61] sm:$0xff]
  %v4284 = vld [vmem:[#allocation2 + $0x69] sm:$0xff]
  %v4285 = vld [vmem:[#allocation2 + $0x71] sm:$0xff]
  %v4286 = vld [vmem:[#allocation2 + $0x79] sm:$0xff]
  %v4287 = vld [vmem:[#allocation2 + $0x81] sm:$0xff]
  %v4288 = vld [vmem:[#allocation2 + $0x89] sm:$0xff]
  %v4289 = vld [vmem:[#allocation2 + $0x91] sm:$0xff]
  %v4290 = vld [vmem:[#allocation2 + $0x99] sm:$0xff]
  %v4291 = vld [vmem:[#allocation2 + $0xa1] sm:$0xff]
  %v4292 = vld [vmem:[#allocation2 + $0xa9] sm:$0xff]
  %v4293 = vld [vmem:[#allocation2 + $0xb1] sm:$0xff]
  %v4294 = vld [vmem:[#allocation2 + $0xb9] sm:$0xff]
  %v4295 = vld [vmem:[#allocation2 + $0xc1] sm:$0xff]
  %v4296 = vld [vmem:[#allocation2 + $0xc9] sm:$0xff]
  %v4297 = vld [vmem:[#allocation2 + $0xd1] sm:$0xff]
  %v4298 = vld [vmem:[#allocation2 + $0xd9] sm:$0xff]
  %v4299 = vld [vmem:[#allocation2 + $0xe1] sm:$0xff]
  %v4300 = vld [vmem:[#allocation2 + $0xe9] sm:$0xff]
  %v4301 = vld [vmem:[#allocation2 + $0xf1] sm:$0xff]
  %v4302 = vld [vmem:[#allocation2 + $0xf9] sm:$0xff]
  %v4303 = vld [vmem:[#allocation2 + $0x101] sm:$0xff]
  %v4304 = vld [vmem:[#allocation2 + $0x109] sm:$0xff]
  %v4305 = vld [vmem:[#allocation2 + $0x111] sm:$0xff]
  %v4306 = vld [vmem:[#allocation2 + $0x119] sm:$0xff]
  %v4307 = vld [vmem:[#allocation2 + $0x121] sm:$0xff]
  %v4308 = vld [vmem:[#allocation2 + $0x129] sm:$0xff]
  %v4309 = vld [vmem:[#allocation2 + $0x131] sm:$0xff]
  %v4310 = vld [vmem:[#allocation2 + $0x139] sm:$0xff]
  %v4311 = vld [vmem:[#allocation2 + $0x141] sm:$0xff]
  %v4312 = vld [vmem:[#allocation2 + $0x149] sm:$0xff]
  %v4313 = vld [vmem:[#allocation2 + $0x151] sm:$0xff]
  %v4314 = vld [vmem:[#allocation2 + $0x159] sm:$0xff]
  %v4315 = vld [vmem:[#allocation2 + $0x161] sm:$0xff]
  %v4316 = vld [vmem:[#allocation2 + $0x169] sm:$0xff]
  %v4317 = vld [vmem:[#allocation2 + $0x171] sm:$0xff]
  %v4318 = vld [vmem:[#allocation2 + $0x179] sm:$0xff]
  %v4319 = vld [vmem:[#allocation2 + $0x181] sm:$0xff]
  %v4320 = vld [vmem:[#allocation2 + $0x189] sm:$0xff]
  %v4321 = vld [vmem:[#allocation2 + $0x191] sm:$0xff]
  %v4322 = vld [vmem:[#allocation2 + $0x199] sm:$0xff]
  %v4323 = vld [vmem:[#allocation2 + $0x1a1] sm:$0xff]
  %v4324 = vld [vmem:[#allocation2 + $0x1a9] sm:$0xff]
  %v4325 = vld [vmem:[#allocation2 + $0x1b1] sm:$0xff]
  %v4326 = vld [vmem:[#allocation2 + $0x1b9] sm:$0xff]
  %v4327 = vld [vmem:[#allocation2 + $0x1c1] sm:$0xff]
  %v4328 = vld [vmem:[#allocation2 + $0x1c9] sm:$0xff]
  %v4329 = vld [vmem:[#allocation2 + $0x1d1] sm:$0xff]
  %v4330 = vld [vmem:[#allocation2 + $0x1d9] sm:$0xff]
  %v4331 = vld [vmem:[#allocation2 + $0x1e1] sm:$0xff]
  %v4332 = vld [vmem:[#allocation2 + $0x1e9] sm:$0xff]
  %v4333 = vld [vmem:[#allocation2 + $0x1f1] sm:$0xff]
  %v4334 = vld [vmem:[#allocation2 + $0x1f9] sm:$0xff]
  %v4335 = vld [vmem:[#allocation2 + $0x201] sm:$0xff]
  %v4336 = vld [vmem:[#allocation2 + $0x209] sm:$0xff]
  %v4337 = vld [vmem:[#allocation2 + $0x211] sm:$0xff]
  %s4338 = scalar_lea.vmem %s3, 2560
  %v4339 = vld [vmem:[%s4338] sm:$0xff]
  %v4340 = vld [vmem:[%s4338 + $0x8] sm:$0xff]
  %v4341 = vld [vmem:[%s4338 + $0x10] sm:$0xff]
  %v4342 = vld [vmem:[%s4338 + $0x18] sm:$0xff]
  %v4343 = vld [vmem:[%s4338 + $0x20] sm:$0xff]
  %v4344 = vld [vmem:[%s4338 + $0x28] sm:$0xff]
  %v4345 = vld [vmem:[%s4338 + $0x30] sm:$0xff]
  %v4346 = vld [vmem:[%s4338 + $0x38] sm:$0xff]
  %v4347 = vld [vmem:[%s4338 + $0x40] sm:$0xff]
  %v4348 = vld [vmem:[%s4338 + $0x48] sm:$0xff]
  %v4349 = vld [vmem:[%s4338 + $0x50] sm:$0xff]
  %v4350 = vld [vmem:[%s4338 + $0x58] sm:$0xff]
  %v4351 = vld [vmem:[%s4338 + $0x60] sm:$0xff]
  %v4352 = vld [vmem:[%s4338 + $0x68] sm:$0xff]
  %v4353 = vld [vmem:[%s4338 + $0x70] sm:$0xff]
  %v4354 = vld [vmem:[%s4338 + $0x78] sm:$0xff]
  %v4355 = vld [vmem:[%s4338 + $0x80] sm:$0xff]
  %v4356 = vld [vmem:[%s4338 + $0x88] sm:$0xff]
  %v4357 = vld [vmem:[%s4338 + $0x90] sm:$0xff]
  %v4358 = vld [vmem:[%s4338 + $0x98] sm:$0xff]
  %v4359 = vld [vmem:[%s4338 + $0xa0] sm:$0xff]
  %v4360 = vld [vmem:[%s4338 + $0xa8] sm:$0xff]
  %v4361 = vld [vmem:[%s4338 + $0xb0] sm:$0xff]
  %v4362 = vld [vmem:[%s4338 + $0xb8] sm:$0xff]
  %v4363 = vld [vmem:[%s4338 + $0xc0] sm:$0xff]
  %v4364 = vld [vmem:[%s4338 + $0xc8] sm:$0xff]
  %v4365 = vld [vmem:[%s4338 + $0xd0] sm:$0xff]
  %v4366 = vld [vmem:[%s4338 + $0xd8] sm:$0xff]
  %v4367 = vld [vmem:[%s4338 + $0xe0] sm:$0xff]
  %v4368 = vld [vmem:[%s4338 + $0xe8] sm:$0xff]
  %v4369 = vld [vmem:[%s4338 + $0xf0] sm:$0xff]
  %v4370 = vld [vmem:[%s4338 + $0xf8] sm:$0xff]
  %v4371 = vld [vmem:[%s4338 + $0x100] sm:$0xff]
  %v4372 = vld [vmem:[%s4338 + $0x108] sm:$0xff]
  %v4373 = vld [vmem:[%s4338 + $0x110] sm:$0xff]
  %v4374 = vld [vmem:[%s4338 + $0x118] sm:$0xff]
  %v4375 = vld [vmem:[%s4338 + $0x120] sm:$0xff]
  %v4376 = vld [vmem:[%s4338 + $0x128] sm:$0xff]
  %v4377 = vld [vmem:[%s4338 + $0x130] sm:$0xff]
  %v4378 = vld [vmem:[%s4338 + $0x138] sm:$0xff]
  %v4379 = vld [vmem:[%s4338 + $0x140] sm:$0xff]
  %v4380 = vld [vmem:[%s4338 + $0x148] sm:$0xff]
  %v4381 = vld [vmem:[%s4338 + $0x150] sm:$0xff]
  %v4382 = vld [vmem:[%s4338 + $0x158] sm:$0xff]
  %v4383 = vld [vmem:[%s4338 + $0x160] sm:$0xff]
  %v4384 = vld [vmem:[%s4338 + $0x168] sm:$0xff]
  %v4385 = vld [vmem:[%s4338 + $0x170] sm:$0xff]
  %v4386 = vld [vmem:[%s4338 + $0x178] sm:$0xff]
  %v4387 = vld [vmem:[%s4338 + $0x180] sm:$0xff]
  %v4388 = vld [vmem:[%s4338 + $0x188] sm:$0xff]
  %v4389 = vld [vmem:[%s4338 + $0x190] sm:$0xff]
  %v4390 = vld [vmem:[%s4338 + $0x198] sm:$0xff]
  %v4391 = vld [vmem:[%s4338 + $0x1a0] sm:$0xff]
  %v4392 = vld [vmem:[%s4338 + $0x1a8] sm:$0xff]
  %v4393 = vld [vmem:[%s4338 + $0x1b0] sm:$0xff]
  %v4394 = vld [vmem:[%s4338 + $0x1b8] sm:$0xff]
  %v4395 = vld [vmem:[%s4338 + $0x1c0] sm:$0xff]
  %v4396 = vld [vmem:[%s4338 + $0x1c8] sm:$0xff]
  %v4397 = vld [vmem:[%s4338 + $0x1d0] sm:$0xff]
  %v4398 = vld [vmem:[%s4338 + $0x1d8] sm:$0xff]
  %v4399 = vld [vmem:[%s4338 + $0x1e0] sm:$0xff]
  %v4400 = vld [vmem:[%s4338 + $0x1e8] sm:$0xff]
  %v4401 = vld [vmem:[%s4338 + $0x1f0] sm:$0xff]
  %v4402 = vld [vmem:[%s4338 + $0x1f8] sm:$0xff]
  %4404 = vset.pattern.permute.xlu0 0
  %4405 = vperm.xlu0 %4404, %v4339
  %v4406 = vpop.permute.xlu0 %4405
  %4409 = vset.pattern.permute.xlu0 0
  %4410 = vperm.xlu0 %4409, %v4340
  %v4411 = vpop.permute.xlu0 %4410
  %4414 = vset.pattern.permute.xlu0 0
  %4415 = vperm.xlu0 %4414, %v4341
  %v4416 = vpop.permute.xlu0 %4415
  %4419 = vset.pattern.permute.xlu0 0
  %4420 = vperm.xlu0 %4419, %v4342
  %v4421 = vpop.permute.xlu0 %4420
  %4424 = vset.pattern.permute.xlu0 0
  %4425 = vperm.xlu0 %4424, %v4343
  %v4426 = vpop.permute.xlu0 %4425
  %4429 = vset.pattern.permute.xlu0 0
  %4430 = vperm.xlu0 %4429, %v4344
  %v4431 = vpop.permute.xlu0 %4430
  %4434 = vset.pattern.permute.xlu0 0
  %4435 = vperm.xlu0 %4434, %v4345
  %v4436 = vpop.permute.xlu0 %4435
  %4439 = vset.pattern.permute.xlu0 0
  %4440 = vperm.xlu0 %4439, %v4346
  %v4441 = vpop.permute.xlu0 %4440
  %4444 = vset.pattern.permute.xlu0 0
  %4445 = vperm.xlu0 %4444, %v4347
  %v4446 = vpop.permute.xlu0 %4445
  %4449 = vset.pattern.permute.xlu0 0
  %4450 = vperm.xlu0 %4449, %v4348
  %v4451 = vpop.permute.xlu0 %4450
  %4454 = vset.pattern.permute.xlu0 0
  %4455 = vperm.xlu0 %4454, %v4349
  %v4456 = vpop.permute.xlu0 %4455
  %4459 = vset.pattern.permute.xlu0 0
  %4460 = vperm.xlu0 %4459, %v4350
  %v4461 = vpop.permute.xlu0 %4460
  %4464 = vset.pattern.permute.xlu0 0
  %4465 = vperm.xlu0 %4464, %v4351
  %v4466 = vpop.permute.xlu0 %4465
  %4469 = vset.pattern.permute.xlu0 0
  %4470 = vperm.xlu0 %4469, %v4352
  %v4471 = vpop.permute.xlu0 %4470
  %4474 = vset.pattern.permute.xlu0 0
  %4475 = vperm.xlu0 %4474, %v4353
  %v4476 = vpop.permute.xlu0 %4475
  %4479 = vset.pattern.permute.xlu0 0
  %4480 = vperm.xlu0 %4479, %v4354
  %v4481 = vpop.permute.xlu0 %4480
  %4484 = vset.pattern.permute.xlu0 0
  %4485 = vperm.xlu0 %4484, %v4355
  %v4486 = vpop.permute.xlu0 %4485
  %4489 = vset.pattern.permute.xlu0 0
  %4490 = vperm.xlu0 %4489, %v4356
  %v4491 = vpop.permute.xlu0 %4490
  %4494 = vset.pattern.permute.xlu0 0
  %4495 = vperm.xlu0 %4494, %v4357
  %v4496 = vpop.permute.xlu0 %4495
  %4499 = vset.pattern.permute.xlu0 0
  %4500 = vperm.xlu0 %4499, %v4358
  %v4501 = vpop.permute.xlu0 %4500
  %4504 = vset.pattern.permute.xlu0 0
  %4505 = vperm.xlu0 %4504, %v4359
  %v4506 = vpop.permute.xlu0 %4505
  %4509 = vset.pattern.permute.xlu0 0
  %4510 = vperm.xlu0 %4509, %v4360
  %v4511 = vpop.permute.xlu0 %4510
  %4514 = vset.pattern.permute.xlu0 0
  %4515 = vperm.xlu0 %4514, %v4361
  %v4516 = vpop.permute.xlu0 %4515
  %4519 = vset.pattern.permute.xlu0 0
  %4520 = vperm.xlu0 %4519, %v4362
  %v4521 = vpop.permute.xlu0 %4520
  %4524 = vset.pattern.permute.xlu0 0
  %4525 = vperm.xlu0 %4524, %v4363
  %v4526 = vpop.permute.xlu0 %4525
  %4529 = vset.pattern.permute.xlu0 0
  %4530 = vperm.xlu0 %4529, %v4364
  %v4531 = vpop.permute.xlu0 %4530
  %4534 = vset.pattern.permute.xlu0 0
  %4535 = vperm.xlu0 %4534, %v4365
  %v4536 = vpop.permute.xlu0 %4535
  %4539 = vset.pattern.permute.xlu0 0
  %4540 = vperm.xlu0 %4539, %v4366
  %v4541 = vpop.permute.xlu0 %4540
  %4544 = vset.pattern.permute.xlu0 0
  %4545 = vperm.xlu0 %4544, %v4367
  %v4546 = vpop.permute.xlu0 %4545
  %4549 = vset.pattern.permute.xlu0 0
  %4550 = vperm.xlu0 %4549, %v4368
  %v4551 = vpop.permute.xlu0 %4550
  %4554 = vset.pattern.permute.xlu0 0
  %4555 = vperm.xlu0 %4554, %v4369
  %v4556 = vpop.permute.xlu0 %4555
  %4559 = vset.pattern.permute.xlu0 0
  %4560 = vperm.xlu0 %4559, %v4370
  %v4561 = vpop.permute.xlu0 %4560
  %4564 = vset.pattern.permute.xlu0 0
  %4565 = vperm.xlu0 %4564, %v4371
  %v4566 = vpop.permute.xlu0 %4565
  %4569 = vset.pattern.permute.xlu0 0
  %4570 = vperm.xlu0 %4569, %v4372
  %v4571 = vpop.permute.xlu0 %4570
  %4574 = vset.pattern.permute.xlu0 0
  %4575 = vperm.xlu0 %4574, %v4373
  %v4576 = vpop.permute.xlu0 %4575
  %4579 = vset.pattern.permute.xlu0 0
  %4580 = vperm.xlu0 %4579, %v4374
  %v4581 = vpop.permute.xlu0 %4580
  %4584 = vset.pattern.permute.xlu0 0
  %4585 = vperm.xlu0 %4584, %v4375
  %v4586 = vpop.permute.xlu0 %4585
  %4589 = vset.pattern.permute.xlu0 0
  %4590 = vperm.xlu0 %4589, %v4376
  %v4591 = vpop.permute.xlu0 %4590
  %4594 = vset.pattern.permute.xlu0 0
  %4595 = vperm.xlu0 %4594, %v4377
  %v4596 = vpop.permute.xlu0 %4595
  %4599 = vset.pattern.permute.xlu0 0
  %4600 = vperm.xlu0 %4599, %v4378
  %v4601 = vpop.permute.xlu0 %4600
  %4604 = vset.pattern.permute.xlu0 0
  %4605 = vperm.xlu0 %4604, %v4379
  %v4606 = vpop.permute.xlu0 %4605
  %4609 = vset.pattern.permute.xlu0 0
  %4610 = vperm.xlu0 %4609, %v4380
  %v4611 = vpop.permute.xlu0 %4610
  %4614 = vset.pattern.permute.xlu0 0
  %4615 = vperm.xlu0 %4614, %v4381
  %v4616 = vpop.permute.xlu0 %4615
  %4619 = vset.pattern.permute.xlu0 0
  %4620 = vperm.xlu0 %4619, %v4382
  %v4621 = vpop.permute.xlu0 %4620
  %4624 = vset.pattern.permute.xlu0 0
  %4625 = vperm.xlu0 %4624, %v4383
  %v4626 = vpop.permute.xlu0 %4625
  %4629 = vset.pattern.permute.xlu0 0
  %4630 = vperm.xlu0 %4629, %v4384
  %v4631 = vpop.permute.xlu0 %4630
  %4634 = vset.pattern.permute.xlu0 0
  %4635 = vperm.xlu0 %4634, %v4385
  %v4636 = vpop.permute.xlu0 %4635
  %4639 = vset.pattern.permute.xlu0 0
  %4640 = vperm.xlu0 %4639, %v4386
  %v4641 = vpop.permute.xlu0 %4640
  %4644 = vset.pattern.permute.xlu0 0
  %4645 = vperm.xlu0 %4644, %v4387
  %v4646 = vpop.permute.xlu0 %4645
  %4649 = vset.pattern.permute.xlu0 0
  %4650 = vperm.xlu0 %4649, %v4388
  %v4651 = vpop.permute.xlu0 %4650
  %4654 = vset.pattern.permute.xlu0 0
  %4655 = vperm.xlu0 %4654, %v4389
  %v4656 = vpop.permute.xlu0 %4655
  %4659 = vset.pattern.permute.xlu0 0
  %4660 = vperm.xlu0 %4659, %v4390
  %v4661 = vpop.permute.xlu0 %4660
  %4664 = vset.pattern.permute.xlu0 0
  %4665 = vperm.xlu0 %4664, %v4391
  %v4666 = vpop.permute.xlu0 %4665
  %4669 = vset.pattern.permute.xlu0 0
  %4670 = vperm.xlu0 %4669, %v4392
  %v4671 = vpop.permute.xlu0 %4670
  %4674 = vset.pattern.permute.xlu0 0
  %4675 = vperm.xlu0 %4674, %v4393
  %v4676 = vpop.permute.xlu0 %4675
  %4679 = vset.pattern.permute.xlu0 0
  %4680 = vperm.xlu0 %4679, %v4394
  %v4681 = vpop.permute.xlu0 %4680
  %4684 = vset.pattern.permute.xlu0 0
  %4685 = vperm.xlu0 %4684, %v4395
  %v4686 = vpop.permute.xlu0 %4685
  %4689 = vset.pattern.permute.xlu0 0
  %4690 = vperm.xlu0 %4689, %v4396
  %v4691 = vpop.permute.xlu0 %4690
  %4694 = vset.pattern.permute.xlu0 0
  %4695 = vperm.xlu0 %4694, %v4397
  %v4696 = vpop.permute.xlu0 %4695
  %4699 = vset.pattern.permute.xlu0 0
  %4700 = vperm.xlu0 %4699, %v4398
  %v4701 = vpop.permute.xlu0 %4700
  %4704 = vset.pattern.permute.xlu0 0
  %4705 = vperm.xlu0 %4704, %v4399
  %v4706 = vpop.permute.xlu0 %4705
  %4709 = vset.pattern.permute.xlu0 0
  %4710 = vperm.xlu0 %4709, %v4400
  %v4711 = vpop.permute.xlu0 %4710
  %4714 = vset.pattern.permute.xlu0 0
  %4715 = vperm.xlu0 %4714, %v4401
  %v4716 = vpop.permute.xlu0 %4715
  %4719 = vset.pattern.permute.xlu0 0
  %4720 = vperm.xlu0 %4719, %v4402
  %v4721 = vpop.permute.xlu0 %4720
  %v4723 = vmul.f32 %v4274, %v4406
  %v4724 = vmul.f32 %v4275, %v4411
  %v4725 = vmul.f32 %v4276, %v4416
  %v4726 = vmul.f32 %v4277, %v4421
  %v4727 = vmul.f32 %v4278, %v4426
  %v4728 = vmul.f32 %v4279, %v4431
  %v4729 = vmul.f32 %v4280, %v4436
  %v4730 = vmul.f32 %v4281, %v4441
  %v4731 = vmul.f32 %v4282, %v4446
  %v4732 = vmul.f32 %v4283, %v4451
  %v4733 = vmul.f32 %v4284, %v4456
  %v4734 = vmul.f32 %v4285, %v4461
  %v4735 = vmul.f32 %v4286, %v4466
  %v4736 = vmul.f32 %v4287, %v4471
  %v4737 = vmul.f32 %v4288, %v4476
  %v4738 = vmul.f32 %v4289, %v4481
  %v4739 = vmul.f32 %v4290, %v4486
  %v4740 = vmul.f32 %v4291, %v4491
  %v4741 = vmul.f32 %v4292, %v4496
  %v4742 = vmul.f32 %v4293, %v4501
  %v4743 = vmul.f32 %v4294, %v4506
  %v4744 = vmul.f32 %v4295, %v4511
  %v4745 = vmul.f32 %v4296, %v4516
  %v4746 = vmul.f32 %v4297, %v4521
  %v4747 = vmul.f32 %v4298, %v4526
  %v4748 = vmul.f32 %v4299, %v4531
  %v4749 = vmul.f32 %v4300, %v4536
  %v4750 = vmul.f32 %v4301, %v4541
  %v4751 = vmul.f32 %v4302, %v4546
  %v4752 = vmul.f32 %v4303, %v4551
  %v4753 = vmul.f32 %v4304, %v4556
  %v4754 = vmul.f32 %v4305, %v4561
  %v4755 = vmul.f32 %v4306, %v4566
  %v4756 = vmul.f32 %v4307, %v4571
  %v4757 = vmul.f32 %v4308, %v4576
  %v4758 = vmul.f32 %v4309, %v4581
  %v4759 = vmul.f32 %v4310, %v4586
  %v4760 = vmul.f32 %v4311, %v4591
  %v4761 = vmul.f32 %v4312, %v4596
  %v4762 = vmul.f32 %v4313, %v4601
  %v4763 = vmul.f32 %v4314, %v4606
  %v4764 = vmul.f32 %v4315, %v4611
  %v4765 = vmul.f32 %v4316, %v4616
  %v4766 = vmul.f32 %v4317, %v4621
  %v4767 = vmul.f32 %v4318, %v4626
  %v4768 = vmul.f32 %v4319, %v4631
  %v4769 = vmul.f32 %v4320, %v4636
  %v4770 = vmul.f32 %v4321, %v4641
  %v4771 = vmul.f32 %v4322, %v4646
  %v4772 = vmul.f32 %v4323, %v4651
  %v4773 = vmul.f32 %v4324, %v4656
  %v4774 = vmul.f32 %v4325, %v4661
  %v4775 = vmul.f32 %v4326, %v4666
  %v4776 = vmul.f32 %v4327, %v4671
  %v4777 = vmul.f32 %v4328, %v4676
  %v4778 = vmul.f32 %v4329, %v4681
  %v4779 = vmul.f32 %v4330, %v4686
  %v4780 = vmul.f32 %v4331, %v4691
  %v4781 = vmul.f32 %v4332, %v4696
  %v4782 = vmul.f32 %v4333, %v4701
  %v4783 = vmul.f32 %v4334, %v4706
  %v4784 = vmul.f32 %v4335, %v4711
  %v4785 = vmul.f32 %v4336, %v4716
  %v4786 = vmul.f32 %v4337, %v4721
  %s4787 = scalar_lea.vmem %s1, 640
  %v4788 = vld [vmem:[%s4787] sm:$0xff]
  %v4789 = vld [vmem:[%s4787 + $0x8] sm:$0xff]
  %v4790 = vld [vmem:[%s4787 + $0x10] sm:$0xff]
  %v4791 = vld [vmem:[%s4787 + $0x18] sm:$0xff]
  %v4792 = vld [vmem:[%s4787 + $0x20] sm:$0xff]
  %v4793 = vld [vmem:[%s4787 + $0x28] sm:$0xff]
  %v4794 = vld [vmem:[%s4787 + $0x30] sm:$0xff]
  %v4795 = vld [vmem:[%s4787 + $0x38] sm:$0xff]
  %v4796 = vld [vmem:[%s4787 + $0x40] sm:$0xff]
  %v4797 = vld [vmem:[%s4787 + $0x48] sm:$0xff]
  %v4798 = vld [vmem:[%s4787 + $0x50] sm:$0xff]
  %v4799 = vld [vmem:[%s4787 + $0x58] sm:$0xff]
  %v4800 = vld [vmem:[%s4787 + $0x60] sm:$0xff]
  %v4801 = vld [vmem:[%s4787 + $0x68] sm:$0xff]
  %v4802 = vld [vmem:[%s4787 + $0x70] sm:$0xff]
  %v4803 = vld [vmem:[%s4787 + $0x78] sm:$0xff]
  %4804 = vmatpush.msra.mxu0 %v4803
  %4805 = vmatpush.msra.mxu0 %v4802
  %4806 = vmatpush.msra.mxu0 %v4801
  %4807 = vmatpush.msra.mxu0 %v4800
  %4808 = vmatpush.msra.mxu0 %v4799
  %4809 = vmatpush.msra.mxu0 %v4798
  %4810 = vmatpush.msra.mxu0 %v4797
  %4811 = vmatpush.msra.mxu0 %v4796
  %4812 = vmatpush.msra.mxu0 %v4795
  %4813 = vmatpush.msra.mxu0 %v4794
  %4814 = vmatpush.msra.mxu0 %v4793
  %4815 = vmatpush.msra.mxu0 %v4792
  %4816 = vmatpush.msra.mxu0 %v4791
  %4817 = vmatpush.msra.mxu0 %v4790
  %4818 = vmatpush.msra.mxu0 %v4789
  %4819 = vmatpush.msra.mxu0 %v4788
  %4820 = vmatmul.f32.gmra.mxu0 %v4723
  %v4821 = vpop.f32.mrf.mxu0
  %v4822 = vadd.f32 0.0, %v4821
  %4823 = vmatmul.f32.gmra.mxu0 %v4724
  %v4824 = vpop.f32.mrf.mxu0
  %v4825 = vadd.f32 0.0, %v4824
  %4826 = vmatmul.f32.gmra.mxu0 %v4725
  %v4827 = vpop.f32.mrf.mxu0
  %v4828 = vadd.f32 0.0, %v4827
  %4829 = vmatmul.f32.gmra.mxu0 %v4726
  %v4830 = vpop.f32.mrf.mxu0
  %v4831 = vadd.f32 0.0, %v4830
  %4832 = vmatmul.f32.gmra.mxu0 %v4727
  %v4833 = vpop.f32.mrf.mxu0
  %v4834 = vadd.f32 0.0, %v4833
  %4835 = vmatmul.f32.gmra.mxu0 %v4728
  %v4836 = vpop.f32.mrf.mxu0
  %v4837 = vadd.f32 0.0, %v4836
  %4838 = vmatmul.f32.gmra.mxu0 %v4729
  %v4839 = vpop.f32.mrf.mxu0
  %v4840 = vadd.f32 0.0, %v4839
  %4841 = vmatmul.f32.gmra.mxu0 %v4730
  %v4842 = vpop.f32.mrf.mxu0
  %v4843 = vadd.f32 0.0, %v4842
  %4844 = vmatmul.f32.gmra.mxu0 %v4731
  %v4845 = vpop.f32.mrf.mxu0
  %v4846 = vadd.f32 0.0, %v4845
  %4847 = vmatmul.f32.gmra.mxu0 %v4732
  %v4848 = vpop.f32.mrf.mxu0
  %v4849 = vadd.f32 0.0, %v4848
  %4850 = vmatmul.f32.gmra.mxu0 %v4733
  %v4851 = vpop.f32.mrf.mxu0
  %v4852 = vadd.f32 0.0, %v4851
  %4853 = vmatmul.f32.gmra.mxu0 %v4734
  %v4854 = vpop.f32.mrf.mxu0
  %v4855 = vadd.f32 0.0, %v4854
  %4856 = vmatmul.f32.gmra.mxu0 %v4735
  %v4857 = vpop.f32.mrf.mxu0
  %v4858 = vadd.f32 0.0, %v4857
  %4859 = vmatmul.f32.gmra.mxu0 %v4736
  %v4860 = vpop.f32.mrf.mxu0
  %v4861 = vadd.f32 0.0, %v4860
  %4862 = vmatmul.f32.gmra.mxu0 %v4737
  %v4863 = vpop.f32.mrf.mxu0
  %v4864 = vadd.f32 0.0, %v4863
  %4865 = vmatmul.f32.gmra.mxu0 %v4738
  %v4866 = vpop.f32.mrf.mxu0
  %v4867 = vadd.f32 0.0, %v4866
  %4868 = vmatmul.f32.gmra.mxu0 %v4739
  %v4869 = vpop.f32.mrf.mxu0
  %v4870 = vadd.f32 0.0, %v4869
  %4871 = vmatmul.f32.gmra.mxu0 %v4740
  %v4872 = vpop.f32.mrf.mxu0
  %v4873 = vadd.f32 0.0, %v4872
  %4874 = vmatmul.f32.gmra.mxu0 %v4741
  %v4875 = vpop.f32.mrf.mxu0
  %v4876 = vadd.f32 0.0, %v4875
  %4877 = vmatmul.f32.gmra.mxu0 %v4742
  %v4878 = vpop.f32.mrf.mxu0
  %v4879 = vadd.f32 0.0, %v4878
  %4880 = vmatmul.f32.gmra.mxu0 %v4743
  %v4881 = vpop.f32.mrf.mxu0
  %v4882 = vadd.f32 0.0, %v4881
  %4883 = vmatmul.f32.gmra.mxu0 %v4744
  %v4884 = vpop.f32.mrf.mxu0
  %v4885 = vadd.f32 0.0, %v4884
  %4886 = vmatmul.f32.gmra.mxu0 %v4745
  %v4887 = vpop.f32.mrf.mxu0
  %v4888 = vadd.f32 0.0, %v4887
  %4889 = vmatmul.f32.gmra.mxu0 %v4746
  %v4890 = vpop.f32.mrf.mxu0
  %v4891 = vadd.f32 0.0, %v4890
  %4892 = vmatmul.f32.gmra.mxu0 %v4747
  %v4893 = vpop.f32.mrf.mxu0
  %v4894 = vadd.f32 0.0, %v4893
  %4895 = vmatmul.f32.gmra.mxu0 %v4748
  %v4896 = vpop.f32.mrf.mxu0
  %v4897 = vadd.f32 0.0, %v4896
  %4898 = vmatmul.f32.gmra.mxu0 %v4749
  %v4899 = vpop.f32.mrf.mxu0
  %v4900 = vadd.f32 0.0, %v4899
  %4901 = vmatmul.f32.gmra.mxu0 %v4750
  %v4902 = vpop.f32.mrf.mxu0
  %v4903 = vadd.f32 0.0, %v4902
  %4904 = vmatmul.f32.gmra.mxu0 %v4751
  %v4905 = vpop.f32.mrf.mxu0
  %v4906 = vadd.f32 0.0, %v4905
  %4907 = vmatmul.f32.gmra.mxu0 %v4752
  %v4908 = vpop.f32.mrf.mxu0
  %v4909 = vadd.f32 0.0, %v4908
  %4910 = vmatmul.f32.gmra.mxu0 %v4753
  %v4911 = vpop.f32.mrf.mxu0
  %v4912 = vadd.f32 0.0, %v4911
  %4913 = vmatmul.f32.gmra.mxu0 %v4754
  %v4914 = vpop.f32.mrf.mxu0
  %v4915 = vadd.f32 0.0, %v4914
  %4916 = vmatmul.f32.gmra.mxu0 %v4755
  %v4917 = vpop.f32.mrf.mxu0
  %v4918 = vadd.f32 0.0, %v4917
  %4919 = vmatmul.f32.gmra.mxu0 %v4756
  %v4920 = vpop.f32.mrf.mxu0
  %v4921 = vadd.f32 0.0, %v4920
  %4922 = vmatmul.f32.gmra.mxu0 %v4757
  %v4923 = vpop.f32.mrf.mxu0
  %v4924 = vadd.f32 0.0, %v4923
  %4925 = vmatmul.f32.gmra.mxu0 %v4758
  %v4926 = vpop.f32.mrf.mxu0
  %v4927 = vadd.f32 0.0, %v4926
  %4928 = vmatmul.f32.gmra.mxu0 %v4759
  %v4929 = vpop.f32.mrf.mxu0
  %v4930 = vadd.f32 0.0, %v4929
  %4931 = vmatmul.f32.gmra.mxu0 %v4760
  %v4932 = vpop.f32.mrf.mxu0
  %v4933 = vadd.f32 0.0, %v4932
  %4934 = vmatmul.f32.gmra.mxu0 %v4761
  %v4935 = vpop.f32.mrf.mxu0
  %v4936 = vadd.f32 0.0, %v4935
  %4937 = vmatmul.f32.gmra.mxu0 %v4762
  %v4938 = vpop.f32.mrf.mxu0
  %v4939 = vadd.f32 0.0, %v4938
  %4940 = vmatmul.f32.gmra.mxu0 %v4763
  %v4941 = vpop.f32.mrf.mxu0
  %v4942 = vadd.f32 0.0, %v4941
  %4943 = vmatmul.f32.gmra.mxu0 %v4764
  %v4944 = vpop.f32.mrf.mxu0
  %v4945 = vadd.f32 0.0, %v4944
  %4946 = vmatmul.f32.gmra.mxu0 %v4765
  %v4947 = vpop.f32.mrf.mxu0
  %v4948 = vadd.f32 0.0, %v4947
  %4949 = vmatmul.f32.gmra.mxu0 %v4766
  %v4950 = vpop.f32.mrf.mxu0
  %v4951 = vadd.f32 0.0, %v4950
  %4952 = vmatmul.f32.gmra.mxu0 %v4767
  %v4953 = vpop.f32.mrf.mxu0
  %v4954 = vadd.f32 0.0, %v4953
  %4955 = vmatmul.f32.gmra.mxu0 %v4768
  %v4956 = vpop.f32.mrf.mxu0
  %v4957 = vadd.f32 0.0, %v4956
  %4958 = vmatmul.f32.gmra.mxu0 %v4769
  %v4959 = vpop.f32.mrf.mxu0
  %v4960 = vadd.f32 0.0, %v4959
  %4961 = vmatmul.f32.gmra.mxu0 %v4770
  %v4962 = vpop.f32.mrf.mxu0
  %v4963 = vadd.f32 0.0, %v4962
  %4964 = vmatmul.f32.gmra.mxu0 %v4771
  %v4965 = vpop.f32.mrf.mxu0
  %v4966 = vadd.f32 0.0, %v4965
  %4967 = vmatmul.f32.gmra.mxu0 %v4772
  %v4968 = vpop.f32.mrf.mxu0
  %v4969 = vadd.f32 0.0, %v4968
  %4970 = vmatmul.f32.gmra.mxu0 %v4773
  %v4971 = vpop.f32.mrf.mxu0
  %v4972 = vadd.f32 0.0, %v4971
  %4973 = vmatmul.f32.gmra.mxu0 %v4774
  %v4974 = vpop.f32.mrf.mxu0
  %v4975 = vadd.f32 0.0, %v4974
  %4976 = vmatmul.f32.gmra.mxu0 %v4775
  %v4977 = vpop.f32.mrf.mxu0
  %v4978 = vadd.f32 0.0, %v4977
  %4979 = vmatmul.f32.gmra.mxu0 %v4776
  %v4980 = vpop.f32.mrf.mxu0
  %v4981 = vadd.f32 0.0, %v4980
  %4982 = vmatmul.f32.gmra.mxu0 %v4777
  %v4983 = vpop.f32.mrf.mxu0
  %v4984 = vadd.f32 0.0, %v4983
  %4985 = vmatmul.f32.gmra.mxu0 %v4778
  %v4986 = vpop.f32.mrf.mxu0
  %v4987 = vadd.f32 0.0, %v4986
  %4988 = vmatmul.f32.gmra.mxu0 %v4779
  %v4989 = vpop.f32.mrf.mxu0
  %v4990 = vadd.f32 0.0, %v4989
  %4991 = vmatmul.f32.gmra.mxu0 %v4780
  %v4992 = vpop.f32.mrf.mxu0
  %v4993 = vadd.f32 0.0, %v4992
  %4994 = vmatmul.f32.gmra.mxu0 %v4781
  %v4995 = vpop.f32.mrf.mxu0
  %v4996 = vadd.f32 0.0, %v4995
  %4997 = vmatmul.f32.gmra.mxu0 %v4782
  %v4998 = vpop.f32.mrf.mxu0
  %v4999 = vadd.f32 0.0, %v4998
  %5000 = vmatmul.f32.gmra.mxu0 %v4783
  %v5001 = vpop.f32.mrf.mxu0
  %v5002 = vadd.f32 0.0, %v5001
  %5003 = vmatmul.f32.gmra.mxu0 %v4784
  %v5004 = vpop.f32.mrf.mxu0
  %v5005 = vadd.f32 0.0, %v5004
  %5006 = vmatmul.f32.gmra.mxu0 %v4785
  %v5007 = vpop.f32.mrf.mxu0
  %v5008 = vadd.f32 0.0, %v5007
  %5009 = vmatmul.f32.gmra.mxu0 %v4786
  %v5010 = vpop.f32.mrf.mxu0
  %v5011 = vadd.f32 0.0, %v5010
  %5012 = vdwg.mxu0
  %v5013 = vadd.f32 %v4210, %v4822
  %v5014 = vadd.f32 %v4211, %v4825
  %v5015 = vadd.f32 %v4212, %v4828
  %v5016 = vadd.f32 %v4213, %v4831
  %v5017 = vadd.f32 %v4214, %v4834
  %v5018 = vadd.f32 %v4215, %v4837
  %v5019 = vadd.f32 %v4216, %v4840
  %v5020 = vadd.f32 %v4217, %v4843
  %v5021 = vadd.f32 %v4218, %v4846
  %v5022 = vadd.f32 %v4219, %v4849
  %v5023 = vadd.f32 %v4220, %v4852
  %v5024 = vadd.f32 %v4221, %v4855
  %v5025 = vadd.f32 %v4222, %v4858
  %v5026 = vadd.f32 %v4223, %v4861
  %v5027 = vadd.f32 %v4224, %v4864
  %v5028 = vadd.f32 %v4225, %v4867
  %v5029 = vadd.f32 %v4226, %v4870
  %v5030 = vadd.f32 %v4227, %v4873
  %v5031 = vadd.f32 %v4228, %v4876
  %v5032 = vadd.f32 %v4229, %v4879
  %v5033 = vadd.f32 %v4230, %v4882
  %v5034 = vadd.f32 %v4231, %v4885
  %v5035 = vadd.f32 %v4232, %v4888
  %v5036 = vadd.f32 %v4233, %v4891
  %v5037 = vadd.f32 %v4234, %v4894
  %v5038 = vadd.f32 %v4235, %v4897
  %v5039 = vadd.f32 %v4236, %v4900
  %v5040 = vadd.f32 %v4237, %v4903
  %v5041 = vadd.f32 %v4238, %v4906
  %v5042 = vadd.f32 %v4239, %v4909
  %v5043 = vadd.f32 %v4240, %v4912
  %v5044 = vadd.f32 %v4241, %v4915
  %v5045 = vadd.f32 %v4242, %v4918
  %v5046 = vadd.f32 %v4243, %v4921
  %v5047 = vadd.f32 %v4244, %v4924
  %v5048 = vadd.f32 %v4245, %v4927
  %v5049 = vadd.f32 %v4246, %v4930
  %v5050 = vadd.f32 %v4247, %v4933
  %v5051 = vadd.f32 %v4248, %v4936
  %v5052 = vadd.f32 %v4249, %v4939
  %v5053 = vadd.f32 %v4250, %v4942
  %v5054 = vadd.f32 %v4251, %v4945
  %v5055 = vadd.f32 %v4252, %v4948
  %v5056 = vadd.f32 %v4253, %v4951
  %v5057 = vadd.f32 %v4254, %v4954
  %v5058 = vadd.f32 %v4255, %v4957
  %v5059 = vadd.f32 %v4256, %v4960
  %v5060 = vadd.f32 %v4257, %v4963
  %v5061 = vadd.f32 %v4258, %v4966
  %v5062 = vadd.f32 %v4259, %v4969
  %v5063 = vadd.f32 %v4260, %v4972
  %v5064 = vadd.f32 %v4261, %v4975
  %v5065 = vadd.f32 %v4262, %v4978
  %v5066 = vadd.f32 %v4263, %v4981
  %v5067 = vadd.f32 %v4264, %v4984
  %v5068 = vadd.f32 %v4265, %v4987
  %v5069 = vadd.f32 %v4266, %v4990
  %v5070 = vadd.f32 %v4267, %v4993
  %v5071 = vadd.f32 %v4268, %v4996
  %v5072 = vadd.f32 %v4269, %v4999
  %v5073 = vadd.f32 %v4270, %v5002
  %v5074 = vadd.f32 %v4271, %v5005
  %v5075 = vadd.f32 %v4272, %v5008
  %v5076 = vadd.f32 %v4273, %v5011
  %v5077 = vld [vmem:[#allocation2 + $0x27] sm:$0xff]
  %v5078 = vld [vmem:[#allocation2 + $0x2f] sm:$0xff]
  %v5079 = vld [vmem:[#allocation2 + $0x37] sm:$0xff]
  %v5080 = vld [vmem:[#allocation2 + $0x3f] sm:$0xff]
  %v5081 = vld [vmem:[#allocation2 + $0x47] sm:$0xff]
  %v5082 = vld [vmem:[#allocation2 + $0x4f] sm:$0xff]
  %v5083 = vld [vmem:[#allocation2 + $0x57] sm:$0xff]
  %v5084 = vld [vmem:[#allocation2 + $0x5f] sm:$0xff]
  %v5085 = vld [vmem:[#allocation2 + $0x67] sm:$0xff]
  %v5086 = vld [vmem:[#allocation2 + $0x6f] sm:$0xff]
  %v5087 = vld [vmem:[#allocation2 + $0x77] sm:$0xff]
  %v5088 = vld [vmem:[#allocation2 + $0x7f] sm:$0xff]
  %v5089 = vld [vmem:[#allocation2 + $0x87] sm:$0xff]
  %v5090 = vld [vmem:[#allocation2 + $0x8f] sm:$0xff]
  %v5091 = vld [vmem:[#allocation2 + $0x97] sm:$0xff]
  %v5092 = vld [vmem:[#allocation2 + $0x9f] sm:$0xff]
  %v5093 = vld [vmem:[#allocation2 + $0xa7] sm:$0xff]
  %v5094 = vld [vmem:[#allocation2 + $0xaf] sm:$0xff]
  %v5095 = vld [vmem:[#allocation2 + $0xb7] sm:$0xff]
  %v5096 = vld [vmem:[#allocation2 + $0xbf] sm:$0xff]
  %v5097 = vld [vmem:[#allocation2 + $0xc7] sm:$0xff]
  %v5098 = vld [vmem:[#allocation2 + $0xcf] sm:$0xff]
  %v5099 = vld [vmem:[#allocation2 + $0xd7] sm:$0xff]
  %v5100 = vld [vmem:[#allocation2 + $0xdf] sm:$0xff]
  %v5101 = vld [vmem:[#allocation2 + $0xe7] sm:$0xff]
  %v5102 = vld [vmem:[#allocation2 + $0xef] sm:$0xff]
  %v5103 = vld [vmem:[#allocation2 + $0xf7] sm:$0xff]
  %v5104 = vld [vmem:[#allocation2 + $0xff] sm:$0xff]
  %v5105 = vld [vmem:[#allocation2 + $0x107] sm:$0xff]
  %v5106 = vld [vmem:[#allocation2 + $0x10f] sm:$0xff]
  %v5107 = vld [vmem:[#allocation2 + $0x117] sm:$0xff]
  %v5108 = vld [vmem:[#allocation2 + $0x11f] sm:$0xff]
  %v5109 = vld [vmem:[#allocation2 + $0x127] sm:$0xff]
  %v5110 = vld [vmem:[#allocation2 + $0x12f] sm:$0xff]
  %v5111 = vld [vmem:[#allocation2 + $0x137] sm:$0xff]
  %v5112 = vld [vmem:[#allocation2 + $0x13f] sm:$0xff]
  %v5113 = vld [vmem:[#allocation2 + $0x147] sm:$0xff]
  %v5114 = vld [vmem:[#allocation2 + $0x14f] sm:$0xff]
  %v5115 = vld [vmem:[#allocation2 + $0x157] sm:$0xff]
  %v5116 = vld [vmem:[#allocation2 + $0x15f] sm:$0xff]
  %v5117 = vld [vmem:[#allocation2 + $0x167] sm:$0xff]
  %v5118 = vld [vmem:[#allocation2 + $0x16f] sm:$0xff]
  %v5119 = vld [vmem:[#allocation2 + $0x177] sm:$0xff]
  %v5120 = vld [vmem:[#allocation2 + $0x17f] sm:$0xff]
  %v5121 = vld [vmem:[#allocation2 + $0x187] sm:$0xff]
  %v5122 = vld [vmem:[#allocation2 + $0x18f] sm:$0xff]
  %v5123 = vld [vmem:[#allocation2 + $0x197] sm:$0xff]
  %v5124 = vld [vmem:[#allocation2 + $0x19f] sm:$0xff]
  %v5125 = vld [vmem:[#allocation2 + $0x1a7] sm:$0xff]
  %v5126 = vld [vmem:[#allocation2 + $0x1af] sm:$0xff]
  %v5127 = vld [vmem:[#allocation2 + $0x1b7] sm:$0xff]
  %v5128 = vld [vmem:[#allocation2 + $0x1bf] sm:$0xff]
  %v5129 = vld [vmem:[#allocation2 + $0x1c7] sm:$0xff]
  %v5130 = vld [vmem:[#allocation2 + $0x1cf] sm:$0xff]
  %v5131 = vld [vmem:[#allocation2 + $0x1d7] sm:$0xff]
  %v5132 = vld [vmem:[#allocation2 + $0x1df] sm:$0xff]
  %v5133 = vld [vmem:[#allocation2 + $0x1e7] sm:$0xff]
  %v5134 = vld [vmem:[#allocation2 + $0x1ef] sm:$0xff]
  %v5135 = vld [vmem:[#allocation2 + $0x1f7] sm:$0xff]
  %v5136 = vld [vmem:[#allocation2 + $0x1ff] sm:$0xff]
  %v5137 = vld [vmem:[#allocation2 + $0x207] sm:$0xff]
  %v5138 = vld [vmem:[#allocation2 + $0x20f] sm:$0xff]
  %v5139 = vld [vmem:[#allocation2 + $0x217] sm:$0xff]
  %v5140 = vld [vmem:[#allocation2 + $0x21f] sm:$0xff]
  %s5141 = scalar_lea.vmem %s3, 3072
  %v5142 = vld [vmem:[%s5141] sm:$0xff]
  %v5143 = vld [vmem:[%s5141 + $0x8] sm:$0xff]
  %v5144 = vld [vmem:[%s5141 + $0x10] sm:$0xff]
  %v5145 = vld [vmem:[%s5141 + $0x18] sm:$0xff]
  %v5146 = vld [vmem:[%s5141 + $0x20] sm:$0xff]
  %v5147 = vld [vmem:[%s5141 + $0x28] sm:$0xff]
  %v5148 = vld [vmem:[%s5141 + $0x30] sm:$0xff]
  %v5149 = vld [vmem:[%s5141 + $0x38] sm:$0xff]
  %v5150 = vld [vmem:[%s5141 + $0x40] sm:$0xff]
  %v5151 = vld [vmem:[%s5141 + $0x48] sm:$0xff]
  %v5152 = vld [vmem:[%s5141 + $0x50] sm:$0xff]
  %v5153 = vld [vmem:[%s5141 + $0x58] sm:$0xff]
  %v5154 = vld [vmem:[%s5141 + $0x60] sm:$0xff]
  %v5155 = vld [vmem:[%s5141 + $0x68] sm:$0xff]
  %v5156 = vld [vmem:[%s5141 + $0x70] sm:$0xff]
  %v5157 = vld [vmem:[%s5141 + $0x78] sm:$0xff]
  %v5158 = vld [vmem:[%s5141 + $0x80] sm:$0xff]
  %v5159 = vld [vmem:[%s5141 + $0x88] sm:$0xff]
  %v5160 = vld [vmem:[%s5141 + $0x90] sm:$0xff]
  %v5161 = vld [vmem:[%s5141 + $0x98] sm:$0xff]
  %v5162 = vld [vmem:[%s5141 + $0xa0] sm:$0xff]
  %v5163 = vld [vmem:[%s5141 + $0xa8] sm:$0xff]
  %v5164 = vld [vmem:[%s5141 + $0xb0] sm:$0xff]
  %v5165 = vld [vmem:[%s5141 + $0xb8] sm:$0xff]
  %v5166 = vld [vmem:[%s5141 + $0xc0] sm:$0xff]
  %v5167 = vld [vmem:[%s5141 + $0xc8] sm:$0xff]
  %v5168 = vld [vmem:[%s5141 + $0xd0] sm:$0xff]
  %v5169 = vld [vmem:[%s5141 + $0xd8] sm:$0xff]
  %v5170 = vld [vmem:[%s5141 + $0xe0] sm:$0xff]
  %v5171 = vld [vmem:[%s5141 + $0xe8] sm:$0xff]
  %v5172 = vld [vmem:[%s5141 + $0xf0] sm:$0xff]
  %v5173 = vld [vmem:[%s5141 + $0xf8] sm:$0xff]
  %v5174 = vld [vmem:[%s5141 + $0x100] sm:$0xff]
  %v5175 = vld [vmem:[%s5141 + $0x108] sm:$0xff]
  %v5176 = vld [vmem:[%s5141 + $0x110] sm:$0xff]
  %v5177 = vld [vmem:[%s5141 + $0x118] sm:$0xff]
  %v5178 = vld [vmem:[%s5141 + $0x120] sm:$0xff]
  %v5179 = vld [vmem:[%s5141 + $0x128] sm:$0xff]
  %v5180 = vld [vmem:[%s5141 + $0x130] sm:$0xff]
  %v5181 = vld [vmem:[%s5141 + $0x138] sm:$0xff]
  %v5182 = vld [vmem:[%s5141 + $0x140] sm:$0xff]
  %v5183 = vld [vmem:[%s5141 + $0x148] sm:$0xff]
  %v5184 = vld [vmem:[%s5141 + $0x150] sm:$0xff]
  %v5185 = vld [vmem:[%s5141 + $0x158] sm:$0xff]
  %v5186 = vld [vmem:[%s5141 + $0x160] sm:$0xff]
  %v5187 = vld [vmem:[%s5141 + $0x168] sm:$0xff]
  %v5188 = vld [vmem:[%s5141 + $0x170] sm:$0xff]
  %v5189 = vld [vmem:[%s5141 + $0x178] sm:$0xff]
  %v5190 = vld [vmem:[%s5141 + $0x180] sm:$0xff]
  %v5191 = vld [vmem:[%s5141 + $0x188] sm:$0xff]
  %v5192 = vld [vmem:[%s5141 + $0x190] sm:$0xff]
  %v5193 = vld [vmem:[%s5141 + $0x198] sm:$0xff]
  %v5194 = vld [vmem:[%s5141 + $0x1a0] sm:$0xff]
  %v5195 = vld [vmem:[%s5141 + $0x1a8] sm:$0xff]
  %v5196 = vld [vmem:[%s5141 + $0x1b0] sm:$0xff]
  %v5197 = vld [vmem:[%s5141 + $0x1b8] sm:$0xff]
  %v5198 = vld [vmem:[%s5141 + $0x1c0] sm:$0xff]
  %v5199 = vld [vmem:[%s5141 + $0x1c8] sm:$0xff]
  %v5200 = vld [vmem:[%s5141 + $0x1d0] sm:$0xff]
  %v5201 = vld [vmem:[%s5141 + $0x1d8] sm:$0xff]
  %v5202 = vld [vmem:[%s5141 + $0x1e0] sm:$0xff]
  %v5203 = vld [vmem:[%s5141 + $0x1e8] sm:$0xff]
  %v5204 = vld [vmem:[%s5141 + $0x1f0] sm:$0xff]
  %v5205 = vld [vmem:[%s5141 + $0x1f8] sm:$0xff]
  %5207 = vset.pattern.permute.xlu0 0
  %5208 = vperm.xlu0 %5207, %v5142
  %v5209 = vpop.permute.xlu0 %5208
  %5212 = vset.pattern.permute.xlu0 0
  %5213 = vperm.xlu0 %5212, %v5143
  %v5214 = vpop.permute.xlu0 %5213
  %5217 = vset.pattern.permute.xlu0 0
  %5218 = vperm.xlu0 %5217, %v5144
  %v5219 = vpop.permute.xlu0 %5218
  %5222 = vset.pattern.permute.xlu0 0
  %5223 = vperm.xlu0 %5222, %v5145
  %v5224 = vpop.permute.xlu0 %5223
  %5227 = vset.pattern.permute.xlu0 0
  %5228 = vperm.xlu0 %5227, %v5146
  %v5229 = vpop.permute.xlu0 %5228
  %5232 = vset.pattern.permute.xlu0 0
  %5233 = vperm.xlu0 %5232, %v5147
  %v5234 = vpop.permute.xlu0 %5233
  %5237 = vset.pattern.permute.xlu0 0
  %5238 = vperm.xlu0 %5237, %v5148
  %v5239 = vpop.permute.xlu0 %5238
  %5242 = vset.pattern.permute.xlu0 0
  %5243 = vperm.xlu0 %5242, %v5149
  %v5244 = vpop.permute.xlu0 %5243
  %5247 = vset.pattern.permute.xlu0 0
  %5248 = vperm.xlu0 %5247, %v5150
  %v5249 = vpop.permute.xlu0 %5248
  %5252 = vset.pattern.permute.xlu0 0
  %5253 = vperm.xlu0 %5252, %v5151
  %v5254 = vpop.permute.xlu0 %5253
  %5257 = vset.pattern.permute.xlu0 0
  %5258 = vperm.xlu0 %5257, %v5152
  %v5259 = vpop.permute.xlu0 %5258
  %5262 = vset.pattern.permute.xlu0 0
  %5263 = vperm.xlu0 %5262, %v5153
  %v5264 = vpop.permute.xlu0 %5263
  %5267 = vset.pattern.permute.xlu0 0
  %5268 = vperm.xlu0 %5267, %v5154
  %v5269 = vpop.permute.xlu0 %5268
  %5272 = vset.pattern.permute.xlu0 0
  %5273 = vperm.xlu0 %5272, %v5155
  %v5274 = vpop.permute.xlu0 %5273
  %5277 = vset.pattern.permute.xlu0 0
  %5278 = vperm.xlu0 %5277, %v5156
  %v5279 = vpop.permute.xlu0 %5278
  %5282 = vset.pattern.permute.xlu0 0
  %5283 = vperm.xlu0 %5282, %v5157
  %v5284 = vpop.permute.xlu0 %5283
  %5287 = vset.pattern.permute.xlu0 0
  %5288 = vperm.xlu0 %5287, %v5158
  %v5289 = vpop.permute.xlu0 %5288
  %5292 = vset.pattern.permute.xlu0 0
  %5293 = vperm.xlu0 %5292, %v5159
  %v5294 = vpop.permute.xlu0 %5293
  %5297 = vset.pattern.permute.xlu0 0
  %5298 = vperm.xlu0 %5297, %v5160
  %v5299 = vpop.permute.xlu0 %5298
  %5302 = vset.pattern.permute.xlu0 0
  %5303 = vperm.xlu0 %5302, %v5161
  %v5304 = vpop.permute.xlu0 %5303
  %5307 = vset.pattern.permute.xlu0 0
  %5308 = vperm.xlu0 %5307, %v5162
  %v5309 = vpop.permute.xlu0 %5308
  %5312 = vset.pattern.permute.xlu0 0
  %5313 = vperm.xlu0 %5312, %v5163
  %v5314 = vpop.permute.xlu0 %5313
  %5317 = vset.pattern.permute.xlu0 0
  %5318 = vperm.xlu0 %5317, %v5164
  %v5319 = vpop.permute.xlu0 %5318
  %5322 = vset.pattern.permute.xlu0 0
  %5323 = vperm.xlu0 %5322, %v5165
  %v5324 = vpop.permute.xlu0 %5323
  %5327 = vset.pattern.permute.xlu0 0
  %5328 = vperm.xlu0 %5327, %v5166
  %v5329 = vpop.permute.xlu0 %5328
  %5332 = vset.pattern.permute.xlu0 0
  %5333 = vperm.xlu0 %5332, %v5167
  %v5334 = vpop.permute.xlu0 %5333
  %5337 = vset.pattern.permute.xlu0 0
  %5338 = vperm.xlu0 %5337, %v5168
  %v5339 = vpop.permute.xlu0 %5338
  %5342 = vset.pattern.permute.xlu0 0
  %5343 = vperm.xlu0 %5342, %v5169
  %v5344 = vpop.permute.xlu0 %5343
  %5347 = vset.pattern.permute.xlu0 0
  %5348 = vperm.xlu0 %5347, %v5170
  %v5349 = vpop.permute.xlu0 %5348
  %5352 = vset.pattern.permute.xlu0 0
  %5353 = vperm.xlu0 %5352, %v5171
  %v5354 = vpop.permute.xlu0 %5353
  %5357 = vset.pattern.permute.xlu0 0
  %5358 = vperm.xlu0 %5357, %v5172
  %v5359 = vpop.permute.xlu0 %5358
  %5362 = vset.pattern.permute.xlu0 0
  %5363 = vperm.xlu0 %5362, %v5173
  %v5364 = vpop.permute.xlu0 %5363
  %5367 = vset.pattern.permute.xlu0 0
  %5368 = vperm.xlu0 %5367, %v5174
  %v5369 = vpop.permute.xlu0 %5368
  %5372 = vset.pattern.permute.xlu0 0
  %5373 = vperm.xlu0 %5372, %v5175
  %v5374 = vpop.permute.xlu0 %5373
  %5377 = vset.pattern.permute.xlu0 0
  %5378 = vperm.xlu0 %5377, %v5176
  %v5379 = vpop.permute.xlu0 %5378
  %5382 = vset.pattern.permute.xlu0 0
  %5383 = vperm.xlu0 %5382, %v5177
  %v5384 = vpop.permute.xlu0 %5383
  %5387 = vset.pattern.permute.xlu0 0
  %5388 = vperm.xlu0 %5387, %v5178
  %v5389 = vpop.permute.xlu0 %5388
  %5392 = vset.pattern.permute.xlu0 0
  %5393 = vperm.xlu0 %5392, %v5179
  %v5394 = vpop.permute.xlu0 %5393
  %5397 = vset.pattern.permute.xlu0 0
  %5398 = vperm.xlu0 %5397, %v5180
  %v5399 = vpop.permute.xlu0 %5398
  %5402 = vset.pattern.permute.xlu0 0
  %5403 = vperm.xlu0 %5402, %v5181
  %v5404 = vpop.permute.xlu0 %5403
  %5407 = vset.pattern.permute.xlu0 0
  %5408 = vperm.xlu0 %5407, %v5182
  %v5409 = vpop.permute.xlu0 %5408
  %5412 = vset.pattern.permute.xlu0 0
  %5413 = vperm.xlu0 %5412, %v5183
  %v5414 = vpop.permute.xlu0 %5413
  %5417 = vset.pattern.permute.xlu0 0
  %5418 = vperm.xlu0 %5417, %v5184
  %v5419 = vpop.permute.xlu0 %5418
  %5422 = vset.pattern.permute.xlu0 0
  %5423 = vperm.xlu0 %5422, %v5185
  %v5424 = vpop.permute.xlu0 %5423
  %5427 = vset.pattern.permute.xlu0 0
  %5428 = vperm.xlu0 %5427, %v5186
  %v5429 = vpop.permute.xlu0 %5428
  %5432 = vset.pattern.permute.xlu0 0
  %5433 = vperm.xlu0 %5432, %v5187
  %v5434 = vpop.permute.xlu0 %5433
  %5437 = vset.pattern.permute.xlu0 0
  %5438 = vperm.xlu0 %5437, %v5188
  %v5439 = vpop.permute.xlu0 %5438
  %5442 = vset.pattern.permute.xlu0 0
  %5443 = vperm.xlu0 %5442, %v5189
  %v5444 = vpop.permute.xlu0 %5443
  %5447 = vset.pattern.permute.xlu0 0
  %5448 = vperm.xlu0 %5447, %v5190
  %v5449 = vpop.permute.xlu0 %5448
  %5452 = vset.pattern.permute.xlu0 0
  %5453 = vperm.xlu0 %5452, %v5191
  %v5454 = vpop.permute.xlu0 %5453
  %5457 = vset.pattern.permute.xlu0 0
  %5458 = vperm.xlu0 %5457, %v5192
  %v5459 = vpop.permute.xlu0 %5458
  %5462 = vset.pattern.permute.xlu0 0
  %5463 = vperm.xlu0 %5462, %v5193
  %v5464 = vpop.permute.xlu0 %5463
  %5467 = vset.pattern.permute.xlu0 0
  %5468 = vperm.xlu0 %5467, %v5194
  %v5469 = vpop.permute.xlu0 %5468
  %5472 = vset.pattern.permute.xlu0 0
  %5473 = vperm.xlu0 %5472, %v5195
  %v5474 = vpop.permute.xlu0 %5473
  %5477 = vset.pattern.permute.xlu0 0
  %5478 = vperm.xlu0 %5477, %v5196
  %v5479 = vpop.permute.xlu0 %5478
  %5482 = vset.pattern.permute.xlu0 0
  %5483 = vperm.xlu0 %5482, %v5197
  %v5484 = vpop.permute.xlu0 %5483
  %5487 = vset.pattern.permute.xlu0 0
  %5488 = vperm.xlu0 %5487, %v5198
  %v5489 = vpop.permute.xlu0 %5488
  %5492 = vset.pattern.permute.xlu0 0
  %5493 = vperm.xlu0 %5492, %v5199
  %v5494 = vpop.permute.xlu0 %5493
  %5497 = vset.pattern.permute.xlu0 0
  %5498 = vperm.xlu0 %5497, %v5200
  %v5499 = vpop.permute.xlu0 %5498
  %5502 = vset.pattern.permute.xlu0 0
  %5503 = vperm.xlu0 %5502, %v5201
  %v5504 = vpop.permute.xlu0 %5503
  %5507 = vset.pattern.permute.xlu0 0
  %5508 = vperm.xlu0 %5507, %v5202
  %v5509 = vpop.permute.xlu0 %5508
  %5512 = vset.pattern.permute.xlu0 0
  %5513 = vperm.xlu0 %5512, %v5203
  %v5514 = vpop.permute.xlu0 %5513
  %5517 = vset.pattern.permute.xlu0 0
  %5518 = vperm.xlu0 %5517, %v5204
  %v5519 = vpop.permute.xlu0 %5518
  %5522 = vset.pattern.permute.xlu0 0
  %5523 = vperm.xlu0 %5522, %v5205
  %v5524 = vpop.permute.xlu0 %5523
  %v5526 = vmul.f32 %v5077, %v5209
  %v5527 = vmul.f32 %v5078, %v5214
  %v5528 = vmul.f32 %v5079, %v5219
  %v5529 = vmul.f32 %v5080, %v5224
  %v5530 = vmul.f32 %v5081, %v5229
  %v5531 = vmul.f32 %v5082, %v5234
  %v5532 = vmul.f32 %v5083, %v5239
  %v5533 = vmul.f32 %v5084, %v5244
  %v5534 = vmul.f32 %v5085, %v5249
  %v5535 = vmul.f32 %v5086, %v5254
  %v5536 = vmul.f32 %v5087, %v5259
  %v5537 = vmul.f32 %v5088, %v5264
  %v5538 = vmul.f32 %v5089, %v5269
  %v5539 = vmul.f32 %v5090, %v5274
  %v5540 = vmul.f32 %v5091, %v5279
  %v5541 = vmul.f32 %v5092, %v5284
  %v5542 = vmul.f32 %v5093, %v5289
  %v5543 = vmul.f32 %v5094, %v5294
  %v5544 = vmul.f32 %v5095, %v5299
  %v5545 = vmul.f32 %v5096, %v5304
  %v5546 = vmul.f32 %v5097, %v5309
  %v5547 = vmul.f32 %v5098, %v5314
  %v5548 = vmul.f32 %v5099, %v5319
  %v5549 = vmul.f32 %v5100, %v5324
  %v5550 = vmul.f32 %v5101, %v5329
  %v5551 = vmul.f32 %v5102, %v5334
  %v5552 = vmul.f32 %v5103, %v5339
  %v5553 = vmul.f32 %v5104, %v5344
  %v5554 = vmul.f32 %v5105, %v5349
  %v5555 = vmul.f32 %v5106, %v5354
  %v5556 = vmul.f32 %v5107, %v5359
  %v5557 = vmul.f32 %v5108, %v5364
  %v5558 = vmul.f32 %v5109, %v5369
  %v5559 = vmul.f32 %v5110, %v5374
  %v5560 = vmul.f32 %v5111, %v5379
  %v5561 = vmul.f32 %v5112, %v5384
  %v5562 = vmul.f32 %v5113, %v5389
  %v5563 = vmul.f32 %v5114, %v5394
  %v5564 = vmul.f32 %v5115, %v5399
  %v5565 = vmul.f32 %v5116, %v5404
  %v5566 = vmul.f32 %v5117, %v5409
  %v5567 = vmul.f32 %v5118, %v5414
  %v5568 = vmul.f32 %v5119, %v5419
  %v5569 = vmul.f32 %v5120, %v5424
  %v5570 = vmul.f32 %v5121, %v5429
  %v5571 = vmul.f32 %v5122, %v5434
  %v5572 = vmul.f32 %v5123, %v5439
  %v5573 = vmul.f32 %v5124, %v5444
  %v5574 = vmul.f32 %v5125, %v5449
  %v5575 = vmul.f32 %v5126, %v5454
  %v5576 = vmul.f32 %v5127, %v5459
  %v5577 = vmul.f32 %v5128, %v5464
  %v5578 = vmul.f32 %v5129, %v5469
  %v5579 = vmul.f32 %v5130, %v5474
  %v5580 = vmul.f32 %v5131, %v5479
  %v5581 = vmul.f32 %v5132, %v5484
  %v5582 = vmul.f32 %v5133, %v5489
  %v5583 = vmul.f32 %v5134, %v5494
  %v5584 = vmul.f32 %v5135, %v5499
  %v5585 = vmul.f32 %v5136, %v5504
  %v5586 = vmul.f32 %v5137, %v5509
  %v5587 = vmul.f32 %v5138, %v5514
  %v5588 = vmul.f32 %v5139, %v5519
  %v5589 = vmul.f32 %v5140, %v5524
  %s5590 = scalar_lea.vmem %s1, 768
  %v5591 = vld [vmem:[%s5590] sm:$0xff]
  %v5592 = vld [vmem:[%s5590 + $0x8] sm:$0xff]
  %v5593 = vld [vmem:[%s5590 + $0x10] sm:$0xff]
  %v5594 = vld [vmem:[%s5590 + $0x18] sm:$0xff]
  %v5595 = vld [vmem:[%s5590 + $0x20] sm:$0xff]
  %v5596 = vld [vmem:[%s5590 + $0x28] sm:$0xff]
  %v5597 = vld [vmem:[%s5590 + $0x30] sm:$0xff]
  %v5598 = vld [vmem:[%s5590 + $0x38] sm:$0xff]
  %v5599 = vld [vmem:[%s5590 + $0x40] sm:$0xff]
  %v5600 = vld [vmem:[%s5590 + $0x48] sm:$0xff]
  %v5601 = vld [vmem:[%s5590 + $0x50] sm:$0xff]
  %v5602 = vld [vmem:[%s5590 + $0x58] sm:$0xff]
  %v5603 = vld [vmem:[%s5590 + $0x60] sm:$0xff]
  %v5604 = vld [vmem:[%s5590 + $0x68] sm:$0xff]
  %v5605 = vld [vmem:[%s5590 + $0x70] sm:$0xff]
  %v5606 = vld [vmem:[%s5590 + $0x78] sm:$0xff]
  %5607 = vmatpush.msra.mxu0 %v5606
  %5608 = vmatpush.msra.mxu0 %v5605
  %5609 = vmatpush.msra.mxu0 %v5604
  %5610 = vmatpush.msra.mxu0 %v5603
  %5611 = vmatpush.msra.mxu0 %v5602
  %5612 = vmatpush.msra.mxu0 %v5601
  %5613 = vmatpush.msra.mxu0 %v5600
  %5614 = vmatpush.msra.mxu0 %v5599
  %5615 = vmatpush.msra.mxu0 %v5598
  %5616 = vmatpush.msra.mxu0 %v5597
  %5617 = vmatpush.msra.mxu0 %v5596
  %5618 = vmatpush.msra.mxu0 %v5595
  %5619 = vmatpush.msra.mxu0 %v5594
  %5620 = vmatpush.msra.mxu0 %v5593
  %5621 = vmatpush.msra.mxu0 %v5592
  %5622 = vmatpush.msra.mxu0 %v5591
  %5623 = vmatmul.f32.gmra.mxu0 %v5526
  %v5624 = vpop.f32.mrf.mxu0
  %v5625 = vadd.f32 0.0, %v5624
  %5626 = vmatmul.f32.gmra.mxu0 %v5527
  %v5627 = vpop.f32.mrf.mxu0
  %v5628 = vadd.f32 0.0, %v5627
  %5629 = vmatmul.f32.gmra.mxu0 %v5528
  %v5630 = vpop.f32.mrf.mxu0
  %v5631 = vadd.f32 0.0, %v5630
  %5632 = vmatmul.f32.gmra.mxu0 %v5529
  %v5633 = vpop.f32.mrf.mxu0
  %v5634 = vadd.f32 0.0, %v5633
  %5635 = vmatmul.f32.gmra.mxu0 %v5530
  %v5636 = vpop.f32.mrf.mxu0
  %v5637 = vadd.f32 0.0, %v5636
  %5638 = vmatmul.f32.gmra.mxu0 %v5531
  %v5639 = vpop.f32.mrf.mxu0
  %v5640 = vadd.f32 0.0, %v5639
  %5641 = vmatmul.f32.gmra.mxu0 %v5532
  %v5642 = vpop.f32.mrf.mxu0
  %v5643 = vadd.f32 0.0, %v5642
  %5644 = vmatmul.f32.gmra.mxu0 %v5533
  %v5645 = vpop.f32.mrf.mxu0
  %v5646 = vadd.f32 0.0, %v5645
  %5647 = vmatmul.f32.gmra.mxu0 %v5534
  %v5648 = vpop.f32.mrf.mxu0
  %v5649 = vadd.f32 0.0, %v5648
  %5650 = vmatmul.f32.gmra.mxu0 %v5535
  %v5651 = vpop.f32.mrf.mxu0
  %v5652 = vadd.f32 0.0, %v5651
  %5653 = vmatmul.f32.gmra.mxu0 %v5536
  %v5654 = vpop.f32.mrf.mxu0
  %v5655 = vadd.f32 0.0, %v5654
  %5656 = vmatmul.f32.gmra.mxu0 %v5537
  %v5657 = vpop.f32.mrf.mxu0
  %v5658 = vadd.f32 0.0, %v5657
  %5659 = vmatmul.f32.gmra.mxu0 %v5538
  %v5660 = vpop.f32.mrf.mxu0
  %v5661 = vadd.f32 0.0, %v5660
  %5662 = vmatmul.f32.gmra.mxu0 %v5539
  %v5663 = vpop.f32.mrf.mxu0
  %v5664 = vadd.f32 0.0, %v5663
  %5665 = vmatmul.f32.gmra.mxu0 %v5540
  %v5666 = vpop.f32.mrf.mxu0
  %v5667 = vadd.f32 0.0, %v5666
  %5668 = vmatmul.f32.gmra.mxu0 %v5541
  %v5669 = vpop.f32.mrf.mxu0
  %v5670 = vadd.f32 0.0, %v5669
  %5671 = vmatmul.f32.gmra.mxu0 %v5542
  %v5672 = vpop.f32.mrf.mxu0
  %v5673 = vadd.f32 0.0, %v5672
  %5674 = vmatmul.f32.gmra.mxu0 %v5543
  %v5675 = vpop.f32.mrf.mxu0
  %v5676 = vadd.f32 0.0, %v5675
  %5677 = vmatmul.f32.gmra.mxu0 %v5544
  %v5678 = vpop.f32.mrf.mxu0
  %v5679 = vadd.f32 0.0, %v5678
  %5680 = vmatmul.f32.gmra.mxu0 %v5545
  %v5681 = vpop.f32.mrf.mxu0
  %v5682 = vadd.f32 0.0, %v5681
  %5683 = vmatmul.f32.gmra.mxu0 %v5546
  %v5684 = vpop.f32.mrf.mxu0
  %v5685 = vadd.f32 0.0, %v5684
  %5686 = vmatmul.f32.gmra.mxu0 %v5547
  %v5687 = vpop.f32.mrf.mxu0
  %v5688 = vadd.f32 0.0, %v5687
  %5689 = vmatmul.f32.gmra.mxu0 %v5548
  %v5690 = vpop.f32.mrf.mxu0
  %v5691 = vadd.f32 0.0, %v5690
  %5692 = vmatmul.f32.gmra.mxu0 %v5549
  %v5693 = vpop.f32.mrf.mxu0
  %v5694 = vadd.f32 0.0, %v5693
  %5695 = vmatmul.f32.gmra.mxu0 %v5550
  %v5696 = vpop.f32.mrf.mxu0
  %v5697 = vadd.f32 0.0, %v5696
  %5698 = vmatmul.f32.gmra.mxu0 %v5551
  %v5699 = vpop.f32.mrf.mxu0
  %v5700 = vadd.f32 0.0, %v5699
  %5701 = vmatmul.f32.gmra.mxu0 %v5552
  %v5702 = vpop.f32.mrf.mxu0
  %v5703 = vadd.f32 0.0, %v5702
  %5704 = vmatmul.f32.gmra.mxu0 %v5553
  %v5705 = vpop.f32.mrf.mxu0
  %v5706 = vadd.f32 0.0, %v5705
  %5707 = vmatmul.f32.gmra.mxu0 %v5554
  %v5708 = vpop.f32.mrf.mxu0
  %v5709 = vadd.f32 0.0, %v5708
  %5710 = vmatmul.f32.gmra.mxu0 %v5555
  %v5711 = vpop.f32.mrf.mxu0
  %v5712 = vadd.f32 0.0, %v5711
  %5713 = vmatmul.f32.gmra.mxu0 %v5556
  %v5714 = vpop.f32.mrf.mxu0
  %v5715 = vadd.f32 0.0, %v5714
  %5716 = vmatmul.f32.gmra.mxu0 %v5557
  %v5717 = vpop.f32.mrf.mxu0
  %v5718 = vadd.f32 0.0, %v5717
  %5719 = vmatmul.f32.gmra.mxu0 %v5558
  %v5720 = vpop.f32.mrf.mxu0
  %v5721 = vadd.f32 0.0, %v5720
  %5722 = vmatmul.f32.gmra.mxu0 %v5559
  %v5723 = vpop.f32.mrf.mxu0
  %v5724 = vadd.f32 0.0, %v5723
  %5725 = vmatmul.f32.gmra.mxu0 %v5560
  %v5726 = vpop.f32.mrf.mxu0
  %v5727 = vadd.f32 0.0, %v5726
  %5728 = vmatmul.f32.gmra.mxu0 %v5561
  %v5729 = vpop.f32.mrf.mxu0
  %v5730 = vadd.f32 0.0, %v5729
  %5731 = vmatmul.f32.gmra.mxu0 %v5562
  %v5732 = vpop.f32.mrf.mxu0
  %v5733 = vadd.f32 0.0, %v5732
  %5734 = vmatmul.f32.gmra.mxu0 %v5563
  %v5735 = vpop.f32.mrf.mxu0
  %v5736 = vadd.f32 0.0, %v5735
  %5737 = vmatmul.f32.gmra.mxu0 %v5564
  %v5738 = vpop.f32.mrf.mxu0
  %v5739 = vadd.f32 0.0, %v5738
  %5740 = vmatmul.f32.gmra.mxu0 %v5565
  %v5741 = vpop.f32.mrf.mxu0
  %v5742 = vadd.f32 0.0, %v5741
  %5743 = vmatmul.f32.gmra.mxu0 %v5566
  %v5744 = vpop.f32.mrf.mxu0
  %v5745 = vadd.f32 0.0, %v5744
  %5746 = vmatmul.f32.gmra.mxu0 %v5567
  %v5747 = vpop.f32.mrf.mxu0
  %v5748 = vadd.f32 0.0, %v5747
  %5749 = vmatmul.f32.gmra.mxu0 %v5568
  %v5750 = vpop.f32.mrf.mxu0
  %v5751 = vadd.f32 0.0, %v5750
  %5752 = vmatmul.f32.gmra.mxu0 %v5569
  %v5753 = vpop.f32.mrf.mxu0
  %v5754 = vadd.f32 0.0, %v5753
  %5755 = vmatmul.f32.gmra.mxu0 %v5570
  %v5756 = vpop.f32.mrf.mxu0
  %v5757 = vadd.f32 0.0, %v5756
  %5758 = vmatmul.f32.gmra.mxu0 %v5571
  %v5759 = vpop.f32.mrf.mxu0
  %v5760 = vadd.f32 0.0, %v5759
  %5761 = vmatmul.f32.gmra.mxu0 %v5572
  %v5762 = vpop.f32.mrf.mxu0
  %v5763 = vadd.f32 0.0, %v5762
  %5764 = vmatmul.f32.gmra.mxu0 %v5573
  %v5765 = vpop.f32.mrf.mxu0
  %v5766 = vadd.f32 0.0, %v5765
  %5767 = vmatmul.f32.gmra.mxu0 %v5574
  %v5768 = vpop.f32.mrf.mxu0
  %v5769 = vadd.f32 0.0, %v5768
  %5770 = vmatmul.f32.gmra.mxu0 %v5575
  %v5771 = vpop.f32.mrf.mxu0
  %v5772 = vadd.f32 0.0, %v5771
  %5773 = vmatmul.f32.gmra.mxu0 %v5576
  %v5774 = vpop.f32.mrf.mxu0
  %v5775 = vadd.f32 0.0, %v5774
  %5776 = vmatmul.f32.gmra.mxu0 %v5577
  %v5777 = vpop.f32.mrf.mxu0
  %v5778 = vadd.f32 0.0, %v5777
  %5779 = vmatmul.f32.gmra.mxu0 %v5578
  %v5780 = vpop.f32.mrf.mxu0
  %v5781 = vadd.f32 0.0, %v5780
  %5782 = vmatmul.f32.gmra.mxu0 %v5579
  %v5783 = vpop.f32.mrf.mxu0
  %v5784 = vadd.f32 0.0, %v5783
  %5785 = vmatmul.f32.gmra.mxu0 %v5580
  %v5786 = vpop.f32.mrf.mxu0
  %v5787 = vadd.f32 0.0, %v5786
  %5788 = vmatmul.f32.gmra.mxu0 %v5581
  %v5789 = vpop.f32.mrf.mxu0
  %v5790 = vadd.f32 0.0, %v5789
  %5791 = vmatmul.f32.gmra.mxu0 %v5582
  %v5792 = vpop.f32.mrf.mxu0
  %v5793 = vadd.f32 0.0, %v5792
  %5794 = vmatmul.f32.gmra.mxu0 %v5583
  %v5795 = vpop.f32.mrf.mxu0
  %v5796 = vadd.f32 0.0, %v5795
  %5797 = vmatmul.f32.gmra.mxu0 %v5584
  %v5798 = vpop.f32.mrf.mxu0
  %v5799 = vadd.f32 0.0, %v5798
  %5800 = vmatmul.f32.gmra.mxu0 %v5585
  %v5801 = vpop.f32.mrf.mxu0
  %v5802 = vadd.f32 0.0, %v5801
  %5803 = vmatmul.f32.gmra.mxu0 %v5586
  %v5804 = vpop.f32.mrf.mxu0
  %v5805 = vadd.f32 0.0, %v5804
  %5806 = vmatmul.f32.gmra.mxu0 %v5587
  %v5807 = vpop.f32.mrf.mxu0
  %v5808 = vadd.f32 0.0, %v5807
  %5809 = vmatmul.f32.gmra.mxu0 %v5588
  %v5810 = vpop.f32.mrf.mxu0
  %v5811 = vadd.f32 0.0, %v5810
  %5812 = vmatmul.f32.gmra.mxu0 %v5589
  %v5813 = vpop.f32.mrf.mxu0
  %v5814 = vadd.f32 0.0, %v5813
  %5815 = vdwg.mxu0
  %v5816 = vadd.f32 %v5013, %v5625
  %v5817 = vadd.f32 %v5014, %v5628
  %v5818 = vadd.f32 %v5015, %v5631
  %v5819 = vadd.f32 %v5016, %v5634
  %v5820 = vadd.f32 %v5017, %v5637
  %v5821 = vadd.f32 %v5018, %v5640
  %v5822 = vadd.f32 %v5019, %v5643
  %v5823 = vadd.f32 %v5020, %v5646
  %v5824 = vadd.f32 %v5021, %v5649
  %v5825 = vadd.f32 %v5022, %v5652
  %v5826 = vadd.f32 %v5023, %v5655
  %v5827 = vadd.f32 %v5024, %v5658
  %v5828 = vadd.f32 %v5025, %v5661
  %v5829 = vadd.f32 %v5026, %v5664
  %v5830 = vadd.f32 %v5027, %v5667
  %v5831 = vadd.f32 %v5028, %v5670
  %v5832 = vadd.f32 %v5029, %v5673
  %v5833 = vadd.f32 %v5030, %v5676
  %v5834 = vadd.f32 %v5031, %v5679
  %v5835 = vadd.f32 %v5032, %v5682
  %v5836 = vadd.f32 %v5033, %v5685
  %v5837 = vadd.f32 %v5034, %v5688
  %v5838 = vadd.f32 %v5035, %v5691
  %v5839 = vadd.f32 %v5036, %v5694
  %v5840 = vadd.f32 %v5037, %v5697
  %v5841 = vadd.f32 %v5038, %v5700
  %v5842 = vadd.f32 %v5039, %v5703
  %v5843 = vadd.f32 %v5040, %v5706
  %v5844 = vadd.f32 %v5041, %v5709
  %v5845 = vadd.f32 %v5042, %v5712
  %v5846 = vadd.f32 %v5043, %v5715
  %v5847 = vadd.f32 %v5044, %v5718
  %v5848 = vadd.f32 %v5045, %v5721
  %v5849 = vadd.f32 %v5046, %v5724
  %v5850 = vadd.f32 %v5047, %v5727
  %v5851 = vadd.f32 %v5048, %v5730
  %v5852 = vadd.f32 %v5049, %v5733
  %v5853 = vadd.f32 %v5050, %v5736
  %v5854 = vadd.f32 %v5051, %v5739
  %v5855 = vadd.f32 %v5052, %v5742
  %v5856 = vadd.f32 %v5053, %v5745
  %v5857 = vadd.f32 %v5054, %v5748
  %v5858 = vadd.f32 %v5055, %v5751
  %v5859 = vadd.f32 %v5056, %v5754
  %v5860 = vadd.f32 %v5057, %v5757
  %v5861 = vadd.f32 %v5058, %v5760
  %v5862 = vadd.f32 %v5059, %v5763
  %v5863 = vadd.f32 %v5060, %v5766
  %v5864 = vadd.f32 %v5061, %v5769
  %v5865 = vadd.f32 %v5062, %v5772
  %v5866 = vadd.f32 %v5063, %v5775
  %v5867 = vadd.f32 %v5064, %v5778
  %v5868 = vadd.f32 %v5065, %v5781
  %v5869 = vadd.f32 %v5066, %v5784
  %v5870 = vadd.f32 %v5067, %v5787
  %v5871 = vadd.f32 %v5068, %v5790
  %v5872 = vadd.f32 %v5069, %v5793
  %v5873 = vadd.f32 %v5070, %v5796
  %v5874 = vadd.f32 %v5071, %v5799
  %v5875 = vadd.f32 %v5072, %v5802
  %v5876 = vadd.f32 %v5073, %v5805
  %v5877 = vadd.f32 %v5074, %v5808
  %v5878 = vadd.f32 %v5075, %v5811
  %v5879 = vadd.f32 %v5076, %v5814
  %v5880 = vld [vmem:[#allocation2 + $0x28] sm:$0xff]
  %v5881 = vld [vmem:[#allocation2 + $0x30] sm:$0xff]
  %v5882 = vld [vmem:[#allocation2 + $0x38] sm:$0xff]
  %v5883 = vld [vmem:[#allocation2 + $0x40] sm:$0xff]
  %v5884 = vld [vmem:[#allocation2 + $0x48] sm:$0xff]
  %v5885 = vld [vmem:[#allocation2 + $0x50] sm:$0xff]
  %v5886 = vld [vmem:[#allocation2 + $0x58] sm:$0xff]
  %v5887 = vld [vmem:[#allocation2 + $0x60] sm:$0xff]
  %v5888 = vld [vmem:[#allocation2 + $0x68] sm:$0xff]
  %v5889 = vld [vmem:[#allocation2 + $0x70] sm:$0xff]
  %v5890 = vld [vmem:[#allocation2 + $0x78] sm:$0xff]
  %v5891 = vld [vmem:[#allocation2 + $0x80] sm:$0xff]
  %v5892 = vld [vmem:[#allocation2 + $0x88] sm:$0xff]
  %v5893 = vld [vmem:[#allocation2 + $0x90] sm:$0xff]
  %v5894 = vld [vmem:[#allocation2 + $0x98] sm:$0xff]
  %v5895 = vld [vmem:[#allocation2 + $0xa0] sm:$0xff]
  %v5896 = vld [vmem:[#allocation2 + $0xa8] sm:$0xff]
  %v5897 = vld [vmem:[#allocation2 + $0xb0] sm:$0xff]
  %v5898 = vld [vmem:[#allocation2 + $0xb8] sm:$0xff]
  %v5899 = vld [vmem:[#allocation2 + $0xc0] sm:$0xff]
  %v5900 = vld [vmem:[#allocation2 + $0xc8] sm:$0xff]
  %v5901 = vld [vmem:[#allocation2 + $0xd0] sm:$0xff]
  %v5902 = vld [vmem:[#allocation2 + $0xd8] sm:$0xff]
  %v5903 = vld [vmem:[#allocation2 + $0xe0] sm:$0xff]
  %v5904 = vld [vmem:[#allocation2 + $0xe8] sm:$0xff]
  %v5905 = vld [vmem:[#allocation2 + $0xf0] sm:$0xff]
  %v5906 = vld [vmem:[#allocation2 + $0xf8] sm:$0xff]
  %v5907 = vld [vmem:[#allocation2 + $0x100] sm:$0xff]
  %v5908 = vld [vmem:[#allocation2 + $0x108] sm:$0xff]
  %v5909 = vld [vmem:[#allocation2 + $0x110] sm:$0xff]
  %v5910 = vld [vmem:[#allocation2 + $0x118] sm:$0xff]
  %v5911 = vld [vmem:[#allocation2 + $0x120] sm:$0xff]
  %v5912 = vld [vmem:[#allocation2 + $0x128] sm:$0xff]
  %v5913 = vld [vmem:[#allocation2 + $0x130] sm:$0xff]
  %v5914 = vld [vmem:[#allocation2 + $0x138] sm:$0xff]
  %v5915 = vld [vmem:[#allocation2 + $0x140] sm:$0xff]
  %v5916 = vld [vmem:[#allocation2 + $0x148] sm:$0xff]
  %v5917 = vld [vmem:[#allocation2 + $0x150] sm:$0xff]
  %v5918 = vld [vmem:[#allocation2 + $0x158] sm:$0xff]
  %v5919 = vld [vmem:[#allocation2 + $0x160] sm:$0xff]
  %v5920 = vld [vmem:[#allocation2 + $0x168] sm:$0xff]
  %v5921 = vld [vmem:[#allocation2 + $0x170] sm:$0xff]
  %v5922 = vld [vmem:[#allocation2 + $0x178] sm:$0xff]
  %v5923 = vld [vmem:[#allocation2 + $0x180] sm:$0xff]
  %v5924 = vld [vmem:[#allocation2 + $0x188] sm:$0xff]
  %v5925 = vld [vmem:[#allocation2 + $0x190] sm:$0xff]
  %v5926 = vld [vmem:[#allocation2 + $0x198] sm:$0xff]
  %v5927 = vld [vmem:[#allocation2 + $0x1a0] sm:$0xff]
  %v5928 = vld [vmem:[#allocation2 + $0x1a8] sm:$0xff]
  %v5929 = vld [vmem:[#allocation2 + $0x1b0] sm:$0xff]
  %v5930 = vld [vmem:[#allocation2 + $0x1b8] sm:$0xff]
  %v5931 = vld [vmem:[#allocation2 + $0x1c0] sm:$0xff]
  %v5932 = vld [vmem:[#allocation2 + $0x1c8] sm:$0xff]
  %v5933 = vld [vmem:[#allocation2 + $0x1d0] sm:$0xff]
  %v5934 = vld [vmem:[#allocation2 + $0x1d8] sm:$0xff]
  %v5935 = vld [vmem:[#allocation2 + $0x1e0] sm:$0xff]
  %v5936 = vld [vmem:[#allocation2 + $0x1e8] sm:$0xff]
  %v5937 = vld [vmem:[#allocation2 + $0x1f0] sm:$0xff]
  %v5938 = vld [vmem:[#allocation2 + $0x1f8] sm:$0xff]
  %v5939 = vld [vmem:[#allocation2 + $0x200] sm:$0xff]
  %v5940 = vld [vmem:[#allocation2 + $0x208] sm:$0xff]
  %v5941 = vld [vmem:[#allocation2 + $0x210] sm:$0xff]
  %v5942 = vld [vmem:[#allocation2 + $0x218] sm:$0xff]
  %v5943 = vld [vmem:[#allocation2 + $0x220] sm:$0xff]
  %s5944 = scalar_lea.vmem %s3, 3584
  %v5945 = vld [vmem:[%s5944] sm:$0xff]
  %v5946 = vld [vmem:[%s5944 + $0x8] sm:$0xff]
  %v5947 = vld [vmem:[%s5944 + $0x10] sm:$0xff]
  %v5948 = vld [vmem:[%s5944 + $0x18] sm:$0xff]
  %v5949 = vld [vmem:[%s5944 + $0x20] sm:$0xff]
  %v5950 = vld [vmem:[%s5944 + $0x28] sm:$0xff]
  %v5951 = vld [vmem:[%s5944 + $0x30] sm:$0xff]
  %v5952 = vld [vmem:[%s5944 + $0x38] sm:$0xff]
  %v5953 = vld [vmem:[%s5944 + $0x40] sm:$0xff]
  %v5954 = vld [vmem:[%s5944 + $0x48] sm:$0xff]
  %v5955 = vld [vmem:[%s5944 + $0x50] sm:$0xff]
  %v5956 = vld [vmem:[%s5944 + $0x58] sm:$0xff]
  %v5957 = vld [vmem:[%s5944 + $0x60] sm:$0xff]
  %v5958 = vld [vmem:[%s5944 + $0x68] sm:$0xff]
  %v5959 = vld [vmem:[%s5944 + $0x70] sm:$0xff]
  %v5960 = vld [vmem:[%s5944 + $0x78] sm:$0xff]
  %v5961 = vld [vmem:[%s5944 + $0x80] sm:$0xff]
  %v5962 = vld [vmem:[%s5944 + $0x88] sm:$0xff]
  %v5963 = vld [vmem:[%s5944 + $0x90] sm:$0xff]
  %v5964 = vld [vmem:[%s5944 + $0x98] sm:$0xff]
  %v5965 = vld [vmem:[%s5944 + $0xa0] sm:$0xff]
  %v5966 = vld [vmem:[%s5944 + $0xa8] sm:$0xff]
  %v5967 = vld [vmem:[%s5944 + $0xb0] sm:$0xff]
  %v5968 = vld [vmem:[%s5944 + $0xb8] sm:$0xff]
  %v5969 = vld [vmem:[%s5944 + $0xc0] sm:$0xff]
  %v5970 = vld [vmem:[%s5944 + $0xc8] sm:$0xff]
  %v5971 = vld [vmem:[%s5944 + $0xd0] sm:$0xff]
  %v5972 = vld [vmem:[%s5944 + $0xd8] sm:$0xff]
  %v5973 = vld [vmem:[%s5944 + $0xe0] sm:$0xff]
  %v5974 = vld [vmem:[%s5944 + $0xe8] sm:$0xff]
  %v5975 = vld [vmem:[%s5944 + $0xf0] sm:$0xff]
  %v5976 = vld [vmem:[%s5944 + $0xf8] sm:$0xff]
  %v5977 = vld [vmem:[%s5944 + $0x100] sm:$0xff]
  %v5978 = vld [vmem:[%s5944 + $0x108] sm:$0xff]
  %v5979 = vld [vmem:[%s5944 + $0x110] sm:$0xff]
  %v5980 = vld [vmem:[%s5944 + $0x118] sm:$0xff]
  %v5981 = vld [vmem:[%s5944 + $0x120] sm:$0xff]
  %v5982 = vld [vmem:[%s5944 + $0x128] sm:$0xff]
  %v5983 = vld [vmem:[%s5944 + $0x130] sm:$0xff]
  %v5984 = vld [vmem:[%s5944 + $0x138] sm:$0xff]
  %v5985 = vld [vmem:[%s5944 + $0x140] sm:$0xff]
  %v5986 = vld [vmem:[%s5944 + $0x148] sm:$0xff]
  %v5987 = vld [vmem:[%s5944 + $0x150] sm:$0xff]
  %v5988 = vld [vmem:[%s5944 + $0x158] sm:$0xff]
  %v5989 = vld [vmem:[%s5944 + $0x160] sm:$0xff]
  %v5990 = vld [vmem:[%s5944 + $0x168] sm:$0xff]
  %v5991 = vld [vmem:[%s5944 + $0x170] sm:$0xff]
  %v5992 = vld [vmem:[%s5944 + $0x178] sm:$0xff]
  %v5993 = vld [vmem:[%s5944 + $0x180] sm:$0xff]
  %v5994 = vld [vmem:[%s5944 + $0x188] sm:$0xff]
  %v5995 = vld [vmem:[%s5944 + $0x190] sm:$0xff]
  %v5996 = vld [vmem:[%s5944 + $0x198] sm:$0xff]
  %v5997 = vld [vmem:[%s5944 + $0x1a0] sm:$0xff]
  %v5998 = vld [vmem:[%s5944 + $0x1a8] sm:$0xff]
  %v5999 = vld [vmem:[%s5944 + $0x1b0] sm:$0xff]
  %v6000 = vld [vmem:[%s5944 + $0x1b8] sm:$0xff]
  %v6001 = vld [vmem:[%s5944 + $0x1c0] sm:$0xff]
  %v6002 = vld [vmem:[%s5944 + $0x1c8] sm:$0xff]
  %v6003 = vld [vmem:[%s5944 + $0x1d0] sm:$0xff]
  %v6004 = vld [vmem:[%s5944 + $0x1d8] sm:$0xff]
  %v6005 = vld [vmem:[%s5944 + $0x1e0] sm:$0xff]
  %v6006 = vld [vmem:[%s5944 + $0x1e8] sm:$0xff]
  %v6007 = vld [vmem:[%s5944 + $0x1f0] sm:$0xff]
  %v6008 = vld [vmem:[%s5944 + $0x1f8] sm:$0xff]
  %6010 = vset.pattern.permute.xlu0 0
  %6011 = vperm.xlu0 %6010, %v5945
  %v6012 = vpop.permute.xlu0 %6011
  %6015 = vset.pattern.permute.xlu0 0
  %6016 = vperm.xlu0 %6015, %v5946
  %v6017 = vpop.permute.xlu0 %6016
  %6020 = vset.pattern.permute.xlu0 0
  %6021 = vperm.xlu0 %6020, %v5947
  %v6022 = vpop.permute.xlu0 %6021
  %6025 = vset.pattern.permute.xlu0 0
  %6026 = vperm.xlu0 %6025, %v5948
  %v6027 = vpop.permute.xlu0 %6026
  %6030 = vset.pattern.permute.xlu0 0
  %6031 = vperm.xlu0 %6030, %v5949
  %v6032 = vpop.permute.xlu0 %6031
  %6035 = vset.pattern.permute.xlu0 0
  %6036 = vperm.xlu0 %6035, %v5950
  %v6037 = vpop.permute.xlu0 %6036
  %6040 = vset.pattern.permute.xlu0 0
  %6041 = vperm.xlu0 %6040, %v5951
  %v6042 = vpop.permute.xlu0 %6041
  %6045 = vset.pattern.permute.xlu0 0
  %6046 = vperm.xlu0 %6045, %v5952
  %v6047 = vpop.permute.xlu0 %6046
  %6050 = vset.pattern.permute.xlu0 0
  %6051 = vperm.xlu0 %6050, %v5953
  %v6052 = vpop.permute.xlu0 %6051
  %6055 = vset.pattern.permute.xlu0 0
  %6056 = vperm.xlu0 %6055, %v5954
  %v6057 = vpop.permute.xlu0 %6056
  %6060 = vset.pattern.permute.xlu0 0
  %6061 = vperm.xlu0 %6060, %v5955
  %v6062 = vpop.permute.xlu0 %6061
  %6065 = vset.pattern.permute.xlu0 0
  %6066 = vperm.xlu0 %6065, %v5956
  %v6067 = vpop.permute.xlu0 %6066
  %6070 = vset.pattern.permute.xlu0 0
  %6071 = vperm.xlu0 %6070, %v5957
  %v6072 = vpop.permute.xlu0 %6071
  %6075 = vset.pattern.permute.xlu0 0
  %6076 = vperm.xlu0 %6075, %v5958
  %v6077 = vpop.permute.xlu0 %6076
  %6080 = vset.pattern.permute.xlu0 0
  %6081 = vperm.xlu0 %6080, %v5959
  %v6082 = vpop.permute.xlu0 %6081
  %6085 = vset.pattern.permute.xlu0 0
  %6086 = vperm.xlu0 %6085, %v5960
  %v6087 = vpop.permute.xlu0 %6086
  %6090 = vset.pattern.permute.xlu0 0
  %6091 = vperm.xlu0 %6090, %v5961
  %v6092 = vpop.permute.xlu0 %6091
  %6095 = vset.pattern.permute.xlu0 0
  %6096 = vperm.xlu0 %6095, %v5962
  %v6097 = vpop.permute.xlu0 %6096
  %6100 = vset.pattern.permute.xlu0 0
  %6101 = vperm.xlu0 %6100, %v5963
  %v6102 = vpop.permute.xlu0 %6101
  %6105 = vset.pattern.permute.xlu0 0
  %6106 = vperm.xlu0 %6105, %v5964
  %v6107 = vpop.permute.xlu0 %6106
  %6110 = vset.pattern.permute.xlu0 0
  %6111 = vperm.xlu0 %6110, %v5965
  %v6112 = vpop.permute.xlu0 %6111
  %6115 = vset.pattern.permute.xlu0 0
  %6116 = vperm.xlu0 %6115, %v5966
  %v6117 = vpop.permute.xlu0 %6116
  %6120 = vset.pattern.permute.xlu0 0
  %6121 = vperm.xlu0 %6120, %v5967
  %v6122 = vpop.permute.xlu0 %6121
  %6125 = vset.pattern.permute.xlu0 0
  %6126 = vperm.xlu0 %6125, %v5968
  %v6127 = vpop.permute.xlu0 %6126
  %6130 = vset.pattern.permute.xlu0 0
  %6131 = vperm.xlu0 %6130, %v5969
  %v6132 = vpop.permute.xlu0 %6131
  %6135 = vset.pattern.permute.xlu0 0
  %6136 = vperm.xlu0 %6135, %v5970
  %v6137 = vpop.permute.xlu0 %6136
  %6140 = vset.pattern.permute.xlu0 0
  %6141 = vperm.xlu0 %6140, %v5971
  %v6142 = vpop.permute.xlu0 %6141
  %6145 = vset.pattern.permute.xlu0 0
  %6146 = vperm.xlu0 %6145, %v5972
  %v6147 = vpop.permute.xlu0 %6146
  %6150 = vset.pattern.permute.xlu0 0
  %6151 = vperm.xlu0 %6150, %v5973
  %v6152 = vpop.permute.xlu0 %6151
  %6155 = vset.pattern.permute.xlu0 0
  %6156 = vperm.xlu0 %6155, %v5974
  %v6157 = vpop.permute.xlu0 %6156
  %6160 = vset.pattern.permute.xlu0 0
  %6161 = vperm.xlu0 %6160, %v5975
  %v6162 = vpop.permute.xlu0 %6161
  %6165 = vset.pattern.permute.xlu0 0
  %6166 = vperm.xlu0 %6165, %v5976
  %v6167 = vpop.permute.xlu0 %6166
  %6170 = vset.pattern.permute.xlu0 0
  %6171 = vperm.xlu0 %6170, %v5977
  %v6172 = vpop.permute.xlu0 %6171
  %6175 = vset.pattern.permute.xlu0 0
  %6176 = vperm.xlu0 %6175, %v5978
  %v6177 = vpop.permute.xlu0 %6176
  %6180 = vset.pattern.permute.xlu0 0
  %6181 = vperm.xlu0 %6180, %v5979
  %v6182 = vpop.permute.xlu0 %6181
  %6185 = vset.pattern.permute.xlu0 0
  %6186 = vperm.xlu0 %6185, %v5980
  %v6187 = vpop.permute.xlu0 %6186
  %6190 = vset.pattern.permute.xlu0 0
  %6191 = vperm.xlu0 %6190, %v5981
  %v6192 = vpop.permute.xlu0 %6191
  %6195 = vset.pattern.permute.xlu0 0
  %6196 = vperm.xlu0 %6195, %v5982
  %v6197 = vpop.permute.xlu0 %6196
  %6200 = vset.pattern.permute.xlu0 0
  %6201 = vperm.xlu0 %6200, %v5983
  %v6202 = vpop.permute.xlu0 %6201
  %6205 = vset.pattern.permute.xlu0 0
  %6206 = vperm.xlu0 %6205, %v5984
  %v6207 = vpop.permute.xlu0 %6206
  %6210 = vset.pattern.permute.xlu0 0
  %6211 = vperm.xlu0 %6210, %v5985
  %v6212 = vpop.permute.xlu0 %6211
  %6215 = vset.pattern.permute.xlu0 0
  %6216 = vperm.xlu0 %6215, %v5986
  %v6217 = vpop.permute.xlu0 %6216
  %6220 = vset.pattern.permute.xlu0 0
  %6221 = vperm.xlu0 %6220, %v5987
  %v6222 = vpop.permute.xlu0 %6221
  %6225 = vset.pattern.permute.xlu0 0
  %6226 = vperm.xlu0 %6225, %v5988
  %v6227 = vpop.permute.xlu0 %6226
  %6230 = vset.pattern.permute.xlu0 0
  %6231 = vperm.xlu0 %6230, %v5989
  %v6232 = vpop.permute.xlu0 %6231
  %6235 = vset.pattern.permute.xlu0 0
  %6236 = vperm.xlu0 %6235, %v5990
  %v6237 = vpop.permute.xlu0 %6236
  %6240 = vset.pattern.permute.xlu0 0
  %6241 = vperm.xlu0 %6240, %v5991
  %v6242 = vpop.permute.xlu0 %6241
  %6245 = vset.pattern.permute.xlu0 0
  %6246 = vperm.xlu0 %6245, %v5992
  %v6247 = vpop.permute.xlu0 %6246
  %6250 = vset.pattern.permute.xlu0 0
  %6251 = vperm.xlu0 %6250, %v5993
  %v6252 = vpop.permute.xlu0 %6251
  %6255 = vset.pattern.permute.xlu0 0
  %6256 = vperm.xlu0 %6255, %v5994
  %v6257 = vpop.permute.xlu0 %6256
  %6260 = vset.pattern.permute.xlu0 0
  %6261 = vperm.xlu0 %6260, %v5995
  %v6262 = vpop.permute.xlu0 %6261
  %6265 = vset.pattern.permute.xlu0 0
  %6266 = vperm.xlu0 %6265, %v5996
  %v6267 = vpop.permute.xlu0 %6266
  %6270 = vset.pattern.permute.xlu0 0
  %6271 = vperm.xlu0 %6270, %v5997
  %v6272 = vpop.permute.xlu0 %6271
  %6275 = vset.pattern.permute.xlu0 0
  %6276 = vperm.xlu0 %6275, %v5998
  %v6277 = vpop.permute.xlu0 %6276
  %6280 = vset.pattern.permute.xlu0 0
  %6281 = vperm.xlu0 %6280, %v5999
  %v6282 = vpop.permute.xlu0 %6281
  %6285 = vset.pattern.permute.xlu0 0
  %6286 = vperm.xlu0 %6285, %v6000
  %v6287 = vpop.permute.xlu0 %6286
  %6290 = vset.pattern.permute.xlu0 0
  %6291 = vperm.xlu0 %6290, %v6001
  %v6292 = vpop.permute.xlu0 %6291
  %6295 = vset.pattern.permute.xlu0 0
  %6296 = vperm.xlu0 %6295, %v6002
  %v6297 = vpop.permute.xlu0 %6296
  %6300 = vset.pattern.permute.xlu0 0
  %6301 = vperm.xlu0 %6300, %v6003
  %v6302 = vpop.permute.xlu0 %6301
  %6305 = vset.pattern.permute.xlu0 0
  %6306 = vperm.xlu0 %6305, %v6004
  %v6307 = vpop.permute.xlu0 %6306
  %6310 = vset.pattern.permute.xlu0 0
  %6311 = vperm.xlu0 %6310, %v6005
  %v6312 = vpop.permute.xlu0 %6311
  %6315 = vset.pattern.permute.xlu0 0
  %6316 = vperm.xlu0 %6315, %v6006
  %v6317 = vpop.permute.xlu0 %6316
  %6320 = vset.pattern.permute.xlu0 0
  %6321 = vperm.xlu0 %6320, %v6007
  %v6322 = vpop.permute.xlu0 %6321
  %6325 = vset.pattern.permute.xlu0 0
  %6326 = vperm.xlu0 %6325, %v6008
  %v6327 = vpop.permute.xlu0 %6326
  %v6329 = vmul.f32 %v5880, %v6012
  %v6330 = vmul.f32 %v5881, %v6017
  %v6331 = vmul.f32 %v5882, %v6022
  %v6332 = vmul.f32 %v5883, %v6027
  %v6333 = vmul.f32 %v5884, %v6032
  %v6334 = vmul.f32 %v5885, %v6037
  %v6335 = vmul.f32 %v5886, %v6042
  %v6336 = vmul.f32 %v5887, %v6047
  %v6337 = vmul.f32 %v5888, %v6052
  %v6338 = vmul.f32 %v5889, %v6057
  %v6339 = vmul.f32 %v5890, %v6062
  %v6340 = vmul.f32 %v5891, %v6067
  %v6341 = vmul.f32 %v5892, %v6072
  %v6342 = vmul.f32 %v5893, %v6077
  %v6343 = vmul.f32 %v5894, %v6082
  %v6344 = vmul.f32 %v5895, %v6087
  %v6345 = vmul.f32 %v5896, %v6092
  %v6346 = vmul.f32 %v5897, %v6097
  %v6347 = vmul.f32 %v5898, %v6102
  %v6348 = vmul.f32 %v5899, %v6107
  %v6349 = vmul.f32 %v5900, %v6112
  %v6350 = vmul.f32 %v5901, %v6117
  %v6351 = vmul.f32 %v5902, %v6122
  %v6352 = vmul.f32 %v5903, %v6127
  %v6353 = vmul.f32 %v5904, %v6132
  %v6354 = vmul.f32 %v5905, %v6137
  %v6355 = vmul.f32 %v5906, %v6142
  %v6356 = vmul.f32 %v5907, %v6147
  %v6357 = vmul.f32 %v5908, %v6152
  %v6358 = vmul.f32 %v5909, %v6157
  %v6359 = vmul.f32 %v5910, %v6162
  %v6360 = vmul.f32 %v5911, %v6167
  %v6361 = vmul.f32 %v5912, %v6172
  %v6362 = vmul.f32 %v5913, %v6177
  %v6363 = vmul.f32 %v5914, %v6182
  %v6364 = vmul.f32 %v5915, %v6187
  %v6365 = vmul.f32 %v5916, %v6192
  %v6366 = vmul.f32 %v5917, %v6197
  %v6367 = vmul.f32 %v5918, %v6202
  %v6368 = vmul.f32 %v5919, %v6207
  %v6369 = vmul.f32 %v5920, %v6212
  %v6370 = vmul.f32 %v5921, %v6217
  %v6371 = vmul.f32 %v5922, %v6222
  %v6372 = vmul.f32 %v5923, %v6227
  %v6373 = vmul.f32 %v5924, %v6232
  %v6374 = vmul.f32 %v5925, %v6237
  %v6375 = vmul.f32 %v5926, %v6242
  %v6376 = vmul.f32 %v5927, %v6247
  %v6377 = vmul.f32 %v5928, %v6252
  %v6378 = vmul.f32 %v5929, %v6257
  %v6379 = vmul.f32 %v5930, %v6262
  %v6380 = vmul.f32 %v5931, %v6267
  %v6381 = vmul.f32 %v5932, %v6272
  %v6382 = vmul.f32 %v5933, %v6277
  %v6383 = vmul.f32 %v5934, %v6282
  %v6384 = vmul.f32 %v5935, %v6287
  %v6385 = vmul.f32 %v5936, %v6292
  %v6386 = vmul.f32 %v5937, %v6297
  %v6387 = vmul.f32 %v5938, %v6302
  %v6388 = vmul.f32 %v5939, %v6307
  %v6389 = vmul.f32 %v5940, %v6312
  %v6390 = vmul.f32 %v5941, %v6317
  %v6391 = vmul.f32 %v5942, %v6322
  %v6392 = vmul.f32 %v5943, %v6327
  %s6393 = scalar_lea.vmem %s1, 896
  %v6394 = vld [vmem:[%s6393] sm:$0xff]
  %v6395 = vld [vmem:[%s6393 + $0x8] sm:$0xff]
  %v6396 = vld [vmem:[%s6393 + $0x10] sm:$0xff]
  %v6397 = vld [vmem:[%s6393 + $0x18] sm:$0xff]
  %v6398 = vld [vmem:[%s6393 + $0x20] sm:$0xff]
  %v6399 = vld [vmem:[%s6393 + $0x28] sm:$0xff]
  %v6400 = vld [vmem:[%s6393 + $0x30] sm:$0xff]
  %v6401 = vld [vmem:[%s6393 + $0x38] sm:$0xff]
  %v6402 = vld [vmem:[%s6393 + $0x40] sm:$0xff]
  %v6403 = vld [vmem:[%s6393 + $0x48] sm:$0xff]
  %v6404 = vld [vmem:[%s6393 + $0x50] sm:$0xff]
  %v6405 = vld [vmem:[%s6393 + $0x58] sm:$0xff]
  %v6406 = vld [vmem:[%s6393 + $0x60] sm:$0xff]
  %v6407 = vld [vmem:[%s6393 + $0x68] sm:$0xff]
  %v6408 = vld [vmem:[%s6393 + $0x70] sm:$0xff]
  %v6409 = vld [vmem:[%s6393 + $0x78] sm:$0xff]
  %6410 = vmatpush.msra.mxu0 %v6409
  %6411 = vmatpush.msra.mxu0 %v6408
  %6412 = vmatpush.msra.mxu0 %v6407
  %6413 = vmatpush.msra.mxu0 %v6406
  %6414 = vmatpush.msra.mxu0 %v6405
  %6415 = vmatpush.msra.mxu0 %v6404
  %6416 = vmatpush.msra.mxu0 %v6403
  %6417 = vmatpush.msra.mxu0 %v6402
  %6418 = vmatpush.msra.mxu0 %v6401
  %6419 = vmatpush.msra.mxu0 %v6400
  %6420 = vmatpush.msra.mxu0 %v6399
  %6421 = vmatpush.msra.mxu0 %v6398
  %6422 = vmatpush.msra.mxu0 %v6397
  %6423 = vmatpush.msra.mxu0 %v6396
  %6424 = vmatpush.msra.mxu0 %v6395
  %6425 = vmatpush.msra.mxu0 %v6394
  %6426 = vmatmul.f32.gmra.mxu0 %v6329
  %v6427 = vpop.f32.mrf.mxu0
  %v6428 = vadd.f32 0.0, %v6427
  %6429 = vmatmul.f32.gmra.mxu0 %v6330
  %v6430 = vpop.f32.mrf.mxu0
  %v6431 = vadd.f32 0.0, %v6430
  %6432 = vmatmul.f32.gmra.mxu0 %v6331
  %v6433 = vpop.f32.mrf.mxu0
  %v6434 = vadd.f32 0.0, %v6433
  %6435 = vmatmul.f32.gmra.mxu0 %v6332
  %v6436 = vpop.f32.mrf.mxu0
  %v6437 = vadd.f32 0.0, %v6436
  %6438 = vmatmul.f32.gmra.mxu0 %v6333
  %v6439 = vpop.f32.mrf.mxu0
  %v6440 = vadd.f32 0.0, %v6439
  %6441 = vmatmul.f32.gmra.mxu0 %v6334
  %v6442 = vpop.f32.mrf.mxu0
  %v6443 = vadd.f32 0.0, %v6442
  %6444 = vmatmul.f32.gmra.mxu0 %v6335
  %v6445 = vpop.f32.mrf.mxu0
  %v6446 = vadd.f32 0.0, %v6445
  %6447 = vmatmul.f32.gmra.mxu0 %v6336
  %v6448 = vpop.f32.mrf.mxu0
  %v6449 = vadd.f32 0.0, %v6448
  %6450 = vmatmul.f32.gmra.mxu0 %v6337
  %v6451 = vpop.f32.mrf.mxu0
  %v6452 = vadd.f32 0.0, %v6451
  %6453 = vmatmul.f32.gmra.mxu0 %v6338
  %v6454 = vpop.f32.mrf.mxu0
  %v6455 = vadd.f32 0.0, %v6454
  %6456 = vmatmul.f32.gmra.mxu0 %v6339
  %v6457 = vpop.f32.mrf.mxu0
  %v6458 = vadd.f32 0.0, %v6457
  %6459 = vmatmul.f32.gmra.mxu0 %v6340
  %v6460 = vpop.f32.mrf.mxu0
  %v6461 = vadd.f32 0.0, %v6460
  %6462 = vmatmul.f32.gmra.mxu0 %v6341
  %v6463 = vpop.f32.mrf.mxu0
  %v6464 = vadd.f32 0.0, %v6463
  %6465 = vmatmul.f32.gmra.mxu0 %v6342
  %v6466 = vpop.f32.mrf.mxu0
  %v6467 = vadd.f32 0.0, %v6466
  %6468 = vmatmul.f32.gmra.mxu0 %v6343
  %v6469 = vpop.f32.mrf.mxu0
  %v6470 = vadd.f32 0.0, %v6469
  %6471 = vmatmul.f32.gmra.mxu0 %v6344
  %v6472 = vpop.f32.mrf.mxu0
  %v6473 = vadd.f32 0.0, %v6472
  %6474 = vmatmul.f32.gmra.mxu0 %v6345
  %v6475 = vpop.f32.mrf.mxu0
  %v6476 = vadd.f32 0.0, %v6475
  %6477 = vmatmul.f32.gmra.mxu0 %v6346
  %v6478 = vpop.f32.mrf.mxu0
  %v6479 = vadd.f32 0.0, %v6478
  %6480 = vmatmul.f32.gmra.mxu0 %v6347
  %v6481 = vpop.f32.mrf.mxu0
  %v6482 = vadd.f32 0.0, %v6481
  %6483 = vmatmul.f32.gmra.mxu0 %v6348
  %v6484 = vpop.f32.mrf.mxu0
  %v6485 = vadd.f32 0.0, %v6484
  %6486 = vmatmul.f32.gmra.mxu0 %v6349
  %v6487 = vpop.f32.mrf.mxu0
  %v6488 = vadd.f32 0.0, %v6487
  %6489 = vmatmul.f32.gmra.mxu0 %v6350
  %v6490 = vpop.f32.mrf.mxu0
  %v6491 = vadd.f32 0.0, %v6490
  %6492 = vmatmul.f32.gmra.mxu0 %v6351
  %v6493 = vpop.f32.mrf.mxu0
  %v6494 = vadd.f32 0.0, %v6493
  %6495 = vmatmul.f32.gmra.mxu0 %v6352
  %v6496 = vpop.f32.mrf.mxu0
  %v6497 = vadd.f32 0.0, %v6496
  %6498 = vmatmul.f32.gmra.mxu0 %v6353
  %v6499 = vpop.f32.mrf.mxu0
  %v6500 = vadd.f32 0.0, %v6499
  %6501 = vmatmul.f32.gmra.mxu0 %v6354
  %v6502 = vpop.f32.mrf.mxu0
  %v6503 = vadd.f32 0.0, %v6502
  %6504 = vmatmul.f32.gmra.mxu0 %v6355
  %v6505 = vpop.f32.mrf.mxu0
  %v6506 = vadd.f32 0.0, %v6505
  %6507 = vmatmul.f32.gmra.mxu0 %v6356
  %v6508 = vpop.f32.mrf.mxu0
  %v6509 = vadd.f32 0.0, %v6508
  %6510 = vmatmul.f32.gmra.mxu0 %v6357
  %v6511 = vpop.f32.mrf.mxu0
  %v6512 = vadd.f32 0.0, %v6511
  %6513 = vmatmul.f32.gmra.mxu0 %v6358
  %v6514 = vpop.f32.mrf.mxu0
  %v6515 = vadd.f32 0.0, %v6514
  %6516 = vmatmul.f32.gmra.mxu0 %v6359
  %v6517 = vpop.f32.mrf.mxu0
  %v6518 = vadd.f32 0.0, %v6517
  %6519 = vmatmul.f32.gmra.mxu0 %v6360
  %v6520 = vpop.f32.mrf.mxu0
  %v6521 = vadd.f32 0.0, %v6520
  %6522 = vmatmul.f32.gmra.mxu0 %v6361
  %v6523 = vpop.f32.mrf.mxu0
  %v6524 = vadd.f32 0.0, %v6523
  %6525 = vmatmul.f32.gmra.mxu0 %v6362
  %v6526 = vpop.f32.mrf.mxu0
  %v6527 = vadd.f32 0.0, %v6526
  %6528 = vmatmul.f32.gmra.mxu0 %v6363
  %v6529 = vpop.f32.mrf.mxu0
  %v6530 = vadd.f32 0.0, %v6529
  %6531 = vmatmul.f32.gmra.mxu0 %v6364
  %v6532 = vpop.f32.mrf.mxu0
  %v6533 = vadd.f32 0.0, %v6532
  %6534 = vmatmul.f32.gmra.mxu0 %v6365
  %v6535 = vpop.f32.mrf.mxu0
  %v6536 = vadd.f32 0.0, %v6535
  %6537 = vmatmul.f32.gmra.mxu0 %v6366
  %v6538 = vpop.f32.mrf.mxu0
  %v6539 = vadd.f32 0.0, %v6538
  %6540 = vmatmul.f32.gmra.mxu0 %v6367
  %v6541 = vpop.f32.mrf.mxu0
  %v6542 = vadd.f32 0.0, %v6541
  %6543 = vmatmul.f32.gmra.mxu0 %v6368
  %v6544 = vpop.f32.mrf.mxu0
  %v6545 = vadd.f32 0.0, %v6544
  %6546 = vmatmul.f32.gmra.mxu0 %v6369
  %v6547 = vpop.f32.mrf.mxu0
  %v6548 = vadd.f32 0.0, %v6547
  %6549 = vmatmul.f32.gmra.mxu0 %v6370
  %v6550 = vpop.f32.mrf.mxu0
  %v6551 = vadd.f32 0.0, %v6550
  %6552 = vmatmul.f32.gmra.mxu0 %v6371
  %v6553 = vpop.f32.mrf.mxu0
  %v6554 = vadd.f32 0.0, %v6553
  %6555 = vmatmul.f32.gmra.mxu0 %v6372
  %v6556 = vpop.f32.mrf.mxu0
  %v6557 = vadd.f32 0.0, %v6556
  %6558 = vmatmul.f32.gmra.mxu0 %v6373
  %v6559 = vpop.f32.mrf.mxu0
  %v6560 = vadd.f32 0.0, %v6559
  %6561 = vmatmul.f32.gmra.mxu0 %v6374
  %v6562 = vpop.f32.mrf.mxu0
  %v6563 = vadd.f32 0.0, %v6562
  %6564 = vmatmul.f32.gmra.mxu0 %v6375
  %v6565 = vpop.f32.mrf.mxu0
  %v6566 = vadd.f32 0.0, %v6565
  %6567 = vmatmul.f32.gmra.mxu0 %v6376
  %v6568 = vpop.f32.mrf.mxu0
  %v6569 = vadd.f32 0.0, %v6568
  %6570 = vmatmul.f32.gmra.mxu0 %v6377
  %v6571 = vpop.f32.mrf.mxu0
  %v6572 = vadd.f32 0.0, %v6571
  %6573 = vmatmul.f32.gmra.mxu0 %v6378
  %v6574 = vpop.f32.mrf.mxu0
  %v6575 = vadd.f32 0.0, %v6574
  %6576 = vmatmul.f32.gmra.mxu0 %v6379
  %v6577 = vpop.f32.mrf.mxu0
  %v6578 = vadd.f32 0.0, %v6577
  %6579 = vmatmul.f32.gmra.mxu0 %v6380
  %v6580 = vpop.f32.mrf.mxu0
  %v6581 = vadd.f32 0.0, %v6580
  %6582 = vmatmul.f32.gmra.mxu0 %v6381
  %v6583 = vpop.f32.mrf.mxu0
  %v6584 = vadd.f32 0.0, %v6583
  %6585 = vmatmul.f32.gmra.mxu0 %v6382
  %v6586 = vpop.f32.mrf.mxu0
  %v6587 = vadd.f32 0.0, %v6586
  %6588 = vmatmul.f32.gmra.mxu0 %v6383
  %v6589 = vpop.f32.mrf.mxu0
  %v6590 = vadd.f32 0.0, %v6589
  %6591 = vmatmul.f32.gmra.mxu0 %v6384
  %v6592 = vpop.f32.mrf.mxu0
  %v6593 = vadd.f32 0.0, %v6592
  %6594 = vmatmul.f32.gmra.mxu0 %v6385
  %v6595 = vpop.f32.mrf.mxu0
  %v6596 = vadd.f32 0.0, %v6595
  %6597 = vmatmul.f32.gmra.mxu0 %v6386
  %v6598 = vpop.f32.mrf.mxu0
  %v6599 = vadd.f32 0.0, %v6598
  %6600 = vmatmul.f32.gmra.mxu0 %v6387
  %v6601 = vpop.f32.mrf.mxu0
  %v6602 = vadd.f32 0.0, %v6601
  %6603 = vmatmul.f32.gmra.mxu0 %v6388
  %v6604 = vpop.f32.mrf.mxu0
  %v6605 = vadd.f32 0.0, %v6604
  %6606 = vmatmul.f32.gmra.mxu0 %v6389
  %v6607 = vpop.f32.mrf.mxu0
  %v6608 = vadd.f32 0.0, %v6607
  %6609 = vmatmul.f32.gmra.mxu0 %v6390
  %v6610 = vpop.f32.mrf.mxu0
  %v6611 = vadd.f32 0.0, %v6610
  %6612 = vmatmul.f32.gmra.mxu0 %v6391
  %v6613 = vpop.f32.mrf.mxu0
  %v6614 = vadd.f32 0.0, %v6613
  %6615 = vmatmul.f32.gmra.mxu0 %v6392
  %v6616 = vpop.f32.mrf.mxu0
  %v6617 = vadd.f32 0.0, %v6616
  %6618 = vdwg.mxu0
  %v6619 = vadd.f32 %v5816, %v6428
  %v6620 = vadd.f32 %v5817, %v6431
  %v6621 = vadd.f32 %v5818, %v6434
  %v6622 = vadd.f32 %v5819, %v6437
  %v6623 = vadd.f32 %v5820, %v6440
  %v6624 = vadd.f32 %v5821, %v6443
  %v6625 = vadd.f32 %v5822, %v6446
  %v6626 = vadd.f32 %v5823, %v6449
  %v6627 = vadd.f32 %v5824, %v6452
  %v6628 = vadd.f32 %v5825, %v6455
  %v6629 = vadd.f32 %v5826, %v6458
  %v6630 = vadd.f32 %v5827, %v6461
  %v6631 = vadd.f32 %v5828, %v6464
  %v6632 = vadd.f32 %v5829, %v6467
  %v6633 = vadd.f32 %v5830, %v6470
  %v6634 = vadd.f32 %v5831, %v6473
  %v6635 = vadd.f32 %v5832, %v6476
  %v6636 = vadd.f32 %v5833, %v6479
  %v6637 = vadd.f32 %v5834, %v6482
  %v6638 = vadd.f32 %v5835, %v6485
  %v6639 = vadd.f32 %v5836, %v6488
  %v6640 = vadd.f32 %v5837, %v6491
  %v6641 = vadd.f32 %v5838, %v6494
  %v6642 = vadd.f32 %v5839, %v6497
  %v6643 = vadd.f32 %v5840, %v6500
  %v6644 = vadd.f32 %v5841, %v6503
  %v6645 = vadd.f32 %v5842, %v6506
  %v6646 = vadd.f32 %v5843, %v6509
  %v6647 = vadd.f32 %v5844, %v6512
  %v6648 = vadd.f32 %v5845, %v6515
  %v6649 = vadd.f32 %v5846, %v6518
  %v6650 = vadd.f32 %v5847, %v6521
  %v6651 = vadd.f32 %v5848, %v6524
  %v6652 = vadd.f32 %v5849, %v6527
  %v6653 = vadd.f32 %v5850, %v6530
  %v6654 = vadd.f32 %v5851, %v6533
  %v6655 = vadd.f32 %v5852, %v6536
  %v6656 = vadd.f32 %v5853, %v6539
  %v6657 = vadd.f32 %v5854, %v6542
  %v6658 = vadd.f32 %v5855, %v6545
  %v6659 = vadd.f32 %v5856, %v6548
  %v6660 = vadd.f32 %v5857, %v6551
  %v6661 = vadd.f32 %v5858, %v6554
  %v6662 = vadd.f32 %v5859, %v6557
  %v6663 = vadd.f32 %v5860, %v6560
  %v6664 = vadd.f32 %v5861, %v6563
  %v6665 = vadd.f32 %v5862, %v6566
  %v6666 = vadd.f32 %v5863, %v6569
  %v6667 = vadd.f32 %v5864, %v6572
  %v6668 = vadd.f32 %v5865, %v6575
  %v6669 = vadd.f32 %v5866, %v6578
  %v6670 = vadd.f32 %v5867, %v6581
  %v6671 = vadd.f32 %v5868, %v6584
  %v6672 = vadd.f32 %v5869, %v6587
  %v6673 = vadd.f32 %v5870, %v6590
  %v6674 = vadd.f32 %v5871, %v6593
  %v6675 = vadd.f32 %v5872, %v6596
  %v6676 = vadd.f32 %v5873, %v6599
  %v6677 = vadd.f32 %v5874, %v6602
  %v6678 = vadd.f32 %v5875, %v6605
  %v6679 = vadd.f32 %v5876, %v6608
  %v6680 = vadd.f32 %v5877, %v6611
  %v6681 = vadd.f32 %v5878, %v6614
  %v6682 = vadd.f32 %v5879, %v6617
  %v6683 = vld [vmem:[#allocation2 + $0x29] sm:$0xff]
  %v6684 = vld [vmem:[#allocation2 + $0x31] sm:$0xff]
  %v6685 = vld [vmem:[#allocation2 + $0x39] sm:$0xff]
  %v6686 = vld [vmem:[#allocation2 + $0x41] sm:$0xff]
  %v6687 = vld [vmem:[#allocation2 + $0x49] sm:$0xff]
  %v6688 = vld [vmem:[#allocation2 + $0x51] sm:$0xff]
  %v6689 = vld [vmem:[#allocation2 + $0x59] sm:$0xff]
  %v6690 = vld [vmem:[#allocation2 + $0x61] sm:$0xff]
  %v6691 = vld [vmem:[#allocation2 + $0x69] sm:$0xff]
  %v6692 = vld [vmem:[#allocation2 + $0x71] sm:$0xff]
  %v6693 = vld [vmem:[#allocation2 + $0x79] sm:$0xff]
  %v6694 = vld [vmem:[#allocation2 + $0x81] sm:$0xff]
  %v6695 = vld [vmem:[#allocation2 + $0x89] sm:$0xff]
  %v6696 = vld [vmem:[#allocation2 + $0x91] sm:$0xff]
  %v6697 = vld [vmem:[#allocation2 + $0x99] sm:$0xff]
  %v6698 = vld [vmem:[#allocation2 + $0xa1] sm:$0xff]
  %v6699 = vld [vmem:[#allocation2 + $0xa9] sm:$0xff]
  %v6700 = vld [vmem:[#allocation2 + $0xb1] sm:$0xff]
  %v6701 = vld [vmem:[#allocation2 + $0xb9] sm:$0xff]
  %v6702 = vld [vmem:[#allocation2 + $0xc1] sm:$0xff]
  %v6703 = vld [vmem:[#allocation2 + $0xc9] sm:$0xff]
  %v6704 = vld [vmem:[#allocation2 + $0xd1] sm:$0xff]
  %v6705 = vld [vmem:[#allocation2 + $0xd9] sm:$0xff]
  %v6706 = vld [vmem:[#allocation2 + $0xe1] sm:$0xff]
  %v6707 = vld [vmem:[#allocation2 + $0xe9] sm:$0xff]
  %v6708 = vld [vmem:[#allocation2 + $0xf1] sm:$0xff]
  %v6709 = vld [vmem:[#allocation2 + $0xf9] sm:$0xff]
  %v6710 = vld [vmem:[#allocation2 + $0x101] sm:$0xff]
  %v6711 = vld [vmem:[#allocation2 + $0x109] sm:$0xff]
  %v6712 = vld [vmem:[#allocation2 + $0x111] sm:$0xff]
  %v6713 = vld [vmem:[#allocation2 + $0x119] sm:$0xff]
  %v6714 = vld [vmem:[#allocation2 + $0x121] sm:$0xff]
  %v6715 = vld [vmem:[#allocation2 + $0x129] sm:$0xff]
  %v6716 = vld [vmem:[#allocation2 + $0x131] sm:$0xff]
  %v6717 = vld [vmem:[#allocation2 + $0x139] sm:$0xff]
  %v6718 = vld [vmem:[#allocation2 + $0x141] sm:$0xff]
  %v6719 = vld [vmem:[#allocation2 + $0x149] sm:$0xff]
  %v6720 = vld [vmem:[#allocation2 + $0x151] sm:$0xff]
  %v6721 = vld [vmem:[#allocation2 + $0x159] sm:$0xff]
  %v6722 = vld [vmem:[#allocation2 + $0x161] sm:$0xff]
  %v6723 = vld [vmem:[#allocation2 + $0x169] sm:$0xff]
  %v6724 = vld [vmem:[#allocation2 + $0x171] sm:$0xff]
  %v6725 = vld [vmem:[#allocation2 + $0x179] sm:$0xff]
  %v6726 = vld [vmem:[#allocation2 + $0x181] sm:$0xff]
  %v6727 = vld [vmem:[#allocation2 + $0x189] sm:$0xff]
  %v6728 = vld [vmem:[#allocation2 + $0x191] sm:$0xff]
  %v6729 = vld [vmem:[#allocation2 + $0x199] sm:$0xff]
  %v6730 = vld [vmem:[#allocation2 + $0x1a1] sm:$0xff]
  %v6731 = vld [vmem:[#allocation2 + $0x1a9] sm:$0xff]
  %v6732 = vld [vmem:[#allocation2 + $0x1b1] sm:$0xff]
  %v6733 = vld [vmem:[#allocation2 + $0x1b9] sm:$0xff]
  %v6734 = vld [vmem:[#allocation2 + $0x1c1] sm:$0xff]
  %v6735 = vld [vmem:[#allocation2 + $0x1c9] sm:$0xff]
  %v6736 = vld [vmem:[#allocation2 + $0x1d1] sm:$0xff]
  %v6737 = vld [vmem:[#allocation2 + $0x1d9] sm:$0xff]
  %v6738 = vld [vmem:[#allocation2 + $0x1e1] sm:$0xff]
  %v6739 = vld [vmem:[#allocation2 + $0x1e9] sm:$0xff]
  %v6740 = vld [vmem:[#allocation2 + $0x1f1] sm:$0xff]
  %v6741 = vld [vmem:[#allocation2 + $0x1f9] sm:$0xff]
  %v6742 = vld [vmem:[#allocation2 + $0x201] sm:$0xff]
  %v6743 = vld [vmem:[#allocation2 + $0x209] sm:$0xff]
  %v6744 = vld [vmem:[#allocation2 + $0x211] sm:$0xff]
  %v6745 = vld [vmem:[#allocation2 + $0x219] sm:$0xff]
  %v6746 = vld [vmem:[#allocation2 + $0x221] sm:$0xff]
  %s6747 = scalar_lea.vmem %s3, 4096
  %v6748 = vld [vmem:[%s6747] sm:$0xff]
  %v6749 = vld [vmem:[%s6747 + $0x8] sm:$0xff]
  %v6750 = vld [vmem:[%s6747 + $0x10] sm:$0xff]
  %v6751 = vld [vmem:[%s6747 + $0x18] sm:$0xff]
  %v6752 = vld [vmem:[%s6747 + $0x20] sm:$0xff]
  %v6753 = vld [vmem:[%s6747 + $0x28] sm:$0xff]
  %v6754 = vld [vmem:[%s6747 + $0x30] sm:$0xff]
  %v6755 = vld [vmem:[%s6747 + $0x38] sm:$0xff]
  %v6756 = vld [vmem:[%s6747 + $0x40] sm:$0xff]
  %v6757 = vld [vmem:[%s6747 + $0x48] sm:$0xff]
  %v6758 = vld [vmem:[%s6747 + $0x50] sm:$0xff]
  %v6759 = vld [vmem:[%s6747 + $0x58] sm:$0xff]
  %v6760 = vld [vmem:[%s6747 + $0x60] sm:$0xff]
  %v6761 = vld [vmem:[%s6747 + $0x68] sm:$0xff]
  %v6762 = vld [vmem:[%s6747 + $0x70] sm:$0xff]
  %v6763 = vld [vmem:[%s6747 + $0x78] sm:$0xff]
  %v6764 = vld [vmem:[%s6747 + $0x80] sm:$0xff]
  %v6765 = vld [vmem:[%s6747 + $0x88] sm:$0xff]
  %v6766 = vld [vmem:[%s6747 + $0x90] sm:$0xff]
  %v6767 = vld [vmem:[%s6747 + $0x98] sm:$0xff]
  %v6768 = vld [vmem:[%s6747 + $0xa0] sm:$0xff]
  %v6769 = vld [vmem:[%s6747 + $0xa8] sm:$0xff]
  %v6770 = vld [vmem:[%s6747 + $0xb0] sm:$0xff]
  %v6771 = vld [vmem:[%s6747 + $0xb8] sm:$0xff]
  %v6772 = vld [vmem:[%s6747 + $0xc0] sm:$0xff]
  %v6773 = vld [vmem:[%s6747 + $0xc8] sm:$0xff]
  %v6774 = vld [vmem:[%s6747 + $0xd0] sm:$0xff]
  %v6775 = vld [vmem:[%s6747 + $0xd8] sm:$0xff]
  %v6776 = vld [vmem:[%s6747 + $0xe0] sm:$0xff]
  %v6777 = vld [vmem:[%s6747 + $0xe8] sm:$0xff]
  %v6778 = vld [vmem:[%s6747 + $0xf0] sm:$0xff]
  %v6779 = vld [vmem:[%s6747 + $0xf8] sm:$0xff]
  %v6780 = vld [vmem:[%s6747 + $0x100] sm:$0xff]
  %v6781 = vld [vmem:[%s6747 + $0x108] sm:$0xff]
  %v6782 = vld [vmem:[%s6747 + $0x110] sm:$0xff]
  %v6783 = vld [vmem:[%s6747 + $0x118] sm:$0xff]
  %v6784 = vld [vmem:[%s6747 + $0x120] sm:$0xff]
  %v6785 = vld [vmem:[%s6747 + $0x128] sm:$0xff]
  %v6786 = vld [vmem:[%s6747 + $0x130] sm:$0xff]
  %v6787 = vld [vmem:[%s6747 + $0x138] sm:$0xff]
  %v6788 = vld [vmem:[%s6747 + $0x140] sm:$0xff]
  %v6789 = vld [vmem:[%s6747 + $0x148] sm:$0xff]
  %v6790 = vld [vmem:[%s6747 + $0x150] sm:$0xff]
  %v6791 = vld [vmem:[%s6747 + $0x158] sm:$0xff]
  %v6792 = vld [vmem:[%s6747 + $0x160] sm:$0xff]
  %v6793 = vld [vmem:[%s6747 + $0x168] sm:$0xff]
  %v6794 = vld [vmem:[%s6747 + $0x170] sm:$0xff]
  %v6795 = vld [vmem:[%s6747 + $0x178] sm:$0xff]
  %v6796 = vld [vmem:[%s6747 + $0x180] sm:$0xff]
  %v6797 = vld [vmem:[%s6747 + $0x188] sm:$0xff]
  %v6798 = vld [vmem:[%s6747 + $0x190] sm:$0xff]
  %v6799 = vld [vmem:[%s6747 + $0x198] sm:$0xff]
  %v6800 = vld [vmem:[%s6747 + $0x1a0] sm:$0xff]
  %v6801 = vld [vmem:[%s6747 + $0x1a8] sm:$0xff]
  %v6802 = vld [vmem:[%s6747 + $0x1b0] sm:$0xff]
  %v6803 = vld [vmem:[%s6747 + $0x1b8] sm:$0xff]
  %v6804 = vld [vmem:[%s6747 + $0x1c0] sm:$0xff]
  %v6805 = vld [vmem:[%s6747 + $0x1c8] sm:$0xff]
  %v6806 = vld [vmem:[%s6747 + $0x1d0] sm:$0xff]
  %v6807 = vld [vmem:[%s6747 + $0x1d8] sm:$0xff]
  %v6808 = vld [vmem:[%s6747 + $0x1e0] sm:$0xff]
  %v6809 = vld [vmem:[%s6747 + $0x1e8] sm:$0xff]
  %v6810 = vld [vmem:[%s6747 + $0x1f0] sm:$0xff]
  %v6811 = vld [vmem:[%s6747 + $0x1f8] sm:$0xff]
  %6813 = vset.pattern.permute.xlu0 0
  %6814 = vperm.xlu0 %6813, %v6748
  %v6815 = vpop.permute.xlu0 %6814
  %6818 = vset.pattern.permute.xlu0 0
  %6819 = vperm.xlu0 %6818, %v6749
  %v6820 = vpop.permute.xlu0 %6819
  %6823 = vset.pattern.permute.xlu0 0
  %6824 = vperm.xlu0 %6823, %v6750
  %v6825 = vpop.permute.xlu0 %6824
  %6828 = vset.pattern.permute.xlu0 0
  %6829 = vperm.xlu0 %6828, %v6751
  %v6830 = vpop.permute.xlu0 %6829
  %6833 = vset.pattern.permute.xlu0 0
  %6834 = vperm.xlu0 %6833, %v6752
  %v6835 = vpop.permute.xlu0 %6834
  %6838 = vset.pattern.permute.xlu0 0
  %6839 = vperm.xlu0 %6838, %v6753
  %v6840 = vpop.permute.xlu0 %6839
  %6843 = vset.pattern.permute.xlu0 0
  %6844 = vperm.xlu0 %6843, %v6754
  %v6845 = vpop.permute.xlu0 %6844
  %6848 = vset.pattern.permute.xlu0 0
  %6849 = vperm.xlu0 %6848, %v6755
  %v6850 = vpop.permute.xlu0 %6849
  %6853 = vset.pattern.permute.xlu0 0
  %6854 = vperm.xlu0 %6853, %v6756
  %v6855 = vpop.permute.xlu0 %6854
  %6858 = vset.pattern.permute.xlu0 0
  %6859 = vperm.xlu0 %6858, %v6757
  %v6860 = vpop.permute.xlu0 %6859
  %6863 = vset.pattern.permute.xlu0 0
  %6864 = vperm.xlu0 %6863, %v6758
  %v6865 = vpop.permute.xlu0 %6864
  %6868 = vset.pattern.permute.xlu0 0
  %6869 = vperm.xlu0 %6868, %v6759
  %v6870 = vpop.permute.xlu0 %6869
  %6873 = vset.pattern.permute.xlu0 0
  %6874 = vperm.xlu0 %6873, %v6760
  %v6875 = vpop.permute.xlu0 %6874
  %6878 = vset.pattern.permute.xlu0 0
  %6879 = vperm.xlu0 %6878, %v6761
  %v6880 = vpop.permute.xlu0 %6879
  %6883 = vset.pattern.permute.xlu0 0
  %6884 = vperm.xlu0 %6883, %v6762
  %v6885 = vpop.permute.xlu0 %6884
  %6888 = vset.pattern.permute.xlu0 0
  %6889 = vperm.xlu0 %6888, %v6763
  %v6890 = vpop.permute.xlu0 %6889
  %6893 = vset.pattern.permute.xlu0 0
  %6894 = vperm.xlu0 %6893, %v6764
  %v6895 = vpop.permute.xlu0 %6894
  %6898 = vset.pattern.permute.xlu0 0
  %6899 = vperm.xlu0 %6898, %v6765
  %v6900 = vpop.permute.xlu0 %6899
  %6903 = vset.pattern.permute.xlu0 0
  %6904 = vperm.xlu0 %6903, %v6766
  %v6905 = vpop.permute.xlu0 %6904
  %6908 = vset.pattern.permute.xlu0 0
  %6909 = vperm.xlu0 %6908, %v6767
  %v6910 = vpop.permute.xlu0 %6909
  %6913 = vset.pattern.permute.xlu0 0
  %6914 = vperm.xlu0 %6913, %v6768
  %v6915 = vpop.permute.xlu0 %6914
  %6918 = vset.pattern.permute.xlu0 0
  %6919 = vperm.xlu0 %6918, %v6769
  %v6920 = vpop.permute.xlu0 %6919
  %6923 = vset.pattern.permute.xlu0 0
  %6924 = vperm.xlu0 %6923, %v6770
  %v6925 = vpop.permute.xlu0 %6924
  %6928 = vset.pattern.permute.xlu0 0
  %6929 = vperm.xlu0 %6928, %v6771
  %v6930 = vpop.permute.xlu0 %6929
  %6933 = vset.pattern.permute.xlu0 0
  %6934 = vperm.xlu0 %6933, %v6772
  %v6935 = vpop.permute.xlu0 %6934
  %6938 = vset.pattern.permute.xlu0 0
  %6939 = vperm.xlu0 %6938, %v6773
  %v6940 = vpop.permute.xlu0 %6939
  %6943 = vset.pattern.permute.xlu0 0
  %6944 = vperm.xlu0 %6943, %v6774
  %v6945 = vpop.permute.xlu0 %6944
  %6948 = vset.pattern.permute.xlu0 0
  %6949 = vperm.xlu0 %6948, %v6775
  %v6950 = vpop.permute.xlu0 %6949
  %6953 = vset.pattern.permute.xlu0 0
  %6954 = vperm.xlu0 %6953, %v6776
  %v6955 = vpop.permute.xlu0 %6954
  %6958 = vset.pattern.permute.xlu0 0
  %6959 = vperm.xlu0 %6958, %v6777
  %v6960 = vpop.permute.xlu0 %6959
  %6963 = vset.pattern.permute.xlu0 0
  %6964 = vperm.xlu0 %6963, %v6778
  %v6965 = vpop.permute.xlu0 %6964
  %6968 = vset.pattern.permute.xlu0 0
  %6969 = vperm.xlu0 %6968, %v6779
  %v6970 = vpop.permute.xlu0 %6969
  %6973 = vset.pattern.permute.xlu0 0
  %6974 = vperm.xlu0 %6973, %v6780
  %v6975 = vpop.permute.xlu0 %6974
  %6978 = vset.pattern.permute.xlu0 0
  %6979 = vperm.xlu0 %6978, %v6781
  %v6980 = vpop.permute.xlu0 %6979
  %6983 = vset.pattern.permute.xlu0 0
  %6984 = vperm.xlu0 %6983, %v6782
  %v6985 = vpop.permute.xlu0 %6984
  %6988 = vset.pattern.permute.xlu0 0
  %6989 = vperm.xlu0 %6988, %v6783
  %v6990 = vpop.permute.xlu0 %6989
  %6993 = vset.pattern.permute.xlu0 0
  %6994 = vperm.xlu0 %6993, %v6784
  %v6995 = vpop.permute.xlu0 %6994
  %6998 = vset.pattern.permute.xlu0 0
  %6999 = vperm.xlu0 %6998, %v6785
  %v7000 = vpop.permute.xlu0 %6999
  %7003 = vset.pattern.permute.xlu0 0
  %7004 = vperm.xlu0 %7003, %v6786
  %v7005 = vpop.permute.xlu0 %7004
  %7008 = vset.pattern.permute.xlu0 0
  %7009 = vperm.xlu0 %7008, %v6787
  %v7010 = vpop.permute.xlu0 %7009
  %7013 = vset.pattern.permute.xlu0 0
  %7014 = vperm.xlu0 %7013, %v6788
  %v7015 = vpop.permute.xlu0 %7014
  %7018 = vset.pattern.permute.xlu0 0
  %7019 = vperm.xlu0 %7018, %v6789
  %v7020 = vpop.permute.xlu0 %7019
  %7023 = vset.pattern.permute.xlu0 0
  %7024 = vperm.xlu0 %7023, %v6790
  %v7025 = vpop.permute.xlu0 %7024
  %7028 = vset.pattern.permute.xlu0 0
  %7029 = vperm.xlu0 %7028, %v6791
  %v7030 = vpop.permute.xlu0 %7029
  %7033 = vset.pattern.permute.xlu0 0
  %7034 = vperm.xlu0 %7033, %v6792
  %v7035 = vpop.permute.xlu0 %7034
  %7038 = vset.pattern.permute.xlu0 0
  %7039 = vperm.xlu0 %7038, %v6793
  %v7040 = vpop.permute.xlu0 %7039
  %7043 = vset.pattern.permute.xlu0 0
  %7044 = vperm.xlu0 %7043, %v6794
  %v7045 = vpop.permute.xlu0 %7044
  %7048 = vset.pattern.permute.xlu0 0
  %7049 = vperm.xlu0 %7048, %v6795
  %v7050 = vpop.permute.xlu0 %7049
  %7053 = vset.pattern.permute.xlu0 0
  %7054 = vperm.xlu0 %7053, %v6796
  %v7055 = vpop.permute.xlu0 %7054
  %7058 = vset.pattern.permute.xlu0 0
  %7059 = vperm.xlu0 %7058, %v6797
  %v7060 = vpop.permute.xlu0 %7059
  %7063 = vset.pattern.permute.xlu0 0
  %7064 = vperm.xlu0 %7063, %v6798
  %v7065 = vpop.permute.xlu0 %7064
  %7068 = vset.pattern.permute.xlu0 0
  %7069 = vperm.xlu0 %7068, %v6799
  %v7070 = vpop.permute.xlu0 %7069
  %7073 = vset.pattern.permute.xlu0 0
  %7074 = vperm.xlu0 %7073, %v6800
  %v7075 = vpop.permute.xlu0 %7074
  %7078 = vset.pattern.permute.xlu0 0
  %7079 = vperm.xlu0 %7078, %v6801
  %v7080 = vpop.permute.xlu0 %7079
  %7083 = vset.pattern.permute.xlu0 0
  %7084 = vperm.xlu0 %7083, %v6802
  %v7085 = vpop.permute.xlu0 %7084
  %7088 = vset.pattern.permute.xlu0 0
  %7089 = vperm.xlu0 %7088, %v6803
  %v7090 = vpop.permute.xlu0 %7089
  %7093 = vset.pattern.permute.xlu0 0
  %7094 = vperm.xlu0 %7093, %v6804
  %v7095 = vpop.permute.xlu0 %7094
  %7098 = vset.pattern.permute.xlu0 0
  %7099 = vperm.xlu0 %7098, %v6805
  %v7100 = vpop.permute.xlu0 %7099
  %7103 = vset.pattern.permute.xlu0 0
  %7104 = vperm.xlu0 %7103, %v6806
  %v7105 = vpop.permute.xlu0 %7104
  %7108 = vset.pattern.permute.xlu0 0
  %7109 = vperm.xlu0 %7108, %v6807
  %v7110 = vpop.permute.xlu0 %7109
  %7113 = vset.pattern.permute.xlu0 0
  %7114 = vperm.xlu0 %7113, %v6808
  %v7115 = vpop.permute.xlu0 %7114
  %7118 = vset.pattern.permute.xlu0 0
  %7119 = vperm.xlu0 %7118, %v6809
  %v7120 = vpop.permute.xlu0 %7119
  %7123 = vset.pattern.permute.xlu0 0
  %7124 = vperm.xlu0 %7123, %v6810
  %v7125 = vpop.permute.xlu0 %7124
  %7128 = vset.pattern.permute.xlu0 0
  %7129 = vperm.xlu0 %7128, %v6811
  %v7130 = vpop.permute.xlu0 %7129
  %v7132 = vmul.f32 %v6683, %v6815
  %v7133 = vmul.f32 %v6684, %v6820
  %v7134 = vmul.f32 %v6685, %v6825
  %v7135 = vmul.f32 %v6686, %v6830
  %v7136 = vmul.f32 %v6687, %v6835
  %v7137 = vmul.f32 %v6688, %v6840
  %v7138 = vmul.f32 %v6689, %v6845
  %v7139 = vmul.f32 %v6690, %v6850
  %v7140 = vmul.f32 %v6691, %v6855
  %v7141 = vmul.f32 %v6692, %v6860
  %v7142 = vmul.f32 %v6693, %v6865
  %v7143 = vmul.f32 %v6694, %v6870
  %v7144 = vmul.f32 %v6695, %v6875
  %v7145 = vmul.f32 %v6696, %v6880
  %v7146 = vmul.f32 %v6697, %v6885
  %v7147 = vmul.f32 %v6698, %v6890
  %v7148 = vmul.f32 %v6699, %v6895
  %v7149 = vmul.f32 %v6700, %v6900
  %v7150 = vmul.f32 %v6701, %v6905
  %v7151 = vmul.f32 %v6702, %v6910
  %v7152 = vmul.f32 %v6703, %v6915
  %v7153 = vmul.f32 %v6704, %v6920
  %v7154 = vmul.f32 %v6705, %v6925
  %v7155 = vmul.f32 %v6706, %v6930
  %v7156 = vmul.f32 %v6707, %v6935
  %v7157 = vmul.f32 %v6708, %v6940
  %v7158 = vmul.f32 %v6709, %v6945
  %v7159 = vmul.f32 %v6710, %v6950
  %v7160 = vmul.f32 %v6711, %v6955
  %v7161 = vmul.f32 %v6712, %v6960
  %v7162 = vmul.f32 %v6713, %v6965
  %v7163 = vmul.f32 %v6714, %v6970
  %v7164 = vmul.f32 %v6715, %v6975
  %v7165 = vmul.f32 %v6716, %v6980
  %v7166 = vmul.f32 %v6717, %v6985
  %v7167 = vmul.f32 %v6718, %v6990
  %v7168 = vmul.f32 %v6719, %v6995
  %v7169 = vmul.f32 %v6720, %v7000
  %v7170 = vmul.f32 %v6721, %v7005
  %v7171 = vmul.f32 %v6722, %v7010
  %v7172 = vmul.f32 %v6723, %v7015
  %v7173 = vmul.f32 %v6724, %v7020
  %v7174 = vmul.f32 %v6725, %v7025
  %v7175 = vmul.f32 %v6726, %v7030
  %v7176 = vmul.f32 %v6727, %v7035
  %v7177 = vmul.f32 %v6728, %v7040
  %v7178 = vmul.f32 %v6729, %v7045
  %v7179 = vmul.f32 %v6730, %v7050
  %v7180 = vmul.f32 %v6731, %v7055
  %v7181 = vmul.f32 %v6732, %v7060
  %v7182 = vmul.f32 %v6733, %v7065
  %v7183 = vmul.f32 %v6734, %v7070
  %v7184 = vmul.f32 %v6735, %v7075
  %v7185 = vmul.f32 %v6736, %v7080
  %v7186 = vmul.f32 %v6737, %v7085
  %v7187 = vmul.f32 %v6738, %v7090
  %v7188 = vmul.f32 %v6739, %v7095
  %v7189 = vmul.f32 %v6740, %v7100
  %v7190 = vmul.f32 %v6741, %v7105
  %v7191 = vmul.f32 %v6742, %v7110
  %v7192 = vmul.f32 %v6743, %v7115
  %v7193 = vmul.f32 %v6744, %v7120
  %v7194 = vmul.f32 %v6745, %v7125
  %v7195 = vmul.f32 %v6746, %v7130
  %s7196 = scalar_lea.vmem %s1, 1024
  %v7197 = vld [vmem:[%s7196] sm:$0xff]
  %v7198 = vld [vmem:[%s7196 + $0x8] sm:$0xff]
  %v7199 = vld [vmem:[%s7196 + $0x10] sm:$0xff]
  %v7200 = vld [vmem:[%s7196 + $0x18] sm:$0xff]
  %v7201 = vld [vmem:[%s7196 + $0x20] sm:$0xff]
  %v7202 = vld [vmem:[%s7196 + $0x28] sm:$0xff]
  %v7203 = vld [vmem:[%s7196 + $0x30] sm:$0xff]
  %v7204 = vld [vmem:[%s7196 + $0x38] sm:$0xff]
  %v7205 = vld [vmem:[%s7196 + $0x40] sm:$0xff]
  %v7206 = vld [vmem:[%s7196 + $0x48] sm:$0xff]
  %v7207 = vld [vmem:[%s7196 + $0x50] sm:$0xff]
  %v7208 = vld [vmem:[%s7196 + $0x58] sm:$0xff]
  %v7209 = vld [vmem:[%s7196 + $0x60] sm:$0xff]
  %v7210 = vld [vmem:[%s7196 + $0x68] sm:$0xff]
  %v7211 = vld [vmem:[%s7196 + $0x70] sm:$0xff]
  %v7212 = vld [vmem:[%s7196 + $0x78] sm:$0xff]
  %7213 = vmatpush.msra.mxu0 %v7212
  %7214 = vmatpush.msra.mxu0 %v7211
  %7215 = vmatpush.msra.mxu0 %v7210
  %7216 = vmatpush.msra.mxu0 %v7209
  %7217 = vmatpush.msra.mxu0 %v7208
  %7218 = vmatpush.msra.mxu0 %v7207
  %7219 = vmatpush.msra.mxu0 %v7206
  %7220 = vmatpush.msra.mxu0 %v7205
  %7221 = vmatpush.msra.mxu0 %v7204
  %7222 = vmatpush.msra.mxu0 %v7203
  %7223 = vmatpush.msra.mxu0 %v7202
  %7224 = vmatpush.msra.mxu0 %v7201
  %7225 = vmatpush.msra.mxu0 %v7200
  %7226 = vmatpush.msra.mxu0 %v7199
  %7227 = vmatpush.msra.mxu0 %v7198
  %7228 = vmatpush.msra.mxu0 %v7197
  %7229 = vmatmul.f32.gmra.mxu0 %v7132
  %v7230 = vpop.f32.mrf.mxu0
  %v7231 = vadd.f32 0.0, %v7230
  %7232 = vmatmul.f32.gmra.mxu0 %v7133
  %v7233 = vpop.f32.mrf.mxu0
  %v7234 = vadd.f32 0.0, %v7233
  %7235 = vmatmul.f32.gmra.mxu0 %v7134
  %v7236 = vpop.f32.mrf.mxu0
  %v7237 = vadd.f32 0.0, %v7236
  %7238 = vmatmul.f32.gmra.mxu0 %v7135
  %v7239 = vpop.f32.mrf.mxu0
  %v7240 = vadd.f32 0.0, %v7239
  %7241 = vmatmul.f32.gmra.mxu0 %v7136
  %v7242 = vpop.f32.mrf.mxu0
  %v7243 = vadd.f32 0.0, %v7242
  %7244 = vmatmul.f32.gmra.mxu0 %v7137
  %v7245 = vpop.f32.mrf.mxu0
  %v7246 = vadd.f32 0.0, %v7245
  %7247 = vmatmul.f32.gmra.mxu0 %v7138
  %v7248 = vpop.f32.mrf.mxu0
  %v7249 = vadd.f32 0.0, %v7248
  %7250 = vmatmul.f32.gmra.mxu0 %v7139
  %v7251 = vpop.f32.mrf.mxu0
  %v7252 = vadd.f32 0.0, %v7251
  %7253 = vmatmul.f32.gmra.mxu0 %v7140
  %v7254 = vpop.f32.mrf.mxu0
  %v7255 = vadd.f32 0.0, %v7254
  %7256 = vmatmul.f32.gmra.mxu0 %v7141
  %v7257 = vpop.f32.mrf.mxu0
  %v7258 = vadd.f32 0.0, %v7257
  %7259 = vmatmul.f32.gmra.mxu0 %v7142
  %v7260 = vpop.f32.mrf.mxu0
  %v7261 = vadd.f32 0.0, %v7260
  %7262 = vmatmul.f32.gmra.mxu0 %v7143
  %v7263 = vpop.f32.mrf.mxu0
  %v7264 = vadd.f32 0.0, %v7263
  %7265 = vmatmul.f32.gmra.mxu0 %v7144
  %v7266 = vpop.f32.mrf.mxu0
  %v7267 = vadd.f32 0.0, %v7266
  %7268 = vmatmul.f32.gmra.mxu0 %v7145
  %v7269 = vpop.f32.mrf.mxu0
  %v7270 = vadd.f32 0.0, %v7269
  %7271 = vmatmul.f32.gmra.mxu0 %v7146
  %v7272 = vpop.f32.mrf.mxu0
  %v7273 = vadd.f32 0.0, %v7272
  %7274 = vmatmul.f32.gmra.mxu0 %v7147
  %v7275 = vpop.f32.mrf.mxu0
  %v7276 = vadd.f32 0.0, %v7275
  %7277 = vmatmul.f32.gmra.mxu0 %v7148
  %v7278 = vpop.f32.mrf.mxu0
  %v7279 = vadd.f32 0.0, %v7278
  %7280 = vmatmul.f32.gmra.mxu0 %v7149
  %v7281 = vpop.f32.mrf.mxu0
  %v7282 = vadd.f32 0.0, %v7281
  %7283 = vmatmul.f32.gmra.mxu0 %v7150
  %v7284 = vpop.f32.mrf.mxu0
  %v7285 = vadd.f32 0.0, %v7284
  %7286 = vmatmul.f32.gmra.mxu0 %v7151
  %v7287 = vpop.f32.mrf.mxu0
  %v7288 = vadd.f32 0.0, %v7287
  %7289 = vmatmul.f32.gmra.mxu0 %v7152
  %v7290 = vpop.f32.mrf.mxu0
  %v7291 = vadd.f32 0.0, %v7290
  %7292 = vmatmul.f32.gmra.mxu0 %v7153
  %v7293 = vpop.f32.mrf.mxu0
  %v7294 = vadd.f32 0.0, %v7293
  %7295 = vmatmul.f32.gmra.mxu0 %v7154
  %v7296 = vpop.f32.mrf.mxu0
  %v7297 = vadd.f32 0.0, %v7296
  %7298 = vmatmul.f32.gmra.mxu0 %v7155
  %v7299 = vpop.f32.mrf.mxu0
  %v7300 = vadd.f32 0.0, %v7299
  %7301 = vmatmul.f32.gmra.mxu0 %v7156
  %v7302 = vpop.f32.mrf.mxu0
  %v7303 = vadd.f32 0.0, %v7302
  %7304 = vmatmul.f32.gmra.mxu0 %v7157
  %v7305 = vpop.f32.mrf.mxu0
  %v7306 = vadd.f32 0.0, %v7305
  %7307 = vmatmul.f32.gmra.mxu0 %v7158
  %v7308 = vpop.f32.mrf.mxu0
  %v7309 = vadd.f32 0.0, %v7308
  %7310 = vmatmul.f32.gmra.mxu0 %v7159
  %v7311 = vpop.f32.mrf.mxu0
  %v7312 = vadd.f32 0.0, %v7311
  %7313 = vmatmul.f32.gmra.mxu0 %v7160
  %v7314 = vpop.f32.mrf.mxu0
  %v7315 = vadd.f32 0.0, %v7314
  %7316 = vmatmul.f32.gmra.mxu0 %v7161
  %v7317 = vpop.f32.mrf.mxu0
  %v7318 = vadd.f32 0.0, %v7317
  %7319 = vmatmul.f32.gmra.mxu0 %v7162
  %v7320 = vpop.f32.mrf.mxu0
  %v7321 = vadd.f32 0.0, %v7320
  %7322 = vmatmul.f32.gmra.mxu0 %v7163
  %v7323 = vpop.f32.mrf.mxu0
  %v7324 = vadd.f32 0.0, %v7323
  %7325 = vmatmul.f32.gmra.mxu0 %v7164
  %v7326 = vpop.f32.mrf.mxu0
  %v7327 = vadd.f32 0.0, %v7326
  %7328 = vmatmul.f32.gmra.mxu0 %v7165
  %v7329 = vpop.f32.mrf.mxu0
  %v7330 = vadd.f32 0.0, %v7329
  %7331 = vmatmul.f32.gmra.mxu0 %v7166
  %v7332 = vpop.f32.mrf.mxu0
  %v7333 = vadd.f32 0.0, %v7332
  %7334 = vmatmul.f32.gmra.mxu0 %v7167
  %v7335 = vpop.f32.mrf.mxu0
  %v7336 = vadd.f32 0.0, %v7335
  %7337 = vmatmul.f32.gmra.mxu0 %v7168
  %v7338 = vpop.f32.mrf.mxu0
  %v7339 = vadd.f32 0.0, %v7338
  %7340 = vmatmul.f32.gmra.mxu0 %v7169
  %v7341 = vpop.f32.mrf.mxu0
  %v7342 = vadd.f32 0.0, %v7341
  %7343 = vmatmul.f32.gmra.mxu0 %v7170
  %v7344 = vpop.f32.mrf.mxu0
  %v7345 = vadd.f32 0.0, %v7344
  %7346 = vmatmul.f32.gmra.mxu0 %v7171
  %v7347 = vpop.f32.mrf.mxu0
  %v7348 = vadd.f32 0.0, %v7347
  %7349 = vmatmul.f32.gmra.mxu0 %v7172
  %v7350 = vpop.f32.mrf.mxu0
  %v7351 = vadd.f32 0.0, %v7350
  %7352 = vmatmul.f32.gmra.mxu0 %v7173
  %v7353 = vpop.f32.mrf.mxu0
  %v7354 = vadd.f32 0.0, %v7353
  %7355 = vmatmul.f32.gmra.mxu0 %v7174
  %v7356 = vpop.f32.mrf.mxu0
  %v7357 = vadd.f32 0.0, %v7356
  %7358 = vmatmul.f32.gmra.mxu0 %v7175
  %v7359 = vpop.f32.mrf.mxu0
  %v7360 = vadd.f32 0.0, %v7359
  %7361 = vmatmul.f32.gmra.mxu0 %v7176
  %v7362 = vpop.f32.mrf.mxu0
  %v7363 = vadd.f32 0.0, %v7362
  %7364 = vmatmul.f32.gmra.mxu0 %v7177
  %v7365 = vpop.f32.mrf.mxu0
  %v7366 = vadd.f32 0.0, %v7365
  %7367 = vmatmul.f32.gmra.mxu0 %v7178
  %v7368 = vpop.f32.mrf.mxu0
  %v7369 = vadd.f32 0.0, %v7368
  %7370 = vmatmul.f32.gmra.mxu0 %v7179
  %v7371 = vpop.f32.mrf.mxu0
  %v7372 = vadd.f32 0.0, %v7371
  %7373 = vmatmul.f32.gmra.mxu0 %v7180
  %v7374 = vpop.f32.mrf.mxu0
  %v7375 = vadd.f32 0.0, %v7374
  %7376 = vmatmul.f32.gmra.mxu0 %v7181
  %v7377 = vpop.f32.mrf.mxu0
  %v7378 = vadd.f32 0.0, %v7377
  %7379 = vmatmul.f32.gmra.mxu0 %v7182
  %v7380 = vpop.f32.mrf.mxu0
  %v7381 = vadd.f32 0.0, %v7380
  %7382 = vmatmul.f32.gmra.mxu0 %v7183
  %v7383 = vpop.f32.mrf.mxu0
  %v7384 = vadd.f32 0.0, %v7383
  %7385 = vmatmul.f32.gmra.mxu0 %v7184
  %v7386 = vpop.f32.mrf.mxu0
  %v7387 = vadd.f32 0.0, %v7386
  %7388 = vmatmul.f32.gmra.mxu0 %v7185
  %v7389 = vpop.f32.mrf.mxu0
  %v7390 = vadd.f32 0.0, %v7389
  %7391 = vmatmul.f32.gmra.mxu0 %v7186
  %v7392 = vpop.f32.mrf.mxu0
  %v7393 = vadd.f32 0.0, %v7392
  %7394 = vmatmul.f32.gmra.mxu0 %v7187
  %v7395 = vpop.f32.mrf.mxu0
  %v7396 = vadd.f32 0.0, %v7395
  %7397 = vmatmul.f32.gmra.mxu0 %v7188
  %v7398 = vpop.f32.mrf.mxu0
  %v7399 = vadd.f32 0.0, %v7398
  %7400 = vmatmul.f32.gmra.mxu0 %v7189
  %v7401 = vpop.f32.mrf.mxu0
  %v7402 = vadd.f32 0.0, %v7401
  %7403 = vmatmul.f32.gmra.mxu0 %v7190
  %v7404 = vpop.f32.mrf.mxu0
  %v7405 = vadd.f32 0.0, %v7404
  %7406 = vmatmul.f32.gmra.mxu0 %v7191
  %v7407 = vpop.f32.mrf.mxu0
  %v7408 = vadd.f32 0.0, %v7407
  %7409 = vmatmul.f32.gmra.mxu0 %v7192
  %v7410 = vpop.f32.mrf.mxu0
  %v7411 = vadd.f32 0.0, %v7410
  %7412 = vmatmul.f32.gmra.mxu0 %v7193
  %v7413 = vpop.f32.mrf.mxu0
  %v7414 = vadd.f32 0.0, %v7413
  %7415 = vmatmul.f32.gmra.mxu0 %v7194
  %v7416 = vpop.f32.mrf.mxu0
  %v7417 = vadd.f32 0.0, %v7416
  %7418 = vmatmul.f32.gmra.mxu0 %v7195
  %v7419 = vpop.f32.mrf.mxu0
  %v7420 = vadd.f32 0.0, %v7419
  %7421 = vdwg.mxu0
  %v7422 = vadd.f32 %v6619, %v7231
  %v7423 = vadd.f32 %v6620, %v7234
  %v7424 = vadd.f32 %v6621, %v7237
  %v7425 = vadd.f32 %v6622, %v7240
  %v7426 = vadd.f32 %v6623, %v7243
  %v7427 = vadd.f32 %v6624, %v7246
  %v7428 = vadd.f32 %v6625, %v7249
  %v7429 = vadd.f32 %v6626, %v7252
  %v7430 = vadd.f32 %v6627, %v7255
  %v7431 = vadd.f32 %v6628, %v7258
  %v7432 = vadd.f32 %v6629, %v7261
  %v7433 = vadd.f32 %v6630, %v7264
  %v7434 = vadd.f32 %v6631, %v7267
  %v7435 = vadd.f32 %v6632, %v7270
  %v7436 = vadd.f32 %v6633, %v7273
  %v7437 = vadd.f32 %v6634, %v7276
  %v7438 = vadd.f32 %v6635, %v7279
  %v7439 = vadd.f32 %v6636, %v7282
  %v7440 = vadd.f32 %v6637, %v7285
  %v7441 = vadd.f32 %v6638, %v7288
  %v7442 = vadd.f32 %v6639, %v7291
  %v7443 = vadd.f32 %v6640, %v7294
  %v7444 = vadd.f32 %v6641, %v7297
  %v7445 = vadd.f32 %v6642, %v7300
  %v7446 = vadd.f32 %v6643, %v7303
  %v7447 = vadd.f32 %v6644, %v7306
  %v7448 = vadd.f32 %v6645, %v7309
  %v7449 = vadd.f32 %v6646, %v7312
  %v7450 = vadd.f32 %v6647, %v7315
  %v7451 = vadd.f32 %v6648, %v7318
  %v7452 = vadd.f32 %v6649, %v7321
  %v7453 = vadd.f32 %v6650, %v7324
  %v7454 = vadd.f32 %v6651, %v7327
  %v7455 = vadd.f32 %v6652, %v7330
  %v7456 = vadd.f32 %v6653, %v7333
  %v7457 = vadd.f32 %v6654, %v7336
  %v7458 = vadd.f32 %v6655, %v7339
  %v7459 = vadd.f32 %v6656, %v7342
  %v7460 = vadd.f32 %v6657, %v7345
  %v7461 = vadd.f32 %v6658, %v7348
  %v7462 = vadd.f32 %v6659, %v7351
  %v7463 = vadd.f32 %v6660, %v7354
  %v7464 = vadd.f32 %v6661, %v7357
  %v7465 = vadd.f32 %v6662, %v7360
  %v7466 = vadd.f32 %v6663, %v7363
  %v7467 = vadd.f32 %v6664, %v7366
  %v7468 = vadd.f32 %v6665, %v7369
  %v7469 = vadd.f32 %v6666, %v7372
  %v7470 = vadd.f32 %v6667, %v7375
  %v7471 = vadd.f32 %v6668, %v7378
  %v7472 = vadd.f32 %v6669, %v7381
  %v7473 = vadd.f32 %v6670, %v7384
  %v7474 = vadd.f32 %v6671, %v7387
  %v7475 = vadd.f32 %v6672, %v7390
  %v7476 = vadd.f32 %v6673, %v7393
  %v7477 = vadd.f32 %v6674, %v7396
  %v7478 = vadd.f32 %v6675, %v7399
  %v7479 = vadd.f32 %v6676, %v7402
  %v7480 = vadd.f32 %v6677, %v7405
  %v7481 = vadd.f32 %v6678, %v7408
  %v7482 = vadd.f32 %v6679, %v7411
  %v7483 = vadd.f32 %v6680, %v7414
  %v7484 = vadd.f32 %v6681, %v7417
  %v7485 = vadd.f32 %v6682, %v7420
  %7486 = vst [vmem:[#allocation2 + $0x18] sm:$0xff] %v7422
  %7487 = vst [vmem:[#allocation2 + $0x20] sm:$0xff] %v7423
  %7488 = vst [vmem:[#allocation2 + $0x28] sm:$0xff] %v7424
  %7489 = vst [vmem:[#allocation2 + $0x30] sm:$0xff] %v7425
  %7490 = vst [vmem:[#allocation2 + $0x38] sm:$0xff] %v7426
  %7491 = vst [vmem:[#allocation2 + $0x40] sm:$0xff] %v7427
  %7492 = vst [vmem:[#allocation2 + $0x48] sm:$0xff] %v7428
  %7493 = vst [vmem:[#allocation2 + $0x50] sm:$0xff] %v7429
  %7494 = vst [vmem:[#allocation2 + $0x58] sm:$0xff] %v7430
  %7495 = vst [vmem:[#allocation2 + $0x60] sm:$0xff] %v7431
  %7496 = vst [vmem:[#allocation2 + $0x68] sm:$0xff] %v7432
  %7497 = vst [vmem:[#allocation2 + $0x70] sm:$0xff] %v7433
  %7498 = vst [vmem:[#allocation2 + $0x78] sm:$0xff] %v7434
  %7499 = vst [vmem:[#allocation2 + $0x80] sm:$0xff] %v7435
  %7500 = vst [vmem:[#allocation2 + $0x88] sm:$0xff] %v7436
  %7501 = vst [vmem:[#allocation2 + $0x90] sm:$0xff] %v7437
  %7502 = vst [vmem:[#allocation2 + $0x98] sm:$0xff] %v7438
  %7503 = vst [vmem:[#allocation2 + $0xa0] sm:$0xff] %v7439
  %7504 = vst [vmem:[#allocation2 + $0xa8] sm:$0xff] %v7440
  %7505 = vst [vmem:[#allocation2 + $0xb0] sm:$0xff] %v7441
  %7506 = vst [vmem:[#allocation2 + $0xb8] sm:$0xff] %v7442
  %7507 = vst [vmem:[#allocation2 + $0xc0] sm:$0xff] %v7443
  %7508 = vst [vmem:[#allocation2 + $0xc8] sm:$0xff] %v7444
  %7509 = vst [vmem:[#allocation2 + $0xd0] sm:$0xff] %v7445
  %7510 = vst [vmem:[#allocation2 + $0xd8] sm:$0xff] %v7446
  %7511 = vst [vmem:[#allocation2 + $0xe0] sm:$0xff] %v7447
  %7512 = vst [vmem:[#allocation2 + $0xe8] sm:$0xff] %v7448
  %7513 = vst [vmem:[#allocation2 + $0xf0] sm:$0xff] %v7449
  %7514 = vst [vmem:[#allocation2 + $0xf8] sm:$0xff] %v7450
  %7515 = vst [vmem:[#allocation2 + $0x100] sm:$0xff] %v7451
  %7516 = vst [vmem:[#allocation2 + $0x108] sm:$0xff] %v7452
  %7517 = vst [vmem:[#allocation2 + $0x110] sm:$0xff] %v7453
  %7518 = vst [vmem:[#allocation2 + $0x118] sm:$0xff] %v7454
  %7519 = vst [vmem:[#allocation2 + $0x120] sm:$0xff] %v7455
  %7520 = vst [vmem:[#allocation2 + $0x128] sm:$0xff] %v7456
  %7521 = vst [vmem:[#allocation2 + $0x130] sm:$0xff] %v7457
  %7522 = vst [vmem:[#allocation2 + $0x138] sm:$0xff] %v7458
  %7523 = vst [vmem:[#allocation2 + $0x140] sm:$0xff] %v7459
  %7524 = vst [vmem:[#allocation2 + $0x148] sm:$0xff] %v7460
  %7525 = vst [vmem:[#allocation2 + $0x150] sm:$0xff] %v7461
  %7526 = vst [vmem:[#allocation2 + $0x158] sm:$0xff] %v7462
  %7527 = vst [vmem:[#allocation2 + $0x160] sm:$0xff] %v7463
  %7528 = vst [vmem:[#allocation2 + $0x168] sm:$0xff] %v7464
  %7529 = vst [vmem:[#allocation2 + $0x170] sm:$0xff] %v7465
  %7530 = vst [vmem:[#allocation2 + $0x178] sm:$0xff] %v7466
  %7531 = vst [vmem:[#allocation2 + $0x180] sm:$0xff] %v7467
  %7532 = vst [vmem:[#allocation2 + $0x188] sm:$0xff] %v7468
  %7533 = vst [vmem:[#allocation2 + $0x190] sm:$0xff] %v7469
  %7534 = vst [vmem:[#allocation2 + $0x198] sm:$0xff] %v7470
  %7535 = vst [vmem:[#allocation2 + $0x1a0] sm:$0xff] %v7471
  %7536 = vst [vmem:[#allocation2 + $0x1a8] sm:$0xff] %v7472
  %7537 = vst [vmem:[#allocation2 + $0x1b0] sm:$0xff] %v7473
  %7538 = vst [vmem:[#allocation2 + $0x1b8] sm:$0xff] %v7474
  %7539 = vst [vmem:[#allocation2 + $0x1c0] sm:$0xff] %v7475
  %7540 = vst [vmem:[#allocation2 + $0x1c8] sm:$0xff] %v7476
  %7541 = vst [vmem:[#allocation2 + $0x1d0] sm:$0xff] %v7477
  %7542 = vst [vmem:[#allocation2 + $0x1d8] sm:$0xff] %v7478
  %7543 = vst [vmem:[#allocation2 + $0x1e0] sm:$0xff] %v7479
  %7544 = vst [vmem:[#allocation2 + $0x1e8] sm:$0xff] %v7480
  %7545 = vst [vmem:[#allocation2 + $0x1f0] sm:$0xff] %v7481
  %7546 = vst [vmem:[#allocation2 + $0x1f8] sm:$0xff] %v7482
  %7547 = vst [vmem:[#allocation2 + $0x200] sm:$0xff] %v7483
  %7548 = vst [vmem:[#allocation2 + $0x208] sm:$0xff] %v7484
  %7549 = vst [vmem:[#allocation2 + $0x210] sm:$0xff] %v7485
  %v7550 = vld [vmem:[#allocation2 + $0x19] sm:$0xff]
  %v7551 = vld [vmem:[#allocation2 + $0x21] sm:$0xff]
  %v7552 = vld [vmem:[#allocation2 + $0x29] sm:$0xff]
  %v7553 = vld [vmem:[#allocation2 + $0x31] sm:$0xff]
  %v7554 = vld [vmem:[#allocation2 + $0x39] sm:$0xff]
  %v7555 = vld [vmem:[#allocation2 + $0x41] sm:$0xff]
  %v7556 = vld [vmem:[#allocation2 + $0x49] sm:$0xff]
  %v7557 = vld [vmem:[#allocation2 + $0x51] sm:$0xff]
  %v7558 = vld [vmem:[#allocation2 + $0x59] sm:$0xff]
  %v7559 = vld [vmem:[#allocation2 + $0x61] sm:$0xff]
  %v7560 = vld [vmem:[#allocation2 + $0x69] sm:$0xff]
  %v7561 = vld [vmem:[#allocation2 + $0x71] sm:$0xff]
  %v7562 = vld [vmem:[#allocation2 + $0x79] sm:$0xff]
  %v7563 = vld [vmem:[#allocation2 + $0x81] sm:$0xff]
  %v7564 = vld [vmem:[#allocation2 + $0x89] sm:$0xff]
  %v7565 = vld [vmem:[#allocation2 + $0x91] sm:$0xff]
  %v7566 = vld [vmem:[#allocation2 + $0x99] sm:$0xff]
  %v7567 = vld [vmem:[#allocation2 + $0xa1] sm:$0xff]
  %v7568 = vld [vmem:[#allocation2 + $0xa9] sm:$0xff]
  %v7569 = vld [vmem:[#allocation2 + $0xb1] sm:$0xff]
  %v7570 = vld [vmem:[#allocation2 + $0xb9] sm:$0xff]
  %v7571 = vld [vmem:[#allocation2 + $0xc1] sm:$0xff]
  %v7572 = vld [vmem:[#allocation2 + $0xc9] sm:$0xff]
  %v7573 = vld [vmem:[#allocation2 + $0xd1] sm:$0xff]
  %v7574 = vld [vmem:[#allocation2 + $0xd9] sm:$0xff]
  %v7575 = vld [vmem:[#allocation2 + $0xe1] sm:$0xff]
  %v7576 = vld [vmem:[#allocation2 + $0xe9] sm:$0xff]
  %v7577 = vld [vmem:[#allocation2 + $0xf1] sm:$0xff]
  %v7578 = vld [vmem:[#allocation2 + $0xf9] sm:$0xff]
  %v7579 = vld [vmem:[#allocation2 + $0x101] sm:$0xff]
  %v7580 = vld [vmem:[#allocation2 + $0x109] sm:$0xff]
  %v7581 = vld [vmem:[#allocation2 + $0x111] sm:$0xff]
  %v7582 = vld [vmem:[#allocation2 + $0x119] sm:$0xff]
  %v7583 = vld [vmem:[#allocation2 + $0x121] sm:$0xff]
  %v7584 = vld [vmem:[#allocation2 + $0x129] sm:$0xff]
  %v7585 = vld [vmem:[#allocation2 + $0x131] sm:$0xff]
  %v7586 = vld [vmem:[#allocation2 + $0x139] sm:$0xff]
  %v7587 = vld [vmem:[#allocation2 + $0x141] sm:$0xff]
  %v7588 = vld [vmem:[#allocation2 + $0x149] sm:$0xff]
  %v7589 = vld [vmem:[#allocation2 + $0x151] sm:$0xff]
  %v7590 = vld [vmem:[#allocation2 + $0x159] sm:$0xff]
  %v7591 = vld [vmem:[#allocation2 + $0x161] sm:$0xff]
  %v7592 = vld [vmem:[#allocation2 + $0x169] sm:$0xff]
  %v7593 = vld [vmem:[#allocation2 + $0x171] sm:$0xff]
  %v7594 = vld [vmem:[#allocation2 + $0x179] sm:$0xff]
  %v7595 = vld [vmem:[#allocation2 + $0x181] sm:$0xff]
  %v7596 = vld [vmem:[#allocation2 + $0x189] sm:$0xff]
  %v7597 = vld [vmem:[#allocation2 + $0x191] sm:$0xff]
  %v7598 = vld [vmem:[#allocation2 + $0x199] sm:$0xff]
  %v7599 = vld [vmem:[#allocation2 + $0x1a1] sm:$0xff]
  %v7600 = vld [vmem:[#allocation2 + $0x1a9] sm:$0xff]
  %v7601 = vld [vmem:[#allocation2 + $0x1b1] sm:$0xff]
  %v7602 = vld [vmem:[#allocation2 + $0x1b9] sm:$0xff]
  %v7603 = vld [vmem:[#allocation2 + $0x1c1] sm:$0xff]
  %v7604 = vld [vmem:[#allocation2 + $0x1c9] sm:$0xff]
  %v7605 = vld [vmem:[#allocation2 + $0x1d1] sm:$0xff]
  %v7606 = vld [vmem:[#allocation2 + $0x1d9] sm:$0xff]
  %v7607 = vld [vmem:[#allocation2 + $0x1e1] sm:$0xff]
  %v7608 = vld [vmem:[#allocation2 + $0x1e9] sm:$0xff]
  %v7609 = vld [vmem:[#allocation2 + $0x1f1] sm:$0xff]
  %v7610 = vld [vmem:[#allocation2 + $0x1f9] sm:$0xff]
  %v7611 = vld [vmem:[#allocation2 + $0x201] sm:$0xff]
  %v7612 = vld [vmem:[#allocation2 + $0x209] sm:$0xff]
  %v7613 = vld [vmem:[#allocation2 + $0x211] sm:$0xff]
  %v7614 = vmax.f32 %v7422, %v7550
  %v7615 = vmax.f32 %v7423, %v7551
  %v7616 = vmax.f32 %v7424, %v7552
  %v7617 = vmax.f32 %v7425, %v7553
  %v7618 = vmax.f32 %v7426, %v7554
  %v7619 = vmax.f32 %v7427, %v7555
  %v7620 = vmax.f32 %v7428, %v7556
  %v7621 = vmax.f32 %v7429, %v7557
  %v7622 = vmax.f32 %v7430, %v7558
  %v7623 = vmax.f32 %v7431, %v7559
  %v7624 = vmax.f32 %v7432, %v7560
  %v7625 = vmax.f32 %v7433, %v7561
  %v7626 = vmax.f32 %v7434, %v7562
  %v7627 = vmax.f32 %v7435, %v7563
  %v7628 = vmax.f32 %v7436, %v7564
  %v7629 = vmax.f32 %v7437, %v7565
  %v7630 = vmax.f32 %v7438, %v7566
  %v7631 = vmax.f32 %v7439, %v7567
  %v7632 = vmax.f32 %v7440, %v7568
  %v7633 = vmax.f32 %v7441, %v7569
  %v7634 = vmax.f32 %v7442, %v7570
  %v7635 = vmax.f32 %v7443, %v7571
  %v7636 = vmax.f32 %v7444, %v7572
  %v7637 = vmax.f32 %v7445, %v7573
  %v7638 = vmax.f32 %v7446, %v7574
  %v7639 = vmax.f32 %v7447, %v7575
  %v7640 = vmax.f32 %v7448, %v7576
  %v7641 = vmax.f32 %v7449, %v7577
  %v7642 = vmax.f32 %v7450, %v7578
  %v7643 = vmax.f32 %v7451, %v7579
  %v7644 = vmax.f32 %v7452, %v7580
  %v7645 = vmax.f32 %v7453, %v7581
  %v7646 = vmax.f32 %v7454, %v7582
  %v7647 = vmax.f32 %v7455, %v7583
  %v7648 = vmax.f32 %v7456, %v7584
  %v7649 = vmax.f32 %v7457, %v7585
  %v7650 = vmax.f32 %v7458, %v7586
  %v7651 = vmax.f32 %v7459, %v7587
  %v7652 = vmax.f32 %v7460, %v7588
  %v7653 = vmax.f32 %v7461, %v7589
  %v7654 = vmax.f32 %v7462, %v7590
  %v7655 = vmax.f32 %v7463, %v7591
  %v7656 = vmax.f32 %v7464, %v7592
  %v7657 = vmax.f32 %v7465, %v7593
  %v7658 = vmax.f32 %v7466, %v7594
  %v7659 = vmax.f32 %v7467, %v7595
  %v7660 = vmax.f32 %v7468, %v7596
  %v7661 = vmax.f32 %v7469, %v7597
  %v7662 = vmax.f32 %v7470, %v7598
  %v7663 = vmax.f32 %v7471, %v7599
  %v7664 = vmax.f32 %v7472, %v7600
  %v7665 = vmax.f32 %v7473, %v7601
  %v7666 = vmax.f32 %v7474, %v7602
  %v7667 = vmax.f32 %v7475, %v7603
  %v7668 = vmax.f32 %v7476, %v7604
  %v7669 = vmax.f32 %v7477, %v7605
  %v7670 = vmax.f32 %v7478, %v7606
  %v7671 = vmax.f32 %v7479, %v7607
  %v7672 = vmax.f32 %v7480, %v7608
  %v7673 = vmax.f32 %v7481, %v7609
  %v7674 = vmax.f32 %v7482, %v7610
  %v7675 = vmax.f32 %v7483, %v7611
  %v7676 = vmax.f32 %v7484, %v7612
  %v7677 = vmax.f32 %v7485, %v7613
  %v7678 = vld [vmem:[#allocation2 + $0x28] sm:$0xff]
  %v7679 = vld [vmem:[#allocation2 + $0x30] sm:$0xff]
  %v7680 = vld [vmem:[#allocation2 + $0x38] sm:$0xff]
  %v7681 = vld [vmem:[#allocation2 + $0x40] sm:$0xff]
  %v7682 = vld [vmem:[#allocation2 + $0x48] sm:$0xff]
  %v7683 = vld [vmem:[#allocation2 + $0x50] sm:$0xff]
  %v7684 = vld [vmem:[#allocation2 + $0x58] sm:$0xff]
  %v7685 = vld [vmem:[#allocation2 + $0x60] sm:$0xff]
  %v7686 = vld [vmem:[#allocation2 + $0x68] sm:$0xff]
  %v7687 = vld [vmem:[#allocation2 + $0x70] sm:$0xff]
  %v7688 = vld [vmem:[#allocation2 + $0x78] sm:$0xff]
  %v7689 = vld [vmem:[#allocation2 + $0x80] sm:$0xff]
  %v7690 = vld [vmem:[#allocation2 + $0x88] sm:$0xff]
  %v7691 = vld [vmem:[#allocation2 + $0x90] sm:$0xff]
  %v7692 = vld [vmem:[#allocation2 + $0x98] sm:$0xff]
  %v7693 = vld [vmem:[#allocation2 + $0xa0] sm:$0xff]
  %v7694 = vld [vmem:[#allocation2 + $0xa8] sm:$0xff]
  %v7695 = vld [vmem:[#allocation2 + $0xb0] sm:$0xff]
  %v7696 = vld [vmem:[#allocation2 + $0xb8] sm:$0xff]
  %v7697 = vld [vmem:[#allocation2 + $0xc0] sm:$0xff]
  %v7698 = vld [vmem:[#allocation2 + $0xc8] sm:$0xff]
  %v7699 = vld [vmem:[#allocation2 + $0xd0] sm:$0xff]
  %v7700 = vld [vmem:[#allocation2 + $0xd8] sm:$0xff]
  %v7701 = vld [vmem:[#allocation2 + $0xe0] sm:$0xff]
  %v7702 = vld [vmem:[#allocation2 + $0xe8] sm:$0xff]
  %v7703 = vld [vmem:[#allocation2 + $0xf0] sm:$0xff]
  %v7704 = vld [vmem:[#allocation2 + $0xf8] sm:$0xff]
  %v7705 = vld [vmem:[#allocation2 + $0x100] sm:$0xff]
  %v7706 = vld [vmem:[#allocation2 + $0x108] sm:$0xff]
  %v7707 = vld [vmem:[#allocation2 + $0x110] sm:$0xff]
  %v7708 = vld [vmem:[#allocation2 + $0x118] sm:$0xff]
  %v7709 = vld [vmem:[#allocation2 + $0x120] sm:$0xff]
  %v7710 = vld [vmem:[#allocation2 + $0x128] sm:$0xff]
  %v7711 = vld [vmem:[#allocation2 + $0x130] sm:$0xff]
  %v7712 = vld [vmem:[#allocation2 + $0x138] sm:$0xff]
  %v7713 = vld [vmem:[#allocation2 + $0x140] sm:$0xff]
  %v7714 = vld [vmem:[#allocation2 + $0x148] sm:$0xff]
  %v7715 = vld [vmem:[#allocation2 + $0x150] sm:$0xff]
  %v7716 = vld [vmem:[#allocation2 + $0x158] sm:$0xff]
  %v7717 = vld [vmem:[#allocation2 + $0x160] sm:$0xff]
  %v7718 = vld [vmem:[#allocation2 + $0x168] sm:$0xff]
  %v7719 = vld [vmem:[#allocation2 + $0x170] sm:$0xff]
  %v7720 = vld [vmem:[#allocation2 + $0x178] sm:$0xff]
  %v7721 = vld [vmem:[#allocation2 + $0x180] sm:$0xff]
  %v7722 = vld [vmem:[#allocation2 + $0x188] sm:$0xff]
  %v7723 = vld [vmem:[#allocation2 + $0x190] sm:$0xff]
  %v7724 = vld [vmem:[#allocation2 + $0x198] sm:$0xff]
  %v7725 = vld [vmem:[#allocation2 + $0x1a0] sm:$0xff]
  %v7726 = vld [vmem:[#allocation2 + $0x1a8] sm:$0xff]
  %v7727 = vld [vmem:[#allocation2 + $0x1b0] sm:$0xff]
  %v7728 = vld [vmem:[#allocation2 + $0x1b8] sm:$0xff]
  %v7729 = vld [vmem:[#allocation2 + $0x1c0] sm:$0xff]
  %v7730 = vld [vmem:[#allocation2 + $0x1c8] sm:$0xff]
  %v7731 = vld [vmem:[#allocation2 + $0x1d0] sm:$0xff]
  %v7732 = vld [vmem:[#allocation2 + $0x1d8] sm:$0xff]
  %v7733 = vld [vmem:[#allocation2 + $0x1e0] sm:$0xff]
  %v7734 = vld [vmem:[#allocation2 + $0x1e8] sm:$0xff]
  %v7735 = vld [vmem:[#allocation2 + $0x1f0] sm:$0xff]
  %v7736 = vld [vmem:[#allocation2 + $0x1f8] sm:$0xff]
  %v7737 = vld [vmem:[#allocation2 + $0x200] sm:$0xff]
  %v7738 = vld [vmem:[#allocation2 + $0x208] sm:$0xff]
  %v7739 = vld [vmem:[#allocation2 + $0x210] sm:$0xff]
  %v7740 = vld [vmem:[#allocation2 + $0x218] sm:$0xff]
  %v7741 = vld [vmem:[#allocation2 + $0x220] sm:$0xff]
  %v7742 = vld [vmem:[#allocation2 + $0x219] sm:$0xff]
  %v7743 = vld [vmem:[#allocation2 + $0x221] sm:$0xff]
  %v7744 = vmax.f32 %v7678, %v7552
  %v7745 = vmax.f32 %v7679, %v7553
  %v7746 = vmax.f32 %v7680, %v7554
  %v7747 = vmax.f32 %v7681, %v7555
  %v7748 = vmax.f32 %v7682, %v7556
  %v7749 = vmax.f32 %v7683, %v7557
  %v7750 = vmax.f32 %v7684, %v7558
  %v7751 = vmax.f32 %v7685, %v7559
  %v7752 = vmax.f32 %v7686, %v7560
  %v7753 = vmax.f32 %v7687, %v7561
  %v7754 = vmax.f32 %v7688, %v7562
  %v7755 = vmax.f32 %v7689, %v7563
  %v7756 = vmax.f32 %v7690, %v7564
  %v7757 = vmax.f32 %v7691, %v7565
  %v7758 = vmax.f32 %v7692, %v7566
  %v7759 = vmax.f32 %v7693, %v7567
  %v7760 = vmax.f32 %v7694, %v7568
  %v7761 = vmax.f32 %v7695, %v7569
  %v7762 = vmax.f32 %v7696, %v7570
  %v7763 = vmax.f32 %v7697, %v7571
  %v7764 = vmax.f32 %v7698, %v7572
  %v7765 = vmax.f32 %v7699, %v7573
  %v7766 = vmax.f32 %v7700, %v7574
  %v7767 = vmax.f32 %v7701, %v7575
  %v7768 = vmax.f32 %v7702, %v7576
  %v7769 = vmax.f32 %v7703, %v7577
  %v7770 = vmax.f32 %v7704, %v7578
  %v7771 = vmax.f32 %v7705, %v7579
  %v7772 = vmax.f32 %v7706, %v7580
  %v7773 = vmax.f32 %v7707, %v7581
  %v7774 = vmax.f32 %v7708, %v7582
  %v7775 = vmax.f32 %v7709, %v7583
  %v7776 = vmax.f32 %v7710, %v7584
  %v7777 = vmax.f32 %v7711, %v7585
  %v7778 = vmax.f32 %v7712, %v7586
  %v7779 = vmax.f32 %v7713, %v7587
  %v7780 = vmax.f32 %v7714, %v7588
  %v7781 = vmax.f32 %v7715, %v7589
  %v7782 = vmax.f32 %v7716, %v7590
  %v7783 = vmax.f32 %v7717, %v7591
  %v7784 = vmax.f32 %v7718, %v7592
  %v7785 = vmax.f32 %v7719, %v7593
  %v7786 = vmax.f32 %v7720, %v7594
  %v7787 = vmax.f32 %v7721, %v7595
  %v7788 = vmax.f32 %v7722, %v7596
  %v7789 = vmax.f32 %v7723, %v7597
  %v7790 = vmax.f32 %v7724, %v7598
  %v7791 = vmax.f32 %v7725, %v7599
  %v7792 = vmax.f32 %v7726, %v7600
  %v7793 = vmax.f32 %v7727, %v7601
  %v7794 = vmax.f32 %v7728, %v7602
  %v7795 = vmax.f32 %v7729, %v7603
  %v7796 = vmax.f32 %v7730, %v7604
  %v7797 = vmax.f32 %v7731, %v7605
  %v7798 = vmax.f32 %v7732, %v7606
  %v7799 = vmax.f32 %v7733, %v7607
  %v7800 = vmax.f32 %v7734, %v7608
  %v7801 = vmax.f32 %v7735, %v7609
  %v7802 = vmax.f32 %v7736, %v7610
  %v7803 = vmax.f32 %v7737, %v7611
  %v7804 = vmax.f32 %v7738, %v7612
  %v7805 = vmax.f32 %v7739, %v7613
  %v7806 = vmax.f32 %v7740, %v7742
  %v7807 = vmax.f32 %v7741, %v7743
  %v7808 = vmax.f32 %v7614, %v7744
  %v7809 = vmax.f32 %v7615, %v7745
  %v7810 = vmax.f32 %v7616, %v7746
  %v7811 = vmax.f32 %v7617, %v7747
  %v7812 = vmax.f32 %v7618, %v7748
  %v7813 = vmax.f32 %v7619, %v7749
  %v7814 = vmax.f32 %v7620, %v7750
  %v7815 = vmax.f32 %v7621, %v7751
  %v7816 = vmax.f32 %v7622, %v7752
  %v7817 = vmax.f32 %v7623, %v7753
  %v7818 = vmax.f32 %v7624, %v7754
  %v7819 = vmax.f32 %v7625, %v7755
  %v7820 = vmax.f32 %v7626, %v7756
  %v7821 = vmax.f32 %v7627, %v7757
  %v7822 = vmax.f32 %v7628, %v7758
  %v7823 = vmax.f32 %v7629, %v7759
  %v7824 = vmax.f32 %v7630, %v7760
  %v7825 = vmax.f32 %v7631, %v7761
  %v7826 = vmax.f32 %v7632, %v7762
  %v7827 = vmax.f32 %v7633, %v7763
  %v7828 = vmax.f32 %v7634, %v7764
  %v7829 = vmax.f32 %v7635, %v7765
  %v7830 = vmax.f32 %v7636, %v7766
  %v7831 = vmax.f32 %v7637, %v7767
  %v7832 = vmax.f32 %v7638, %v7768
  %v7833 = vmax.f32 %v7639, %v7769
  %v7834 = vmax.f32 %v7640, %v7770
  %v7835 = vmax.f32 %v7641, %v7771
  %v7836 = vmax.f32 %v7642, %v7772
  %v7837 = vmax.f32 %v7643, %v7773
  %v7838 = vmax.f32 %v7644, %v7774
  %v7839 = vmax.f32 %v7645, %v7775
  %v7840 = vmax.f32 %v7646, %v7776
  %v7841 = vmax.f32 %v7647, %v7777
  %v7842 = vmax.f32 %v7648, %v7778
  %v7843 = vmax.f32 %v7649, %v7779
  %v7844 = vmax.f32 %v7650, %v7780
  %v7845 = vmax.f32 %v7651, %v7781
  %v7846 = vmax.f32 %v7652, %v7782
  %v7847 = vmax.f32 %v7653, %v7783
  %v7848 = vmax.f32 %v7654, %v7784
  %v7849 = vmax.f32 %v7655, %v7785
  %v7850 = vmax.f32 %v7656, %v7786
  %v7851 = vmax.f32 %v7657, %v7787
  %v7852 = vmax.f32 %v7658, %v7788
  %v7853 = vmax.f32 %v7659, %v7789
  %v7854 = vmax.f32 %v7660, %v7790
  %v7855 = vmax.f32 %v7661, %v7791
  %v7856 = vmax.f32 %v7662, %v7792
  %v7857 = vmax.f32 %v7663, %v7793
  %v7858 = vmax.f32 %v7664, %v7794
  %v7859 = vmax.f32 %v7665, %v7795
  %v7860 = vmax.f32 %v7666, %v7796
  %v7861 = vmax.f32 %v7667, %v7797
  %v7862 = vmax.f32 %v7668, %v7798
  %v7863 = vmax.f32 %v7669, %v7799
  %v7864 = vmax.f32 %v7670, %v7800
  %v7865 = vmax.f32 %v7671, %v7801
  %v7866 = vmax.f32 %v7672, %v7802
  %v7867 = vmax.f32 %v7673, %v7803
  %v7868 = vmax.f32 %v7674, %v7804
  %v7869 = vmax.f32 %v7675, %v7805
  %v7870 = vmax.f32 %v7676, %v7806
  %v7871 = vmax.f32 %v7677, %v7807
  %v7872 = vmax.f32 %v7808, 0.0
  %v7873 = vmax.f32 %v7809, 0.0
  %v7874 = vmax.f32 %v7810, 0.0
  %v7875 = vmax.f32 %v7811, 0.0
  %v7876 = vmax.f32 %v7812, 0.0
  %v7877 = vmax.f32 %v7813, 0.0
  %v7878 = vmax.f32 %v7814, 0.0
  %v7879 = vmax.f32 %v7815, 0.0
  %v7880 = vmax.f32 %v7816, 0.0
  %v7881 = vmax.f32 %v7817, 0.0
  %v7882 = vmax.f32 %v7818, 0.0
  %v7883 = vmax.f32 %v7819, 0.0
  %v7884 = vmax.f32 %v7820, 0.0
  %v7885 = vmax.f32 %v7821, 0.0
  %v7886 = vmax.f32 %v7822, 0.0
  %v7887 = vmax.f32 %v7823, 0.0
  %v7888 = vmax.f32 %v7824, 0.0
  %v7889 = vmax.f32 %v7825, 0.0
  %v7890 = vmax.f32 %v7826, 0.0
  %v7891 = vmax.f32 %v7827, 0.0
  %v7892 = vmax.f32 %v7828, 0.0
  %v7893 = vmax.f32 %v7829, 0.0
  %v7894 = vmax.f32 %v7830, 0.0
  %v7895 = vmax.f32 %v7831, 0.0
  %v7896 = vmax.f32 %v7832, 0.0
  %v7897 = vmax.f32 %v7833, 0.0
  %v7898 = vmax.f32 %v7834, 0.0
  %v7899 = vmax.f32 %v7835, 0.0
  %v7900 = vmax.f32 %v7836, 0.0
  %v7901 = vmax.f32 %v7837, 0.0
  %v7902 = vmax.f32 %v7838, 0.0
  %v7903 = vmax.f32 %v7839, 0.0
  %v7904 = vmax.f32 %v7840, 0.0
  %v7905 = vmax.f32 %v7841, 0.0
  %v7906 = vmax.f32 %v7842, 0.0
  %v7907 = vmax.f32 %v7843, 0.0
  %v7908 = vmax.f32 %v7844, 0.0
  %v7909 = vmax.f32 %v7845, 0.0
  %v7910 = vmax.f32 %v7846, 0.0
  %v7911 = vmax.f32 %v7847, 0.0
  %v7912 = vmax.f32 %v7848, 0.0
  %v7913 = vmax.f32 %v7849, 0.0
  %v7914 = vmax.f32 %v7850, 0.0
  %v7915 = vmax.f32 %v7851, 0.0
  %v7916 = vmax.f32 %v7852, 0.0
  %v7917 = vmax.f32 %v7853, 0.0
  %v7918 = vmax.f32 %v7854, 0.0
  %v7919 = vmax.f32 %v7855, 0.0
  %v7920 = vmax.f32 %v7856, 0.0
  %v7921 = vmax.f32 %v7857, 0.0
  %v7922 = vmax.f32 %v7858, 0.0
  %v7923 = vmax.f32 %v7859, 0.0
  %v7924 = vmax.f32 %v7860, 0.0
  %v7925 = vmax.f32 %v7861, 0.0
  %v7926 = vmax.f32 %v7862, 0.0
  %v7927 = vmax.f32 %v7863, 0.0
  %v7928 = vmax.f32 %v7864, 0.0
  %v7929 = vmax.f32 %v7865, 0.0
  %v7930 = vmax.f32 %v7866, 0.0
  %v7931 = vmax.f32 %v7867, 0.0
  %v7932 = vmax.f32 %v7868, 0.0
  %v7933 = vmax.f32 %v7869, 0.0
  %v7934 = vmax.f32 %v7870, 0.0
  %v7935 = vmax.f32 %v7871, 0.0
  %v7936 = vld [vmem:[%s4] sm:$0xff]
  %v7937 = vld [vmem:[%s4 + $0x8] sm:$0xff]
  %v7938 = vld [vmem:[%s4 + $0x10] sm:$0xff]
  %v7939 = vld [vmem:[%s4 + $0x18] sm:$0xff]
  %v7940 = vld [vmem:[%s4 + $0x20] sm:$0xff]
  %v7941 = vld [vmem:[%s4 + $0x28] sm:$0xff]
  %v7942 = vld [vmem:[%s4 + $0x30] sm:$0xff]
  %v7943 = vld [vmem:[%s4 + $0x38] sm:$0xff]
  %v7944 = vld [vmem:[%s4 + $0x40] sm:$0xff]
  %v7945 = vld [vmem:[%s4 + $0x48] sm:$0xff]
  %v7946 = vld [vmem:[%s4 + $0x50] sm:$0xff]
  %v7947 = vld [vmem:[%s4 + $0x58] sm:$0xff]
  %v7948 = vld [vmem:[%s4 + $0x60] sm:$0xff]
  %v7949 = vld [vmem:[%s4 + $0x68] sm:$0xff]
  %v7950 = vld [vmem:[%s4 + $0x70] sm:$0xff]
  %v7951 = vld [vmem:[%s4 + $0x78] sm:$0xff]
  %v7952 = vld [vmem:[%s4 + $0x80] sm:$0xff]
  %v7953 = vld [vmem:[%s4 + $0x88] sm:$0xff]
  %v7954 = vld [vmem:[%s4 + $0x90] sm:$0xff]
  %v7955 = vld [vmem:[%s4 + $0x98] sm:$0xff]
  %v7956 = vld [vmem:[%s4 + $0xa0] sm:$0xff]
  %v7957 = vld [vmem:[%s4 + $0xa8] sm:$0xff]
  %v7958 = vld [vmem:[%s4 + $0xb0] sm:$0xff]
  %v7959 = vld [vmem:[%s4 + $0xb8] sm:$0xff]
  %v7960 = vld [vmem:[%s4 + $0xc0] sm:$0xff]
  %v7961 = vld [vmem:[%s4 + $0xc8] sm:$0xff]
  %v7962 = vld [vmem:[%s4 + $0xd0] sm:$0xff]
  %v7963 = vld [vmem:[%s4 + $0xd8] sm:$0xff]
  %v7964 = vld [vmem:[%s4 + $0xe0] sm:$0xff]
  %v7965 = vld [vmem:[%s4 + $0xe8] sm:$0xff]
  %v7966 = vld [vmem:[%s4 + $0xf0] sm:$0xff]
  %v7967 = vld [vmem:[%s4 + $0xf8] sm:$0xff]
  %v7968 = vld [vmem:[%s4 + $0x100] sm:$0xff]
  %v7969 = vld [vmem:[%s4 + $0x108] sm:$0xff]
  %v7970 = vld [vmem:[%s4 + $0x110] sm:$0xff]
  %v7971 = vld [vmem:[%s4 + $0x118] sm:$0xff]
  %v7972 = vld [vmem:[%s4 + $0x120] sm:$0xff]
  %v7973 = vld [vmem:[%s4 + $0x128] sm:$0xff]
  %v7974 = vld [vmem:[%s4 + $0x130] sm:$0xff]
  %v7975 = vld [vmem:[%s4 + $0x138] sm:$0xff]
  %v7976 = vld [vmem:[%s4 + $0x140] sm:$0xff]
  %v7977 = vld [vmem:[%s4 + $0x148] sm:$0xff]
  %v7978 = vld [vmem:[%s4 + $0x150] sm:$0xff]
  %v7979 = vld [vmem:[%s4 + $0x158] sm:$0xff]
  %v7980 = vld [vmem:[%s4 + $0x160] sm:$0xff]
  %v7981 = vld [vmem:[%s4 + $0x168] sm:$0xff]
  %v7982 = vld [vmem:[%s4 + $0x170] sm:$0xff]
  %v7983 = vld [vmem:[%s4 + $0x178] sm:$0xff]
  %v7984 = vld [vmem:[%s4 + $0x180] sm:$0xff]
  %v7985 = vld [vmem:[%s4 + $0x188] sm:$0xff]
  %v7986 = vld [vmem:[%s4 + $0x190] sm:$0xff]
  %v7987 = vld [vmem:[%s4 + $0x198] sm:$0xff]
  %v7988 = vld [vmem:[%s4 + $0x1a0] sm:$0xff]
  %v7989 = vld [vmem:[%s4 + $0x1a8] sm:$0xff]
  %v7990 = vld [vmem:[%s4 + $0x1b0] sm:$0xff]
  %v7991 = vld [vmem:[%s4 + $0x1b8] sm:$0xff]
  %v7992 = vld [vmem:[%s4 + $0x1c0] sm:$0xff]
  %v7993 = vld [vmem:[%s4 + $0x1c8] sm:$0xff]
  %v7994 = vld [vmem:[%s4 + $0x1d0] sm:$0xff]
  %v7995 = vld [vmem:[%s4 + $0x1d8] sm:$0xff]
  %v7996 = vld [vmem:[%s4 + $0x1e0] sm:$0xff]
  %v7997 = vld [vmem:[%s4 + $0x1e8] sm:$0xff]
  %v7998 = vld [vmem:[%s4 + $0x1f0] sm:$0xff]
  %v7999 = vld [vmem:[%s4 + $0x1f8] sm:$0xff]
  %8000 = vmatpush.msra.mxu0 %v7887
  %8001 = vmatpush.msra.mxu0 %v7886
  %8002 = vmatpush.msra.mxu0 %v7885
  %8003 = vmatpush.msra.mxu0 %v7884
  %8004 = vmatpush.msra.mxu0 %v7883
  %8005 = vmatpush.msra.mxu0 %v7882
  %8006 = vmatpush.msra.mxu0 %v7881
  %8007 = vmatpush.msra.mxu0 %v7880
  %8008 = vmatpush.msra.mxu0 %v7879
  %8009 = vmatpush.msra.mxu0 %v7878
  %8010 = vmatpush.msra.mxu0 %v7877
  %8011 = vmatpush.msra.mxu0 %v7876
  %8012 = vmatpush.msra.mxu0 %v7875
  %8013 = vmatpush.msra.mxu0 %v7874
  %8014 = vmatpush.msra.mxu0 %v7873
  %8015 = vmatpush.msra.mxu0 %v7872
  %8016 = vmatmul.f32.gmra.mxu0 %v7936
  %v8017 = vpop.f32.mrf.mxu0
  %v8018 = vadd.f32 0.0, %v8017
  %8019 = vmatmul.f32.gmra.mxu0 %v7940
  %v8020 = vpop.f32.mrf.mxu0
  %v8021 = vadd.f32 0.0, %v8020
  %8022 = vmatmul.f32.gmra.mxu0 %v7944
  %v8023 = vpop.f32.mrf.mxu0
  %v8024 = vadd.f32 0.0, %v8023
  %8025 = vmatmul.f32.gmra.mxu0 %v7948
  %v8026 = vpop.f32.mrf.mxu0
  %v8027 = vadd.f32 0.0, %v8026
  %8028 = vmatmul.f32.gmra.mxu0 %v7952
  %v8029 = vpop.f32.mrf.mxu0
  %v8030 = vadd.f32 0.0, %v8029
  %8031 = vmatmul.f32.gmra.mxu0 %v7956
  %v8032 = vpop.f32.mrf.mxu0
  %v8033 = vadd.f32 0.0, %v8032
  %8034 = vmatmul.f32.gmra.mxu0 %v7960
  %v8035 = vpop.f32.mrf.mxu0
  %v8036 = vadd.f32 0.0, %v8035
  %8037 = vmatmul.f32.gmra.mxu0 %v7964
  %v8038 = vpop.f32.mrf.mxu0
  %v8039 = vadd.f32 0.0, %v8038
  %8040 = vmatmul.f32.gmra.mxu0 %v7968
  %v8041 = vpop.f32.mrf.mxu0
  %v8042 = vadd.f32 0.0, %v8041
  %8043 = vmatmul.f32.gmra.mxu0 %v7972
  %v8044 = vpop.f32.mrf.mxu0
  %v8045 = vadd.f32 0.0, %v8044
  %8046 = vmatmul.f32.gmra.mxu0 %v7976
  %v8047 = vpop.f32.mrf.mxu0
  %v8048 = vadd.f32 0.0, %v8047
  %8049 = vmatmul.f32.gmra.mxu0 %v7980
  %v8050 = vpop.f32.mrf.mxu0
  %v8051 = vadd.f32 0.0, %v8050
  %8052 = vmatmul.f32.gmra.mxu0 %v7984
  %v8053 = vpop.f32.mrf.mxu0
  %v8054 = vadd.f32 0.0, %v8053
  %8055 = vmatmul.f32.gmra.mxu0 %v7988
  %v8056 = vpop.f32.mrf.mxu0
  %v8057 = vadd.f32 0.0, %v8056
  %8058 = vmatmul.f32.gmra.mxu0 %v7992
  %v8059 = vpop.f32.mrf.mxu0
  %v8060 = vadd.f32 0.0, %v8059
  %8061 = vmatmul.f32.gmra.mxu0 %v7996
  %v8062 = vpop.f32.mrf.mxu0
  %v8063 = vadd.f32 0.0, %v8062
  %8064 = vdwg.mxu0
  %8065 = vmatpush.msra.mxu0 %v7903
  %8066 = vmatpush.msra.mxu0 %v7902
  %8067 = vmatpush.msra.mxu0 %v7901
  %8068 = vmatpush.msra.mxu0 %v7900
  %8069 = vmatpush.msra.mxu0 %v7899
  %8070 = vmatpush.msra.mxu0 %v7898
  %8071 = vmatpush.msra.mxu0 %v7897
  %8072 = vmatpush.msra.mxu0 %v7896
  %8073 = vmatpush.msra.mxu0 %v7895
  %8074 = vmatpush.msra.mxu0 %v7894
  %8075 = vmatpush.msra.mxu0 %v7893
  %8076 = vmatpush.msra.mxu0 %v7892
  %8077 = vmatpush.msra.mxu0 %v7891
  %8078 = vmatpush.msra.mxu0 %v7890
  %8079 = vmatpush.msra.mxu0 %v7889
  %8080 = vmatpush.msra.mxu0 %v7888
  %8081 = vmatmul.f32.gmra.mxu0 %v7937
  %v8082 = vpop.f32.mrf.mxu0
  %v8083 = vadd.f32 %v8018, %v8082
  %8084 = vmatmul.f32.gmra.mxu0 %v7941
  %v8085 = vpop.f32.mrf.mxu0
  %v8086 = vadd.f32 %v8021, %v8085
  %8087 = vmatmul.f32.gmra.mxu0 %v7945
  %v8088 = vpop.f32.mrf.mxu0
  %v8089 = vadd.f32 %v8024, %v8088
  %8090 = vmatmul.f32.gmra.mxu0 %v7949
  %v8091 = vpop.f32.mrf.mxu0
  %v8092 = vadd.f32 %v8027, %v8091
  %8093 = vmatmul.f32.gmra.mxu0 %v7953
  %v8094 = vpop.f32.mrf.mxu0
  %v8095 = vadd.f32 %v8030, %v8094
  %8096 = vmatmul.f32.gmra.mxu0 %v7957
  %v8097 = vpop.f32.mrf.mxu0
  %v8098 = vadd.f32 %v8033, %v8097
  %8099 = vmatmul.f32.gmra.mxu0 %v7961
  %v8100 = vpop.f32.mrf.mxu0
  %v8101 = vadd.f32 %v8036, %v8100
  %8102 = vmatmul.f32.gmra.mxu0 %v7965
  %v8103 = vpop.f32.mrf.mxu0
  %v8104 = vadd.f32 %v8039, %v8103
  %8105 = vmatmul.f32.gmra.mxu0 %v7969
  %v8106 = vpop.f32.mrf.mxu0
  %v8107 = vadd.f32 %v8042, %v8106
  %8108 = vmatmul.f32.gmra.mxu0 %v7973
  %v8109 = vpop.f32.mrf.mxu0
  %v8110 = vadd.f32 %v8045, %v8109
  %8111 = vmatmul.f32.gmra.mxu0 %v7977
  %v8112 = vpop.f32.mrf.mxu0
  %v8113 = vadd.f32 %v8048, %v8112
  %8114 = vmatmul.f32.gmra.mxu0 %v7981
  %v8115 = vpop.f32.mrf.mxu0
  %v8116 = vadd.f32 %v8051, %v8115
  %8117 = vmatmul.f32.gmra.mxu0 %v7985
  %v8118 = vpop.f32.mrf.mxu0
  %v8119 = vadd.f32 %v8054, %v8118
  %8120 = vmatmul.f32.gmra.mxu0 %v7989
  %v8121 = vpop.f32.mrf.mxu0
  %v8122 = vadd.f32 %v8057, %v8121
  %8123 = vmatmul.f32.gmra.mxu0 %v7993
  %v8124 = vpop.f32.mrf.mxu0
  %v8125 = vadd.f32 %v8060, %v8124
  %8126 = vmatmul.f32.gmra.mxu0 %v7997
  %v8127 = vpop.f32.mrf.mxu0
  %v8128 = vadd.f32 %v8063, %v8127
  %8129 = vdwg.mxu0
  %8130 = vmatpush.msra.mxu0 %v7919
  %8131 = vmatpush.msra.mxu0 %v7918
  %8132 = vmatpush.msra.mxu0 %v7917
  %8133 = vmatpush.msra.mxu0 %v7916
  %8134 = vmatpush.msra.mxu0 %v7915
  %8135 = vmatpush.msra.mxu0 %v7914
  %8136 = vmatpush.msra.mxu0 %v7913
  %8137 = vmatpush.msra.mxu0 %v7912
  %8138 = vmatpush.msra.mxu0 %v7911
  %8139 = vmatpush.msra.mxu0 %v7910
  %8140 = vmatpush.msra.mxu0 %v7909
  %8141 = vmatpush.msra.mxu0 %v7908
  %8142 = vmatpush.msra.mxu0 %v7907
  %8143 = vmatpush.msra.mxu0 %v7906
  %8144 = vmatpush.msra.mxu0 %v7905
  %8145 = vmatpush.msra.mxu0 %v7904
  %8146 = vmatmul.f32.gmra.mxu0 %v7938
  %v8147 = vpop.f32.mrf.mxu0
  %v8148 = vadd.f32 %v8083, %v8147
  %8149 = vmatmul.f32.gmra.mxu0 %v7942
  %v8150 = vpop.f32.mrf.mxu0
  %v8151 = vadd.f32 %v8086, %v8150
  %8152 = vmatmul.f32.gmra.mxu0 %v7946
  %v8153 = vpop.f32.mrf.mxu0
  %v8154 = vadd.f32 %v8089, %v8153
  %8155 = vmatmul.f32.gmra.mxu0 %v7950
  %v8156 = vpop.f32.mrf.mxu0
  %v8157 = vadd.f32 %v8092, %v8156
  %8158 = vmatmul.f32.gmra.mxu0 %v7954
  %v8159 = vpop.f32.mrf.mxu0
  %v8160 = vadd.f32 %v8095, %v8159
  %8161 = vmatmul.f32.gmra.mxu0 %v7958
  %v8162 = vpop.f32.mrf.mxu0
  %v8163 = vadd.f32 %v8098, %v8162
  %8164 = vmatmul.f32.gmra.mxu0 %v7962
  %v8165 = vpop.f32.mrf.mxu0
  %v8166 = vadd.f32 %v8101, %v8165
  %8167 = vmatmul.f32.gmra.mxu0 %v7966
  %v8168 = vpop.f32.mrf.mxu0
  %v8169 = vadd.f32 %v8104, %v8168
  %8170 = vmatmul.f32.gmra.mxu0 %v7970
  %v8171 = vpop.f32.mrf.mxu0
  %v8172 = vadd.f32 %v8107, %v8171
  %8173 = vmatmul.f32.gmra.mxu0 %v7974
  %v8174 = vpop.f32.mrf.mxu0
  %v8175 = vadd.f32 %v8110, %v8174
  %8176 = vmatmul.f32.gmra.mxu0 %v7978
  %v8177 = vpop.f32.mrf.mxu0
  %v8178 = vadd.f32 %v8113, %v8177
  %8179 = vmatmul.f32.gmra.mxu0 %v7982
  %v8180 = vpop.f32.mrf.mxu0
  %v8181 = vadd.f32 %v8116, %v8180
  %8182 = vmatmul.f32.gmra.mxu0 %v7986
  %v8183 = vpop.f32.mrf.mxu0
  %v8184 = vadd.f32 %v8119, %v8183
  %8185 = vmatmul.f32.gmra.mxu0 %v7990
  %v8186 = vpop.f32.mrf.mxu0
  %v8187 = vadd.f32 %v8122, %v8186
  %8188 = vmatmul.f32.gmra.mxu0 %v7994
  %v8189 = vpop.f32.mrf.mxu0
  %v8190 = vadd.f32 %v8125, %v8189
  %8191 = vmatmul.f32.gmra.mxu0 %v7998
  %v8192 = vpop.f32.mrf.mxu0
  %v8193 = vadd.f32 %v8128, %v8192
  %8194 = vdwg.mxu0
  %8195 = vmatpush.msra.mxu0 %v7935
  %8196 = vmatpush.msra.mxu0 %v7934
  %8197 = vmatpush.msra.mxu0 %v7933
  %8198 = vmatpush.msra.mxu0 %v7932
  %8199 = vmatpush.msra.mxu0 %v7931
  %8200 = vmatpush.msra.mxu0 %v7930
  %8201 = vmatpush.msra.mxu0 %v7929
  %8202 = vmatpush.msra.mxu0 %v7928
  %8203 = vmatpush.msra.mxu0 %v7927
  %8204 = vmatpush.msra.mxu0 %v7926
  %8205 = vmatpush.msra.mxu0 %v7925
  %8206 = vmatpush.msra.mxu0 %v7924
  %8207 = vmatpush.msra.mxu0 %v7923
  %8208 = vmatpush.msra.mxu0 %v7922
  %8209 = vmatpush.msra.mxu0 %v7921
  %8210 = vmatpush.msra.mxu0 %v7920
  %8211 = vmatmul.f32.gmra.mxu0 %v7939
  %v8212 = vpop.f32.mrf.mxu0
  %v8213 = vadd.f32 %v8148, %v8212
  %8214 = vmatmul.f32.gmra.mxu0 %v7943
  %v8215 = vpop.f32.mrf.mxu0
  %v8216 = vadd.f32 %v8151, %v8215
  %8217 = vmatmul.f32.gmra.mxu0 %v7947
  %v8218 = vpop.f32.mrf.mxu0
  %v8219 = vadd.f32 %v8154, %v8218
  %8220 = vmatmul.f32.gmra.mxu0 %v7951
  %v8221 = vpop.f32.mrf.mxu0
  %v8222 = vadd.f32 %v8157, %v8221
  %8223 = vmatmul.f32.gmra.mxu0 %v7955
  %v8224 = vpop.f32.mrf.mxu0
  %v8225 = vadd.f32 %v8160, %v8224
  %8226 = vmatmul.f32.gmra.mxu0 %v7959
  %v8227 = vpop.f32.mrf.mxu0
  %v8228 = vadd.f32 %v8163, %v8227
  %8229 = vmatmul.f32.gmra.mxu0 %v7963
  %v8230 = vpop.f32.mrf.mxu0
  %v8231 = vadd.f32 %v8166, %v8230
  %8232 = vmatmul.f32.gmra.mxu0 %v7967
  %v8233 = vpop.f32.mrf.mxu0
  %v8234 = vadd.f32 %v8169, %v8233
  %8235 = vmatmul.f32.gmra.mxu0 %v7971
  %v8236 = vpop.f32.mrf.mxu0
  %v8237 = vadd.f32 %v8172, %v8236
  %8238 = vmatmul.f32.gmra.mxu0 %v7975
  %v8239 = vpop.f32.mrf.mxu0
  %v8240 = vadd.f32 %v8175, %v8239
  %8241 = vmatmul.f32.gmra.mxu0 %v7979
  %v8242 = vpop.f32.mrf.mxu0
  %v8243 = vadd.f32 %v8178, %v8242
  %8244 = vmatmul.f32.gmra.mxu0 %v7983
  %v8245 = vpop.f32.mrf.mxu0
  %v8246 = vadd.f32 %v8181, %v8245
  %8247 = vmatmul.f32.gmra.mxu0 %v7987
  %v8248 = vpop.f32.mrf.mxu0
  %v8249 = vadd.f32 %v8184, %v8248
  %8250 = vmatmul.f32.gmra.mxu0 %v7991
  %v8251 = vpop.f32.mrf.mxu0
  %v8252 = vadd.f32 %v8187, %v8251
  %8253 = vmatmul.f32.gmra.mxu0 %v7995
  %v8254 = vpop.f32.mrf.mxu0
  %v8255 = vadd.f32 %v8190, %v8254
  %8256 = vmatmul.f32.gmra.mxu0 %v7999
  %v8257 = vpop.f32.mrf.mxu0
  %v8258 = vadd.f32 %v8193, %v8257
  %8259 = vdwg.mxu0
  %8260 = vst [vmem:[#allocation3] sm:$0xff] 0.0
  %8261 = vst [vmem:[#allocation3 + $0x8] sm:$0xff] 0.0
  %8262 = vst [vmem:[#allocation3 + $0x10] sm:$0xff] 0.0
  %8263 = vst [vmem:[#allocation3 + $0x18] sm:$0xff] 0.0
  %8264 = vst [vmem:[#allocation3 + $0x20] sm:$0xff] 0.0
  %8265 = vst [vmem:[#allocation3 + $0x28] sm:$0xff] 0.0
  %8266 = vst [vmem:[#allocation3 + $0x30] sm:$0xff] 0.0
  %8267 = vst [vmem:[#allocation3 + $0x38] sm:$0xff] 0.0
  %8268 = vst [vmem:[#allocation3 + $0x40] sm:$0xff] 0.0
  %8269 = vst [vmem:[#allocation3 + $0x48] sm:$0xff] 0.0
  %8270 = vst [vmem:[#allocation3 + $0x50] sm:$0xff] 0.0
  %8271 = vst [vmem:[#allocation3 + $0x58] sm:$0xff] 0.0
  %8272 = vst [vmem:[#allocation3 + $0x60] sm:$0xff] 0.0
  %8273 = vst [vmem:[#allocation3 + $0x68] sm:$0xff] 0.0
  %8274 = vst [vmem:[#allocation3 + $0x70] sm:$0xff] 0.0
  %8275 = vst [vmem:[#allocation3 + $0x78] sm:$0xff] 0.0
  %8276 = vst [vmem:[#allocation3 + $0x80] sm:$0xff] 0.0
  %8277 = vst [vmem:[#allocation3 + $0x88] sm:$0xff] 0.0
  %8278 = vst [vmem:[#allocation3 + $0x90] sm:$0xff] 0.0
  %8279 = vst [vmem:[#allocation3 + $0x98] sm:$0xff] 0.0
  %8280 = vst [vmem:[#allocation3 + $0x10] sm:$0xff] %v8213
  %8281 = vst [vmem:[#allocation3 + $0x18] sm:$0xff] %v8216
  %8282 = vst [vmem:[#allocation3 + $0x20] sm:$0xff] %v8219
  %8283 = vst [vmem:[#allocation3 + $0x28] sm:$0xff] %v8222
  %8284 = vst [vmem:[#allocation3 + $0x30] sm:$0xff] %v8225
  %8285 = vst [vmem:[#allocation3 + $0x38] sm:$0xff] %v8228
  %8286 = vst [vmem:[#allocation3 + $0x40] sm:$0xff] %v8231
  %8287 = vst [vmem:[#allocation3 + $0x48] sm:$0xff] %v8234
  %8288 = vst [vmem:[#allocation3 + $0x50] sm:$0xff] %v8237
  %8289 = vst [vmem:[#allocation3 + $0x58] sm:$0xff] %v8240
  %8290 = vst [vmem:[#allocation3 + $0x60] sm:$0xff] %v8243
  %8291 = vst [vmem:[#allocation3 + $0x68] sm:$0xff] %v8246
  %8292 = vst [vmem:[#allocation3 + $0x70] sm:$0xff] %v8249
  %8293 = vst [vmem:[#allocation3 + $0x78] sm:$0xff] %v8252
  %8294 = vst [vmem:[#allocation3 + $0x80] sm:$0xff] %v8255
  %8295 = vst [vmem:[#allocation3 + $0x88] sm:$0xff] %v8258
  %v8296 = vld [vmem:[%s6] sm:$0x1]
  %v8298 = vperm.slane %v8296, 0
  %v8300 = vld [vmem:[#allocation3 + $0x7] sm:$0xff]
  %v8301 = vld [vmem:[#allocation3 + $0xf] sm:$0xff]
  %v8302 = vld [vmem:[#allocation3 + $0x17] sm:$0xff]
  %v8303 = vld [vmem:[#allocation3 + $0x1f] sm:$0xff]
  %v8304 = vld [vmem:[#allocation3 + $0x27] sm:$0xff]
  %v8305 = vld [vmem:[#allocation3 + $0x2f] sm:$0xff]
  %v8306 = vld [vmem:[#allocation3 + $0x37] sm:$0xff]
  %v8307 = vld [vmem:[#allocation3 + $0x3f] sm:$0xff]
  %v8308 = vld [vmem:[#allocation3 + $0x47] sm:$0xff]
  %v8309 = vld [vmem:[#allocation3 + $0x4f] sm:$0xff]
  %v8310 = vld [vmem:[#allocation3 + $0x57] sm:$0xff]
  %v8311 = vld [vmem:[#allocation3 + $0x5f] sm:$0xff]
  %v8312 = vld [vmem:[#allocation3 + $0x67] sm:$0xff]
  %v8313 = vld [vmem:[#allocation3 + $0x6f] sm:$0xff]
  %v8314 = vld [vmem:[#allocation3 + $0x77] sm:$0xff]
  %v8315 = vld [vmem:[#allocation3 + $0x7f] sm:$0xff]
  %v8316 = vld [vmem:[%s7] sm:$0xff]
  %v8317 = vld [vmem:[%s7 + $0x8] sm:$0xff]
  %v8318 = vld [vmem:[%s7 + $0x10] sm:$0xff]
  %v8319 = vld [vmem:[%s7 + $0x18] sm:$0xff]
  %v8320 = vld [vmem:[%s7 + $0x20] sm:$0xff]
  %v8321 = vld [vmem:[%s7 + $0x28] sm:$0xff]
  %v8322 = vld [vmem:[%s7 + $0x30] sm:$0xff]
  %v8323 = vld [vmem:[%s7 + $0x38] sm:$0xff]
  %v8324 = vld [vmem:[%s7 + $0x40] sm:$0xff]
  %v8325 = vld [vmem:[%s7 + $0x48] sm:$0xff]
  %v8326 = vld [vmem:[%s7 + $0x50] sm:$0xff]
  %v8327 = vld [vmem:[%s7 + $0x58] sm:$0xff]
  %v8328 = vld [vmem:[%s7 + $0x60] sm:$0xff]
  %v8329 = vld [vmem:[%s7 + $0x68] sm:$0xff]
  %v8330 = vld [vmem:[%s7 + $0x70] sm:$0xff]
  %v8331 = vld [vmem:[%s7 + $0x78] sm:$0xff]
  %8333 = vset.pattern.permute.xlu0 0
  %8334 = vperm.xlu0 %8333, %v8316
  %v8335 = vpop.permute.xlu0 %8334
  %8338 = vset.pattern.permute.xlu0 0
  %8339 = vperm.xlu0 %8338, %v8317
  %v8340 = vpop.permute.xlu0 %8339
  %8343 = vset.pattern.permute.xlu0 0
  %8344 = vperm.xlu0 %8343, %v8318
  %v8345 = vpop.permute.xlu0 %8344
  %8348 = vset.pattern.permute.xlu0 0
  %8349 = vperm.xlu0 %8348, %v8319
  %v8350 = vpop.permute.xlu0 %8349
  %8353 = vset.pattern.permute.xlu0 0
  %8354 = vperm.xlu0 %8353, %v8320
  %v8355 = vpop.permute.xlu0 %8354
  %8358 = vset.pattern.permute.xlu0 0
  %8359 = vperm.xlu0 %8358, %v8321
  %v8360 = vpop.permute.xlu0 %8359
  %8363 = vset.pattern.permute.xlu0 0
  %8364 = vperm.xlu0 %8363, %v8322
  %v8365 = vpop.permute.xlu0 %8364
  %8368 = vset.pattern.permute.xlu0 0
  %8369 = vperm.xlu0 %8368, %v8323
  %v8370 = vpop.permute.xlu0 %8369
  %8373 = vset.pattern.permute.xlu0 0
  %8374 = vperm.xlu0 %8373, %v8324
  %v8375 = vpop.permute.xlu0 %8374
  %8378 = vset.pattern.permute.xlu0 0
  %8379 = vperm.xlu0 %8378, %v8325
  %v8380 = vpop.permute.xlu0 %8379
  %8383 = vset.pattern.permute.xlu0 0
  %8384 = vperm.xlu0 %8383, %v8326
  %v8385 = vpop.permute.xlu0 %8384
  %8388 = vset.pattern.permute.xlu0 0
  %8389 = vperm.xlu0 %8388, %v8327
  %v8390 = vpop.permute.xlu0 %8389
  %8393 = vset.pattern.permute.xlu0 0
  %8394 = vperm.xlu0 %8393, %v8328
  %v8395 = vpop.permute.xlu0 %8394
  %8398 = vset.pattern.permute.xlu0 0
  %8399 = vperm.xlu0 %8398, %v8329
  %v8400 = vpop.permute.xlu0 %8399
  %8403 = vset.pattern.permute.xlu0 0
  %8404 = vperm.xlu0 %8403, %v8330
  %v8405 = vpop.permute.xlu0 %8404
  %8408 = vset.pattern.permute.xlu0 0
  %8409 = vperm.xlu0 %8408, %v8331
  %v8410 = vpop.permute.xlu0 %8409
  %v8412 = vmul.f32 %v8300, %v8335
  %v8413 = vmul.f32 %v8301, %v8340
  %v8414 = vmul.f32 %v8302, %v8345
  %v8415 = vmul.f32 %v8303, %v8350
  %v8416 = vmul.f32 %v8304, %v8355
  %v8417 = vmul.f32 %v8305, %v8360
  %v8418 = vmul.f32 %v8306, %v8365
  %v8419 = vmul.f32 %v8307, %v8370
  %v8420 = vmul.f32 %v8308, %v8375
  %v8421 = vmul.f32 %v8309, %v8380
  %v8422 = vmul.f32 %v8310, %v8385
  %v8423 = vmul.f32 %v8311, %v8390
  %v8424 = vmul.f32 %v8312, %v8395
  %v8425 = vmul.f32 %v8313, %v8400
  %v8426 = vmul.f32 %v8314, %v8405
  %v8427 = vmul.f32 %v8315, %v8410
  %v8428 = vld [vmem:[%s5] sm:$0xff]
  %v8429 = vld [vmem:[%s5 + $0x8] sm:$0xff]
  %v8430 = vld [vmem:[%s5 + $0x10] sm:$0xff]
  %v8431 = vld [vmem:[%s5 + $0x18] sm:$0xff]
  %v8432 = vld [vmem:[%s5 + $0x20] sm:$0xff]
  %v8433 = vld [vmem:[%s5 + $0x28] sm:$0xff]
  %v8434 = vld [vmem:[%s5 + $0x30] sm:$0xff]
  %v8435 = vld [vmem:[%s5 + $0x38] sm:$0xff]
  %v8436 = vld [vmem:[%s5 + $0x40] sm:$0xff]
  %v8437 = vld [vmem:[%s5 + $0x48] sm:$0xff]
  %v8438 = vld [vmem:[%s5 + $0x50] sm:$0xff]
  %v8439 = vld [vmem:[%s5 + $0x58] sm:$0xff]
  %v8440 = vld [vmem:[%s5 + $0x60] sm:$0xff]
  %v8441 = vld [vmem:[%s5 + $0x68] sm:$0xff]
  %v8442 = vld [vmem:[%s5 + $0x70] sm:$0xff]
  %v8443 = vld [vmem:[%s5 + $0x78] sm:$0xff]
  %8444 = vmatpush.msra.mxu0 %v8443
  %8445 = vmatpush.msra.mxu0 %v8442
  %8446 = vmatpush.msra.mxu0 %v8441
  %8447 = vmatpush.msra.mxu0 %v8440
  %8448 = vmatpush.msra.mxu0 %v8439
  %8449 = vmatpush.msra.mxu0 %v8438
  %8450 = vmatpush.msra.mxu0 %v8437
  %8451 = vmatpush.msra.mxu0 %v8436
  %8452 = vmatpush.msra.mxu0 %v8435
  %8453 = vmatpush.msra.mxu0 %v8434
  %8454 = vmatpush.msra.mxu0 %v8433
  %8455 = vmatpush.msra.mxu0 %v8432
  %8456 = vmatpush.msra.mxu0 %v8431
  %8457 = vmatpush.msra.mxu0 %v8430
  %8458 = vmatpush.msra.mxu0 %v8429
  %8459 = vmatpush.msra.mxu0 %v8428
  %8460 = vmatmul.f32.gmra.mxu0 %v8412
  %v8461 = vpop.f32.mrf.mxu0
  %v8462 = vadd.f32 0.0, %v8461
  %8463 = vmatmul.f32.gmra.mxu0 %v8413
  %v8464 = vpop.f32.mrf.mxu0
  %v8465 = vadd.f32 0.0, %v8464
  %8466 = vmatmul.f32.gmra.mxu0 %v8414
  %v8467 = vpop.f32.mrf.mxu0
  %v8468 = vadd.f32 0.0, %v8467
  %8469 = vmatmul.f32.gmra.mxu0 %v8415
  %v8470 = vpop.f32.mrf.mxu0
  %v8471 = vadd.f32 0.0, %v8470
  %8472 = vmatmul.f32.gmra.mxu0 %v8416
  %v8473 = vpop.f32.mrf.mxu0
  %v8474 = vadd.f32 0.0, %v8473
  %8475 = vmatmul.f32.gmra.mxu0 %v8417
  %v8476 = vpop.f32.mrf.mxu0
  %v8477 = vadd.f32 0.0, %v8476
  %8478 = vmatmul.f32.gmra.mxu0 %v8418
  %v8479 = vpop.f32.mrf.mxu0
  %v8480 = vadd.f32 0.0, %v8479
  %8481 = vmatmul.f32.gmra.mxu0 %v8419
  %v8482 = vpop.f32.mrf.mxu0
  %v8483 = vadd.f32 0.0, %v8482
  %8484 = vmatmul.f32.gmra.mxu0 %v8420
  %v8485 = vpop.f32.mrf.mxu0
  %v8486 = vadd.f32 0.0, %v8485
  %8487 = vmatmul.f32.gmra.mxu0 %v8421
  %v8488 = vpop.f32.mrf.mxu0
  %v8489 = vadd.f32 0.0, %v8488
  %8490 = vmatmul.f32.gmra.mxu0 %v8422
  %v8491 = vpop.f32.mrf.mxu0
  %v8492 = vadd.f32 0.0, %v8491
  %8493 = vmatmul.f32.gmra.mxu0 %v8423
  %v8494 = vpop.f32.mrf.mxu0
  %v8495 = vadd.f32 0.0, %v8494
  %8496 = vmatmul.f32.gmra.mxu0 %v8424
  %v8497 = vpop.f32.mrf.mxu0
  %v8498 = vadd.f32 0.0, %v8497
  %8499 = vmatmul.f32.gmra.mxu0 %v8425
  %v8500 = vpop.f32.mrf.mxu0
  %v8501 = vadd.f32 0.0, %v8500
  %8502 = vmatmul.f32.gmra.mxu0 %v8426
  %v8503 = vpop.f32.mrf.mxu0
  %v8504 = vadd.f32 0.0, %v8503
  %8505 = vmatmul.f32.gmra.mxu0 %v8427
  %v8506 = vpop.f32.mrf.mxu0
  %v8507 = vadd.f32 0.0, %v8506
  %8508 = vdwg.mxu0
  %v8509 = vadd.f32 %v8298, %v8462
  %v8510 = vadd.f32 %v8298, %v8465
  %v8511 = vadd.f32 %v8298, %v8468
  %v8512 = vadd.f32 %v8298, %v8471
  %v8513 = vadd.f32 %v8298, %v8474
  %v8514 = vadd.f32 %v8298, %v8477
  %v8515 = vadd.f32 %v8298, %v8480
  %v8516 = vadd.f32 %v8298, %v8483
  %v8517 = vadd.f32 %v8298, %v8486
  %v8518 = vadd.f32 %v8298, %v8489
  %v8519 = vadd.f32 %v8298, %v8492
  %v8520 = vadd.f32 %v8298, %v8495
  %v8521 = vadd.f32 %v8298, %v8498
  %v8522 = vadd.f32 %v8298, %v8501
  %v8523 = vadd.f32 %v8298, %v8504
  %v8524 = vadd.f32 %v8298, %v8507
  %v8525 = vld [vmem:[#allocation3 + $0x8] sm:$0xff]
  %v8526 = vld [vmem:[#allocation3 + $0x10] sm:$0xff]
  %v8527 = vld [vmem:[#allocation3 + $0x18] sm:$0xff]
  %v8528 = vld [vmem:[#allocation3 + $0x20] sm:$0xff]
  %v8529 = vld [vmem:[#allocation3 + $0x28] sm:$0xff]
  %v8530 = vld [vmem:[#allocation3 + $0x30] sm:$0xff]
  %v8531 = vld [vmem:[#allocation3 + $0x38] sm:$0xff]
  %v8532 = vld [vmem:[#allocation3 + $0x40] sm:$0xff]
  %v8533 = vld [vmem:[#allocation3 + $0x48] sm:$0xff]
  %v8534 = vld [vmem:[#allocation3 + $0x50] sm:$0xff]
  %v8535 = vld [vmem:[#allocation3 + $0x58] sm:$0xff]
  %v8536 = vld [vmem:[#allocation3 + $0x60] sm:$0xff]
  %v8537 = vld [vmem:[#allocation3 + $0x68] sm:$0xff]
  %v8538 = vld [vmem:[#allocation3 + $0x70] sm:$0xff]
  %v8539 = vld [vmem:[#allocation3 + $0x78] sm:$0xff]
  %v8540 = vld [vmem:[#allocation3 + $0x80] sm:$0xff]
  %s8541 = scalar_lea.vmem %s7, 128
  %v8542 = vld [vmem:[%s8541] sm:$0xff]
  %v8543 = vld [vmem:[%s8541 + $0x8] sm:$0xff]
  %v8544 = vld [vmem:[%s8541 + $0x10] sm:$0xff]
  %v8545 = vld [vmem:[%s8541 + $0x18] sm:$0xff]
  %v8546 = vld [vmem:[%s8541 + $0x20] sm:$0xff]
  %v8547 = vld [vmem:[%s8541 + $0x28] sm:$0xff]
  %v8548 = vld [vmem:[%s8541 + $0x30] sm:$0xff]
  %v8549 = vld [vmem:[%s8541 + $0x38] sm:$0xff]
  %v8550 = vld [vmem:[%s8541 + $0x40] sm:$0xff]
  %v8551 = vld [vmem:[%s8541 + $0x48] sm:$0xff]
  %v8552 = vld [vmem:[%s8541 + $0x50] sm:$0xff]
  %v8553 = vld [vmem:[%s8541 + $0x58] sm:$0xff]
  %v8554 = vld [vmem:[%s8541 + $0x60] sm:$0xff]
  %v8555 = vld [vmem:[%s8541 + $0x68] sm:$0xff]
  %v8556 = vld [vmem:[%s8541 + $0x70] sm:$0xff]
  %v8557 = vld [vmem:[%s8541 + $0x78] sm:$0xff]
  %8559 = vset.pattern.permute.xlu0 0
  %8560 = vperm.xlu0 %8559, %v8542
  %v8561 = vpop.permute.xlu0 %8560
  %8564 = vset.pattern.permute.xlu0 0
  %8565 = vperm.xlu0 %8564, %v8543
  %v8566 = vpop.permute.xlu0 %8565
  %8569 = vset.pattern.permute.xlu0 0
  %8570 = vperm.xlu0 %8569, %v8544
  %v8571 = vpop.permute.xlu0 %8570
  %8574 = vset.pattern.permute.xlu0 0
  %8575 = vperm.xlu0 %8574, %v8545
  %v8576 = vpop.permute.xlu0 %8575
  %8579 = vset.pattern.permute.xlu0 0
  %8580 = vperm.xlu0 %8579, %v8546
  %v8581 = vpop.permute.xlu0 %8580
  %8584 = vset.pattern.permute.xlu0 0
  %8585 = vperm.xlu0 %8584, %v8547
  %v8586 = vpop.permute.xlu0 %8585
  %8589 = vset.pattern.permute.xlu0 0
  %8590 = vperm.xlu0 %8589, %v8548
  %v8591 = vpop.permute.xlu0 %8590
  %8594 = vset.pattern.permute.xlu0 0
  %8595 = vperm.xlu0 %8594, %v8549
  %v8596 = vpop.permute.xlu0 %8595
  %8599 = vset.pattern.permute.xlu0 0
  %8600 = vperm.xlu0 %8599, %v8550
  %v8601 = vpop.permute.xlu0 %8600
  %8604 = vset.pattern.permute.xlu0 0
  %8605 = vperm.xlu0 %8604, %v8551
  %v8606 = vpop.permute.xlu0 %8605
  %8609 = vset.pattern.permute.xlu0 0
  %8610 = vperm.xlu0 %8609, %v8552
  %v8611 = vpop.permute.xlu0 %8610
  %8614 = vset.pattern.permute.xlu0 0
  %8615 = vperm.xlu0 %8614, %v8553
  %v8616 = vpop.permute.xlu0 %8615
  %8619 = vset.pattern.permute.xlu0 0
  %8620 = vperm.xlu0 %8619, %v8554
  %v8621 = vpop.permute.xlu0 %8620
  %8624 = vset.pattern.permute.xlu0 0
  %8625 = vperm.xlu0 %8624, %v8555
  %v8626 = vpop.permute.xlu0 %8625
  %8629 = vset.pattern.permute.xlu0 0
  %8630 = vperm.xlu0 %8629, %v8556
  %v8631 = vpop.permute.xlu0 %8630
  %8634 = vset.pattern.permute.xlu0 0
  %8635 = vperm.xlu0 %8634, %v8557
  %v8636 = vpop.permute.xlu0 %8635
  %v8638 = vmul.f32 %v8525, %v8561
  %v8639 = vmul.f32 %v8526, %v8566
  %v8640 = vmul.f32 %v8527, %v8571
  %v8641 = vmul.f32 %v8528, %v8576
  %v8642 = vmul.f32 %v8529, %v8581
  %v8643 = vmul.f32 %v8530, %v8586
  %v8644 = vmul.f32 %v8531, %v8591
  %v8645 = vmul.f32 %v8532, %v8596
  %v8646 = vmul.f32 %v8533, %v8601
  %v8647 = vmul.f32 %v8534, %v8606
  %v8648 = vmul.f32 %v8535, %v8611
  %v8649 = vmul.f32 %v8536, %v8616
  %v8650 = vmul.f32 %v8537, %v8621
  %v8651 = vmul.f32 %v8538, %v8626
  %v8652 = vmul.f32 %v8539, %v8631
  %v8653 = vmul.f32 %v8540, %v8636
  %s8654 = scalar_lea.vmem %s5, 128
  %v8655 = vld [vmem:[%s8654] sm:$0xff]
  %v8656 = vld [vmem:[%s8654 + $0x8] sm:$0xff]
  %v8657 = vld [vmem:[%s8654 + $0x10] sm:$0xff]
  %v8658 = vld [vmem:[%s8654 + $0x18] sm:$0xff]
  %v8659 = vld [vmem:[%s8654 + $0x20] sm:$0xff]
  %v8660 = vld [vmem:[%s8654 + $0x28] sm:$0xff]
  %v8661 = vld [vmem:[%s8654 + $0x30] sm:$0xff]
  %v8662 = vld [vmem:[%s8654 + $0x38] sm:$0xff]
  %v8663 = vld [vmem:[%s8654 + $0x40] sm:$0xff]
  %v8664 = vld [vmem:[%s8654 + $0x48] sm:$0xff]
  %v8665 = vld [vmem:[%s8654 + $0x50] sm:$0xff]
  %v8666 = vld [vmem:[%s8654 + $0x58] sm:$0xff]
  %v8667 = vld [vmem:[%s8654 + $0x60] sm:$0xff]
  %v8668 = vld [vmem:[%s8654 + $0x68] sm:$0xff]
  %v8669 = vld [vmem:[%s8654 + $0x70] sm:$0xff]
  %v8670 = vld [vmem:[%s8654 + $0x78] sm:$0xff]
  %8671 = vmatpush.msra.mxu0 %v8670
  %8672 = vmatpush.msra.mxu0 %v8669
  %8673 = vmatpush.msra.mxu0 %v8668
  %8674 = vmatpush.msra.mxu0 %v8667
  %8675 = vmatpush.msra.mxu0 %v8666
  %8676 = vmatpush.msra.mxu0 %v8665
  %8677 = vmatpush.msra.mxu0 %v8664
  %8678 = vmatpush.msra.mxu0 %v8663
  %8679 = vmatpush.msra.mxu0 %v8662
  %8680 = vmatpush.msra.mxu0 %v8661
  %8681 = vmatpush.msra.mxu0 %v8660
  %8682 = vmatpush.msra.mxu0 %v8659
  %8683 = vmatpush.msra.mxu0 %v8658
  %8684 = vmatpush.msra.mxu0 %v8657
  %8685 = vmatpush.msra.mxu0 %v8656
  %8686 = vmatpush.msra.mxu0 %v8655
  %8687 = vmatmul.f32.gmra.mxu0 %v8638
  %v8688 = vpop.f32.mrf.mxu0
  %v8689 = vadd.f32 0.0, %v8688
  %8690 = vmatmul.f32.gmra.mxu0 %v8639
  %v8691 = vpop.f32.mrf.mxu0
  %v8692 = vadd.f32 0.0, %v8691
  %8693 = vmatmul.f32.gmra.mxu0 %v8640
  %v8694 = vpop.f32.mrf.mxu0
  %v8695 = vadd.f32 0.0, %v8694
  %8696 = vmatmul.f32.gmra.mxu0 %v8641
  %v8697 = vpop.f32.mrf.mxu0
  %v8698 = vadd.f32 0.0, %v8697
  %8699 = vmatmul.f32.gmra.mxu0 %v8642
  %v8700 = vpop.f32.mrf.mxu0
  %v8701 = vadd.f32 0.0, %v8700
  %8702 = vmatmul.f32.gmra.mxu0 %v8643
  %v8703 = vpop.f32.mrf.mxu0
  %v8704 = vadd.f32 0.0, %v8703
  %8705 = vmatmul.f32.gmra.mxu0 %v8644
  %v8706 = vpop.f32.mrf.mxu0
  %v8707 = vadd.f32 0.0, %v8706
  %8708 = vmatmul.f32.gmra.mxu0 %v8645
  %v8709 = vpop.f32.mrf.mxu0
  %v8710 = vadd.f32 0.0, %v8709
  %8711 = vmatmul.f32.gmra.mxu0 %v8646
  %v8712 = vpop.f32.mrf.mxu0
  %v8713 = vadd.f32 0.0, %v8712
  %8714 = vmatmul.f32.gmra.mxu0 %v8647
  %v8715 = vpop.f32.mrf.mxu0
  %v8716 = vadd.f32 0.0, %v8715
  %8717 = vmatmul.f32.gmra.mxu0 %v8648
  %v8718 = vpop.f32.mrf.mxu0
  %v8719 = vadd.f32 0.0, %v8718
  %8720 = vmatmul.f32.gmra.mxu0 %v8649
  %v8721 = vpop.f32.mrf.mxu0
  %v8722 = vadd.f32 0.0, %v8721
  %8723 = vmatmul.f32.gmra.mxu0 %v8650
  %v8724 = vpop.f32.mrf.mxu0
  %v8725 = vadd.f32 0.0, %v8724
  %8726 = vmatmul.f32.gmra.mxu0 %v8651
  %v8727 = vpop.f32.mrf.mxu0
  %v8728 = vadd.f32 0.0, %v8727
  %8729 = vmatmul.f32.gmra.mxu0 %v8652
  %v8730 = vpop.f32.mrf.mxu0
  %v8731 = vadd.f32 0.0, %v8730
  %8732 = vmatmul.f32.gmra.mxu0 %v8653
  %v8733 = vpop.f32.mrf.mxu0
  %v8734 = vadd.f32 0.0, %v8733
  %8735 = vdwg.mxu0
  %v8736 = vadd.f32 %v8509, %v8689
  %v8737 = vadd.f32 %v8510, %v8692
  %v8738 = vadd.f32 %v8511, %v8695
  %v8739 = vadd.f32 %v8512, %v8698
  %v8740 = vadd.f32 %v8513, %v8701
  %v8741 = vadd.f32 %v8514, %v8704
  %v8742 = vadd.f32 %v8515, %v8707
  %v8743 = vadd.f32 %v8516, %v8710
  %v8744 = vadd.f32 %v8517, %v8713
  %v8745 = vadd.f32 %v8518, %v8716
  %v8746 = vadd.f32 %v8519, %v8719
  %v8747 = vadd.f32 %v8520, %v8722
  %v8748 = vadd.f32 %v8521, %v8725
  %v8749 = vadd.f32 %v8522, %v8728
  %v8750 = vadd.f32 %v8523, %v8731
  %v8751 = vadd.f32 %v8524, %v8734
  %v8752 = vld [vmem:[#allocation3 + $0x9] sm:$0xff]
  %v8753 = vld [vmem:[#allocation3 + $0x11] sm:$0xff]
  %v8754 = vld [vmem:[#allocation3 + $0x19] sm:$0xff]
  %v8755 = vld [vmem:[#allocation3 + $0x21] sm:$0xff]
  %v8756 = vld [vmem:[#allocation3 + $0x29] sm:$0xff]
  %v8757 = vld [vmem:[#allocation3 + $0x31] sm:$0xff]
  %v8758 = vld [vmem:[#allocation3 + $0x39] sm:$0xff]
  %v8759 = vld [vmem:[#allocation3 + $0x41] sm:$0xff]
  %v8760 = vld [vmem:[#allocation3 + $0x49] sm:$0xff]
  %v8761 = vld [vmem:[#allocation3 + $0x51] sm:$0xff]
  %v8762 = vld [vmem:[#allocation3 + $0x59] sm:$0xff]
  %v8763 = vld [vmem:[#allocation3 + $0x61] sm:$0xff]
  %v8764 = vld [vmem:[#allocation3 + $0x69] sm:$0xff]
  %v8765 = vld [vmem:[#allocation3 + $0x71] sm:$0xff]
  %v8766 = vld [vmem:[#allocation3 + $0x79] sm:$0xff]
  %v8767 = vld [vmem:[#allocation3 + $0x81] sm:$0xff]
  %s8768 = scalar_lea.vmem %s7, 256
  %v8769 = vld [vmem:[%s8768] sm:$0xff]
  %v8770 = vld [vmem:[%s8768 + $0x8] sm:$0xff]
  %v8771 = vld [vmem:[%s8768 + $0x10] sm:$0xff]
  %v8772 = vld [vmem:[%s8768 + $0x18] sm:$0xff]
  %v8773 = vld [vmem:[%s8768 + $0x20] sm:$0xff]
  %v8774 = vld [vmem:[%s8768 + $0x28] sm:$0xff]
  %v8775 = vld [vmem:[%s8768 + $0x30] sm:$0xff]
  %v8776 = vld [vmem:[%s8768 + $0x38] sm:$0xff]
  %v8777 = vld [vmem:[%s8768 + $0x40] sm:$0xff]
  %v8778 = vld [vmem:[%s8768 + $0x48] sm:$0xff]
  %v8779 = vld [vmem:[%s8768 + $0x50] sm:$0xff]
  %v8780 = vld [vmem:[%s8768 + $0x58] sm:$0xff]
  %v8781 = vld [vmem:[%s8768 + $0x60] sm:$0xff]
  %v8782 = vld [vmem:[%s8768 + $0x68] sm:$0xff]
  %v8783 = vld [vmem:[%s8768 + $0x70] sm:$0xff]
  %v8784 = vld [vmem:[%s8768 + $0x78] sm:$0xff]
  %8786 = vset.pattern.permute.xlu0 0
  %8787 = vperm.xlu0 %8786, %v8769
  %v8788 = vpop.permute.xlu0 %8787
  %8791 = vset.pattern.permute.xlu0 0
  %8792 = vperm.xlu0 %8791, %v8770
  %v8793 = vpop.permute.xlu0 %8792
  %8796 = vset.pattern.permute.xlu0 0
  %8797 = vperm.xlu0 %8796, %v8771
  %v8798 = vpop.permute.xlu0 %8797
  %8801 = vset.pattern.permute.xlu0 0
  %8802 = vperm.xlu0 %8801, %v8772
  %v8803 = vpop.permute.xlu0 %8802
  %8806 = vset.pattern.permute.xlu0 0
  %8807 = vperm.xlu0 %8806, %v8773
  %v8808 = vpop.permute.xlu0 %8807
  %8811 = vset.pattern.permute.xlu0 0
  %8812 = vperm.xlu0 %8811, %v8774
  %v8813 = vpop.permute.xlu0 %8812
  %8816 = vset.pattern.permute.xlu0 0
  %8817 = vperm.xlu0 %8816, %v8775
  %v8818 = vpop.permute.xlu0 %8817
  %8821 = vset.pattern.permute.xlu0 0
  %8822 = vperm.xlu0 %8821, %v8776
  %v8823 = vpop.permute.xlu0 %8822
  %8826 = vset.pattern.permute.xlu0 0
  %8827 = vperm.xlu0 %8826, %v8777
  %v8828 = vpop.permute.xlu0 %8827
  %8831 = vset.pattern.permute.xlu0 0
  %8832 = vperm.xlu0 %8831, %v8778
  %v8833 = vpop.permute.xlu0 %8832
  %8836 = vset.pattern.permute.xlu0 0
  %8837 = vperm.xlu0 %8836, %v8779
  %v8838 = vpop.permute.xlu0 %8837
  %8841 = vset.pattern.permute.xlu0 0
  %8842 = vperm.xlu0 %8841, %v8780
  %v8843 = vpop.permute.xlu0 %8842
  %8846 = vset.pattern.permute.xlu0 0
  %8847 = vperm.xlu0 %8846, %v8781
  %v8848 = vpop.permute.xlu0 %8847
  %8851 = vset.pattern.permute.xlu0 0
  %8852 = vperm.xlu0 %8851, %v8782
  %v8853 = vpop.permute.xlu0 %8852
  %8856 = vset.pattern.permute.xlu0 0
  %8857 = vperm.xlu0 %8856, %v8783
  %v8858 = vpop.permute.xlu0 %8857
  %8861 = vset.pattern.permute.xlu0 0
  %8862 = vperm.xlu0 %8861, %v8784
  %v8863 = vpop.permute.xlu0 %8862
  %v8865 = vmul.f32 %v8752, %v8788
  %v8866 = vmul.f32 %v8753, %v8793
  %v8867 = vmul.f32 %v8754, %v8798
  %v8868 = vmul.f32 %v8755, %v8803
  %v8869 = vmul.f32 %v8756, %v8808
  %v8870 = vmul.f32 %v8757, %v8813
  %v8871 = vmul.f32 %v8758, %v8818
  %v8872 = vmul.f32 %v8759, %v8823
  %v8873 = vmul.f32 %v8760, %v8828
  %v8874 = vmul.f32 %v8761, %v8833
  %v8875 = vmul.f32 %v8762, %v8838
  %v8876 = vmul.f32 %v8763, %v8843
  %v8877 = vmul.f32 %v8764, %v8848
  %v8878 = vmul.f32 %v8765, %v8853
  %v8879 = vmul.f32 %v8766, %v8858
  %v8880 = vmul.f32 %v8767, %v8863
  %s8881 = scalar_lea.vmem %s5, 256
  %v8882 = vld [vmem:[%s8881] sm:$0xff]
  %v8883 = vld [vmem:[%s8881 + $0x8] sm:$0xff]
  %v8884 = vld [vmem:[%s8881 + $0x10] sm:$0xff]
  %v8885 = vld [vmem:[%s8881 + $0x18] sm:$0xff]
  %v8886 = vld [vmem:[%s8881 + $0x20] sm:$0xff]
  %v8887 = vld [vmem:[%s8881 + $0x28] sm:$0xff]
  %v8888 = vld [vmem:[%s8881 + $0x30] sm:$0xff]
  %v8889 = vld [vmem:[%s8881 + $0x38] sm:$0xff]
  %v8890 = vld [vmem:[%s8881 + $0x40] sm:$0xff]
  %v8891 = vld [vmem:[%s8881 + $0x48] sm:$0xff]
  %v8892 = vld [vmem:[%s8881 + $0x50] sm:$0xff]
  %v8893 = vld [vmem:[%s8881 + $0x58] sm:$0xff]
  %v8894 = vld [vmem:[%s8881 + $0x60] sm:$0xff]
  %v8895 = vld [vmem:[%s8881 + $0x68] sm:$0xff]
  %v8896 = vld [vmem:[%s8881 + $0x70] sm:$0xff]
  %v8897 = vld [vmem:[%s8881 + $0x78] sm:$0xff]
  %8898 = vmatpush.msra.mxu0 %v8897
  %8899 = vmatpush.msra.mxu0 %v8896
  %8900 = vmatpush.msra.mxu0 %v8895
  %8901 = vmatpush.msra.mxu0 %v8894
  %8902 = vmatpush.msra.mxu0 %v8893
  %8903 = vmatpush.msra.mxu0 %v8892
  %8904 = vmatpush.msra.mxu0 %v8891
  %8905 = vmatpush.msra.mxu0 %v8890
  %8906 = vmatpush.msra.mxu0 %v8889
  %8907 = vmatpush.msra.mxu0 %v8888
  %8908 = vmatpush.msra.mxu0 %v8887
  %8909 = vmatpush.msra.mxu0 %v8886
  %8910 = vmatpush.msra.mxu0 %v8885
  %8911 = vmatpush.msra.mxu0 %v8884
  %8912 = vmatpush.msra.mxu0 %v8883
  %8913 = vmatpush.msra.mxu0 %v8882
  %8914 = vmatmul.f32.gmra.mxu0 %v8865
  %v8915 = vpop.f32.mrf.mxu0
  %v8916 = vadd.f32 0.0, %v8915
  %8917 = vmatmul.f32.gmra.mxu0 %v8866
  %v8918 = vpop.f32.mrf.mxu0
  %v8919 = vadd.f32 0.0, %v8918
  %8920 = vmatmul.f32.gmra.mxu0 %v8867
  %v8921 = vpop.f32.mrf.mxu0
  %v8922 = vadd.f32 0.0, %v8921
  %8923 = vmatmul.f32.gmra.mxu0 %v8868
  %v8924 = vpop.f32.mrf.mxu0
  %v8925 = vadd.f32 0.0, %v8924
  %8926 = vmatmul.f32.gmra.mxu0 %v8869
  %v8927 = vpop.f32.mrf.mxu0
  %v8928 = vadd.f32 0.0, %v8927
  %8929 = vmatmul.f32.gmra.mxu0 %v8870
  %v8930 = vpop.f32.mrf.mxu0
  %v8931 = vadd.f32 0.0, %v8930
  %8932 = vmatmul.f32.gmra.mxu0 %v8871
  %v8933 = vpop.f32.mrf.mxu0
  %v8934 = vadd.f32 0.0, %v8933
  %8935 = vmatmul.f32.gmra.mxu0 %v8872
  %v8936 = vpop.f32.mrf.mxu0
  %v8937 = vadd.f32 0.0, %v8936
  %8938 = vmatmul.f32.gmra.mxu0 %v8873
  %v8939 = vpop.f32.mrf.mxu0
  %v8940 = vadd.f32 0.0, %v8939
  %8941 = vmatmul.f32.gmra.mxu0 %v8874
  %v8942 = vpop.f32.mrf.mxu0
  %v8943 = vadd.f32 0.0, %v8942
  %8944 = vmatmul.f32.gmra.mxu0 %v8875
  %v8945 = vpop.f32.mrf.mxu0
  %v8946 = vadd.f32 0.0, %v8945
  %8947 = vmatmul.f32.gmra.mxu0 %v8876
  %v8948 = vpop.f32.mrf.mxu0
  %v8949 = vadd.f32 0.0, %v8948
  %8950 = vmatmul.f32.gmra.mxu0 %v8877
  %v8951 = vpop.f32.mrf.mxu0
  %v8952 = vadd.f32 0.0, %v8951
  %8953 = vmatmul.f32.gmra.mxu0 %v8878
  %v8954 = vpop.f32.mrf.mxu0
  %v8955 = vadd.f32 0.0, %v8954
  %8956 = vmatmul.f32.gmra.mxu0 %v8879
  %v8957 = vpop.f32.mrf.mxu0
  %v8958 = vadd.f32 0.0, %v8957
  %8959 = vmatmul.f32.gmra.mxu0 %v8880
  %v8960 = vpop.f32.mrf.mxu0
  %v8961 = vadd.f32 0.0, %v8960
  %8962 = vdwg.mxu0
  %v8963 = vadd.f32 %v8736, %v8916
  %v8964 = vadd.f32 %v8737, %v8919
  %v8965 = vadd.f32 %v8738, %v8922
  %v8966 = vadd.f32 %v8739, %v8925
  %v8967 = vadd.f32 %v8740, %v8928
  %v8968 = vadd.f32 %v8741, %v8931
  %v8969 = vadd.f32 %v8742, %v8934
  %v8970 = vadd.f32 %v8743, %v8937
  %v8971 = vadd.f32 %v8744, %v8940
  %v8972 = vadd.f32 %v8745, %v8943
  %v8973 = vadd.f32 %v8746, %v8946
  %v8974 = vadd.f32 %v8747, %v8949
  %v8975 = vadd.f32 %v8748, %v8952
  %v8976 = vadd.f32 %v8749, %v8955
  %v8977 = vadd.f32 %v8750, %v8958
  %v8978 = vadd.f32 %v8751, %v8961
  %v8979 = vld [vmem:[#allocation3 + $0xf] sm:$0xff]
  %v8980 = vld [vmem:[#allocation3 + $0x17] sm:$0xff]
  %v8981 = vld [vmem:[#allocation3 + $0x1f] sm:$0xff]
  %v8982 = vld [vmem:[#allocation3 + $0x27] sm:$0xff]
  %v8983 = vld [vmem:[#allocation3 + $0x2f] sm:$0xff]
  %v8984 = vld [vmem:[#allocation3 + $0x37] sm:$0xff]
  %v8985 = vld [vmem:[#allocation3 + $0x3f] sm:$0xff]
  %v8986 = vld [vmem:[#allocation3 + $0x47] sm:$0xff]
  %v8987 = vld [vmem:[#allocation3 + $0x4f] sm:$0xff]
  %v8988 = vld [vmem:[#allocation3 + $0x57] sm:$0xff]
  %v8989 = vld [vmem:[#allocation3 + $0x5f] sm:$0xff]
  %v8990 = vld [vmem:[#allocation3 + $0x67] sm:$0xff]
  %v8991 = vld [vmem:[#allocation3 + $0x6f] sm:$0xff]
  %v8992 = vld [vmem:[#allocation3 + $0x77] sm:$0xff]
  %v8993 = vld [vmem:[#allocation3 + $0x7f] sm:$0xff]
  %v8994 = vld [vmem:[#allocation3 + $0x87] sm:$0xff]
  %s8995 = scalar_lea.vmem %s7, 384
  %v8996 = vld [vmem:[%s8995] sm:$0xff]
  %v8997 = vld [vmem:[%s8995 + $0x8] sm:$0xff]
  %v8998 = vld [vmem:[%s8995 + $0x10] sm:$0xff]
  %v8999 = vld [vmem:[%s8995 + $0x18] sm:$0xff]
  %v9000 = vld [vmem:[%s8995 + $0x20] sm:$0xff]
  %v9001 = vld [vmem:[%s8995 + $0x28] sm:$0xff]
  %v9002 = vld [vmem:[%s8995 + $0x30] sm:$0xff]
  %v9003 = vld [vmem:[%s8995 + $0x38] sm:$0xff]
  %v9004 = vld [vmem:[%s8995 + $0x40] sm:$0xff]
  %v9005 = vld [vmem:[%s8995 + $0x48] sm:$0xff]
  %v9006 = vld [vmem:[%s8995 + $0x50] sm:$0xff]
  %v9007 = vld [vmem:[%s8995 + $0x58] sm:$0xff]
  %v9008 = vld [vmem:[%s8995 + $0x60] sm:$0xff]
  %v9009 = vld [vmem:[%s8995 + $0x68] sm:$0xff]
  %v9010 = vld [vmem:[%s8995 + $0x70] sm:$0xff]
  %v9011 = vld [vmem:[%s8995 + $0x78] sm:$0xff]
  %9013 = vset.pattern.permute.xlu0 0
  %9014 = vperm.xlu0 %9013, %v8996
  %v9015 = vpop.permute.xlu0 %9014
  %9018 = vset.pattern.permute.xlu0 0
  %9019 = vperm.xlu0 %9018, %v8997
  %v9020 = vpop.permute.xlu0 %9019
  %9023 = vset.pattern.permute.xlu0 0
  %9024 = vperm.xlu0 %9023, %v8998
  %v9025 = vpop.permute.xlu0 %9024
  %9028 = vset.pattern.permute.xlu0 0
  %9029 = vperm.xlu0 %9028, %v8999
  %v9030 = vpop.permute.xlu0 %9029
  %9033 = vset.pattern.permute.xlu0 0
  %9034 = vperm.xlu0 %9033, %v9000
  %v9035 = vpop.permute.xlu0 %9034
  %9038 = vset.pattern.permute.xlu0 0
  %9039 = vperm.xlu0 %9038, %v9001
  %v9040 = vpop.permute.xlu0 %9039
  %9043 = vset.pattern.permute.xlu0 0
  %9044 = vperm.xlu0 %9043, %v9002
  %v9045 = vpop.permute.xlu0 %9044
  %9048 = vset.pattern.permute.xlu0 0
  %9049 = vperm.xlu0 %9048, %v9003
  %v9050 = vpop.permute.xlu0 %9049
  %9053 = vset.pattern.permute.xlu0 0
  %9054 = vperm.xlu0 %9053, %v9004
  %v9055 = vpop.permute.xlu0 %9054
  %9058 = vset.pattern.permute.xlu0 0
  %9059 = vperm.xlu0 %9058, %v9005
  %v9060 = vpop.permute.xlu0 %9059
  %9063 = vset.pattern.permute.xlu0 0
  %9064 = vperm.xlu0 %9063, %v9006
  %v9065 = vpop.permute.xlu0 %9064
  %9068 = vset.pattern.permute.xlu0 0
  %9069 = vperm.xlu0 %9068, %v9007
  %v9070 = vpop.permute.xlu0 %9069
  %9073 = vset.pattern.permute.xlu0 0
  %9074 = vperm.xlu0 %9073, %v9008
  %v9075 = vpop.permute.xlu0 %9074
  %9078 = vset.pattern.permute.xlu0 0
  %9079 = vperm.xlu0 %9078, %v9009
  %v9080 = vpop.permute.xlu0 %9079
  %9083 = vset.pattern.permute.xlu0 0
  %9084 = vperm.xlu0 %9083, %v9010
  %v9085 = vpop.permute.xlu0 %9084
  %9088 = vset.pattern.permute.xlu0 0
  %9089 = vperm.xlu0 %9088, %v9011
  %v9090 = vpop.permute.xlu0 %9089
  %v9092 = vmul.f32 %v8979, %v9015
  %v9093 = vmul.f32 %v8980, %v9020
  %v9094 = vmul.f32 %v8981, %v9025
  %v9095 = vmul.f32 %v8982, %v9030
  %v9096 = vmul.f32 %v8983, %v9035
  %v9097 = vmul.f32 %v8984, %v9040
  %v9098 = vmul.f32 %v8985, %v9045
  %v9099 = vmul.f32 %v8986, %v9050
  %v9100 = vmul.f32 %v8987, %v9055
  %v9101 = vmul.f32 %v8988, %v9060
  %v9102 = vmul.f32 %v8989, %v9065
  %v9103 = vmul.f32 %v8990, %v9070
  %v9104 = vmul.f32 %v8991, %v9075
  %v9105 = vmul.f32 %v8992, %v9080
  %v9106 = vmul.f32 %v8993, %v9085
  %v9107 = vmul.f32 %v8994, %v9090
  %s9108 = scalar_lea.vmem %s5, 384
  %v9109 = vld [vmem:[%s9108] sm:$0xff]
  %v9110 = vld [vmem:[%s9108 + $0x8] sm:$0xff]
  %v9111 = vld [vmem:[%s9108 + $0x10] sm:$0xff]
  %v9112 = vld [vmem:[%s9108 + $0x18] sm:$0xff]
  %v9113 = vld [vmem:[%s9108 + $0x20] sm:$0xff]
  %v9114 = vld [vmem:[%s9108 + $0x28] sm:$0xff]
  %v9115 = vld [vmem:[%s9108 + $0x30] sm:$0xff]
  %v9116 = vld [vmem:[%s9108 + $0x38] sm:$0xff]
  %v9117 = vld [vmem:[%s9108 + $0x40] sm:$0xff]
  %v9118 = vld [vmem:[%s9108 + $0x48] sm:$0xff]
  %v9119 = vld [vmem:[%s9108 + $0x50] sm:$0xff]
  %v9120 = vld [vmem:[%s9108 + $0x58] sm:$0xff]
  %v9121 = vld [vmem:[%s9108 + $0x60] sm:$0xff]
  %v9122 = vld [vmem:[%s9108 + $0x68] sm:$0xff]
  %v9123 = vld [vmem:[%s9108 + $0x70] sm:$0xff]
  %v9124 = vld [vmem:[%s9108 + $0x78] sm:$0xff]
  %9125 = vmatpush.msra.mxu0 %v9124
  %9126 = vmatpush.msra.mxu0 %v9123
  %9127 = vmatpush.msra.mxu0 %v9122
  %9128 = vmatpush.msra.mxu0 %v9121
  %9129 = vmatpush.msra.mxu0 %v9120
  %9130 = vmatpush.msra.mxu0 %v9119
  %9131 = vmatpush.msra.mxu0 %v9118
  %9132 = vmatpush.msra.mxu0 %v9117
  %9133 = vmatpush.msra.mxu0 %v9116
  %9134 = vmatpush.msra.mxu0 %v9115
  %9135 = vmatpush.msra.mxu0 %v9114
  %9136 = vmatpush.msra.mxu0 %v9113
  %9137 = vmatpush.msra.mxu0 %v9112
  %9138 = vmatpush.msra.mxu0 %v9111
  %9139 = vmatpush.msra.mxu0 %v9110
  %9140 = vmatpush.msra.mxu0 %v9109
  %9141 = vmatmul.f32.gmra.mxu0 %v9092
  %v9142 = vpop.f32.mrf.mxu0
  %v9143 = vadd.f32 0.0, %v9142
  %9144 = vmatmul.f32.gmra.mxu0 %v9093
  %v9145 = vpop.f32.mrf.mxu0
  %v9146 = vadd.f32 0.0, %v9145
  %9147 = vmatmul.f32.gmra.mxu0 %v9094
  %v9148 = vpop.f32.mrf.mxu0
  %v9149 = vadd.f32 0.0, %v9148
  %9150 = vmatmul.f32.gmra.mxu0 %v9095
  %v9151 = vpop.f32.mrf.mxu0
  %v9152 = vadd.f32 0.0, %v9151
  %9153 = vmatmul.f32.gmra.mxu0 %v9096
  %v9154 = vpop.f32.mrf.mxu0
  %v9155 = vadd.f32 0.0, %v9154
  %9156 = vmatmul.f32.gmra.mxu0 %v9097
  %v9157 = vpop.f32.mrf.mxu0
  %v9158 = vadd.f32 0.0, %v9157
  %9159 = vmatmul.f32.gmra.mxu0 %v9098
  %v9160 = vpop.f32.mrf.mxu0
  %v9161 = vadd.f32 0.0, %v9160
  %9162 = vmatmul.f32.gmra.mxu0 %v9099
  %v9163 = vpop.f32.mrf.mxu0
  %v9164 = vadd.f32 0.0, %v9163
  %9165 = vmatmul.f32.gmra.mxu0 %v9100
  %v9166 = vpop.f32.mrf.mxu0
  %v9167 = vadd.f32 0.0, %v9166
  %9168 = vmatmul.f32.gmra.mxu0 %v9101
  %v9169 = vpop.f32.mrf.mxu0
  %v9170 = vadd.f32 0.0, %v9169
  %9171 = vmatmul.f32.gmra.mxu0 %v9102
  %v9172 = vpop.f32.mrf.mxu0
  %v9173 = vadd.f32 0.0, %v9172
  %9174 = vmatmul.f32.gmra.mxu0 %v9103
  %v9175 = vpop.f32.mrf.mxu0
  %v9176 = vadd.f32 0.0, %v9175
  %9177 = vmatmul.f32.gmra.mxu0 %v9104
  %v9178 = vpop.f32.mrf.mxu0
  %v9179 = vadd.f32 0.0, %v9178
  %9180 = vmatmul.f32.gmra.mxu0 %v9105
  %v9181 = vpop.f32.mrf.mxu0
  %v9182 = vadd.f32 0.0, %v9181
  %9183 = vmatmul.f32.gmra.mxu0 %v9106
  %v9184 = vpop.f32.mrf.mxu0
  %v9185 = vadd.f32 0.0, %v9184
  %9186 = vmatmul.f32.gmra.mxu0 %v9107
  %v9187 = vpop.f32.mrf.mxu0
  %v9188 = vadd.f32 0.0, %v9187
  %9189 = vdwg.mxu0
  %v9190 = vadd.f32 %v8963, %v9143
  %v9191 = vadd.f32 %v8964, %v9146
  %v9192 = vadd.f32 %v8965, %v9149
  %v9193 = vadd.f32 %v8966, %v9152
  %v9194 = vadd.f32 %v8967, %v9155
  %v9195 = vadd.f32 %v8968, %v9158
  %v9196 = vadd.f32 %v8969, %v9161
  %v9197 = vadd.f32 %v8970, %v9164
  %v9198 = vadd.f32 %v8971, %v9167
  %v9199 = vadd.f32 %v8972, %v9170
  %v9200 = vadd.f32 %v8973, %v9173
  %v9201 = vadd.f32 %v8974, %v9176
  %v9202 = vadd.f32 %v8975, %v9179
  %v9203 = vadd.f32 %v8976, %v9182
  %v9204 = vadd.f32 %v8977, %v9185
  %v9205 = vadd.f32 %v8978, %v9188
  %v9206 = vld [vmem:[#allocation3 + $0x10] sm:$0xff]
  %v9207 = vld [vmem:[#allocation3 + $0x18] sm:$0xff]
  %v9208 = vld [vmem:[#allocation3 + $0x20] sm:$0xff]
  %v9209 = vld [vmem:[#allocation3 + $0x28] sm:$0xff]
  %v9210 = vld [vmem:[#allocation3 + $0x30] sm:$0xff]
  %v9211 = vld [vmem:[#allocation3 + $0x38] sm:$0xff]
  %v9212 = vld [vmem:[#allocation3 + $0x40] sm:$0xff]
  %v9213 = vld [vmem:[#allocation3 + $0x48] sm:$0xff]
  %v9214 = vld [vmem:[#allocation3 + $0x50] sm:$0xff]
  %v9215 = vld [vmem:[#allocation3 + $0x58] sm:$0xff]
  %v9216 = vld [vmem:[#allocation3 + $0x60] sm:$0xff]
  %v9217 = vld [vmem:[#allocation3 + $0x68] sm:$0xff]
  %v9218 = vld [vmem:[#allocation3 + $0x70] sm:$0xff]
  %v9219 = vld [vmem:[#allocation3 + $0x78] sm:$0xff]
  %v9220 = vld [vmem:[#allocation3 + $0x80] sm:$0xff]
  %v9221 = vld [vmem:[#allocation3 + $0x88] sm:$0xff]
  %s9222 = scalar_lea.vmem %s7, 512
  %v9223 = vld [vmem:[%s9222] sm:$0xff]
  %v9224 = vld [vmem:[%s9222 + $0x8] sm:$0xff]
  %v9225 = vld [vmem:[%s9222 + $0x10] sm:$0xff]
  %v9226 = vld [vmem:[%s9222 + $0x18] sm:$0xff]
  %v9227 = vld [vmem:[%s9222 + $0x20] sm:$0xff]
  %v9228 = vld [vmem:[%s9222 + $0x28] sm:$0xff]
  %v9229 = vld [vmem:[%s9222 + $0x30] sm:$0xff]
  %v9230 = vld [vmem:[%s9222 + $0x38] sm:$0xff]
  %v9231 = vld [vmem:[%s9222 + $0x40] sm:$0xff]
  %v9232 = vld [vmem:[%s9222 + $0x48] sm:$0xff]
  %v9233 = vld [vmem:[%s9222 + $0x50] sm:$0xff]
  %v9234 = vld [vmem:[%s9222 + $0x58] sm:$0xff]
  %v9235 = vld [vmem:[%s9222 + $0x60] sm:$0xff]
  %v9236 = vld [vmem:[%s9222 + $0x68] sm:$0xff]
  %v9237 = vld [vmem:[%s9222 + $0x70] sm:$0xff]
  %v9238 = vld [vmem:[%s9222 + $0x78] sm:$0xff]
  %9240 = vset.pattern.permute.xlu0 0
  %9241 = vperm.xlu0 %9240, %v9223
  %v9242 = vpop.permute.xlu0 %9241
  %9245 = vset.pattern.permute.xlu0 0
  %9246 = vperm.xlu0 %9245, %v9224
  %v9247 = vpop.permute.xlu0 %9246
  %9250 = vset.pattern.permute.xlu0 0
  %9251 = vperm.xlu0 %9250, %v9225
  %v9252 = vpop.permute.xlu0 %9251
  %9255 = vset.pattern.permute.xlu0 0
  %9256 = vperm.xlu0 %9255, %v9226
  %v9257 = vpop.permute.xlu0 %9256
  %9260 = vset.pattern.permute.xlu0 0
  %9261 = vperm.xlu0 %9260, %v9227
  %v9262 = vpop.permute.xlu0 %9261
  %9265 = vset.pattern.permute.xlu0 0
  %9266 = vperm.xlu0 %9265, %v9228
  %v9267 = vpop.permute.xlu0 %9266
  %9270 = vset.pattern.permute.xlu0 0
  %9271 = vperm.xlu0 %9270, %v9229
  %v9272 = vpop.permute.xlu0 %9271
  %9275 = vset.pattern.permute.xlu0 0
  %9276 = vperm.xlu0 %9275, %v9230
  %v9277 = vpop.permute.xlu0 %9276
  %9280 = vset.pattern.permute.xlu0 0
  %9281 = vperm.xlu0 %9280, %v9231
  %v9282 = vpop.permute.xlu0 %9281
  %9285 = vset.pattern.permute.xlu0 0
  %9286 = vperm.xlu0 %9285, %v9232
  %v9287 = vpop.permute.xlu0 %9286
  %9290 = vset.pattern.permute.xlu0 0
  %9291 = vperm.xlu0 %9290, %v9233
  %v9292 = vpop.permute.xlu0 %9291
  %9295 = vset.pattern.permute.xlu0 0
  %9296 = vperm.xlu0 %9295, %v9234
  %v9297 = vpop.permute.xlu0 %9296
  %9300 = vset.pattern.permute.xlu0 0
  %9301 = vperm.xlu0 %9300, %v9235
  %v9302 = vpop.permute.xlu0 %9301
  %9305 = vset.pattern.permute.xlu0 0
  %9306 = vperm.xlu0 %9305, %v9236
  %v9307 = vpop.permute.xlu0 %9306
  %9310 = vset.pattern.permute.xlu0 0
  %9311 = vperm.xlu0 %9310, %v9237
  %v9312 = vpop.permute.xlu0 %9311
  %9315 = vset.pattern.permute.xlu0 0
  %9316 = vperm.xlu0 %9315, %v9238
  %v9317 = vpop.permute.xlu0 %9316
  %v9319 = vmul.f32 %v9206, %v9242
  %v9320 = vmul.f32 %v9207, %v9247
  %v9321 = vmul.f32 %v9208, %v9252
  %v9322 = vmul.f32 %v9209, %v9257
  %v9323 = vmul.f32 %v9210, %v9262
  %v9324 = vmul.f32 %v9211, %v9267
  %v9325 = vmul.f32 %v9212, %v9272
  %v9326 = vmul.f32 %v9213, %v9277
  %v9327 = vmul.f32 %v9214, %v9282
  %v9328 = vmul.f32 %v9215, %v9287
  %v9329 = vmul.f32 %v9216, %v9292
  %v9330 = vmul.f32 %v9217, %v9297
  %v9331 = vmul.f32 %v9218, %v9302
  %v9332 = vmul.f32 %v9219, %v9307
  %v9333 = vmul.f32 %v9220, %v9312
  %v9334 = vmul.f32 %v9221, %v9317
  %s9335 = scalar_lea.vmem %s5, 512
  %v9336 = vld [vmem:[%s9335] sm:$0xff]
  %v9337 = vld [vmem:[%s9335 + $0x8] sm:$0xff]
  %v9338 = vld [vmem:[%s9335 + $0x10] sm:$0xff]
  %v9339 = vld [vmem:[%s9335 + $0x18] sm:$0xff]
  %v9340 = vld [vmem:[%s9335 + $0x20] sm:$0xff]
  %v9341 = vld [vmem:[%s9335 + $0x28] sm:$0xff]
  %v9342 = vld [vmem:[%s9335 + $0x30] sm:$0xff]
  %v9343 = vld [vmem:[%s9335 + $0x38] sm:$0xff]
  %v9344 = vld [vmem:[%s9335 + $0x40] sm:$0xff]
  %v9345 = vld [vmem:[%s9335 + $0x48] sm:$0xff]
  %v9346 = vld [vmem:[%s9335 + $0x50] sm:$0xff]
  %v9347 = vld [vmem:[%s9335 + $0x58] sm:$0xff]
  %v9348 = vld [vmem:[%s9335 + $0x60] sm:$0xff]
  %v9349 = vld [vmem:[%s9335 + $0x68] sm:$0xff]
  %v9350 = vld [vmem:[%s9335 + $0x70] sm:$0xff]
  %v9351 = vld [vmem:[%s9335 + $0x78] sm:$0xff]
  %9352 = vmatpush.msra.mxu0 %v9351
  %9353 = vmatpush.msra.mxu0 %v9350
  %9354 = vmatpush.msra.mxu0 %v9349
  %9355 = vmatpush.msra.mxu0 %v9348
  %9356 = vmatpush.msra.mxu0 %v9347
  %9357 = vmatpush.msra.mxu0 %v9346
  %9358 = vmatpush.msra.mxu0 %v9345
  %9359 = vmatpush.msra.mxu0 %v9344
  %9360 = vmatpush.msra.mxu0 %v9343
  %9361 = vmatpush.msra.mxu0 %v9342
  %9362 = vmatpush.msra.mxu0 %v9341
  %9363 = vmatpush.msra.mxu0 %v9340
  %9364 = vmatpush.msra.mxu0 %v9339
  %9365 = vmatpush.msra.mxu0 %v9338
  %9366 = vmatpush.msra.mxu0 %v9337
  %9367 = vmatpush.msra.mxu0 %v9336
  %9368 = vmatmul.f32.gmra.mxu0 %v9319
  %v9369 = vpop.f32.mrf.mxu0
  %v9370 = vadd.f32 0.0, %v9369
  %9371 = vmatmul.f32.gmra.mxu0 %v9320
  %v9372 = vpop.f32.mrf.mxu0
  %v9373 = vadd.f32 0.0, %v9372
  %9374 = vmatmul.f32.gmra.mxu0 %v9321
  %v9375 = vpop.f32.mrf.mxu0
  %v9376 = vadd.f32 0.0, %v9375
  %9377 = vmatmul.f32.gmra.mxu0 %v9322
  %v9378 = vpop.f32.mrf.mxu0
  %v9379 = vadd.f32 0.0, %v9378
  %9380 = vmatmul.f32.gmra.mxu0 %v9323
  %v9381 = vpop.f32.mrf.mxu0
  %v9382 = vadd.f32 0.0, %v9381
  %9383 = vmatmul.f32.gmra.mxu0 %v9324
  %v9384 = vpop.f32.mrf.mxu0
  %v9385 = vadd.f32 0.0, %v9384
  %9386 = vmatmul.f32.gmra.mxu0 %v9325
  %v9387 = vpop.f32.mrf.mxu0
  %v9388 = vadd.f32 0.0, %v9387
  %9389 = vmatmul.f32.gmra.mxu0 %v9326
  %v9390 = vpop.f32.mrf.mxu0
  %v9391 = vadd.f32 0.0, %v9390
  %9392 = vmatmul.f32.gmra.mxu0 %v9327
  %v9393 = vpop.f32.mrf.mxu0
  %v9394 = vadd.f32 0.0, %v9393
  %9395 = vmatmul.f32.gmra.mxu0 %v9328
  %v9396 = vpop.f32.mrf.mxu0
  %v9397 = vadd.f32 0.0, %v9396
  %9398 = vmatmul.f32.gmra.mxu0 %v9329
  %v9399 = vpop.f32.mrf.mxu0
  %v9400 = vadd.f32 0.0, %v9399
  %9401 = vmatmul.f32.gmra.mxu0 %v9330
  %v9402 = vpop.f32.mrf.mxu0
  %v9403 = vadd.f32 0.0, %v9402
  %9404 = vmatmul.f32.gmra.mxu0 %v9331
  %v9405 = vpop.f32.mrf.mxu0
  %v9406 = vadd.f32 0.0, %v9405
  %9407 = vmatmul.f32.gmra.mxu0 %v9332
  %v9408 = vpop.f32.mrf.mxu0
  %v9409 = vadd.f32 0.0, %v9408
  %9410 = vmatmul.f32.gmra.mxu0 %v9333
  %v9411 = vpop.f32.mrf.mxu0
  %v9412 = vadd.f32 0.0, %v9411
  %9413 = vmatmul.f32.gmra.mxu0 %v9334
  %v9414 = vpop.f32.mrf.mxu0
  %v9415 = vadd.f32 0.0, %v9414
  %9416 = vdwg.mxu0
  %v9417 = vadd.f32 %v9190, %v9370
  %v9418 = vadd.f32 %v9191, %v9373
  %v9419 = vadd.f32 %v9192, %v9376
  %v9420 = vadd.f32 %v9193, %v9379
  %v9421 = vadd.f32 %v9194, %v9382
  %v9422 = vadd.f32 %v9195, %v9385
  %v9423 = vadd.f32 %v9196, %v9388
  %v9424 = vadd.f32 %v9197, %v9391
  %v9425 = vadd.f32 %v9198, %v9394
  %v9426 = vadd.f32 %v9199, %v9397
  %v9427 = vadd.f32 %v9200, %v9400
  %v9428 = vadd.f32 %v9201, %v9403
  %v9429 = vadd.f32 %v9202, %v9406
  %v9430 = vadd.f32 %v9203, %v9409
  %v9431 = vadd.f32 %v9204, %v9412
  %v9432 = vadd.f32 %v9205, %v9415
  %v9433 = vld [vmem:[#allocation3 + $0x11] sm:$0xff]
  %v9434 = vld [vmem:[#allocation3 + $0x19] sm:$0xff]
  %v9435 = vld [vmem:[#allocation3 + $0x21] sm:$0xff]
  %v9436 = vld [vmem:[#allocation3 + $0x29] sm:$0xff]
  %v9437 = vld [vmem:[#allocation3 + $0x31] sm:$0xff]
  %v9438 = vld [vmem:[#allocation3 + $0x39] sm:$0xff]
  %v9439 = vld [vmem:[#allocation3 + $0x41] sm:$0xff]
  %v9440 = vld [vmem:[#allocation3 + $0x49] sm:$0xff]
  %v9441 = vld [vmem:[#allocation3 + $0x51] sm:$0xff]
  %v9442 = vld [vmem:[#allocation3 + $0x59] sm:$0xff]
  %v9443 = vld [vmem:[#allocation3 + $0x61] sm:$0xff]
  %v9444 = vld [vmem:[#allocation3 + $0x69] sm:$0xff]
  %v9445 = vld [vmem:[#allocation3 + $0x71] sm:$0xff]
  %v9446 = vld [vmem:[#allocation3 + $0x79] sm:$0xff]
  %v9447 = vld [vmem:[#allocation3 + $0x81] sm:$0xff]
  %v9448 = vld [vmem:[#allocation3 + $0x89] sm:$0xff]
  %s9449 = scalar_lea.vmem %s7, 640
  %v9450 = vld [vmem:[%s9449] sm:$0xff]
  %v9451 = vld [vmem:[%s9449 + $0x8] sm:$0xff]
  %v9452 = vld [vmem:[%s9449 + $0x10] sm:$0xff]
  %v9453 = vld [vmem:[%s9449 + $0x18] sm:$0xff]
  %v9454 = vld [vmem:[%s9449 + $0x20] sm:$0xff]
  %v9455 = vld [vmem:[%s9449 + $0x28] sm:$0xff]
  %v9456 = vld [vmem:[%s9449 + $0x30] sm:$0xff]
  %v9457 = vld [vmem:[%s9449 + $0x38] sm:$0xff]
  %v9458 = vld [vmem:[%s9449 + $0x40] sm:$0xff]
  %v9459 = vld [vmem:[%s9449 + $0x48] sm:$0xff]
  %v9460 = vld [vmem:[%s9449 + $0x50] sm:$0xff]
  %v9461 = vld [vmem:[%s9449 + $0x58] sm:$0xff]
  %v9462 = vld [vmem:[%s9449 + $0x60] sm:$0xff]
  %v9463 = vld [vmem:[%s9449 + $0x68] sm:$0xff]
  %v9464 = vld [vmem:[%s9449 + $0x70] sm:$0xff]
  %v9465 = vld [vmem:[%s9449 + $0x78] sm:$0xff]
  %9467 = vset.pattern.permute.xlu0 0
  %9468 = vperm.xlu0 %9467, %v9450
  %v9469 = vpop.permute.xlu0 %9468
  %9472 = vset.pattern.permute.xlu0 0
  %9473 = vperm.xlu0 %9472, %v9451
  %v9474 = vpop.permute.xlu0 %9473
  %9477 = vset.pattern.permute.xlu0 0
  %9478 = vperm.xlu0 %9477, %v9452
  %v9479 = vpop.permute.xlu0 %9478
  %9482 = vset.pattern.permute.xlu0 0
  %9483 = vperm.xlu0 %9482, %v9453
  %v9484 = vpop.permute.xlu0 %9483
  %9487 = vset.pattern.permute.xlu0 0
  %9488 = vperm.xlu0 %9487, %v9454
  %v9489 = vpop.permute.xlu0 %9488
  %9492 = vset.pattern.permute.xlu0 0
  %9493 = vperm.xlu0 %9492, %v9455
  %v9494 = vpop.permute.xlu0 %9493
  %9497 = vset.pattern.permute.xlu0 0
  %9498 = vperm.xlu0 %9497, %v9456
  %v9499 = vpop.permute.xlu0 %9498
  %9502 = vset.pattern.permute.xlu0 0
  %9503 = vperm.xlu0 %9502, %v9457
  %v9504 = vpop.permute.xlu0 %9503
  %9507 = vset.pattern.permute.xlu0 0
  %9508 = vperm.xlu0 %9507, %v9458
  %v9509 = vpop.permute.xlu0 %9508
  %9512 = vset.pattern.permute.xlu0 0
  %9513 = vperm.xlu0 %9512, %v9459
  %v9514 = vpop.permute.xlu0 %9513
  %9517 = vset.pattern.permute.xlu0 0
  %9518 = vperm.xlu0 %9517, %v9460
  %v9519 = vpop.permute.xlu0 %9518
  %9522 = vset.pattern.permute.xlu0 0
  %9523 = vperm.xlu0 %9522, %v9461
  %v9524 = vpop.permute.xlu0 %9523
  %9527 = vset.pattern.permute.xlu0 0
  %9528 = vperm.xlu0 %9527, %v9462
  %v9529 = vpop.permute.xlu0 %9528
  %9532 = vset.pattern.permute.xlu0 0
  %9533 = vperm.xlu0 %9532, %v9463
  %v9534 = vpop.permute.xlu0 %9533
  %9537 = vset.pattern.permute.xlu0 0
  %9538 = vperm.xlu0 %9537, %v9464
  %v9539 = vpop.permute.xlu0 %9538
  %9542 = vset.pattern.permute.xlu0 0
  %9543 = vperm.xlu0 %9542, %v9465
  %v9544 = vpop.permute.xlu0 %9543
  %v9546 = vmul.f32 %v9433, %v9469
  %v9547 = vmul.f32 %v9434, %v9474
  %v9548 = vmul.f32 %v9435, %v9479
  %v9549 = vmul.f32 %v9436, %v9484
  %v9550 = vmul.f32 %v9437, %v9489
  %v9551 = vmul.f32 %v9438, %v9494
  %v9552 = vmul.f32 %v9439, %v9499
  %v9553 = vmul.f32 %v9440, %v9504
  %v9554 = vmul.f32 %v9441, %v9509
  %v9555 = vmul.f32 %v9442, %v9514
  %v9556 = vmul.f32 %v9443, %v9519
  %v9557 = vmul.f32 %v9444, %v9524
  %v9558 = vmul.f32 %v9445, %v9529
  %v9559 = vmul.f32 %v9446, %v9534
  %v9560 = vmul.f32 %v9447, %v9539
  %v9561 = vmul.f32 %v9448, %v9544
  %s9562 = scalar_lea.vmem %s5, 640
  %v9563 = vld [vmem:[%s9562] sm:$0xff]
  %v9564 = vld [vmem:[%s9562 + $0x8] sm:$0xff]
  %v9565 = vld [vmem:[%s9562 + $0x10] sm:$0xff]
  %v9566 = vld [vmem:[%s9562 + $0x18] sm:$0xff]
  %v9567 = vld [vmem:[%s9562 + $0x20] sm:$0xff]
  %v9568 = vld [vmem:[%s9562 + $0x28] sm:$0xff]
  %v9569 = vld [vmem:[%s9562 + $0x30] sm:$0xff]
  %v9570 = vld [vmem:[%s9562 + $0x38] sm:$0xff]
  %v9571 = vld [vmem:[%s9562 + $0x40] sm:$0xff]
  %v9572 = vld [vmem:[%s9562 + $0x48] sm:$0xff]
  %v9573 = vld [vmem:[%s9562 + $0x50] sm:$0xff]
  %v9574 = vld [vmem:[%s9562 + $0x58] sm:$0xff]
  %v9575 = vld [vmem:[%s9562 + $0x60] sm:$0xff]
  %v9576 = vld [vmem:[%s9562 + $0x68] sm:$0xff]
  %v9577 = vld [vmem:[%s9562 + $0x70] sm:$0xff]
  %v9578 = vld [vmem:[%s9562 + $0x78] sm:$0xff]
  %9579 = vmatpush.msra.mxu0 %v9578
  %9580 = vmatpush.msra.mxu0 %v9577
  %9581 = vmatpush.msra.mxu0 %v9576
  %9582 = vmatpush.msra.mxu0 %v9575
  %9583 = vmatpush.msra.mxu0 %v9574
  %9584 = vmatpush.msra.mxu0 %v9573
  %9585 = vmatpush.msra.mxu0 %v9572
  %9586 = vmatpush.msra.mxu0 %v9571
  %9587 = vmatpush.msra.mxu0 %v9570
  %9588 = vmatpush.msra.mxu0 %v9569
  %9589 = vmatpush.msra.mxu0 %v9568
  %9590 = vmatpush.msra.mxu0 %v9567
  %9591 = vmatpush.msra.mxu0 %v9566
  %9592 = vmatpush.msra.mxu0 %v9565
  %9593 = vmatpush.msra.mxu0 %v9564
  %9594 = vmatpush.msra.mxu0 %v9563
  %9595 = vmatmul.f32.gmra.mxu0 %v9546
  %v9596 = vpop.f32.mrf.mxu0
  %v9597 = vadd.f32 0.0, %v9596
  %9598 = vmatmul.f32.gmra.mxu0 %v9547
  %v9599 = vpop.f32.mrf.mxu0
  %v9600 = vadd.f32 0.0, %v9599
  %9601 = vmatmul.f32.gmra.mxu0 %v9548
  %v9602 = vpop.f32.mrf.mxu0
  %v9603 = vadd.f32 0.0, %v9602
  %9604 = vmatmul.f32.gmra.mxu0 %v9549
  %v9605 = vpop.f32.mrf.mxu0
  %v9606 = vadd.f32 0.0, %v9605
  %9607 = vmatmul.f32.gmra.mxu0 %v9550
  %v9608 = vpop.f32.mrf.mxu0
  %v9609 = vadd.f32 0.0, %v9608
  %9610 = vmatmul.f32.gmra.mxu0 %v9551
  %v9611 = vpop.f32.mrf.mxu0
  %v9612 = vadd.f32 0.0, %v9611
  %9613 = vmatmul.f32.gmra.mxu0 %v9552
  %v9614 = vpop.f32.mrf.mxu0
  %v9615 = vadd.f32 0.0, %v9614
  %9616 = vmatmul.f32.gmra.mxu0 %v9553
  %v9617 = vpop.f32.mrf.mxu0
  %v9618 = vadd.f32 0.0, %v9617
  %9619 = vmatmul.f32.gmra.mxu0 %v9554
  %v9620 = vpop.f32.mrf.mxu0
  %v9621 = vadd.f32 0.0, %v9620
  %9622 = vmatmul.f32.gmra.mxu0 %v9555
  %v9623 = vpop.f32.mrf.mxu0
  %v9624 = vadd.f32 0.0, %v9623
  %9625 = vmatmul.f32.gmra.mxu0 %v9556
  %v9626 = vpop.f32.mrf.mxu0
  %v9627 = vadd.f32 0.0, %v9626
  %9628 = vmatmul.f32.gmra.mxu0 %v9557
  %v9629 = vpop.f32.mrf.mxu0
  %v9630 = vadd.f32 0.0, %v9629
  %9631 = vmatmul.f32.gmra.mxu0 %v9558
  %v9632 = vpop.f32.mrf.mxu0
  %v9633 = vadd.f32 0.0, %v9632
  %9634 = vmatmul.f32.gmra.mxu0 %v9559
  %v9635 = vpop.f32.mrf.mxu0
  %v9636 = vadd.f32 0.0, %v9635
  %9637 = vmatmul.f32.gmra.mxu0 %v9560
  %v9638 = vpop.f32.mrf.mxu0
  %v9639 = vadd.f32 0.0, %v9638
  %9640 = vmatmul.f32.gmra.mxu0 %v9561
  %v9641 = vpop.f32.mrf.mxu0
  %v9642 = vadd.f32 0.0, %v9641
  %9643 = vdwg.mxu0
  %v9644 = vadd.f32 %v9417, %v9597
  %v9645 = vadd.f32 %v9418, %v9600
  %v9646 = vadd.f32 %v9419, %v9603
  %v9647 = vadd.f32 %v9420, %v9606
  %v9648 = vadd.f32 %v9421, %v9609
  %v9649 = vadd.f32 %v9422, %v9612
  %v9650 = vadd.f32 %v9423, %v9615
  %v9651 = vadd.f32 %v9424, %v9618
  %v9652 = vadd.f32 %v9425, %v9621
  %v9653 = vadd.f32 %v9426, %v9624
  %v9654 = vadd.f32 %v9427, %v9627
  %v9655 = vadd.f32 %v9428, %v9630
  %v9656 = vadd.f32 %v9429, %v9633
  %v9657 = vadd.f32 %v9430, %v9636
  %v9658 = vadd.f32 %v9431, %v9639
  %v9659 = vadd.f32 %v9432, %v9642
  %v9660 = vld [vmem:[#allocation3 + $0x17] sm:$0xff]
  %v9661 = vld [vmem:[#allocation3 + $0x1f] sm:$0xff]
  %v9662 = vld [vmem:[#allocation3 + $0x27] sm:$0xff]
  %v9663 = vld [vmem:[#allocation3 + $0x2f] sm:$0xff]
  %v9664 = vld [vmem:[#allocation3 + $0x37] sm:$0xff]
  %v9665 = vld [vmem:[#allocation3 + $0x3f] sm:$0xff]
  %v9666 = vld [vmem:[#allocation3 + $0x47] sm:$0xff]
  %v9667 = vld [vmem:[#allocation3 + $0x4f] sm:$0xff]
  %v9668 = vld [vmem:[#allocation3 + $0x57] sm:$0xff]
  %v9669 = vld [vmem:[#allocation3 + $0x5f] sm:$0xff]
  %v9670 = vld [vmem:[#allocation3 + $0x67] sm:$0xff]
  %v9671 = vld [vmem:[#allocation3 + $0x6f] sm:$0xff]
  %v9672 = vld [vmem:[#allocation3 + $0x77] sm:$0xff]
  %v9673 = vld [vmem:[#allocation3 + $0x7f] sm:$0xff]
  %v9674 = vld [vmem:[#allocation3 + $0x87] sm:$0xff]
  %v9675 = vld [vmem:[#allocation3 + $0x8f] sm:$0xff]
  %s9676 = scalar_lea.vmem %s7, 768
  %v9677 = vld [vmem:[%s9676] sm:$0xff]
  %v9678 = vld [vmem:[%s9676 + $0x8] sm:$0xff]
  %v9679 = vld [vmem:[%s9676 + $0x10] sm:$0xff]
  %v9680 = vld [vmem:[%s9676 + $0x18] sm:$0xff]
  %v9681 = vld [vmem:[%s9676 + $0x20] sm:$0xff]
  %v9682 = vld [vmem:[%s9676 + $0x28] sm:$0xff]
  %v9683 = vld [vmem:[%s9676 + $0x30] sm:$0xff]
  %v9684 = vld [vmem:[%s9676 + $0x38] sm:$0xff]
  %v9685 = vld [vmem:[%s9676 + $0x40] sm:$0xff]
  %v9686 = vld [vmem:[%s9676 + $0x48] sm:$0xff]
  %v9687 = vld [vmem:[%s9676 + $0x50] sm:$0xff]
  %v9688 = vld [vmem:[%s9676 + $0x58] sm:$0xff]
  %v9689 = vld [vmem:[%s9676 + $0x60] sm:$0xff]
  %v9690 = vld [vmem:[%s9676 + $0x68] sm:$0xff]
  %v9691 = vld [vmem:[%s9676 + $0x70] sm:$0xff]
  %v9692 = vld [vmem:[%s9676 + $0x78] sm:$0xff]
  %9694 = vset.pattern.permute.xlu0 0
  %9695 = vperm.xlu0 %9694, %v9677
  %v9696 = vpop.permute.xlu0 %9695
  %9699 = vset.pattern.permute.xlu0 0
  %9700 = vperm.xlu0 %9699, %v9678
  %v9701 = vpop.permute.xlu0 %9700
  %9704 = vset.pattern.permute.xlu0 0
  %9705 = vperm.xlu0 %9704, %v9679
  %v9706 = vpop.permute.xlu0 %9705
  %9709 = vset.pattern.permute.xlu0 0
  %9710 = vperm.xlu0 %9709, %v9680
  %v9711 = vpop.permute.xlu0 %9710
  %9714 = vset.pattern.permute.xlu0 0
  %9715 = vperm.xlu0 %9714, %v9681
  %v9716 = vpop.permute.xlu0 %9715
  %9719 = vset.pattern.permute.xlu0 0
  %9720 = vperm.xlu0 %9719, %v9682
  %v9721 = vpop.permute.xlu0 %9720
  %9724 = vset.pattern.permute.xlu0 0
  %9725 = vperm.xlu0 %9724, %v9683
  %v9726 = vpop.permute.xlu0 %9725
  %9729 = vset.pattern.permute.xlu0 0
  %9730 = vperm.xlu0 %9729, %v9684
  %v9731 = vpop.permute.xlu0 %9730
  %9734 = vset.pattern.permute.xlu0 0
  %9735 = vperm.xlu0 %9734, %v9685
  %v9736 = vpop.permute.xlu0 %9735
  %9739 = vset.pattern.permute.xlu0 0
  %9740 = vperm.xlu0 %9739, %v9686
  %v9741 = vpop.permute.xlu0 %9740
  %9744 = vset.pattern.permute.xlu0 0
  %9745 = vperm.xlu0 %9744, %v9687
  %v9746 = vpop.permute.xlu0 %9745
  %9749 = vset.pattern.permute.xlu0 0
  %9750 = vperm.xlu0 %9749, %v9688
  %v9751 = vpop.permute.xlu0 %9750
  %9754 = vset.pattern.permute.xlu0 0
  %9755 = vperm.xlu0 %9754, %v9689
  %v9756 = vpop.permute.xlu0 %9755
  %9759 = vset.pattern.permute.xlu0 0
  %9760 = vperm.xlu0 %9759, %v9690
  %v9761 = vpop.permute.xlu0 %9760
  %9764 = vset.pattern.permute.xlu0 0
  %9765 = vperm.xlu0 %9764, %v9691
  %v9766 = vpop.permute.xlu0 %9765
  %9769 = vset.pattern.permute.xlu0 0
  %9770 = vperm.xlu0 %9769, %v9692
  %v9771 = vpop.permute.xlu0 %9770
  %v9773 = vmul.f32 %v9660, %v9696
  %v9774 = vmul.f32 %v9661, %v9701
  %v9775 = vmul.f32 %v9662, %v9706
  %v9776 = vmul.f32 %v9663, %v9711
  %v9777 = vmul.f32 %v9664, %v9716
  %v9778 = vmul.f32 %v9665, %v9721
  %v9779 = vmul.f32 %v9666, %v9726
  %v9780 = vmul.f32 %v9667, %v9731
  %v9781 = vmul.f32 %v9668, %v9736
  %v9782 = vmul.f32 %v9669, %v9741
  %v9783 = vmul.f32 %v9670, %v9746
  %v9784 = vmul.f32 %v9671, %v9751
  %v9785 = vmul.f32 %v9672, %v9756
  %v9786 = vmul.f32 %v9673, %v9761
  %v9787 = vmul.f32 %v9674, %v9766
  %v9788 = vmul.f32 %v9675, %v9771
  %s9789 = scalar_lea.vmem %s5, 768
  %v9790 = vld [vmem:[%s9789] sm:$0xff]
  %v9791 = vld [vmem:[%s9789 + $0x8] sm:$0xff]
  %v9792 = vld [vmem:[%s9789 + $0x10] sm:$0xff]
  %v9793 = vld [vmem:[%s9789 + $0x18] sm:$0xff]
  %v9794 = vld [vmem:[%s9789 + $0x20] sm:$0xff]
  %v9795 = vld [vmem:[%s9789 + $0x28] sm:$0xff]
  %v9796 = vld [vmem:[%s9789 + $0x30] sm:$0xff]
  %v9797 = vld [vmem:[%s9789 + $0x38] sm:$0xff]
  %v9798 = vld [vmem:[%s9789 + $0x40] sm:$0xff]
  %v9799 = vld [vmem:[%s9789 + $0x48] sm:$0xff]
  %v9800 = vld [vmem:[%s9789 + $0x50] sm:$0xff]
  %v9801 = vld [vmem:[%s9789 + $0x58] sm:$0xff]
  %v9802 = vld [vmem:[%s9789 + $0x60] sm:$0xff]
  %v9803 = vld [vmem:[%s9789 + $0x68] sm:$0xff]
  %v9804 = vld [vmem:[%s9789 + $0x70] sm:$0xff]
  %v9805 = vld [vmem:[%s9789 + $0x78] sm:$0xff]
  %9806 = vmatpush.msra.mxu0 %v9805
  %9807 = vmatpush.msra.mxu0 %v9804
  %9808 = vmatpush.msra.mxu0 %v9803
  %9809 = vmatpush.msra.mxu0 %v9802
  %9810 = vmatpush.msra.mxu0 %v9801
  %9811 = vmatpush.msra.mxu0 %v9800
  %9812 = vmatpush.msra.mxu0 %v9799
  %9813 = vmatpush.msra.mxu0 %v9798
  %9814 = vmatpush.msra.mxu0 %v9797
  %9815 = vmatpush.msra.mxu0 %v9796
  %9816 = vmatpush.msra.mxu0 %v9795
  %9817 = vmatpush.msra.mxu0 %v9794
  %9818 = vmatpush.msra.mxu0 %v9793
  %9819 = vmatpush.msra.mxu0 %v9792
  %9820 = vmatpush.msra.mxu0 %v9791
  %9821 = vmatpush.msra.mxu0 %v9790
  %9822 = vmatmul.f32.gmra.mxu0 %v9773
  %v9823 = vpop.f32.mrf.mxu0
  %v9824 = vadd.f32 0.0, %v9823
  %9825 = vmatmul.f32.gmra.mxu0 %v9774
  %v9826 = vpop.f32.mrf.mxu0
  %v9827 = vadd.f32 0.0, %v9826
  %9828 = vmatmul.f32.gmra.mxu0 %v9775
  %v9829 = vpop.f32.mrf.mxu0
  %v9830 = vadd.f32 0.0, %v9829
  %9831 = vmatmul.f32.gmra.mxu0 %v9776
  %v9832 = vpop.f32.mrf.mxu0
  %v9833 = vadd.f32 0.0, %v9832
  %9834 = vmatmul.f32.gmra.mxu0 %v9777
  %v9835 = vpop.f32.mrf.mxu0
  %v9836 = vadd.f32 0.0, %v9835
  %9837 = vmatmul.f32.gmra.mxu0 %v9778
  %v9838 = vpop.f32.mrf.mxu0
  %v9839 = vadd.f32 0.0, %v9838
  %9840 = vmatmul.f32.gmra.mxu0 %v9779
  %v9841 = vpop.f32.mrf.mxu0
  %v9842 = vadd.f32 0.0, %v9841
  %9843 = vmatmul.f32.gmra.mxu0 %v9780
  %v9844 = vpop.f32.mrf.mxu0
  %v9845 = vadd.f32 0.0, %v9844
  %9846 = vmatmul.f32.gmra.mxu0 %v9781
  %v9847 = vpop.f32.mrf.mxu0
  %v9848 = vadd.f32 0.0, %v9847
  %9849 = vmatmul.f32.gmra.mxu0 %v9782
  %v9850 = vpop.f32.mrf.mxu0
  %v9851 = vadd.f32 0.0, %v9850
  %9852 = vmatmul.f32.gmra.mxu0 %v9783
  %v9853 = vpop.f32.mrf.mxu0
  %v9854 = vadd.f32 0.0, %v9853
  %9855 = vmatmul.f32.gmra.mxu0 %v9784
  %v9856 = vpop.f32.mrf.mxu0
  %v9857 = vadd.f32 0.0, %v9856
  %9858 = vmatmul.f32.gmra.mxu0 %v9785
  %v9859 = vpop.f32.mrf.mxu0
  %v9860 = vadd.f32 0.0, %v9859
  %9861 = vmatmul.f32.gmra.mxu0 %v9786
  %v9862 = vpop.f32.mrf.mxu0
  %v9863 = vadd.f32 0.0, %v9862
  %9864 = vmatmul.f32.gmra.mxu0 %v9787
  %v9865 = vpop.f32.mrf.mxu0
  %v9866 = vadd.f32 0.0, %v9865
  %9867 = vmatmul.f32.gmra.mxu0 %v9788
  %v9868 = vpop.f32.mrf.mxu0
  %v9869 = vadd.f32 0.0, %v9868
  %9870 = vdwg.mxu0
  %v9871 = vadd.f32 %v9644, %v9824
  %v9872 = vadd.f32 %v9645, %v9827
  %v9873 = vadd.f32 %v9646, %v9830
  %v9874 = vadd.f32 %v9647, %v9833
  %v9875 = vadd.f32 %v9648, %v9836
  %v9876 = vadd.f32 %v9649, %v9839
  %v9877 = vadd.f32 %v9650, %v9842
  %v9878 = vadd.f32 %v9651, %v9845
  %v9879 = vadd.f32 %v9652, %v9848
  %v9880 = vadd.f32 %v9653, %v9851
  %v9881 = vadd.f32 %v9654, %v9854
  %v9882 = vadd.f32 %v9655, %v9857
  %v9883 = vadd.f32 %v9656, %v9860
  %v9884 = vadd.f32 %v9657, %v9863
  %v9885 = vadd.f32 %v9658, %v9866
  %v9886 = vadd.f32 %v9659, %v9869
  %v9887 = vld [vmem:[#allocation3 + $0x18] sm:$0xff]
  %v9888 = vld [vmem:[#allocation3 + $0x20] sm:$0xff]
  %v9889 = vld [vmem:[#allocation3 + $0x28] sm:$0xff]
  %v9890 = vld [vmem:[#allocation3 + $0x30] sm:$0xff]
  %v9891 = vld [vmem:[#allocation3 + $0x38] sm:$0xff]
  %v9892 = vld [vmem:[#allocation3 + $0x40] sm:$0xff]
  %v9893 = vld [vmem:[#allocation3 + $0x48] sm:$0xff]
  %v9894 = vld [vmem:[#allocation3 + $0x50] sm:$0xff]
  %v9895 = vld [vmem:[#allocation3 + $0x58] sm:$0xff]
  %v9896 = vld [vmem:[#allocation3 + $0x60] sm:$0xff]
  %v9897 = vld [vmem:[#allocation3 + $0x68] sm:$0xff]
  %v9898 = vld [vmem:[#allocation3 + $0x70] sm:$0xff]
  %v9899 = vld [vmem:[#allocation3 + $0x78] sm:$0xff]
  %v9900 = vld [vmem:[#allocation3 + $0x80] sm:$0xff]
  %v9901 = vld [vmem:[#allocation3 + $0x88] sm:$0xff]
  %v9902 = vld [vmem:[#allocation3 + $0x90] sm:$0xff]
  %s9903 = scalar_lea.vmem %s7, 896
  %v9904 = vld [vmem:[%s9903] sm:$0xff]
  %v9905 = vld [vmem:[%s9903 + $0x8] sm:$0xff]
  %v9906 = vld [vmem:[%s9903 + $0x10] sm:$0xff]
  %v9907 = vld [vmem:[%s9903 + $0x18] sm:$0xff]
  %v9908 = vld [vmem:[%s9903 + $0x20] sm:$0xff]
  %v9909 = vld [vmem:[%s9903 + $0x28] sm:$0xff]
  %v9910 = vld [vmem:[%s9903 + $0x30] sm:$0xff]
  %v9911 = vld [vmem:[%s9903 + $0x38] sm:$0xff]
  %v9912 = vld [vmem:[%s9903 + $0x40] sm:$0xff]
  %v9913 = vld [vmem:[%s9903 + $0x48] sm:$0xff]
  %v9914 = vld [vmem:[%s9903 + $0x50] sm:$0xff]
  %v9915 = vld [vmem:[%s9903 + $0x58] sm:$0xff]
  %v9916 = vld [vmem:[%s9903 + $0x60] sm:$0xff]
  %v9917 = vld [vmem:[%s9903 + $0x68] sm:$0xff]
  %v9918 = vld [vmem:[%s9903 + $0x70] sm:$0xff]
  %v9919 = vld [vmem:[%s9903 + $0x78] sm:$0xff]
  %9921 = vset.pattern.permute.xlu0 0
  %9922 = vperm.xlu0 %9921, %v9904
  %v9923 = vpop.permute.xlu0 %9922
  %9926 = vset.pattern.permute.xlu0 0
  %9927 = vperm.xlu0 %9926, %v9905
  %v9928 = vpop.permute.xlu0 %9927
  %9931 = vset.pattern.permute.xlu0 0
  %9932 = vperm.xlu0 %9931, %v9906
  %v9933 = vpop.permute.xlu0 %9932
  %9936 = vset.pattern.permute.xlu0 0
  %9937 = vperm.xlu0 %9936, %v9907
  %v9938 = vpop.permute.xlu0 %9937
  %9941 = vset.pattern.permute.xlu0 0
  %9942 = vperm.xlu0 %9941, %v9908
  %v9943 = vpop.permute.xlu0 %9942
  %9946 = vset.pattern.permute.xlu0 0
  %9947 = vperm.xlu0 %9946, %v9909
  %v9948 = vpop.permute.xlu0 %9947
  %9951 = vset.pattern.permute.xlu0 0
  %9952 = vperm.xlu0 %9951, %v9910
  %v9953 = vpop.permute.xlu0 %9952
  %9956 = vset.pattern.permute.xlu0 0
  %9957 = vperm.xlu0 %9956, %v9911
  %v9958 = vpop.permute.xlu0 %9957
  %9961 = vset.pattern.permute.xlu0 0
  %9962 = vperm.xlu0 %9961, %v9912
  %v9963 = vpop.permute.xlu0 %9962
  %9966 = vset.pattern.permute.xlu0 0
  %9967 = vperm.xlu0 %9966, %v9913
  %v9968 = vpop.permute.xlu0 %9967
  %9971 = vset.pattern.permute.xlu0 0
  %9972 = vperm.xlu0 %9971, %v9914
  %v9973 = vpop.permute.xlu0 %9972
  %9976 = vset.pattern.permute.xlu0 0
  %9977 = vperm.xlu0 %9976, %v9915
  %v9978 = vpop.permute.xlu0 %9977
  %9981 = vset.pattern.permute.xlu0 0
  %9982 = vperm.xlu0 %9981, %v9916
  %v9983 = vpop.permute.xlu0 %9982
  %9986 = vset.pattern.permute.xlu0 0
  %9987 = vperm.xlu0 %9986, %v9917
  %v9988 = vpop.permute.xlu0 %9987
  %9991 = vset.pattern.permute.xlu0 0
  %9992 = vperm.xlu0 %9991, %v9918
  %v9993 = vpop.permute.xlu0 %9992
  %9996 = vset.pattern.permute.xlu0 0
  %9997 = vperm.xlu0 %9996, %v9919
  %v9998 = vpop.permute.xlu0 %9997
  %v10000 = vmul.f32 %v9887, %v9923
  %v10001 = vmul.f32 %v9888, %v9928
  %v10002 = vmul.f32 %v9889, %v9933
  %v10003 = vmul.f32 %v9890, %v9938
  %v10004 = vmul.f32 %v9891, %v9943
  %v10005 = vmul.f32 %v9892, %v9948
  %v10006 = vmul.f32 %v9893, %v9953
  %v10007 = vmul.f32 %v9894, %v9958
  %v10008 = vmul.f32 %v9895, %v9963
  %v10009 = vmul.f32 %v9896, %v9968
  %v10010 = vmul.f32 %v9897, %v9973
  %v10011 = vmul.f32 %v9898, %v9978
  %v10012 = vmul.f32 %v9899, %v9983
  %v10013 = vmul.f32 %v9900, %v9988
  %v10014 = vmul.f32 %v9901, %v9993
  %v10015 = vmul.f32 %v9902, %v9998
  %s10016 = scalar_lea.vmem %s5, 896
  %v10017 = vld [vmem:[%s10016] sm:$0xff]
  %v10018 = vld [vmem:[%s10016 + $0x8] sm:$0xff]
  %v10019 = vld [vmem:[%s10016 + $0x10] sm:$0xff]
  %v10020 = vld [vmem:[%s10016 + $0x18] sm:$0xff]
  %v10021 = vld [vmem:[%s10016 + $0x20] sm:$0xff]
  %v10022 = vld [vmem:[%s10016 + $0x28] sm:$0xff]
  %v10023 = vld [vmem:[%s10016 + $0x30] sm:$0xff]
  %v10024 = vld [vmem:[%s10016 + $0x38] sm:$0xff]
  %v10025 = vld [vmem:[%s10016 + $0x40] sm:$0xff]
  %v10026 = vld [vmem:[%s10016 + $0x48] sm:$0xff]
  %v10027 = vld [vmem:[%s10016 + $0x50] sm:$0xff]
  %v10028 = vld [vmem:[%s10016 + $0x58] sm:$0xff]
  %v10029 = vld [vmem:[%s10016 + $0x60] sm:$0xff]
  %v10030 = vld [vmem:[%s10016 + $0x68] sm:$0xff]
  %v10031 = vld [vmem:[%s10016 + $0x70] sm:$0xff]
  %v10032 = vld [vmem:[%s10016 + $0x78] sm:$0xff]
  %10033 = vmatpush.msra.mxu0 %v10032
  %10034 = vmatpush.msra.mxu0 %v10031
  %10035 = vmatpush.msra.mxu0 %v10030
  %10036 = vmatpush.msra.mxu0 %v10029
  %10037 = vmatpush.msra.mxu0 %v10028
  %10038 = vmatpush.msra.mxu0 %v10027
  %10039 = vmatpush.msra.mxu0 %v10026
  %10040 = vmatpush.msra.mxu0 %v10025
  %10041 = vmatpush.msra.mxu0 %v10024
  %10042 = vmatpush.msra.mxu0 %v10023
  %10043 = vmatpush.msra.mxu0 %v10022
  %10044 = vmatpush.msra.mxu0 %v10021
  %10045 = vmatpush.msra.mxu0 %v10020
  %10046 = vmatpush.msra.mxu0 %v10019
  %10047 = vmatpush.msra.mxu0 %v10018
  %10048 = vmatpush.msra.mxu0 %v10017
  %10049 = vmatmul.f32.gmra.mxu0 %v10000
  %v10050 = vpop.f32.mrf.mxu0
  %v10051 = vadd.f32 0.0, %v10050
  %10052 = vmatmul.f32.gmra.mxu0 %v10001
  %v10053 = vpop.f32.mrf.mxu0
  %v10054 = vadd.f32 0.0, %v10053
  %10055 = vmatmul.f32.gmra.mxu0 %v10002
  %v10056 = vpop.f32.mrf.mxu0
  %v10057 = vadd.f32 0.0, %v10056
  %10058 = vmatmul.f32.gmra.mxu0 %v10003
  %v10059 = vpop.f32.mrf.mxu0
  %v10060 = vadd.f32 0.0, %v10059
  %10061 = vmatmul.f32.gmra.mxu0 %v10004
  %v10062 = vpop.f32.mrf.mxu0
  %v10063 = vadd.f32 0.0, %v10062
  %10064 = vmatmul.f32.gmra.mxu0 %v10005
  %v10065 = vpop.f32.mrf.mxu0
  %v10066 = vadd.f32 0.0, %v10065
  %10067 = vmatmul.f32.gmra.mxu0 %v10006
  %v10068 = vpop.f32.mrf.mxu0
  %v10069 = vadd.f32 0.0, %v10068
  %10070 = vmatmul.f32.gmra.mxu0 %v10007
  %v10071 = vpop.f32.mrf.mxu0
  %v10072 = vadd.f32 0.0, %v10071
  %10073 = vmatmul.f32.gmra.mxu0 %v10008
  %v10074 = vpop.f32.mrf.mxu0
  %v10075 = vadd.f32 0.0, %v10074
  %10076 = vmatmul.f32.gmra.mxu0 %v10009
  %v10077 = vpop.f32.mrf.mxu0
  %v10078 = vadd.f32 0.0, %v10077
  %10079 = vmatmul.f32.gmra.mxu0 %v10010
  %v10080 = vpop.f32.mrf.mxu0
  %v10081 = vadd.f32 0.0, %v10080
  %10082 = vmatmul.f32.gmra.mxu0 %v10011
  %v10083 = vpop.f32.mrf.mxu0
  %v10084 = vadd.f32 0.0, %v10083
  %10085 = vmatmul.f32.gmra.mxu0 %v10012
  %v10086 = vpop.f32.mrf.mxu0
  %v10087 = vadd.f32 0.0, %v10086
  %10088 = vmatmul.f32.gmra.mxu0 %v10013
  %v10089 = vpop.f32.mrf.mxu0
  %v10090 = vadd.f32 0.0, %v10089
  %10091 = vmatmul.f32.gmra.mxu0 %v10014
  %v10092 = vpop.f32.mrf.mxu0
  %v10093 = vadd.f32 0.0, %v10092
  %10094 = vmatmul.f32.gmra.mxu0 %v10015
  %v10095 = vpop.f32.mrf.mxu0
  %v10096 = vadd.f32 0.0, %v10095
  %10097 = vdwg.mxu0
  %v10098 = vadd.f32 %v9871, %v10051
  %v10099 = vadd.f32 %v9872, %v10054
  %v10100 = vadd.f32 %v9873, %v10057
  %v10101 = vadd.f32 %v9874, %v10060
  %v10102 = vadd.f32 %v9875, %v10063
  %v10103 = vadd.f32 %v9876, %v10066
  %v10104 = vadd.f32 %v9877, %v10069
  %v10105 = vadd.f32 %v9878, %v10072
  %v10106 = vadd.f32 %v9879, %v10075
  %v10107 = vadd.f32 %v9880, %v10078
  %v10108 = vadd.f32 %v9881, %v10081
  %v10109 = vadd.f32 %v9882, %v10084
  %v10110 = vadd.f32 %v9883, %v10087
  %v10111 = vadd.f32 %v9884, %v10090
  %v10112 = vadd.f32 %v9885, %v10093
  %v10113 = vadd.f32 %v9886, %v10096
  %v10114 = vld [vmem:[#allocation3 + $0x19] sm:$0xff]
  %v10115 = vld [vmem:[#allocation3 + $0x21] sm:$0xff]
  %v10116 = vld [vmem:[#allocation3 + $0x29] sm:$0xff]
  %v10117 = vld [vmem:[#allocation3 + $0x31] sm:$0xff]
  %v10118 = vld [vmem:[#allocation3 + $0x39] sm:$0xff]
  %v10119 = vld [vmem:[#allocation3 + $0x41] sm:$0xff]
  %v10120 = vld [vmem:[#allocation3 + $0x49] sm:$0xff]
  %v10121 = vld [vmem:[#allocation3 + $0x51] sm:$0xff]
  %v10122 = vld [vmem:[#allocation3 + $0x59] sm:$0xff]
  %v10123 = vld [vmem:[#allocation3 + $0x61] sm:$0xff]
  %v10124 = vld [vmem:[#allocation3 + $0x69] sm:$0xff]
  %v10125 = vld [vmem:[#allocation3 + $0x71] sm:$0xff]
  %v10126 = vld [vmem:[#allocation3 + $0x79] sm:$0xff]
  %v10127 = vld [vmem:[#allocation3 + $0x81] sm:$0xff]
  %v10128 = vld [vmem:[#allocation3 + $0x89] sm:$0xff]
  %v10129 = vld [vmem:[#allocation3 + $0x91] sm:$0xff]
  %s10130 = scalar_lea.vmem %s7, 1024
  %v10131 = vld [vmem:[%s10130] sm:$0xff]
  %v10132 = vld [vmem:[%s10130 + $0x8] sm:$0xff]
  %v10133 = vld [vmem:[%s10130 + $0x10] sm:$0xff]
  %v10134 = vld [vmem:[%s10130 + $0x18] sm:$0xff]
  %v10135 = vld [vmem:[%s10130 + $0x20] sm:$0xff]
  %v10136 = vld [vmem:[%s10130 + $0x28] sm:$0xff]
  %v10137 = vld [vmem:[%s10130 + $0x30] sm:$0xff]
  %v10138 = vld [vmem:[%s10130 + $0x38] sm:$0xff]
  %v10139 = vld [vmem:[%s10130 + $0x40] sm:$0xff]
  %v10140 = vld [vmem:[%s10130 + $0x48] sm:$0xff]
  %v10141 = vld [vmem:[%s10130 + $0x50] sm:$0xff]
  %v10142 = vld [vmem:[%s10130 + $0x58] sm:$0xff]
  %v10143 = vld [vmem:[%s10130 + $0x60] sm:$0xff]
  %v10144 = vld [vmem:[%s10130 + $0x68] sm:$0xff]
  %v10145 = vld [vmem:[%s10130 + $0x70] sm:$0xff]
  %v10146 = vld [vmem:[%s10130 + $0x78] sm:$0xff]
  %10148 = vset.pattern.permute.xlu0 0
  %10149 = vperm.xlu0 %10148, %v10131
  %v10150 = vpop.permute.xlu0 %10149
  %10153 = vset.pattern.permute.xlu0 0
  %10154 = vperm.xlu0 %10153, %v10132
  %v10155 = vpop.permute.xlu0 %10154
  %10158 = vset.pattern.permute.xlu0 0
  %10159 = vperm.xlu0 %10158, %v10133
  %v10160 = vpop.permute.xlu0 %10159
  %10163 = vset.pattern.permute.xlu0 0
  %10164 = vperm.xlu0 %10163, %v10134
  %v10165 = vpop.permute.xlu0 %10164
  %10168 = vset.pattern.permute.xlu0 0
  %10169 = vperm.xlu0 %10168, %v10135
  %v10170 = vpop.permute.xlu0 %10169
  %10173 = vset.pattern.permute.xlu0 0
  %10174 = vperm.xlu0 %10173, %v10136
  %v10175 = vpop.permute.xlu0 %10174
  %10178 = vset.pattern.permute.xlu0 0
  %10179 = vperm.xlu0 %10178, %v10137
  %v10180 = vpop.permute.xlu0 %10179
  %10183 = vset.pattern.permute.xlu0 0
  %10184 = vperm.xlu0 %10183, %v10138
  %v10185 = vpop.permute.xlu0 %10184
  %10188 = vset.pattern.permute.xlu0 0
  %10189 = vperm.xlu0 %10188, %v10139
  %v10190 = vpop.permute.xlu0 %10189
  %10193 = vset.pattern.permute.xlu0 0
  %10194 = vperm.xlu0 %10193, %v10140
  %v10195 = vpop.permute.xlu0 %10194
  %10198 = vset.pattern.permute.xlu0 0
  %10199 = vperm.xlu0 %10198, %v10141
  %v10200 = vpop.permute.xlu0 %10199
  %10203 = vset.pattern.permute.xlu0 0
  %10204 = vperm.xlu0 %10203, %v10142
  %v10205 = vpop.permute.xlu0 %10204
  %10208 = vset.pattern.permute.xlu0 0
  %10209 = vperm.xlu0 %10208, %v10143
  %v10210 = vpop.permute.xlu0 %10209
  %10213 = vset.pattern.permute.xlu0 0
  %10214 = vperm.xlu0 %10213, %v10144
  %v10215 = vpop.permute.xlu0 %10214
  %10218 = vset.pattern.permute.xlu0 0
  %10219 = vperm.xlu0 %10218, %v10145
  %v10220 = vpop.permute.xlu0 %10219
  %10223 = vset.pattern.permute.xlu0 0
  %10224 = vperm.xlu0 %10223, %v10146
  %v10225 = vpop.permute.xlu0 %10224
  %v10227 = vmul.f32 %v10114, %v10150
  %v10228 = vmul.f32 %v10115, %v10155
  %v10229 = vmul.f32 %v10116, %v10160
  %v10230 = vmul.f32 %v10117, %v10165
  %v10231 = vmul.f32 %v10118, %v10170
  %v10232 = vmul.f32 %v10119, %v10175
  %v10233 = vmul.f32 %v10120, %v10180
  %v10234 = vmul.f32 %v10121, %v10185
  %v10235 = vmul.f32 %v10122, %v10190
  %v10236 = vmul.f32 %v10123, %v10195
  %v10237 = vmul.f32 %v10124, %v10200
  %v10238 = vmul.f32 %v10125, %v10205
  %v10239 = vmul.f32 %v10126, %v10210
  %v10240 = vmul.f32 %v10127, %v10215
  %v10241 = vmul.f32 %v10128, %v10220
  %v10242 = vmul.f32 %v10129, %v10225
  %s10243 = scalar_lea.vmem %s5, 1024
  %v10244 = vld [vmem:[%s10243] sm:$0xff]
  %v10245 = vld [vmem:[%s10243 + $0x8] sm:$0xff]
  %v10246 = vld [vmem:[%s10243 + $0x10] sm:$0xff]
  %v10247 = vld [vmem:[%s10243 + $0x18] sm:$0xff]
  %v10248 = vld [vmem:[%s10243 + $0x20] sm:$0xff]
  %v10249 = vld [vmem:[%s10243 + $0x28] sm:$0xff]
  %v10250 = vld [vmem:[%s10243 + $0x30] sm:$0xff]
  %v10251 = vld [vmem:[%s10243 + $0x38] sm:$0xff]
  %v10252 = vld [vmem:[%s10243 + $0x40] sm:$0xff]
  %v10253 = vld [vmem:[%s10243 + $0x48] sm:$0xff]
  %v10254 = vld [vmem:[%s10243 + $0x50] sm:$0xff]
  %v10255 = vld [vmem:[%s10243 + $0x58] sm:$0xff]
  %v10256 = vld [vmem:[%s10243 + $0x60] sm:$0xff]
  %v10257 = vld [vmem:[%s10243 + $0x68] sm:$0xff]
  %v10258 = vld [vmem:[%s10243 + $0x70] sm:$0xff]
  %v10259 = vld [vmem:[%s10243 + $0x78] sm:$0xff]
  %10260 = vmatpush.msra.mxu0 %v10259
  %10261 = vmatpush.msra.mxu0 %v10258
  %10262 = vmatpush.msra.mxu0 %v10257
  %10263 = vmatpush.msra.mxu0 %v10256
  %10264 = vmatpush.msra.mxu0 %v10255
  %10265 = vmatpush.msra.mxu0 %v10254
  %10266 = vmatpush.msra.mxu0 %v10253
  %10267 = vmatpush.msra.mxu0 %v10252
  %10268 = vmatpush.msra.mxu0 %v10251
  %10269 = vmatpush.msra.mxu0 %v10250
  %10270 = vmatpush.msra.mxu0 %v10249
  %10271 = vmatpush.msra.mxu0 %v10248
  %10272 = vmatpush.msra.mxu0 %v10247
  %10273 = vmatpush.msra.mxu0 %v10246
  %10274 = vmatpush.msra.mxu0 %v10245
  %10275 = vmatpush.msra.mxu0 %v10244
  %10276 = vmatmul.f32.gmra.mxu0 %v10227
  %v10277 = vpop.f32.mrf.mxu0
  %v10278 = vadd.f32 0.0, %v10277
  %10279 = vmatmul.f32.gmra.mxu0 %v10228
  %v10280 = vpop.f32.mrf.mxu0
  %v10281 = vadd.f32 0.0, %v10280
  %10282 = vmatmul.f32.gmra.mxu0 %v10229
  %v10283 = vpop.f32.mrf.mxu0
  %v10284 = vadd.f32 0.0, %v10283
  %10285 = vmatmul.f32.gmra.mxu0 %v10230
  %v10286 = vpop.f32.mrf.mxu0
  %v10287 = vadd.f32 0.0, %v10286
  %10288 = vmatmul.f32.gmra.mxu0 %v10231
  %v10289 = vpop.f32.mrf.mxu0
  %v10290 = vadd.f32 0.0, %v10289
  %10291 = vmatmul.f32.gmra.mxu0 %v10232
  %v10292 = vpop.f32.mrf.mxu0
  %v10293 = vadd.f32 0.0, %v10292
  %10294 = vmatmul.f32.gmra.mxu0 %v10233
  %v10295 = vpop.f32.mrf.mxu0
  %v10296 = vadd.f32 0.0, %v10295
  %10297 = vmatmul.f32.gmra.mxu0 %v10234
  %v10298 = vpop.f32.mrf.mxu0
  %v10299 = vadd.f32 0.0, %v10298
  %10300 = vmatmul.f32.gmra.mxu0 %v10235
  %v10301 = vpop.f32.mrf.mxu0
  %v10302 = vadd.f32 0.0, %v10301
  %10303 = vmatmul.f32.gmra.mxu0 %v10236
  %v10304 = vpop.f32.mrf.mxu0
  %v10305 = vadd.f32 0.0, %v10304
  %10306 = vmatmul.f32.gmra.mxu0 %v10237
  %v10307 = vpop.f32.mrf.mxu0
  %v10308 = vadd.f32 0.0, %v10307
  %10309 = vmatmul.f32.gmra.mxu0 %v10238
  %v10310 = vpop.f32.mrf.mxu0
  %v10311 = vadd.f32 0.0, %v10310
  %10312 = vmatmul.f32.gmra.mxu0 %v10239
  %v10313 = vpop.f32.mrf.mxu0
  %v10314 = vadd.f32 0.0, %v10313
  %10315 = vmatmul.f32.gmra.mxu0 %v10240
  %v10316 = vpop.f32.mrf.mxu0
  %v10317 = vadd.f32 0.0, %v10316
  %10318 = vmatmul.f32.gmra.mxu0 %v10241
  %v10319 = vpop.f32.mrf.mxu0
  %v10320 = vadd.f32 0.0, %v10319
  %10321 = vmatmul.f32.gmra.mxu0 %v10242
  %v10322 = vpop.f32.mrf.mxu0
  %v10323 = vadd.f32 0.0, %v10322
  %10324 = vdwg.mxu0
  %v10325 = vadd.f32 %v10098, %v10278
  %v10326 = vadd.f32 %v10099, %v10281
  %v10327 = vadd.f32 %v10100, %v10284
  %v10328 = vadd.f32 %v10101, %v10287
  %v10329 = vadd.f32 %v10102, %v10290
  %v10330 = vadd.f32 %v10103, %v10293
  %v10331 = vadd.f32 %v10104, %v10296
  %v10332 = vadd.f32 %v10105, %v10299
  %v10333 = vadd.f32 %v10106, %v10302
  %v10334 = vadd.f32 %v10107, %v10305
  %v10335 = vadd.f32 %v10108, %v10308
  %v10336 = vadd.f32 %v10109, %v10311
  %v10337 = vadd.f32 %v10110, %v10314
  %v10338 = vadd.f32 %v10111, %v10317
  %v10339 = vadd.f32 %v10112, %v10320
  %v10340 = vadd.f32 %v10113, %v10323
  %10341 = vst [vmem:[#allocation3 + $0x10] sm:$0xff] %v10325
  %10342 = vst [vmem:[#allocation3 + $0x18] sm:$0xff] %v10326
  %10343 = vst [vmem:[#allocation3 + $0x20] sm:$0xff] %v10327
  %10344 = vst [vmem:[#allocation3 + $0x28] sm:$0xff] %v10328
  %10345 = vst [vmem:[#allocation3 + $0x30] sm:$0xff] %v10329
  %10346 = vst [vmem:[#allocation3 + $0x38] sm:$0xff] %v10330
  %10347 = vst [vmem:[#allocation3 + $0x40] sm:$0xff] %v10331
  %10348 = vst [vmem:[#allocation3 + $0x48] sm:$0xff] %v10332
  %10349 = vst [vmem:[#allocation3 + $0x50] sm:$0xff] %v10333
  %10350 = vst [vmem:[#allocation3 + $0x58] sm:$0xff] %v10334
  %10351 = vst [vmem:[#allocation3 + $0x60] sm:$0xff] %v10335
  %10352 = vst [vmem:[#allocation3 + $0x68] sm:$0xff] %v10336
  %10353 = vst [vmem:[#allocation3 + $0x70] sm:$0xff] %v10337
  %10354 = vst [vmem:[#allocation3 + $0x78] sm:$0xff] %v10338
  %10355 = vst [vmem:[#allocation3 + $0x80] sm:$0xff] %v10339
  %10356 = vst [vmem:[#allocation3 + $0x88] sm:$0xff] %v10340
  %v10357 = vld [vmem:[#allocation3 + $0x11] sm:$0xff]
  %v10358 = vld [vmem:[#allocation3 + $0x19] sm:$0xff]
  %v10359 = vld [vmem:[#allocation3 + $0x21] sm:$0xff]
  %v10360 = vld [vmem:[#allocation3 + $0x29] sm:$0xff]
  %v10361 = vld [vmem:[#allocation3 + $0x31] sm:$0xff]
  %v10362 = vld [vmem:[#allocation3 + $0x39] sm:$0xff]
  %v10363 = vld [vmem:[#allocation3 + $0x41] sm:$0xff]
  %v10364 = vld [vmem:[#allocation3 + $0x49] sm:$0xff]
  %v10365 = vld [vmem:[#allocation3 + $0x51] sm:$0xff]
  %v10366 = vld [vmem:[#allocation3 + $0x59] sm:$0xff]
  %v10367 = vld [vmem:[#allocation3 + $0x61] sm:$0xff]
  %v10368 = vld [vmem:[#allocation3 + $0x69] sm:$0xff]
  %v10369 = vld [vmem:[#allocation3 + $0x71] sm:$0xff]
  %v10370 = vld [vmem:[#allocation3 + $0x79] sm:$0xff]
  %v10371 = vld [vmem:[#allocation3 + $0x81] sm:$0xff]
  %v10372 = vld [vmem:[#allocation3 + $0x89] sm:$0xff]
  %v10373 = vmax.f32 %v10325, %v10357
  %v10374 = vmax.f32 %v10326, %v10358
  %v10375 = vmax.f32 %v10327, %v10359
  %v10376 = vmax.f32 %v10328, %v10360
  %v10377 = vmax.f32 %v10329, %v10361
  %v10378 = vmax.f32 %v10330, %v10362
  %v10379 = vmax.f32 %v10331, %v10363
  %v10380 = vmax.f32 %v10332, %v10364
  %v10381 = vmax.f32 %v10333, %v10365
  %v10382 = vmax.f32 %v10334, %v10366
  %v10383 = vmax.f32 %v10335, %v10367
  %v10384 = vmax.f32 %v10336, %v10368
  %v10385 = vmax.f32 %v10337, %v10369
  %v10386 = vmax.f32 %v10338, %v10370
  %v10387 = vmax.f32 %v10339, %v10371
  %v10388 = vmax.f32 %v10340, %v10372
  %v10389 = vld [vmem:[#allocation3 + $0x18] sm:$0xff]
  %v10390 = vld [vmem:[#allocation3 + $0x20] sm:$0xff]
  %v10391 = vld [vmem:[#allocation3 + $0x28] sm:$0xff]
  %v10392 = vld [vmem:[#allocation3 + $0x30] sm:$0xff]
  %v10393 = vld [vmem:[#allocation3 + $0x38] sm:$0xff]
  %v10394 = vld [vmem:[#allocation3 + $0x40] sm:$0xff]
  %v10395 = vld [vmem:[#allocation3 + $0x48] sm:$0xff]
  %v10396 = vld [vmem:[#allocation3 + $0x50] sm:$0xff]
  %v10397 = vld [vmem:[#allocation3 + $0x58] sm:$0xff]
  %v10398 = vld [vmem:[#allocation3 + $0x60] sm:$0xff]
  %v10399 = vld [vmem:[#allocation3 + $0x68] sm:$0xff]
  %v10400 = vld [vmem:[#allocation3 + $0x70] sm:$0xff]
  %v10401 = vld [vmem:[#allocation3 + $0x78] sm:$0xff]
  %v10402 = vld [vmem:[#allocation3 + $0x80] sm:$0xff]
  %v10403 = vld [vmem:[#allocation3 + $0x88] sm:$0xff]
  %v10404 = vld [vmem:[#allocation3 + $0x90] sm:$0xff]
  %v10405 = vld [vmem:[#allocation3 + $0x91] sm:$0xff]
  %v10406 = vmax.f32 %v10389, %v10358
  %v10407 = vmax.f32 %v10390, %v10359
  %v10408 = vmax.f32 %v10391, %v10360
  %v10409 = vmax.f32 %v10392, %v10361
  %v10410 = vmax.f32 %v10393, %v10362
  %v10411 = vmax.f32 %v10394, %v10363
  %v10412 = vmax.f32 %v10395, %v10364
  %v10413 = vmax.f32 %v10396, %v10365
  %v10414 = vmax.f32 %v10397, %v10366
  %v10415 = vmax.f32 %v10398, %v10367
  %v10416 = vmax.f32 %v10399, %v10368
  %v10417 = vmax.f32 %v10400, %v10369
  %v10418 = vmax.f32 %v10401, %v10370
  %v10419 = vmax.f32 %v10402, %v10371
  %v10420 = vmax.f32 %v10403, %v10372
  %v10421 = vmax.f32 %v10404, %v10405
  %v10422 = vmax.f32 %v10373, %v10406
  %v10423 = vmax.f32 %v10374, %v10407
  %v10424 = vmax.f32 %v10375, %v10408
  %v10425 = vmax.f32 %v10376, %v10409
  %v10426 = vmax.f32 %v10377, %v10410
  %v10427 = vmax.f32 %v10378, %v10411
  %v10428 = vmax.f32 %v10379, %v10412
  %v10429 = vmax.f32 %v10380, %v10413
  %v10430 = vmax.f32 %v10381, %v10414
  %v10431 = vmax.f32 %v10382, %v10415
  %v10432 = vmax.f32 %v10383, %v10416
  %v10433 = vmax.f32 %v10384, %v10417
  %v10434 = vmax.f32 %v10385, %v10418
  %v10435 = vmax.f32 %v10386, %v10419
  %v10436 = vmax.f32 %v10387, %v10420
  %v10437 = vmax.f32 %v10388, %v10421
  %v10438 = vmax.f32 %v10422, 0.0
  %v10439 = vmax.f32 %v10423, 0.0
  %v10440 = vmax.f32 %v10424, 0.0
  %v10441 = vmax.f32 %v10425, 0.0
  %v10442 = vmax.f32 %v10426, 0.0
  %v10443 = vmax.f32 %v10427, 0.0
  %v10444 = vmax.f32 %v10428, 0.0
  %v10445 = vmax.f32 %v10429, 0.0
  %v10446 = vmax.f32 %v10430, 0.0
  %v10447 = vmax.f32 %v10431, 0.0
  %v10448 = vmax.f32 %v10432, 0.0
  %v10449 = vmax.f32 %v10433, 0.0
  %v10450 = vmax.f32 %v10434, 0.0
  %v10451 = vmax.f32 %v10435, 0.0
  %v10452 = vmax.f32 %v10436, 0.0
  %v10453 = vmax.f32 %v10437, 0.0
  %v10454 = vld [vmem:[%s8] sm:$0xff]
  %v10455 = vld [vmem:[%s8 + $0x8] sm:$0xff]
  %v10456 = vld [vmem:[%s8 + $0x10] sm:$0xff]
  %v10457 = vld [vmem:[%s8 + $0x18] sm:$0xff]
  %10458 = vmatpush.msra.mxu0 %v10453
  %10459 = vmatpush.msra.mxu0 %v10452
  %10460 = vmatpush.msra.mxu0 %v10451
  %10461 = vmatpush.msra.mxu0 %v10450
  %10462 = vmatpush.msra.mxu0 %v10449
  %10463 = vmatpush.msra.mxu0 %v10448
  %10464 = vmatpush.msra.mxu0 %v10447
  %10465 = vmatpush.msra.mxu0 %v10446
  %10466 = vmatpush.msra.mxu0 %v10445
  %10467 = vmatpush.msra.mxu0 %v10444
  %10468 = vmatpush.msra.mxu0 %v10443
  %10469 = vmatpush.msra.mxu0 %v10442
  %10470 = vmatpush.msra.mxu0 %v10441
  %10471 = vmatpush.msra.mxu0 %v10440
  %10472 = vmatpush.msra.mxu0 %v10439
  %10473 = vmatpush.msra.mxu0 %v10438
  %10474 = vmatmul.f32.gmra.mxu0 %v10454
  %v10475 = vpop.f32.mrf.mxu0
  %v10476 = vadd.f32 0.0, %v10475
  %10477 = vmatmul.f32.gmra.mxu0 %v10455
  %v10478 = vpop.f32.mrf.mxu0
  %v10479 = vadd.f32 0.0, %v10478
  %10480 = vmatmul.f32.gmra.mxu0 %v10456
  %v10481 = vpop.f32.mrf.mxu0
  %v10482 = vadd.f32 0.0, %v10481
  %10483 = vmatmul.f32.gmra.mxu0 %v10457
  %v10484 = vpop.f32.mrf.mxu0
  %v10485 = vadd.f32 0.0, %v10484
  %10486 = vdwg.mxu0
  %10487 = vst [vmem:[#allocation4] sm:$0xff] 0.0
  %10488 = vst [vmem:[#allocation4 + $0x8] sm:$0xff] 0.0
  %10489 = vst [vmem:[#allocation4 + $0x10] sm:$0xff] 0.0
  %10490 = vst [vmem:[#allocation4 + $0x18] sm:$0xff] 0.0
  %10491 = vst [vmem:[#allocation4 + $0x20] sm:$0xff] 0.0
  %10492 = vst [vmem:[#allocation4 + $0x28] sm:$0xff] 0.0
  %10493 = vst [vmem:[#allocation4 + $0x8] sm:$0xff] %v10476
  %10494 = vst [vmem:[#allocation4 + $0x10] sm:$0xff] %v10479
  %10495 = vst [vmem:[#allocation4 + $0x18] sm:$0xff] %v10482
  %10496 = vst [vmem:[#allocation4 + $0x20] sm:$0xff] %v10485
  %v10497 = vld [vmem:[%s10] sm:$0x1]
  %v10499 = vperm.slane %v10497, 0
  %v10501 = vld [vmem:[#allocation4 + $0x3] sm:$0xff]
  %v10502 = vld [vmem:[#allocation4 + $0xb] sm:$0xff]
  %v10503 = vld [vmem:[#allocation4 + $0x13] sm:$0xff]
  %v10504 = vld [vmem:[#allocation4 + $0x1b] sm:$0xff]
  %v10505 = vld [vmem:[%s11] sm:$0xff]
  %v10506 = vld [vmem:[%s11 + $0x8] sm:$0xff]
  %v10507 = vld [vmem:[%s11 + $0x10] sm:$0xff]
  %v10508 = vld [vmem:[%s11 + $0x18] sm:$0xff]
  %10510 = vset.pattern.permute.xlu0 0
  %10511 = vperm.xlu0 %10510, %v10505
  %v10512 = vpop.permute.xlu0 %10511
  %10515 = vset.pattern.permute.xlu0 0
  %10516 = vperm.xlu0 %10515, %v10506
  %v10517 = vpop.permute.xlu0 %10516
  %10520 = vset.pattern.permute.xlu0 0
  %10521 = vperm.xlu0 %10520, %v10507
  %v10522 = vpop.permute.xlu0 %10521
  %10525 = vset.pattern.permute.xlu0 0
  %10526 = vperm.xlu0 %10525, %v10508
  %v10527 = vpop.permute.xlu0 %10526
  %v10529 = vmul.f32 %v10501, %v10512
  %v10530 = vmul.f32 %v10502, %v10517
  %v10531 = vmul.f32 %v10503, %v10522
  %v10532 = vmul.f32 %v10504, %v10527
  %v10533 = vld [vmem:[%s9] sm:$0xff]
  %v10534 = vld [vmem:[%s9 + $0x8] sm:$0xff]
  %v10535 = vld [vmem:[%s9 + $0x10] sm:$0xff]
  %v10536 = vld [vmem:[%s9 + $0x18] sm:$0xff]
  %v10537 = vld [vmem:[%s9 + $0x20] sm:$0xff]
  %v10538 = vld [vmem:[%s9 + $0x28] sm:$0xff]
  %v10539 = vld [vmem:[%s9 + $0x30] sm:$0xff]
  %v10540 = vld [vmem:[%s9 + $0x38] sm:$0xff]
  %v10541 = vld [vmem:[%s9 + $0x40] sm:$0xff]
  %v10542 = vld [vmem:[%s9 + $0x48] sm:$0xff]
  %v10543 = vld [vmem:[%s9 + $0x50] sm:$0xff]
  %v10544 = vld [vmem:[%s9 + $0x58] sm:$0xff]
  %v10545 = vld [vmem:[%s9 + $0x60] sm:$0xff]
  %v10546 = vld [vmem:[%s9 + $0x68] sm:$0xff]
  %v10547 = vld [vmem:[%s9 + $0x70] sm:$0xff]
  %v10548 = vld [vmem:[%s9 + $0x78] sm:$0xff]
  %10549 = vmatpush.msra.mxu0 %v10548
  %10550 = vmatpush.msra.mxu0 %v10547
  %10551 = vmatpush.msra.mxu0 %v10546
  %10552 = vmatpush.msra.mxu0 %v10545
  %10553 = vmatpush.msra.mxu0 %v10544
  %10554 = vmatpush.msra.mxu0 %v10543
  %10555 = vmatpush.msra.mxu0 %v10542
  %10556 = vmatpush.msra.mxu0 %v10541
  %10557 = vmatpush.msra.mxu0 %v10540
  %10558 = vmatpush.msra.mxu0 %v10539
  %10559 = vmatpush.msra.mxu0 %v10538
  %10560 = vmatpush.msra.mxu0 %v10537
  %10561 = vmatpush.msra.mxu0 %v10536
  %10562 = vmatpush.msra.mxu0 %v10535
  %10563 = vmatpush.msra.mxu0 %v10534
  %10564 = vmatpush.msra.mxu0 %v10533
  %10565 = vmatmul.f32.gmra.mxu0 %v10529
  %v10566 = vpop.f32.mrf.mxu0
  %v10567 = vadd.f32 0.0, %v10566
  %10568 = vmatmul.f32.gmra.mxu0 %v10530
  %v10569 = vpop.f32.mrf.mxu0
  %v10570 = vadd.f32 0.0, %v10569
  %10571 = vmatmul.f32.gmra.mxu0 %v10531
  %v10572 = vpop.f32.mrf.mxu0
  %v10573 = vadd.f32 0.0, %v10572
  %10574 = vmatmul.f32.gmra.mxu0 %v10532
  %v10575 = vpop.f32.mrf.mxu0
  %v10576 = vadd.f32 0.0, %v10575
  %10577 = vdwg.mxu0
  %v10578 = vadd.f32 %v10499, %v10567
  %v10579 = vadd.f32 %v10499, %v10570
  %v10580 = vadd.f32 %v10499, %v10573
  %v10581 = vadd.f32 %v10499, %v10576
  %v10582 = vld [vmem:[#allocation4 + $0x4] sm:$0xff]
  %v10583 = vld [vmem:[#allocation4 + $0xc] sm:$0xff]
  %v10584 = vld [vmem:[#allocation4 + $0x14] sm:$0xff]
  %v10585 = vld [vmem:[#allocation4 + $0x1c] sm:$0xff]
  %s10586 = scalar_lea.vmem %s11, 32
  %v10587 = vld [vmem:[%s10586] sm:$0xff]
  %v10588 = vld [vmem:[%s10586 + $0x8] sm:$0xff]
  %v10589 = vld [vmem:[%s10586 + $0x10] sm:$0xff]
  %v10590 = vld [vmem:[%s10586 + $0x18] sm:$0xff]
  %10592 = vset.pattern.permute.xlu0 0
  %10593 = vperm.xlu0 %10592, %v10587
  %v10594 = vpop.permute.xlu0 %10593
  %10597 = vset.pattern.permute.xlu0 0
  %10598 = vperm.xlu0 %10597, %v10588
  %v10599 = vpop.permute.xlu0 %10598
  %10602 = vset.pattern.permute.xlu0 0
  %10603 = vperm.xlu0 %10602, %v10589
  %v10604 = vpop.permute.xlu0 %10603
  %10607 = vset.pattern.permute.xlu0 0
  %10608 = vperm.xlu0 %10607, %v10590
  %v10609 = vpop.permute.xlu0 %10608
  %v10611 = vmul.f32 %v10582, %v10594
  %v10612 = vmul.f32 %v10583, %v10599
  %v10613 = vmul.f32 %v10584, %v10604
  %v10614 = vmul.f32 %v10585, %v10609
  %s10615 = scalar_lea.vmem %s9, 128
  %v10616 = vld [vmem:[%s10615] sm:$0xff]
  %v10617 = vld [vmem:[%s10615 + $0x8] sm:$0xff]
  %v10618 = vld [vmem:[%s10615 + $0x10] sm:$0xff]
  %v10619 = vld [vmem:[%s10615 + $0x18] sm:$0xff]
  %v10620 = vld [vmem:[%s10615 + $0x20] sm:$0xff]
  %v10621 = vld [vmem:[%s10615 + $0x28] sm:$0xff]
  %v10622 = vld [vmem:[%s10615 + $0x30] sm:$0xff]
  %v10623 = vld [vmem:[%s10615 + $0x38] sm:$0xff]
  %v10624 = vld [vmem:[%s10615 + $0x40] sm:$0xff]
  %v10625 = vld [vmem:[%s10615 + $0x48] sm:$0xff]
  %v10626 = vld [vmem:[%s10615 + $0x50] sm:$0xff]
  %v10627 = vld [vmem:[%s10615 + $0x58] sm:$0xff]
  %v10628 = vld [vmem:[%s10615 + $0x60] sm:$0xff]
  %v10629 = vld [vmem:[%s10615 + $0x68] sm:$0xff]
  %v10630 = vld [vmem:[%s10615 + $0x70] sm:$0xff]
  %v10631 = vld [vmem:[%s10615 + $0x78] sm:$0xff]
  %10632 = vmatpush.msra.mxu0 %v10631
  %10633 = vmatpush.msra.mxu0 %v10630
  %10634 = vmatpush.msra.mxu0 %v10629
  %10635 = vmatpush.msra.mxu0 %v10628
  %10636 = vmatpush.msra.mxu0 %v10627
  %10637 = vmatpush.msra.mxu0 %v10626
  %10638 = vmatpush.msra.mxu0 %v10625
  %10639 = vmatpush.msra.mxu0 %v10624
  %10640 = vmatpush.msra.mxu0 %v10623
  %10641 = vmatpush.msra.mxu0 %v10622
  %10642 = vmatpush.msra.mxu0 %v10621
  %10643 = vmatpush.msra.mxu0 %v10620
  %10644 = vmatpush.msra.mxu0 %v10619
  %10645 = vmatpush.msra.mxu0 %v10618
  %10646 = vmatpush.msra.mxu0 %v10617
  %10647 = vmatpush.msra.mxu0 %v10616
  %10648 = vmatmul.f32.gmra.mxu0 %v10611
  %v10649 = vpop.f32.mrf.mxu0
  %v10650 = vadd.f32 0.0, %v10649
  %10651 = vmatmul.f32.gmra.mxu0 %v10612
  %v10652 = vpop.f32.mrf.mxu0
  %v10653 = vadd.f32 0.0, %v10652
  %10654 = vmatmul.f32.gmra.mxu0 %v10613
  %v10655 = vpop.f32.mrf.mxu0
  %v10656 = vadd.f32 0.0, %v10655
  %10657 = vmatmul.f32.gmra.mxu0 %v10614
  %v10658 = vpop.f32.mrf.mxu0
  %v10659 = vadd.f32 0.0, %v10658
  %10660 = vdwg.mxu0
  %v10661 = vadd.f32 %v10578, %v10650
  %v10662 = vadd.f32 %v10579, %v10653
  %v10663 = vadd.f32 %v10580, %v10656
  %v10664 = vadd.f32 %v10581, %v10659
  %v10665 = vld [vmem:[#allocation4 + $0x5] sm:$0xff]
  %v10666 = vld [vmem:[#allocation4 + $0xd] sm:$0xff]
  %v10667 = vld [vmem:[#allocation4 + $0x15] sm:$0xff]
  %v10668 = vld [vmem:[#allocation4 + $0x1d] sm:$0xff]
  %s10669 = scalar_lea.vmem %s11, 64
  %v10670 = vld [vmem:[%s10669] sm:$0xff]
  %v10671 = vld [vmem:[%s10669 + $0x8] sm:$0xff]
  %v10672 = vld [vmem:[%s10669 + $0x10] sm:$0xff]
  %v10673 = vld [vmem:[%s10669 + $0x18] sm:$0xff]
  %10675 = vset.pattern.permute.xlu0 0
  %10676 = vperm.xlu0 %10675, %v10670
  %v10677 = vpop.permute.xlu0 %10676
  %10680 = vset.pattern.permute.xlu0 0
  %10681 = vperm.xlu0 %10680, %v10671
  %v10682 = vpop.permute.xlu0 %10681
  %10685 = vset.pattern.permute.xlu0 0
  %10686 = vperm.xlu0 %10685, %v10672
  %v10687 = vpop.permute.xlu0 %10686
  %10690 = vset.pattern.permute.xlu0 0
  %10691 = vperm.xlu0 %10690, %v10673
  %v10692 = vpop.permute.xlu0 %10691
  %v10694 = vmul.f32 %v10665, %v10677
  %v10695 = vmul.f32 %v10666, %v10682
  %v10696 = vmul.f32 %v10667, %v10687
  %v10697 = vmul.f32 %v10668, %v10692
  %s10698 = scalar_lea.vmem %s9, 256
  %v10699 = vld [vmem:[%s10698] sm:$0xff]
  %v10700 = vld [vmem:[%s10698 + $0x8] sm:$0xff]
  %v10701 = vld [vmem:[%s10698 + $0x10] sm:$0xff]
  %v10702 = vld [vmem:[%s10698 + $0x18] sm:$0xff]
  %v10703 = vld [vmem:[%s10698 + $0x20] sm:$0xff]
  %v10704 = vld [vmem:[%s10698 + $0x28] sm:$0xff]
  %v10705 = vld [vmem:[%s10698 + $0x30] sm:$0xff]
  %v10706 = vld [vmem:[%s10698 + $0x38] sm:$0xff]
  %v10707 = vld [vmem:[%s10698 + $0x40] sm:$0xff]
  %v10708 = vld [vmem:[%s10698 + $0x48] sm:$0xff]
  %v10709 = vld [vmem:[%s10698 + $0x50] sm:$0xff]
  %v10710 = vld [vmem:[%s10698 + $0x58] sm:$0xff]
  %v10711 = vld [vmem:[%s10698 + $0x60] sm:$0xff]
  %v10712 = vld [vmem:[%s10698 + $0x68] sm:$0xff]
  %v10713 = vld [vmem:[%s10698 + $0x70] sm:$0xff]
  %v10714 = vld [vmem:[%s10698 + $0x78] sm:$0xff]
  %10715 = vmatpush.msra.mxu0 %v10714
  %10716 = vmatpush.msra.mxu0 %v10713
  %10717 = vmatpush.msra.mxu0 %v10712
  %10718 = vmatpush.msra.mxu0 %v10711
  %10719 = vmatpush.msra.mxu0 %v10710
  %10720 = vmatpush.msra.mxu0 %v10709
  %10721 = vmatpush.msra.mxu0 %v10708
  %10722 = vmatpush.msra.mxu0 %v10707
  %10723 = vmatpush.msra.mxu0 %v10706
  %10724 = vmatpush.msra.mxu0 %v10705
  %10725 = vmatpush.msra.mxu0 %v10704
  %10726 = vmatpush.msra.mxu0 %v10703
  %10727 = vmatpush.msra.mxu0 %v10702
  %10728 = vmatpush.msra.mxu0 %v10701
  %10729 = vmatpush.msra.mxu0 %v10700
  %10730 = vmatpush.msra.mxu0 %v10699
  %10731 = vmatmul.f32.gmra.mxu0 %v10694
  %v10732 = vpop.f32.mrf.mxu0
  %v10733 = vadd.f32 0.0, %v10732
  %10734 = vmatmul.f32.gmra.mxu0 %v10695
  %v10735 = vpop.f32.mrf.mxu0
  %v10736 = vadd.f32 0.0, %v10735
  %10737 = vmatmul.f32.gmra.mxu0 %v10696
  %v10738 = vpop.f32.mrf.mxu0
  %v10739 = vadd.f32 0.0, %v10738
  %10740 = vmatmul.f32.gmra.mxu0 %v10697
  %v10741 = vpop.f32.mrf.mxu0
  %v10742 = vadd.f32 0.0, %v10741
  %10743 = vdwg.mxu0
  %v10744 = vadd.f32 %v10661, %v10733
  %v10745 = vadd.f32 %v10662, %v10736
  %v10746 = vadd.f32 %v10663, %v10739
  %v10747 = vadd.f32 %v10664, %v10742
  %v10748 = vld [vmem:[#allocation4 + $0x7] sm:$0xff]
  %v10749 = vld [vmem:[#allocation4 + $0xf] sm:$0xff]
  %v10750 = vld [vmem:[#allocation4 + $0x17] sm:$0xff]
  %v10751 = vld [vmem:[#allocation4 + $0x1f] sm:$0xff]
  %s10752 = scalar_lea.vmem %s11, 96
  %v10753 = vld [vmem:[%s10752] sm:$0xff]
  %v10754 = vld [vmem:[%s10752 + $0x8] sm:$0xff]
  %v10755 = vld [vmem:[%s10752 + $0x10] sm:$0xff]
  %v10756 = vld [vmem:[%s10752 + $0x18] sm:$0xff]
  %10758 = vset.pattern.permute.xlu0 0
  %10759 = vperm.xlu0 %10758, %v10753
  %v10760 = vpop.permute.xlu0 %10759
  %10763 = vset.pattern.permute.xlu0 0
  %10764 = vperm.xlu0 %10763, %v10754
  %v10765 = vpop.permute.xlu0 %10764
  %10768 = vset.pattern.permute.xlu0 0
  %10769 = vperm.xlu0 %10768, %v10755
  %v10770 = vpop.permute.xlu0 %10769
  %10773 = vset.pattern.permute.xlu0 0
  %10774 = vperm.xlu0 %10773, %v10756
  %v10775 = vpop.permute.xlu0 %10774
  %v10777 = vmul.f32 %v10748, %v10760
  %v10778 = vmul.f32 %v10749, %v10765
  %v10779 = vmul.f32 %v10750, %v10770
  %v10780 = vmul.f32 %v10751, %v10775
  %s10781 = scalar_lea.vmem %s9, 384
  %v10782 = vld [vmem:[%s10781] sm:$0xff]
  %v10783 = vld [vmem:[%s10781 + $0x8] sm:$0xff]
  %v10784 = vld [vmem:[%s10781 + $0x10] sm:$0xff]
  %v10785 = vld [vmem:[%s10781 + $0x18] sm:$0xff]
  %v10786 = vld [vmem:[%s10781 + $0x20] sm:$0xff]
  %v10787 = vld [vmem:[%s10781 + $0x28] sm:$0xff]
  %v10788 = vld [vmem:[%s10781 + $0x30] sm:$0xff]
  %v10789 = vld [vmem:[%s10781 + $0x38] sm:$0xff]
  %v10790 = vld [vmem:[%s10781 + $0x40] sm:$0xff]
  %v10791 = vld [vmem:[%s10781 + $0x48] sm:$0xff]
  %v10792 = vld [vmem:[%s10781 + $0x50] sm:$0xff]
  %v10793 = vld [vmem:[%s10781 + $0x58] sm:$0xff]
  %v10794 = vld [vmem:[%s10781 + $0x60] sm:$0xff]
  %v10795 = vld [vmem:[%s10781 + $0x68] sm:$0xff]
  %v10796 = vld [vmem:[%s10781 + $0x70] sm:$0xff]
  %v10797 = vld [vmem:[%s10781 + $0x78] sm:$0xff]
  %10798 = vmatpush.msra.mxu0 %v10797
  %10799 = vmatpush.msra.mxu0 %v10796
  %10800 = vmatpush.msra.mxu0 %v10795
  %10801 = vmatpush.msra.mxu0 %v10794
  %10802 = vmatpush.msra.mxu0 %v10793
  %10803 = vmatpush.msra.mxu0 %v10792
  %10804 = vmatpush.msra.mxu0 %v10791
  %10805 = vmatpush.msra.mxu0 %v10790
  %10806 = vmatpush.msra.mxu0 %v10789
  %10807 = vmatpush.msra.mxu0 %v10788
  %10808 = vmatpush.msra.mxu0 %v10787
  %10809 = vmatpush.msra.mxu0 %v10786
  %10810 = vmatpush.msra.mxu0 %v10785
  %10811 = vmatpush.msra.mxu0 %v10784
  %10812 = vmatpush.msra.mxu0 %v10783
  %10813 = vmatpush.msra.mxu0 %v10782
  %10814 = vmatmul.f32.gmra.mxu0 %v10777
  %v10815 = vpop.f32.mrf.mxu0
  %v10816 = vadd.f32 0.0, %v10815
  %10817 = vmatmul.f32.gmra.mxu0 %v10778
  %v10818 = vpop.f32.mrf.mxu0
  %v10819 = vadd.f32 0.0, %v10818
  %10820 = vmatmul.f32.gmra.mxu0 %v10779
  %v10821 = vpop.f32.mrf.mxu0
  %v10822 = vadd.f32 0.0, %v10821
  %10823 = vmatmul.f32.gmra.mxu0 %v10780
  %v10824 = vpop.f32.mrf.mxu0
  %v10825 = vadd.f32 0.0, %v10824
  %10826 = vdwg.mxu0
  %v10827 = vadd.f32 %v10744, %v10816
  %v10828 = vadd.f32 %v10745, %v10819
  %v10829 = vadd.f32 %v10746, %v10822
  %v10830 = vadd.f32 %v10747, %v10825
  %v10831 = vld [vmem:[#allocation4 + $0x8] sm:$0xff]
  %v10832 = vld [vmem:[#allocation4 + $0x10] sm:$0xff]
  %v10833 = vld [vmem:[#allocation4 + $0x18] sm:$0xff]
  %v10834 = vld [vmem:[#allocation4 + $0x20] sm:$0xff]
  %s10835 = scalar_lea.vmem %s11, 128
  %v10836 = vld [vmem:[%s10835] sm:$0xff]
  %v10837 = vld [vmem:[%s10835 + $0x8] sm:$0xff]
  %v10838 = vld [vmem:[%s10835 + $0x10] sm:$0xff]
  %v10839 = vld [vmem:[%s10835 + $0x18] sm:$0xff]
  %10841 = vset.pattern.permute.xlu0 0
  %10842 = vperm.xlu0 %10841, %v10836
  %v10843 = vpop.permute.xlu0 %10842
  %10846 = vset.pattern.permute.xlu0 0
  %10847 = vperm.xlu0 %10846, %v10837
  %v10848 = vpop.permute.xlu0 %10847
  %10851 = vset.pattern.permute.xlu0 0
  %10852 = vperm.xlu0 %10851, %v10838
  %v10853 = vpop.permute.xlu0 %10852
  %10856 = vset.pattern.permute.xlu0 0
  %10857 = vperm.xlu0 %10856, %v10839
  %v10858 = vpop.permute.xlu0 %10857
  %v10860 = vmul.f32 %v10831, %v10843
  %v10861 = vmul.f32 %v10832, %v10848
  %v10862 = vmul.f32 %v10833, %v10853
  %v10863 = vmul.f32 %v10834, %v10858
  %s10864 = scalar_lea.vmem %s9, 512
  %v10865 = vld [vmem:[%s10864] sm:$0xff]
  %v10866 = vld [vmem:[%s10864 + $0x8] sm:$0xff]
  %v10867 = vld [vmem:[%s10864 + $0x10] sm:$0xff]
  %v10868 = vld [vmem:[%s10864 + $0x18] sm:$0xff]
  %v10869 = vld [vmem:[%s10864 + $0x20] sm:$0xff]
  %v10870 = vld [vmem:[%s10864 + $0x28] sm:$0xff]
  %v10871 = vld [vmem:[%s10864 + $0x30] sm:$0xff]
  %v10872 = vld [vmem:[%s10864 + $0x38] sm:$0xff]
  %v10873 = vld [vmem:[%s10864 + $0x40] sm:$0xff]
  %v10874 = vld [vmem:[%s10864 + $0x48] sm:$0xff]
  %v10875 = vld [vmem:[%s10864 + $0x50] sm:$0xff]
  %v10876 = vld [vmem:[%s10864 + $0x58] sm:$0xff]
  %v10877 = vld [vmem:[%s10864 + $0x60] sm:$0xff]
  %v10878 = vld [vmem:[%s10864 + $0x68] sm:$0xff]
  %v10879 = vld [vmem:[%s10864 + $0x70] sm:$0xff]
  %v10880 = vld [vmem:[%s10864 + $0x78] sm:$0xff]
  %10881 = vmatpush.msra.mxu0 %v10880
  %10882 = vmatpush.msra.mxu0 %v10879
  %10883 = vmatpush.msra.mxu0 %v10878
  %10884 = vmatpush.msra.mxu0 %v10877
  %10885 = vmatpush.msra.mxu0 %v10876
  %10886 = vmatpush.msra.mxu0 %v10875
  %10887 = vmatpush.msra.mxu0 %v10874
  %10888 = vmatpush.msra.mxu0 %v10873
  %10889 = vmatpush.msra.mxu0 %v10872
  %10890 = vmatpush.msra.mxu0 %v10871
  %10891 = vmatpush.msra.mxu0 %v10870
  %10892 = vmatpush.msra.mxu0 %v10869
  %10893 = vmatpush.msra.mxu0 %v10868
  %10894 = vmatpush.msra.mxu0 %v10867
  %10895 = vmatpush.msra.mxu0 %v10866
  %10896 = vmatpush.msra.mxu0 %v10865
  %10897 = vmatmul.f32.gmra.mxu0 %v10860
  %v10898 = vpop.f32.mrf.mxu0
  %v10899 = vadd.f32 0.0, %v10898
  %10900 = vmatmul.f32.gmra.mxu0 %v10861
  %v10901 = vpop.f32.mrf.mxu0
  %v10902 = vadd.f32 0.0, %v10901
  %10903 = vmatmul.f32.gmra.mxu0 %v10862
  %v10904 = vpop.f32.mrf.mxu0
  %v10905 = vadd.f32 0.0, %v10904
  %10906 = vmatmul.f32.gmra.mxu0 %v10863
  %v10907 = vpop.f32.mrf.mxu0
  %v10908 = vadd.f32 0.0, %v10907
  %10909 = vdwg.mxu0
  %v10910 = vadd.f32 %v10827, %v10899
  %v10911 = vadd.f32 %v10828, %v10902
  %v10912 = vadd.f32 %v10829, %v10905
  %v10913 = vadd.f32 %v10830, %v10908
  %v10914 = vld [vmem:[#allocation4 + $0x9] sm:$0xff]
  %v10915 = vld [vmem:[#allocation4 + $0x11] sm:$0xff]
  %v10916 = vld [vmem:[#allocation4 + $0x19] sm:$0xff]
  %v10917 = vld [vmem:[#allocation4 + $0x21] sm:$0xff]
  %s10918 = scalar_lea.vmem %s11, 160
  %v10919 = vld [vmem:[%s10918] sm:$0xff]
  %v10920 = vld [vmem:[%s10918 + $0x8] sm:$0xff]
  %v10921 = vld [vmem:[%s10918 + $0x10] sm:$0xff]
  %v10922 = vld [vmem:[%s10918 + $0x18] sm:$0xff]
  %10924 = vset.pattern.permute.xlu0 0
  %10925 = vperm.xlu0 %10924, %v10919
  %v10926 = vpop.permute.xlu0 %10925
  %10929 = vset.pattern.permute.xlu0 0
  %10930 = vperm.xlu0 %10929, %v10920
  %v10931 = vpop.permute.xlu0 %10930
  %10934 = vset.pattern.permute.xlu0 0
  %10935 = vperm.xlu0 %10934, %v10921
  %v10936 = vpop.permute.xlu0 %10935
  %10939 = vset.pattern.permute.xlu0 0
  %10940 = vperm.xlu0 %10939, %v10922
  %v10941 = vpop.permute.xlu0 %10940
  %v10943 = vmul.f32 %v10914, %v10926
  %v10944 = vmul.f32 %v10915, %v10931
  %v10945 = vmul.f32 %v10916, %v10936
  %v10946 = vmul.f32 %v10917, %v10941
  %s10947 = scalar_lea.vmem %s9, 640
  %v10948 = vld [vmem:[%s10947] sm:$0xff]
  %v10949 = vld [vmem:[%s10947 + $0x8] sm:$0xff]
  %v10950 = vld [vmem:[%s10947 + $0x10] sm:$0xff]
  %v10951 = vld [vmem:[%s10947 + $0x18] sm:$0xff]
  %v10952 = vld [vmem:[%s10947 + $0x20] sm:$0xff]
  %v10953 = vld [vmem:[%s10947 + $0x28] sm:$0xff]
  %v10954 = vld [vmem:[%s10947 + $0x30] sm:$0xff]
  %v10955 = vld [vmem:[%s10947 + $0x38] sm:$0xff]
  %v10956 = vld [vmem:[%s10947 + $0x40] sm:$0xff]
  %v10957 = vld [vmem:[%s10947 + $0x48] sm:$0xff]
  %v10958 = vld [vmem:[%s10947 + $0x50] sm:$0xff]
  %v10959 = vld [vmem:[%s10947 + $0x58] sm:$0xff]
  %v10960 = vld [vmem:[%s10947 + $0x60] sm:$0xff]
  %v10961 = vld [vmem:[%s10947 + $0x68] sm:$0xff]
  %v10962 = vld [vmem:[%s10947 + $0x70] sm:$0xff]
  %v10963 = vld [vmem:[%s10947 + $0x78] sm:$0xff]
  %10964 = vmatpush.msra.mxu0 %v10963
  %10965 = vmatpush.msra.mxu0 %v10962
  %10966 = vmatpush.msra.mxu0 %v10961
  %10967 = vmatpush.msra.mxu0 %v10960
  %10968 = vmatpush.msra.mxu0 %v10959
  %10969 = vmatpush.msra.mxu0 %v10958
  %10970 = vmatpush.msra.mxu0 %v10957
  %10971 = vmatpush.msra.mxu0 %v10956
  %10972 = vmatpush.msra.mxu0 %v10955
  %10973 = vmatpush.msra.mxu0 %v10954
  %10974 = vmatpush.msra.mxu0 %v10953
  %10975 = vmatpush.msra.mxu0 %v10952
  %10976 = vmatpush.msra.mxu0 %v10951
  %10977 = vmatpush.msra.mxu0 %v10950
  %10978 = vmatpush.msra.mxu0 %v10949
  %10979 = vmatpush.msra.mxu0 %v10948
  %10980 = vmatmul.f32.gmra.mxu0 %v10943
  %v10981 = vpop.f32.mrf.mxu0
  %v10982 = vadd.f32 0.0, %v10981
  %10983 = vmatmul.f32.gmra.mxu0 %v10944
  %v10984 = vpop.f32.mrf.mxu0
  %v10985 = vadd.f32 0.0, %v10984
  %10986 = vmatmul.f32.gmra.mxu0 %v10945
  %v10987 = vpop.f32.mrf.mxu0
  %v10988 = vadd.f32 0.0, %v10987
  %10989 = vmatmul.f32.gmra.mxu0 %v10946
  %v10990 = vpop.f32.mrf.mxu0
  %v10991 = vadd.f32 0.0, %v10990
  %10992 = vdwg.mxu0
  %v10993 = vadd.f32 %v10910, %v10982
  %v10994 = vadd.f32 %v10911, %v10985
  %v10995 = vadd.f32 %v10912, %v10988
  %v10996 = vadd.f32 %v10913, %v10991
  %v10997 = vld [vmem:[#allocation4 + $0xb] sm:$0xff]
  %v10998 = vld [vmem:[#allocation4 + $0x13] sm:$0xff]
  %v10999 = vld [vmem:[#allocation4 + $0x1b] sm:$0xff]
  %v11000 = vld [vmem:[#allocation4 + $0x23] sm:$0xff]
  %s11001 = scalar_lea.vmem %s11, 192
  %v11002 = vld [vmem:[%s11001] sm:$0xff]
  %v11003 = vld [vmem:[%s11001 + $0x8] sm:$0xff]
  %v11004 = vld [vmem:[%s11001 + $0x10] sm:$0xff]
  %v11005 = vld [vmem:[%s11001 + $0x18] sm:$0xff]
  %11007 = vset.pattern.permute.xlu0 0
  %11008 = vperm.xlu0 %11007, %v11002
  %v11009 = vpop.permute.xlu0 %11008
  %11012 = vset.pattern.permute.xlu0 0
  %11013 = vperm.xlu0 %11012, %v11003
  %v11014 = vpop.permute.xlu0 %11013
  %11017 = vset.pattern.permute.xlu0 0
  %11018 = vperm.xlu0 %11017, %v11004
  %v11019 = vpop.permute.xlu0 %11018
  %11022 = vset.pattern.permute.xlu0 0
  %11023 = vperm.xlu0 %11022, %v11005
  %v11024 = vpop.permute.xlu0 %11023
  %v11026 = vmul.f32 %v10997, %v11009
  %v11027 = vmul.f32 %v10998, %v11014
  %v11028 = vmul.f32 %v10999, %v11019
  %v11029 = vmul.f32 %v11000, %v11024
  %s11030 = scalar_lea.vmem %s9, 768
  %v11031 = vld [vmem:[%s11030] sm:$0xff]
  %v11032 = vld [vmem:[%s11030 + $0x8] sm:$0xff]
  %v11033 = vld [vmem:[%s11030 + $0x10] sm:$0xff]
  %v11034 = vld [vmem:[%s11030 + $0x18] sm:$0xff]
  %v11035 = vld [vmem:[%s11030 + $0x20] sm:$0xff]
  %v11036 = vld [vmem:[%s11030 + $0x28] sm:$0xff]
  %v11037 = vld [vmem:[%s11030 + $0x30] sm:$0xff]
  %v11038 = vld [vmem:[%s11030 + $0x38] sm:$0xff]
  %v11039 = vld [vmem:[%s11030 + $0x40] sm:$0xff]
  %v11040 = vld [vmem:[%s11030 + $0x48] sm:$0xff]
  %v11041 = vld [vmem:[%s11030 + $0x50] sm:$0xff]
  %v11042 = vld [vmem:[%s11030 + $0x58] sm:$0xff]
  %v11043 = vld [vmem:[%s11030 + $0x60] sm:$0xff]
  %v11044 = vld [vmem:[%s11030 + $0x68] sm:$0xff]
  %v11045 = vld [vmem:[%s11030 + $0x70] sm:$0xff]
  %v11046 = vld [vmem:[%s11030 + $0x78] sm:$0xff]
  %11047 = vmatpush.msra.mxu0 %v11046
  %11048 = vmatpush.msra.mxu0 %v11045
  %11049 = vmatpush.msra.mxu0 %v11044
  %11050 = vmatpush.msra.mxu0 %v11043
  %11051 = vmatpush.msra.mxu0 %v11042
  %11052 = vmatpush.msra.mxu0 %v11041
  %11053 = vmatpush.msra.mxu0 %v11040
  %11054 = vmatpush.msra.mxu0 %v11039
  %11055 = vmatpush.msra.mxu0 %v11038
  %11056 = vmatpush.msra.mxu0 %v11037
  %11057 = vmatpush.msra.mxu0 %v11036
  %11058 = vmatpush.msra.mxu0 %v11035
  %11059 = vmatpush.msra.mxu0 %v11034
  %11060 = vmatpush.msra.mxu0 %v11033
  %11061 = vmatpush.msra.mxu0 %v11032
  %11062 = vmatpush.msra.mxu0 %v11031
  %11063 = vmatmul.f32.gmra.mxu0 %v11026
  %v11064 = vpop.f32.mrf.mxu0
  %v11065 = vadd.f32 0.0, %v11064
  %11066 = vmatmul.f32.gmra.mxu0 %v11027
  %v11067 = vpop.f32.mrf.mxu0
  %v11068 = vadd.f32 0.0, %v11067
  %11069 = vmatmul.f32.gmra.mxu0 %v11028
  %v11070 = vpop.f32.mrf.mxu0
  %v11071 = vadd.f32 0.0, %v11070
  %11072 = vmatmul.f32.gmra.mxu0 %v11029
  %v11073 = vpop.f32.mrf.mxu0
  %v11074 = vadd.f32 0.0, %v11073
  %11075 = vdwg.mxu0
  %v11076 = vadd.f32 %v10993, %v11065
  %v11077 = vadd.f32 %v10994, %v11068
  %v11078 = vadd.f32 %v10995, %v11071
  %v11079 = vadd.f32 %v10996, %v11074
  %v11080 = vld [vmem:[#allocation4 + $0xc] sm:$0xff]
  %v11081 = vld [vmem:[#allocation4 + $0x14] sm:$0xff]
  %v11082 = vld [vmem:[#allocation4 + $0x1c] sm:$0xff]
  %v11083 = vld [vmem:[#allocation4 + $0x24] sm:$0xff]
  %s11084 = scalar_lea.vmem %s11, 224
  %v11085 = vld [vmem:[%s11084] sm:$0xff]
  %v11086 = vld [vmem:[%s11084 + $0x8] sm:$0xff]
  %v11087 = vld [vmem:[%s11084 + $0x10] sm:$0xff]
  %v11088 = vld [vmem:[%s11084 + $0x18] sm:$0xff]
  %11090 = vset.pattern.permute.xlu0 0
  %11091 = vperm.xlu0 %11090, %v11085
  %v11092 = vpop.permute.xlu0 %11091
  %11095 = vset.pattern.permute.xlu0 0
  %11096 = vperm.xlu0 %11095, %v11086
  %v11097 = vpop.permute.xlu0 %11096
  %11100 = vset.pattern.permute.xlu0 0
  %11101 = vperm.xlu0 %11100, %v11087
  %v11102 = vpop.permute.xlu0 %11101
  %11105 = vset.pattern.permute.xlu0 0
  %11106 = vperm.xlu0 %11105, %v11088
  %v11107 = vpop.permute.xlu0 %11106
  %v11109 = vmul.f32 %v11080, %v11092
  %v11110 = vmul.f32 %v11081, %v11097
  %v11111 = vmul.f32 %v11082, %v11102
  %v11112 = vmul.f32 %v11083, %v11107
  %s11113 = scalar_lea.vmem %s9, 896
  %v11114 = vld [vmem:[%s11113] sm:$0xff]
  %v11115 = vld [vmem:[%s11113 + $0x8] sm:$0xff]
  %v11116 = vld [vmem:[%s11113 + $0x10] sm:$0xff]
  %v11117 = vld [vmem:[%s11113 + $0x18] sm:$0xff]
  %v11118 = vld [vmem:[%s11113 + $0x20] sm:$0xff]
  %v11119 = vld [vmem:[%s11113 + $0x28] sm:$0xff]
  %v11120 = vld [vmem:[%s11113 + $0x30] sm:$0xff]
  %v11121 = vld [vmem:[%s11113 + $0x38] sm:$0xff]
  %v11122 = vld [vmem:[%s11113 + $0x40] sm:$0xff]
  %v11123 = vld [vmem:[%s11113 + $0x48] sm:$0xff]
  %v11124 = vld [vmem:[%s11113 + $0x50] sm:$0xff]
  %v11125 = vld [vmem:[%s11113 + $0x58] sm:$0xff]
  %v11126 = vld [vmem:[%s11113 + $0x60] sm:$0xff]
  %v11127 = vld [vmem:[%s11113 + $0x68] sm:$0xff]
  %v11128 = vld [vmem:[%s11113 + $0x70] sm:$0xff]
  %v11129 = vld [vmem:[%s11113 + $0x78] sm:$0xff]
  %11130 = vmatpush.msra.mxu0 %v11129
  %11131 = vmatpush.msra.mxu0 %v11128
  %11132 = vmatpush.msra.mxu0 %v11127
  %11133 = vmatpush.msra.mxu0 %v11126
  %11134 = vmatpush.msra.mxu0 %v11125
  %11135 = vmatpush.msra.mxu0 %v11124
  %11136 = vmatpush.msra.mxu0 %v11123
  %11137 = vmatpush.msra.mxu0 %v11122
  %11138 = vmatpush.msra.mxu0 %v11121
  %11139 = vmatpush.msra.mxu0 %v11120
  %11140 = vmatpush.msra.mxu0 %v11119
  %11141 = vmatpush.msra.mxu0 %v11118
  %11142 = vmatpush.msra.mxu0 %v11117
  %11143 = vmatpush.msra.mxu0 %v11116
  %11144 = vmatpush.msra.mxu0 %v11115
  %11145 = vmatpush.msra.mxu0 %v11114
  %11146 = vmatmul.f32.gmra.mxu0 %v11109
  %v11147 = vpop.f32.mrf.mxu0
  %v11148 = vadd.f32 0.0, %v11147
  %11149 = vmatmul.f32.gmra.mxu0 %v11110
  %v11150 = vpop.f32.mrf.mxu0
  %v11151 = vadd.f32 0.0, %v11150
  %11152 = vmatmul.f32.gmra.mxu0 %v11111
  %v11153 = vpop.f32.mrf.mxu0
  %v11154 = vadd.f32 0.0, %v11153
  %11155 = vmatmul.f32.gmra.mxu0 %v11112
  %v11156 = vpop.f32.mrf.mxu0
  %v11157 = vadd.f32 0.0, %v11156
  %11158 = vdwg.mxu0
  %v11159 = vadd.f32 %v11076, %v11148
  %v11160 = vadd.f32 %v11077, %v11151
  %v11161 = vadd.f32 %v11078, %v11154
  %v11162 = vadd.f32 %v11079, %v11157
  %v11163 = vld [vmem:[#allocation4 + $0xd] sm:$0xff]
  %v11164 = vld [vmem:[#allocation4 + $0x15] sm:$0xff]
  %v11165 = vld [vmem:[#allocation4 + $0x1d] sm:$0xff]
  %v11166 = vld [vmem:[#allocation4 + $0x25] sm:$0xff]
  %s11167 = scalar_lea.vmem %s11, 256
  %v11168 = vld [vmem:[%s11167] sm:$0xff]
  %v11169 = vld [vmem:[%s11167 + $0x8] sm:$0xff]
  %v11170 = vld [vmem:[%s11167 + $0x10] sm:$0xff]
  %v11171 = vld [vmem:[%s11167 + $0x18] sm:$0xff]
  %11173 = vset.pattern.permute.xlu0 0
  %11174 = vperm.xlu0 %11173, %v11168
  %v11175 = vpop.permute.xlu0 %11174
  %11178 = vset.pattern.permute.xlu0 0
  %11179 = vperm.xlu0 %11178, %v11169
  %v11180 = vpop.permute.xlu0 %11179
  %11183 = vset.pattern.permute.xlu0 0
  %11184 = vperm.xlu0 %11183, %v11170
  %v11185 = vpop.permute.xlu0 %11184
  %11188 = vset.pattern.permute.xlu0 0
  %11189 = vperm.xlu0 %11188, %v11171
  %v11190 = vpop.permute.xlu0 %11189
  %v11192 = vmul.f32 %v11163, %v11175
  %v11193 = vmul.f32 %v11164, %v11180
  %v11194 = vmul.f32 %v11165, %v11185
  %v11195 = vmul.f32 %v11166, %v11190
  %s11196 = scalar_lea.vmem %s9, 1024
  %v11197 = vld [vmem:[%s11196] sm:$0xff]
  %v11198 = vld [vmem:[%s11196 + $0x8] sm:$0xff]
  %v11199 = vld [vmem:[%s11196 + $0x10] sm:$0xff]
  %v11200 = vld [vmem:[%s11196 + $0x18] sm:$0xff]
  %v11201 = vld [vmem:[%s11196 + $0x20] sm:$0xff]
  %v11202 = vld [vmem:[%s11196 + $0x28] sm:$0xff]
  %v11203 = vld [vmem:[%s11196 + $0x30] sm:$0xff]
  %v11204 = vld [vmem:[%s11196 + $0x38] sm:$0xff]
  %v11205 = vld [vmem:[%s11196 + $0x40] sm:$0xff]
  %v11206 = vld [vmem:[%s11196 + $0x48] sm:$0xff]
  %v11207 = vld [vmem:[%s11196 + $0x50] sm:$0xff]
  %v11208 = vld [vmem:[%s11196 + $0x58] sm:$0xff]
  %v11209 = vld [vmem:[%s11196 + $0x60] sm:$0xff]
  %v11210 = vld [vmem:[%s11196 + $0x68] sm:$0xff]
  %v11211 = vld [vmem:[%s11196 + $0x70] sm:$0xff]
  %v11212 = vld [vmem:[%s11196 + $0x78] sm:$0xff]
  %11213 = vmatpush.msra.mxu0 %v11212
  %11214 = vmatpush.msra.mxu0 %v11211
  %11215 = vmatpush.msra.mxu0 %v11210
  %11216 = vmatpush.msra.mxu0 %v11209
  %11217 = vmatpush.msra.mxu0 %v11208
  %11218 = vmatpush.msra.mxu0 %v11207
  %11219 = vmatpush.msra.mxu0 %v11206
  %11220 = vmatpush.msra.mxu0 %v11205
  %11221 = vmatpush.msra.mxu0 %v11204
  %11222 = vmatpush.msra.mxu0 %v11203
  %11223 = vmatpush.msra.mxu0 %v11202
  %11224 = vmatpush.msra.mxu0 %v11201
  %11225 = vmatpush.msra.mxu0 %v11200
  %11226 = vmatpush.msra.mxu0 %v11199
  %11227 = vmatpush.msra.mxu0 %v11198
  %11228 = vmatpush.msra.mxu0 %v11197
  %11229 = vmatmul.f32.gmra.mxu0 %v11192
  %v11230 = vpop.f32.mrf.mxu0
  %v11231 = vadd.f32 0.0, %v11230
  %11232 = vmatmul.f32.gmra.mxu0 %v11193
  %v11233 = vpop.f32.mrf.mxu0
  %v11234 = vadd.f32 0.0, %v11233
  %11235 = vmatmul.f32.gmra.mxu0 %v11194
  %v11236 = vpop.f32.mrf.mxu0
  %v11237 = vadd.f32 0.0, %v11236
  %11238 = vmatmul.f32.gmra.mxu0 %v11195
  %v11239 = vpop.f32.mrf.mxu0
  %v11240 = vadd.f32 0.0, %v11239
  %11241 = vdwg.mxu0
  %v11242 = vadd.f32 %v11159, %v11231
  %v11243 = vadd.f32 %v11160, %v11234
  %v11244 = vadd.f32 %v11161, %v11237
  %v11245 = vadd.f32 %v11162, %v11240
  %11246 = vst [vmem:[#allocation4 + $0x8] sm:$0xff] %v11242
  %11247 = vst [vmem:[#allocation4 + $0x10] sm:$0xff] %v11243
  %11248 = vst [vmem:[#allocation4 + $0x18] sm:$0xff] %v11244
  %11249 = vst [vmem:[#allocation4 + $0x20] sm:$0xff] %v11245
  %v11250 = vld [vmem:[#allocation4 + $0x9] sm:$0xff]
  %v11251 = vld [vmem:[#allocation4 + $0x11] sm:$0xff]
  %v11252 = vld [vmem:[#allocation4 + $0x19] sm:$0xff]
  %v11253 = vld [vmem:[#allocation4 + $0x21] sm:$0xff]
  %v11254 = vmax.f32 %v11242, %v11250
  %v11255 = vmax.f32 %v11243, %v11251
  %v11256 = vmax.f32 %v11244, %v11252
  %v11257 = vmax.f32 %v11245, %v11253
  %v11258 = vld [vmem:[#allocation4 + $0xc] sm:$0xff]
  %v11259 = vld [vmem:[#allocation4 + $0x14] sm:$0xff]
  %v11260 = vld [vmem:[#allocation4 + $0x1c] sm:$0xff]
  %v11261 = vld [vmem:[#allocation4 + $0x24] sm:$0xff]
  %v11262 = vld [vmem:[#allocation4 + $0xd] sm:$0xff]
  %v11263 = vld [vmem:[#allocation4 + $0x15] sm:$0xff]
  %v11264 = vld [vmem:[#allocation4 + $0x1d] sm:$0xff]
  %v11265 = vld [vmem:[#allocation4 + $0x25] sm:$0xff]
  %v11266 = vmax.f32 %v11258, %v11262
  %v11267 = vmax.f32 %v11259, %v11263
  %v11268 = vmax.f32 %v11260, %v11264
  %v11269 = vmax.f32 %v11261, %v11265
  %v11270 = vmax.f32 %v11254, %v11266
  %v11271 = vmax.f32 %v11255, %v11267
  %v11272 = vmax.f32 %v11256, %v11268
  %v11273 = vmax.f32 %v11257, %v11269
  %v11274 = vmax.f32 %v11270, 0.0
  %v11275 = vmax.f32 %v11271, 0.0
  %v11276 = vmax.f32 %v11272, 0.0
  %v11277 = vmax.f32 %v11273, 0.0
  %v11278 = vld [vmem:[%s12] sm:$0xff]
  %vm11279 = vcmask 261120
  %v11281 = vsel %vm11279, %v11278, 0
  %11283 = vmatpush.msra.mxu0 0.0
  %11284 = vmatpush.msra.mxu0 0.0
  %11285 = vmatpush.msra.mxu0 0.0
  %11286 = vmatpush.msra.mxu0 0.0
  %11287 = vmatpush.msra.mxu0 0.0
  %11288 = vmatpush.msra.mxu0 0.0
  %11289 = vmatpush.msra.mxu0 0.0
  %11290 = vmatpush.msra.mxu0 0.0
  %11291 = vmatpush.msra.mxu0 0.0
  %11292 = vmatpush.msra.mxu0 0.0
  %11293 = vmatpush.msra.mxu0 0.0
  %11294 = vmatpush.msra.mxu0 0.0
  %11295 = vmatpush.msra.mxu0 %v11277
  %11296 = vmatpush.msra.mxu0 %v11276
  %11297 = vmatpush.msra.mxu0 %v11275
  %11298 = vmatpush.msra.mxu0 %v11274
  %11299 = vmatmul.f32.gmra.mxu0 %v11281
  %v11300 = vpop.f32.mrf.mxu0
  %v11301 = vadd.f32 0.0, %v11300
  %11302 = vdwg.mxu0
  %v11303 = vld [vmem:[%s13] sm:$0x3]
  %vm11304 = vcmask 64512
  %v11306 = vsel %vm11304, %v11303, 0
  %11308 = vmatpush.msra.mxu0 0.0
  %11309 = vmatpush.msra.mxu0 0.0
  %11310 = vmatpush.msra.mxu0 0.0
  %11311 = vmatpush.msra.mxu0 0.0
  %11312 = vmatpush.msra.mxu0 0.0
  %11313 = vmatpush.msra.mxu0 0.0
  %11314 = vmatpush.msra.mxu0 0.0
  %11315 = vmatpush.msra.mxu0 0.0
  %11316 = vmatpush.msra.mxu0 0.0
  %11317 = vmatpush.msra.mxu0 0.0
  %11318 = vmatpush.msra.mxu0 0.0
  %11319 = vmatpush.msra.mxu0 0.0
  %11320 = vmatpush.msra.mxu0 0.0
  %11321 = vmatpush.msra.mxu0 0.0
  %11322 = vmatpush.msra.mxu0 0.0
  %11323 = vmatpush.msra.mxu0 %v11301
  %11324 = vmatmul.f32.gmra.mxu0 %v11306
  %v11325 = vpop.f32.mrf.mxu0
  %v11326 = vadd.f32 0.0, %v11325
  %11327 = vdwg.mxu0
  %v11328 = vld [vmem:[%s14] sm:$0xff]
  %v11329 = vld [vmem:[%s14 + $0x8] sm:$0xff]
  %v11330 = vld [vmem:[%s14 + $0x10] sm:$0xff]
  %v11331 = vld [vmem:[%s14 + $0x18] sm:$0xff]
  %v11332 = vld [vmem:[%s14 + $0x20] sm:$0xff]
  %v11333 = vld [vmem:[%s14 + $0x28] sm:$0xff]
  %v11334 = vld [vmem:[%s14 + $0x30] sm:$0xff]
  %v11335 = vld [vmem:[%s14 + $0x38] sm:$0xff]
  %v11336 = vld [vmem:[%s14 + $0x40] sm:$0xff]
  %v11337 = vld [vmem:[%s14 + $0x48] sm:$0xff]
  %v11338 = vld [vmem:[%s14 + $0x50] sm:$0xff]
  %v11339 = vld [vmem:[%s14 + $0x58] sm:$0xff]
  %v11340 = vld [vmem:[%s14 + $0x60] sm:$0xff]
  %v11341 = vld [vmem:[%s14 + $0x68] sm:$0xff]
  %v11342 = vld [vmem:[%s14 + $0x70] sm:$0xff]
  %v11343 = vld [vmem:[%s14 + $0x78] sm:$0xff]
  %s11344 = scalar_lea.vmem %s13, 2
  %v11345 = vld [vmem:[%s11344] sm:$0x3]
  %v11347 = vsel %vm11304, %v11345, 0
  %11349 = vmatpush.msra.mxu0 0.0
  %11350 = vmatpush.msra.mxu0 0.0
  %11351 = vmatpush.msra.mxu0 0.0
  %11352 = vmatpush.msra.mxu0 0.0
  %11353 = vmatpush.msra.mxu0 0.0
  %11354 = vmatpush.msra.mxu0 0.0
  %11355 = vmatpush.msra.mxu0 0.0
  %11356 = vmatpush.msra.mxu0 0.0
  %11357 = vmatpush.msra.mxu0 0.0
  %11358 = vmatpush.msra.mxu0 0.0
  %11359 = vmatpush.msra.mxu0 0.0
  %11360 = vmatpush.msra.mxu0 0.0
  %11361 = vmatpush.msra.mxu0 0.0
  %11362 = vmatpush.msra.mxu0 0.0
  %11363 = vmatpush.msra.mxu0 0.0
  %11364 = vmatpush.msra.mxu0 %v11301
  %11365 = vmatmul.f32.gmra.mxu0 %v11347
  %v11366 = vpop.f32.mrf.mxu0
  %v11367 = vadd.f32 0.0, %v11366
  %11368 = vdwg.mxu0
  %s11369 = scalar_lea.vmem %s14, 128
  %v11370 = vld [vmem:[%s11369] sm:$0xff]
  %v11371 = vld [vmem:[%s11369 + $0x8] sm:$0xff]
  %v11372 = vld [vmem:[%s11369 + $0x10] sm:$0xff]
  %v11373 = vld [vmem:[%s11369 + $0x18] sm:$0xff]
  %v11374 = vld [vmem:[%s11369 + $0x20] sm:$0xff]
  %v11375 = vld [vmem:[%s11369 + $0x28] sm:$0xff]
  %v11376 = vld [vmem:[%s11369 + $0x30] sm:$0xff]
  %v11377 = vld [vmem:[%s11369 + $0x38] sm:$0xff]
  %v11378 = vld [vmem:[%s11369 + $0x40] sm:$0xff]
  %v11379 = vld [vmem:[%s11369 + $0x48] sm:$0xff]
  %v11380 = vld [vmem:[%s11369 + $0x50] sm:$0xff]
  %v11381 = vld [vmem:[%s11369 + $0x58] sm:$0xff]
  %v11382 = vld [vmem:[%s11369 + $0x60] sm:$0xff]
  %v11383 = vld [vmem:[%s11369 + $0x68] sm:$0xff]
  %v11384 = vld [vmem:[%s11369 + $0x70] sm:$0xff]
  %v11385 = vld [vmem:[%s11369 + $0x78] sm:$0xff]
  %11386 = vmatpush.msra.mxu0 %v11385
  %11387 = vmatpush.msra.mxu0 %v11384
  %11388 = vmatpush.msra.mxu0 %v11383
  %11389 = vmatpush.msra.mxu0 %v11382
  %11390 = vmatpush.msra.mxu0 %v11381
  %11391 = vmatpush.msra.mxu0 %v11380
  %11392 = vmatpush.msra.mxu0 %v11379
  %11393 = vmatpush.msra.mxu0 %v11378
  %11394 = vmatpush.msra.mxu0 %v11377
  %11395 = vmatpush.msra.mxu0 %v11376
  %11396 = vmatpush.msra.mxu0 %v11375
  %11397 = vmatpush.msra.mxu0 %v11374
  %11398 = vmatpush.msra.mxu0 %v11373
  %11399 = vmatpush.msra.mxu0 %v11372
  %11400 = vmatpush.msra.mxu0 %v11371
  %11401 = vmatpush.msra.mxu0 %v11370
  %11402 = vmatmul.f32.gmra.mxu0 %v11367
  %v11403 = vpop.f32.mrf.mxu0
  %v11404 = vadd.f32 0.0, %v11403
  %11405 = vdwg.mxu0
  %11406 = vmatpush.msra.mxu0 %v11343
  %11407 = vmatpush.msra.mxu0 %v11342
  %11408 = vmatpush.msra.mxu0 %v11341
  %11409 = vmatpush.msra.mxu0 %v11340
  %11410 = vmatpush.msra.mxu0 %v11339
  %11411 = vmatpush.msra.mxu0 %v11338
  %11412 = vmatpush.msra.mxu0 %v11337
  %11413 = vmatpush.msra.mxu0 %v11336
  %11414 = vmatpush.msra.mxu0 %v11335
  %11415 = vmatpush.msra.mxu0 %v11334
  %11416 = vmatpush.msra.mxu0 %v11333
  %11417 = vmatpush.msra.mxu0 %v11332
  %11418 = vmatpush.msra.mxu0 %v11331
  %11419 = vmatpush.msra.mxu0 %v11330
  %11420 = vmatpush.msra.mxu0 %v11329
  %11421 = vmatpush.msra.mxu0 %v11328
  %11422 = vmatmul.f32.gmra.mxu0 %v11326
  %v11423 = vpop.f32.mrf.mxu0
  %v11424 = vadd.f32 %v11404, %v11423
  %11425 = vdwg.mxu0
  %s11426 = scalar_lea.vmem %s13, 4
  %v11427 = vld [vmem:[%s11426] sm:$0x3]
  %v11429 = vsel %vm11304, %v11427, 0
  %11431 = vmatpush.msra.mxu0 0.0
  %11432 = vmatpush.msra.mxu0 0.0
  %11433 = vmatpush.msra.mxu0 0.0
  %11434 = vmatpush.msra.mxu0 0.0
  %11435 = vmatpush.msra.mxu0 0.0
  %11436 = vmatpush.msra.mxu0 0.0
  %11437 = vmatpush.msra.mxu0 0.0
  %11438 = vmatpush.msra.mxu0 0.0
  %11439 = vmatpush.msra.mxu0 0.0
  %11440 = vmatpush.msra.mxu0 0.0
  %11441 = vmatpush.msra.mxu0 0.0
  %11442 = vmatpush.msra.mxu0 0.0
  %11443 = vmatpush.msra.mxu0 0.0
  %11444 = vmatpush.msra.mxu0 0.0
  %11445 = vmatpush.msra.mxu0 0.0
  %11446 = vmatpush.msra.mxu0 %v11301
  %11447 = vmatmul.f32.gmra.mxu0 %v11429
  %v11448 = vpop.f32.mrf.mxu0
  %v11449 = vadd.f32 0.0, %v11448
  %11450 = vdwg.mxu0
  %s11451 = scalar_lea.vmem %s14, 256
  %v11452 = vld [vmem:[%s11451] sm:$0xff]
  %v11453 = vld [vmem:[%s11451 + $0x8] sm:$0xff]
  %v11454 = vld [vmem:[%s11451 + $0x10] sm:$0xff]
  %v11455 = vld [vmem:[%s11451 + $0x18] sm:$0xff]
  %v11456 = vld [vmem:[%s11451 + $0x20] sm:$0xff]
  %v11457 = vld [vmem:[%s11451 + $0x28] sm:$0xff]
  %v11458 = vld [vmem:[%s11451 + $0x30] sm:$0xff]
  %v11459 = vld [vmem:[%s11451 + $0x38] sm:$0xff]
  %v11460 = vld [vmem:[%s11451 + $0x40] sm:$0xff]
  %v11461 = vld [vmem:[%s11451 + $0x48] sm:$0xff]
  %v11462 = vld [vmem:[%s11451 + $0x50] sm:$0xff]
  %v11463 = vld [vmem:[%s11451 + $0x58] sm:$0xff]
  %v11464 = vld [vmem:[%s11451 + $0x60] sm:$0xff]
  %v11465 = vld [vmem:[%s11451 + $0x68] sm:$0xff]
  %v11466 = vld [vmem:[%s11451 + $0x70] sm:$0xff]
  %v11467 = vld [vmem:[%s11451 + $0x78] sm:$0xff]
  %11468 = vmatpush.msra.mxu0 %v11467
  %11469 = vmatpush.msra.mxu0 %v11466
  %11470 = vmatpush.msra.mxu0 %v11465
  %11471 = vmatpush.msra.mxu0 %v11464
  %11472 = vmatpush.msra.mxu0 %v11463
  %11473 = vmatpush.msra.mxu0 %v11462
  %11474 = vmatpush.msra.mxu0 %v11461
  %11475 = vmatpush.msra.mxu0 %v11460
  %11476 = vmatpush.msra.mxu0 %v11459
  %11477 = vmatpush.msra.mxu0 %v11458
  %11478 = vmatpush.msra.mxu0 %v11457
  %11479 = vmatpush.msra.mxu0 %v11456
  %11480 = vmatpush.msra.mxu0 %v11455
  %11481 = vmatpush.msra.mxu0 %v11454
  %11482 = vmatpush.msra.mxu0 %v11453
  %11483 = vmatpush.msra.mxu0 %v11452
  %11484 = vmatmul.f32.gmra.mxu0 %v11449
  %v11485 = vpop.f32.mrf.mxu0
  %v11486 = vadd.f32 0.0, %v11485
  %11487 = vdwg.mxu0
  %v11488 = vadd.f32 %v11424, %v11486
  %s11489 = scalar_lea.vmem %s13, 6
  %v11490 = vld [vmem:[%s11489] sm:$0x3]
  %v11492 = vsel %vm11304, %v11490, 0
  %11494 = vmatpush.msra.mxu0 0.0
  %11495 = vmatpush.msra.mxu0 0.0
  %11496 = vmatpush.msra.mxu0 0.0
  %11497 = vmatpush.msra.mxu0 0.0
  %11498 = vmatpush.msra.mxu0 0.0
  %11499 = vmatpush.msra.mxu0 0.0
  %11500 = vmatpush.msra.mxu0 0.0
  %11501 = vmatpush.msra.mxu0 0.0
  %11502 = vmatpush.msra.mxu0 0.0
  %11503 = vmatpush.msra.mxu0 0.0
  %11504 = vmatpush.msra.mxu0 0.0
  %11505 = vmatpush.msra.mxu0 0.0
  %11506 = vmatpush.msra.mxu0 0.0
  %11507 = vmatpush.msra.mxu0 0.0
  %11508 = vmatpush.msra.mxu0 0.0
  %11509 = vmatpush.msra.mxu0 %v11301
  %11510 = vmatmul.f32.gmra.mxu0 %v11492
  %v11511 = vpop.f32.mrf.mxu0
  %v11512 = vadd.f32 0.0, %v11511
  %11513 = vdwg.mxu0
  %s11514 = scalar_lea.vmem %s14, 384
  %v11515 = vld [vmem:[%s11514] sm:$0xff]
  %v11516 = vld [vmem:[%s11514 + $0x8] sm:$0xff]
  %v11517 = vld [vmem:[%s11514 + $0x10] sm:$0xff]
  %v11518 = vld [vmem:[%s11514 + $0x18] sm:$0xff]
  %v11519 = vld [vmem:[%s11514 + $0x20] sm:$0xff]
  %v11520 = vld [vmem:[%s11514 + $0x28] sm:$0xff]
  %v11521 = vld [vmem:[%s11514 + $0x30] sm:$0xff]
  %v11522 = vld [vmem:[%s11514 + $0x38] sm:$0xff]
  %v11523 = vld [vmem:[%s11514 + $0x40] sm:$0xff]
  %v11524 = vld [vmem:[%s11514 + $0x48] sm:$0xff]
  %v11525 = vld [vmem:[%s11514 + $0x50] sm:$0xff]
  %v11526 = vld [vmem:[%s11514 + $0x58] sm:$0xff]
  %v11527 = vld [vmem:[%s11514 + $0x60] sm:$0xff]
  %v11528 = vld [vmem:[%s11514 + $0x68] sm:$0xff]
  %v11529 = vld [vmem:[%s11514 + $0x70] sm:$0xff]
  %v11530 = vld [vmem:[%s11514 + $0x78] sm:$0xff]
  %11531 = vmatpush.msra.mxu0 %v11530
  %11532 = vmatpush.msra.mxu0 %v11529
  %11533 = vmatpush.msra.mxu0 %v11528
  %11534 = vmatpush.msra.mxu0 %v11527
  %11535 = vmatpush.msra.mxu0 %v11526
  %11536 = vmatpush.msra.mxu0 %v11525
  %11537 = vmatpush.msra.mxu0 %v11524
  %11538 = vmatpush.msra.mxu0 %v11523
  %11539 = vmatpush.msra.mxu0 %v11522
  %11540 = vmatpush.msra.mxu0 %v11521
  %11541 = vmatpush.msra.mxu0 %v11520
  %11542 = vmatpush.msra.mxu0 %v11519
  %11543 = vmatpush.msra.mxu0 %v11518
  %11544 = vmatpush.msra.mxu0 %v11517
  %11545 = vmatpush.msra.mxu0 %v11516
  %11546 = vmatpush.msra.mxu0 %v11515
  %11547 = vmatmul.f32.gmra.mxu0 %v11512
  %v11548 = vpop.f32.mrf.mxu0
  %v11549 = vadd.f32 0.0, %v11548
  %11550 = vdwg.mxu0
  %v11551 = vadd.f32 %v11488, %v11549
  %v11552 = vld [vmem:[%s15] sm:$0x1]
  %v11554 = vperm.slane %v11552, 0
  %v11556 = vadd.f32 %v11551, %v11554
  %v11557 = vmax.f32 %v11556, 0.0
  %v11558 = vld [vmem:[%s16] sm:$0xff]
  %v11559 = vld [vmem:[%s16 + $0x8] sm:$0xff]
  %v11560 = vld [vmem:[%s16 + $0x10] sm:$0xff]
  %v11561 = vld [vmem:[%s16 + $0x18] sm:$0xff]
  %v11562 = vld [vmem:[%s16 + $0x20] sm:$0xff]
  %v11563 = vld [vmem:[%s16 + $0x28] sm:$0xff]
  %v11564 = vld [vmem:[%s16 + $0x30] sm:$0xff]
  %v11565 = vld [vmem:[%s16 + $0x38] sm:$0xff]
  %v11566 = vld [vmem:[%s16 + $0x40] sm:$0xff]
  %v11567 = vld [vmem:[%s16 + $0x48] sm:$0xff]
  %v11568 = vld [vmem:[%s16 + $0x50] sm:$0xff]
  %v11569 = vld [vmem:[%s16 + $0x58] sm:$0xff]
  %v11570 = vld [vmem:[%s16 + $0x60] sm:$0xff]
  %v11571 = vld [vmem:[%s16 + $0x68] sm:$0xff]
  %v11572 = vld [vmem:[%s16 + $0x70] sm:$0xff]
  %v11573 = vld [vmem:[%s16 + $0x78] sm:$0xff]
  %v11574 = vld [vmem:[%s17] sm:$0x1]
  %v11576 = vperm.slane %v11574, 0
  %11578 = vmatpush.msra.mxu0 %v11573
  %11579 = vmatpush.msra.mxu0 %v11572
  %11580 = vmatpush.msra.mxu0 %v11571
  %11581 = vmatpush.msra.mxu0 %v11570
  %11582 = vmatpush.msra.mxu0 %v11569
  %11583 = vmatpush.msra.mxu0 %v11568
  %11584 = vmatpush.msra.mxu0 %v11567
  %11585 = vmatpush.msra.mxu0 %v11566
  %11586 = vmatpush.msra.mxu0 %v11565
  %11587 = vmatpush.msra.mxu0 %v11564
  %11588 = vmatpush.msra.mxu0 %v11563
  %11589 = vmatpush.msra.mxu0 %v11562
  %11590 = vmatpush.msra.mxu0 %v11561
  %11591 = vmatpush.msra.mxu0 %v11560
  %11592 = vmatpush.msra.mxu0 %v11559
  %11593 = vmatpush.msra.mxu0 %v11558
  %11594 = vmatmul.f32.gmra.mxu0 %v11557
  %v11595 = vpop.f32.mrf.mxu0
  %v11596 = vadd.f32 %v11576, %v11595
  %11597 = vdwg.mxu0
  %v11598 = vmax.f32 %v11596, 0.0
  %v11599 = vsub.f32 0.0, %v11598
  %v11600 = vmul.f32 %v11599, 1.442695
  %v11601 = vpow.pop %v11600
  %v11602 = vadd.f32 %v11601, 1.0
  %v11603 = vrcp.pop %v11602
  %v11604 = vmul.f32 %v11602, %v11603
  %v11605 = vsub.f32 1.0, %v11604
  %v11606 = vmul.f32 %v11603, %v11605
  %v11607 = vadd.f32 %v11603, %v11606
  %vm11608 = vweird.f32 %v11602
  %vm11609 = vweird.f32 %v11603
  %vm11610 = vmor %vm11608, %vm11609
  %v11611 = vsel %vm11610, %v11603, %v11607
  %v11612 = vand.u32 2147483647, %v11602
  %vm11613 = vcmp.eq.f32.partialorder %v11612, 8.507059e+37
  %v11614 = vand.u32 %v11602, 2147483648
  %v11615 = vor.u32 1.1754944e-38, %v11614
  %v11616 = vsel %vm11613, %v11615, %v11611
  %v11617 = vmul.f32 1.0, %v11616
  %11618 = vst [vmem:[%s18] sm:$0x3] %v11617
  // Predicated region
  $region74: #{netz_forward.1} parent=0 // pred_check
    _
  $region75: #{netz_forward.1} parent=0 // pred_check_branch
    %11620 = sbr.rel (0) target = $region77
  $region76: #{netz_forward.1} parent=0 // pred_region
    _
  $region77: #{netz_forward.1} parent=0 // pred_fallthru
    _
  // Predicated region
  $region78: #{netz_forward.1} parent=0 // pred_check
    _
  $region79: #{netz_forward.1} parent=0 // pred_check_branch
    %11622 = sbr.rel (0) target = $region81
  $region80: #{netz_forward.1} parent=0 // pred_region
    _
  $region81: #{netz_forward.1} parent=0 // pred_fallthru
    _

</llo_original>
